<compile_context>
chip_gen: v5e
topology: v5e:2x2
jax: 0.10.0
libtpu: 0.0.40
codegen_flags: <defaults>
</compile_context>

<pallas_src>
import jax
import jax.numpy as jnp
from jax import lax
from jax.experimental import pallas as pl
from jax.experimental.pallas import tpu as pltpu

EPS = 1e-5


def resnet_block_kernel(x_ref, w1_ref, g1_ref, be1_ref, w2_ref, g2_ref, be2_ref,
                        out_ref, pad_ref):
    B, H2, W2, C = pad_ref.shape
    H, W = H2 - 2, W2 - 2
    Cout = w1_ref.shape[-1]
    BHW = B * H * W

    def conv3x3(w_ref):
        """Fused im2col conv: one (BHW, 9C) @ (9C, Cout) bf16 matmul, f32 accumulate."""
        taps = []
        for kh in range(3):
            for kw in range(3):
                tap = pad_ref[:, kh:kh + H, kw:kw + W, :]          # (B,H,W,C) f32
                taps.append(tap.reshape(BHW, C).astype(jnp.bfloat16))
        patches = jnp.concatenate(taps, axis=-1)                   # (BHW, 9C) bf16, lane-aligned
        return jnp.dot(patches, w_ref[...],                        # single MXU contraction
                       preferred_element_type=jnp.float32)         # (BHW, Cout) f32

    def batchnorm(y, g, be, relu):
        """Training-mode BN, one-pass stats (sum & sumsq), folded scale/shift."""
        inv_n = 1.0 / y.shape[0]
        s = jnp.sum(y, axis=0, keepdims=True)
        ss = jnp.sum(y * y, axis=0, keepdims=True)
        mean = s * inv_n
        var = ss * inv_n - mean * mean
        scale = g * lax.rsqrt(var + EPS)          # rsqrt -> EUP (free slot)
        shift = be - mean * scale
        y = y * scale + shift
        return jnp.maximum(y, 0.0) if relu else y

    # ---- zero only the 1-px halo of the shared padded scratch (once) ---------
    zrow = jnp.zeros((B, 1, W2, C), jnp.float32)
    zcol = jnp.zeros((B, H2, 1, C), jnp.float32)
    pad_ref[:, 0:1, :, :] = zrow
    pad_ref[:, H + 1:H + 2, :, :] = zrow
    pad_ref[:, :, 0:1, :] = zcol
    pad_ref[:, :, W + 1:W + 2, :] = zcol

    # ---- conv1 + bn1 + relu ---------------------------------------------------
    # (conv bias omitted: cancelled exactly by the BN batch-mean subtraction)
    pad_ref[:, 1:H + 1, 1:W + 1, :] = x_ref[...]
    y1 = batchnorm(conv3x3(w1_ref), g1_ref[...], be1_ref[...], relu=True)

    # ---- conv2 + bn2 (reuse the same padded scratch; halo still zero) ---------
    pad_ref[:, 1:H + 1, 1:W + 1, :] = y1.reshape(B, H, W, Cout)
    y2 = batchnorm(conv3x3(w2_ref), g2_ref[...], be2_ref[...], relu=False)

    # ---- residual add + relu (identity_downsample is None, Cin == Cout) -------
    res = y2 + x_ref[...].reshape(BHW, C)
    out_ref[...] = jnp.maximum(res, 0.0).reshape(B, H, W, Cout)   # lane-dense (C=128) store


def block_model_forward(x_nchw, params):
    """Wrapper: NCHW in/out (PyTorch convention); kernel runs in NHWC."""
    B, C, H, W = x_nchw.shape
    Cout = params["w1"].shape[-1]
    assert C == Cout, "identity residual requires in_channels == out_channels"
    x = jnp.transpose(x_nchw, (0, 2, 3, 1)).astype(jnp.float32)   # NHWC

    # HWIO (3,3,Cin,Cout) -> (9*Cin, Cout), row order (kh, kw, cin); bf16 MXU operands.
    w1 = params["w1"].reshape(9 * C, Cout).astype(jnp.bfloat16)
    w2 = params["w2"].reshape(9 * Cout, Cout).astype(jnp.bfloat16)
    vec = lambda v: v.reshape(1, -1).astype(jnp.float32)

    args = (x, w1, vec(params["g1"]), vec(params["be1"]),
            w2, vec(params["g2"]), vec(params["be2"]))

    vmem = pl.BlockSpec(memory_space=pltpu.MemorySpace.VMEM)
    out_nhwc = pl.pallas_call(
        resnet_block_kernel,
        out_shape=jax.ShapeDtypeStruct((B, H, W, Cout), jnp.float32),
        in_specs=[vmem] * len(args),
        out_specs=vmem,
        scratch_shapes=[pltpu.VMEM((B, H + 2, W + 2, C), jnp.float32)],  # shared pad buffer
        compiler_params=pltpu.CompilerParams(vmem_limit_bytes=32 * 1024 * 1024),
    )(*args)
    return jnp.transpose(out_nhwc, (0, 3, 1, 2))  # back to NCHW


def reference_forward(x_nchw, params, conv_dtype=jnp.float32):
    """Pure-JAX reference of the module forward.

    conv_dtype=float32  -> full-f32 (HIGHEST) convs: the exact PyTorch-style semantics.
    conv_dtype=bfloat16 -> convs with bf16 inputs / f32 accumulation: same numerics as
                           the kernel's single-pass MXU path (tight comparison).
    """
    x = jnp.transpose(x_nchw, (0, 2, 3, 1)).astype(jnp.float32)
    prec = (lax.Precision.HIGHEST if conv_dtype == jnp.float32
            else lax.Precision.DEFAULT)

    def conv(z, w, b):
        y = lax.conv_general_dilated(
            z.astype(conv_dtype), w.astype(conv_dtype),
            window_strides=(1, 1), padding="SAME",
            dimension_numbers=("NHWC", "HWIO", "NHWC"),
            preferred_element_type=jnp.float32, precision=prec)
        return y + b.reshape(1, 1, 1, -1)

    def bn(z, g, be):
        m = jnp.mean(z, axis=(0, 1, 2), keepdims=True)
        v = jnp.mean((z - m) ** 2, axis=(0, 1, 2), keepdims=True)
        return (z - m) * lax.rsqrt(v + EPS) * g.reshape(1, 1, 1, -1) + be.reshape(1, 1, 1, -1)

    y = jnp.maximum(bn(conv(x, params["w1"], params["b1"]),
                       params["g1"], params["be1"]), 0.0)
    y = bn(conv(y, params["w2"], params["b2"]), params["g2"], params["be2"])
    y = jnp.maximum(y + x, 0.0)
    return jnp.transpose(y, (0, 3, 1, 2))


if __name__ == "__main__":
    key = jax.random.PRNGKey(0)
    # Realistic ResNet-18/34 block channel count (lane-dense C=128), small batch/spatial.
    B, C, H, W = 2, 128, 16, 16
    ks = jax.random.split(key, 9)
    wscale = 1.0 / (3.0 * (C ** 0.5))   # ~1/sqrt(fan_in) = 1/sqrt(9*C)

    params = dict(
        w1=wscale * jax.random.normal(ks[0], (3, 3, C, C), jnp.float32),
        b1=0.05 * jax.random.normal(ks[1], (C,), jnp.float32),
        g1=1.0 + 0.1 * jax.random.normal(ks[2], (C,), jnp.float32),
        be1=0.05 * jax.random.normal(ks[3], (C,), jnp.float32),
        w2=wscale * jax.random.normal(ks[4], (3, 3, C, C), jnp.float32),
        b2=0.05 * jax.random.normal(ks[5], (C,), jnp.float32),
        g2=1.0 + 0.1 * jax.random.normal(ks[6], (C,), jnp.float32),
        be2=0.05 * jax.random.normal(ks[7], (C,), jnp.float32),
    )
    x = jax.random.normal(ks[8], (B, C, H, W), jnp.float32)

    out = jax.block_until_ready(block_model_forward(x, params))
    assert out.shape == (B, C, H, W), out.shape

    # Tight numerics check: reference using the same bf16-input / f32-accumulate convs.
    ref_bf16 = jax.block_until_ready(reference_forward(x, params, conv_dtype=jnp.bfloat16))
    assert jnp.allclose(out, ref_bf16, atol=2e-3, rtol=2e-3), (
        float(jnp.max(jnp.abs(out - ref_bf16))))

    # Semantics check vs. the full-f32 PyTorch-style forward (looser: bf16 MXU inputs).
    ref_f32 = jax.block_until_ready(reference_forward(x, params, conv_dtype=jnp.float32))
    assert jnp.allclose(out, ref_f32, atol=7e-2, rtol=7e-2), (
        float(jnp.max(jnp.abs(out - ref_f32))))

    print("KERNEL_OK")
</pallas_src>

<mosaic_0001>
module attributes {stable_mosaic.version = 11 : i64} {
  func.func @resnet_block_kernel(%arg0: memref<2x16x16x128xf32, #tpu.memory_space<vmem>>, %arg1: memref<1152x128xbf16, #tpu.memory_space<vmem>>, %arg2: memref<1x128xf32, #tpu.memory_space<vmem>>, %arg3: memref<1x128xf32, #tpu.memory_space<vmem>>, %arg4: memref<1152x128xbf16, #tpu.memory_space<vmem>>, %arg5: memref<1x128xf32, #tpu.memory_space<vmem>>, %arg6: memref<1x128xf32, #tpu.memory_space<vmem>>, %arg7: memref<2x16x16x128xf32, #tpu.memory_space<vmem>>, %arg8: memref<2x18x18x128xf32, #tpu.memory_space<vmem>>) attributes {dimension_semantics = [], scalar_prefetch = 0 : i64, scratch_operands = 1 : i64, tpu.core_type = #tpu.core_type<tc>} {
    %cst = arith.constant 0.000000e+00 : f32
    %0 = vector.broadcast %cst : f32 to vector<2x1x18x128xf32>
    %cst_0 = arith.constant 0.000000e+00 : f32
    %1 = vector.broadcast %cst_0 : f32 to vector<2x18x1x128xf32>
    %c0 = arith.constant 0 : index
    %c0_1 = arith.constant 0 : index
    %c0_2 = arith.constant 0 : index
    %c0_3 = arith.constant 0 : index
    %2 = vector.load %arg8[%c0, %c0_1, %c0_2, %c0_3] : memref<2x18x18x128xf32, #tpu.memory_space<vmem>>, vector<2x1x18x128xf32>
    tpu.vector_store %arg8[%c0, %c0_1, %c0_2, %c0_3], %0 {strides = array<i32>} : memref<2x18x18x128xf32, #tpu.memory_space<vmem>>, vector<2x1x18x128xf32>,
    %c0_4 = arith.constant 0 : index
    %c17 = arith.constant 17 : index
    %c0_5 = arith.constant 0 : index
    %c0_6 = arith.constant 0 : index
    %3 = vector.load %arg8[%c0_4, %c17, %c0_5, %c0_6] : memref<2x18x18x128xf32, #tpu.memory_space<vmem>>, vector<2x1x18x128xf32>
    tpu.vector_store %arg8[%c0_4, %c17, %c0_5, %c0_6], %0 {strides = array<i32>} : memref<2x18x18x128xf32, #tpu.memory_space<vmem>>, vector<2x1x18x128xf32>,
    %c0_7 = arith.constant 0 : index
    %c0_8 = arith.constant 0 : index
    %c0_9 = arith.constant 0 : index
    %c0_10 = arith.constant 0 : index
    %4 = vector.load %arg8[%c0_7, %c0_8, %c0_9, %c0_10] : memref<2x18x18x128xf32, #tpu.memory_space<vmem>>, vector<2x18x1x128xf32>
    tpu.vector_store %arg8[%c0_7, %c0_8, %c0_9, %c0_10], %1 {strides = array<i32>} : memref<2x18x18x128xf32, #tpu.memory_space<vmem>>, vector<2x18x1x128xf32>,
    %c0_11 = arith.constant 0 : index
    %c0_12 = arith.constant 0 : index
    %c17_13 = arith.constant 17 : index
    %c0_14 = arith.constant 0 : index
    %5 = vector.load %arg8[%c0_11, %c0_12, %c17_13, %c0_14] : memref<2x18x18x128xf32, #tpu.memory_space<vmem>>, vector<2x18x1x128xf32>
    tpu.vector_store %arg8[%c0_11, %c0_12, %c17_13, %c0_14], %1 {strides = array<i32>} : memref<2x18x18x128xf32, #tpu.memory_space<vmem>>, vector<2x18x1x128xf32>,
    %c0_15 = arith.constant 0 : index
    %c0_16 = arith.constant 0 : index
    %c0_17 = arith.constant 0 : index
    %c0_18 = arith.constant 0 : index
    %6 = vector.load %arg0[%c0_15, %c0_16, %c0_17, %c0_18] : memref<2x16x16x128xf32, #tpu.memory_space<vmem>>, vector<2x16x16x128xf32>
    %c0_19 = arith.constant 0 : index
    %c1 = arith.constant 1 : index
    %c1_20 = arith.constant 1 : index
    %c0_21 = arith.constant 0 : index
    %7 = vector.load %arg8[%c0_19, %c1, %c1_20, %c0_21] : memref<2x18x18x128xf32, #tpu.memory_space<vmem>>, vector<2x16x16x128xf32>
    tpu.vector_store %arg8[%c0_19, %c1, %c1_20, %c0_21], %6 {strides = array<i32>} : memref<2x18x18x128xf32, #tpu.memory_space<vmem>>, vector<2x16x16x128xf32>,
    %c0_22 = arith.constant 0 : index
    %c0_23 = arith.constant 0 : index
    %c0_24 = arith.constant 0 : index
    %c0_25 = arith.constant 0 : index
    %8 = vector.load %arg8[%c0_22, %c0_23, %c0_24, %c0_25] : memref<2x18x18x128xf32, #tpu.memory_space<vmem>>, vector<2x16x16x128xf32>
    %9 = vector.shape_cast %8 : vector<2x16x16x128xf32> to vector<512x128xf32>
    %10 = arith.truncf %9 : vector<512x128xf32> to vector<512x128xbf16>
    %c0_26 = arith.constant 0 : index
    %c0_27 = arith.constant 0 : index
    %c1_28 = arith.constant 1 : index
    %c0_29 = arith.constant 0 : index
    %11 = vector.load %arg8[%c0_26, %c0_27, %c1_28, %c0_29] : memref<2x18x18x128xf32, #tpu.memory_space<vmem>>, vector<2x16x16x128xf32>
    %12 = vector.shape_cast %11 : vector<2x16x16x128xf32> to vector<512x128xf32>
    %13 = arith.truncf %12 : vector<512x128xf32> to vector<512x128xbf16>
    %c0_30 = arith.constant 0 : index
    %c0_31 = arith.constant 0 : index
    %c2 = arith.constant 2 : index
    %c0_32 = arith.constant 0 : index
    %14 = vector.load %arg8[%c0_30, %c0_31, %c2, %c0_32] : memref<2x18x18x128xf32, #tpu.memory_space<vmem>>, vector<2x16x16x128xf32>
    %15 = vector.shape_cast %14 : vector<2x16x16x128xf32> to vector<512x128xf32>
    %16 = arith.truncf %15 : vector<512x128xf32> to vector<512x128xbf16>
    %c0_33 = arith.constant 0 : index
    %c1_34 = arith.constant 1 : index
    %c0_35 = arith.constant 0 : index
    %c0_36 = arith.constant 0 : index
    %17 = vector.load %arg8[%c0_33, %c1_34, %c0_35, %c0_36] : memref<2x18x18x128xf32, #tpu.memory_space<vmem>>, vector<2x16x16x128xf32>
    %18 = vector.shape_cast %17 : vector<2x16x16x128xf32> to vector<512x128xf32>
    %19 = arith.truncf %18 : vector<512x128xf32> to vector<512x128xbf16>
    %c0_37 = arith.constant 0 : index
    %c1_38 = arith.constant 1 : index
    %c1_39 = arith.constant 1 : index
    %c0_40 = arith.constant 0 : index
    %20 = vector.load %arg8[%c0_37, %c1_38, %c1_39, %c0_40] : memref<2x18x18x128xf32, #tpu.memory_space<vmem>>, vector<2x16x16x128xf32>
    %21 = vector.shape_cast %20 : vector<2x16x16x128xf32> to vector<512x128xf32>
    %22 = arith.truncf %21 : vector<512x128xf32> to vector<512x128xbf16>
    %c0_41 = arith.constant 0 : index
    %c1_42 = arith.constant 1 : index
    %c2_43 = arith.constant 2 : index
    %c0_44 = arith.constant 0 : index
    %23 = vector.load %arg8[%c0_41, %c1_42, %c2_43, %c0_44] : memref<2x18x18x128xf32, #tpu.memory_space<vmem>>, vector<2x16x16x128xf32>
    %24 = vector.shape_cast %23 : vector<2x16x16x128xf32> to vector<512x128xf32>
    %25 = arith.truncf %24 : vector<512x128xf32> to vector<512x128xbf16>
    %c0_45 = arith.constant 0 : index
    %c2_46 = arith.constant 2 : index
    %c0_47 = arith.constant 0 : index
    %c0_48 = arith.constant 0 : index
    %26 = vector.load %arg8[%c0_45, %c2_46, %c0_47, %c0_48] : memref<2x18x18x128xf32, #tpu.memory_space<vmem>>, vector<2x16x16x128xf32>
    %27 = vector.shape_cast %26 : vector<2x16x16x128xf32> to vector<512x128xf32>
    %28 = arith.truncf %27 : vector<512x128xf32> to vector<512x128xbf16>
    %c0_49 = arith.constant 0 : index
    %c2_50 = arith.constant 2 : index
    %c1_51 = arith.constant 1 : index
    %c0_52 = arith.constant 0 : index
    %29 = vector.load %arg8[%c0_49, %c2_50, %c1_51, %c0_52] : memref<2x18x18x128xf32, #tpu.memory_space<vmem>>, vector<2x16x16x128xf32>
    %30 = vector.shape_cast %29 : vector<2x16x16x128xf32> to vector<512x128xf32>
    %31 = arith.truncf %30 : vector<512x128xf32> to vector<512x128xbf16>
    %c0_53 = arith.constant 0 : index
    %c2_54 = arith.constant 2 : index
    %c2_55 = arith.constant 2 : index
    %c0_56 = arith.constant 0 : index
    %32 = vector.load %arg8[%c0_53, %c2_54, %c2_55, %c0_56] : memref<2x18x18x128xf32, #tpu.memory_space<vmem>>, vector<2x16x16x128xf32>
    %33 = vector.shape_cast %32 : vector<2x16x16x128xf32> to vector<512x128xf32>
    %34 = arith.truncf %33 : vector<512x128xf32> to vector<512x128xbf16>
    %35 = tpu.concatenate %10, %13, %16, %19, %22, %25, %28, %31, %34 in 1 : vector<512x128xbf16>, vector<512x128xbf16>, vector<512x128xbf16>, vector<512x128xbf16>, vector<512x128xbf16>, vector<512x128xbf16>, vector<512x128xbf16>, vector<512x128xbf16>, vector<512x128xbf16> -> vector<512x1152xbf16>
    %c0_57 = arith.constant 0 : index
    %c0_58 = arith.constant 0 : index
    %36 = vector.load %arg1[%c0_57, %c0_58] : memref<1152x128xbf16, #tpu.memory_space<vmem>>, vector<1152x128xbf16>
    %cst_59 = arith.constant dense<0.000000e+00> : vector<512x128xf32>
    %37 = tpu.matmul %35, %36, %cst_59 {dimension_numbers = #tpu.dot_dimension_numbers<[1], [0], [0], [1], [0, 0, 1, 1], [], []>} : vector<512x1152xbf16>, vector<1152x128xbf16>, vector<512x128xf32> -> vector<512x128xf32>
    %c0_60 = arith.constant 0 : index
    %c0_61 = arith.constant 0 : index
    %38 = vector.load %arg2[%c0_60, %c0_61] : memref<1x128xf32, #tpu.memory_space<vmem>>, vector<1x128xf32>
    %c0_62 = arith.constant 0 : index
    %c0_63 = arith.constant 0 : index
    %39 = vector.load %arg3[%c0_62, %c0_63] : memref<1x128xf32, #tpu.memory_space<vmem>>, vector<1x128xf32>
    %cst_64 = arith.constant dense<0.000000e+00> : vector<128xf32>
    %40 = vector.multi_reduction <add>, %37, %cst_64 [0] : vector<512x128xf32> to vector<128xf32>
    %41 = vector.shape_cast %40 : vector<128xf32> to vector<1x128xf32>
    %42 = arith.mulf %37, %37 : vector<512x128xf32>
    %cst_65 = arith.constant dense<0.000000e+00> : vector<128xf32>
    %43 = vector.multi_reduction <add>, %42, %cst_65 [0] : vector<512x128xf32> to vector<128xf32>
    %44 = vector.shape_cast %43 : vector<128xf32> to vector<1x128xf32>
    %cst_66 = arith.constant 0.001953125 : f32
    %45 = vector.broadcast %cst_66 : f32 to vector<1x128xf32>
    %46 = arith.mulf %41, %45 : vector<1x128xf32>
    %cst_67 = arith.constant 0.001953125 : f32
    %47 = vector.broadcast %cst_67 : f32 to vector<1x128xf32>
    %48 = arith.mulf %44, %47 : vector<1x128xf32>
    %49 = arith.mulf %46, %46 : vector<1x128xf32>
    %50 = arith.subf %48, %49 : vector<1x128xf32>
    %cst_68 = arith.constant 9.99999974E-6 : f32
    %51 = vector.broadcast %cst_68 : f32 to vector<1x128xf32>
    %52 = arith.addf %50, %51 : vector<1x128xf32>
    %53 = math.rsqrt %52 : vector<1x128xf32>
    %54 = arith.mulf %38, %53 : vector<1x128xf32>
    %55 = arith.mulf %46, %54 : vector<1x128xf32>
    %56 = arith.subf %39, %55 : vector<1x128xf32>
    %57 = vector.broadcast %54 : vector<1x128xf32> to vector<512x128xf32>
    %58 = arith.mulf %37, %57 : vector<512x128xf32>
    %59 = vector.broadcast %56 : vector<1x128xf32> to vector<512x128xf32>
    %60 = arith.addf %58, %59 : vector<512x128xf32>
    %cst_69 = arith.constant 0.000000e+00 : f32
    %61 = vector.broadcast %cst_69 : f32 to vector<512x128xf32>
    %62 = arith.maximumf %60, %61 : vector<512x128xf32>
    %63 = vector.shape_cast %62 : vector<512x128xf32> to vector<2x16x16x128xf32>
    %c0_70 = arith.constant 0 : index
    %c1_71 = arith.constant 1 : index
    %c1_72 = arith.constant 1 : index
    %c0_73 = arith.constant 0 : index
    %64 = vector.load %arg8[%c0_70, %c1_71, %c1_72, %c0_73] : memref<2x18x18x128xf32, #tpu.memory_space<vmem>>, vector<2x16x16x128xf32>
    tpu.vector_store %arg8[%c0_70, %c1_71, %c1_72, %c0_73], %63 {strides = array<i32>} : memref<2x18x18x128xf32, #tpu.memory_space<vmem>>, vector<2x16x16x128xf32>,
    %c0_74 = arith.constant 0 : index
    %c0_75 = arith.constant 0 : index
    %c0_76 = arith.constant 0 : index
    %c0_77 = arith.constant 0 : index
    %65 = vector.load %arg8[%c0_74, %c0_75, %c0_76, %c0_77] : memref<2x18x18x128xf32, #tpu.memory_space<vmem>>, vector<2x16x16x128xf32>
    %66 = vector.shape_cast %65 : vector<2x16x16x128xf32> to vector<512x128xf32>
    %67 = arith.truncf %66 : vector<512x128xf32> to vector<512x128xbf16>
    %c0_78 = arith.constant 0 : index
    %c0_79 = arith.constant 0 : index
    %c1_80 = arith.constant 1 : index
    %c0_81 = arith.constant 0 : index
    %68 = vector.load %arg8[%c0_78, %c0_79, %c1_80, %c0_81] : memref<2x18x18x128xf32, #tpu.memory_space<vmem>>, vector<2x16x16x128xf32>
    %69 = vector.shape_cast %68 : vector<2x16x16x128xf32> to vector<512x128xf32>
    %70 = arith.truncf %69 : vector<512x128xf32> to vector<512x128xbf16>
    %c0_82 = arith.constant 0 : index
    %c0_83 = arith.constant 0 : index
    %c2_84 = arith.constant 2 : index
    %c0_85 = arith.constant 0 : index
    %71 = vector.load %arg8[%c0_82, %c0_83, %c2_84, %c0_85] : memref<2x18x18x128xf32, #tpu.memory_space<vmem>>, vector<2x16x16x128xf32>
    %72 = vector.shape_cast %71 : vector<2x16x16x128xf32> to vector<512x128xf32>
    %73 = arith.truncf %72 : vector<512x128xf32> to vector<512x128xbf16>
    %c0_86 = arith.constant 0 : index
    %c1_87 = arith.constant 1 : index
    %c0_88 = arith.constant 0 : index
    %c0_89 = arith.constant 0 : index
    %74 = vector.load %arg8[%c0_86, %c1_87, %c0_88, %c0_89] : memref<2x18x18x128xf32, #tpu.memory_space<vmem>>, vector<2x16x16x128xf32>
    %75 = vector.shape_cast %74 : vector<2x16x16x128xf32> to vector<512x128xf32>
    %76 = arith.truncf %75 : vector<512x128xf32> to vector<512x128xbf16>
    %c0_90 = arith.constant 0 : index
    %c1_91 = arith.constant 1 : index
    %c1_92 = arith.constant 1 : index
    %c0_93 = arith.constant 0 : index
    %77 = vector.load %arg8[%c0_90, %c1_91, %c1_92, %c0_93] : memref<2x18x18x128xf32, #tpu.memory_space<vmem>>, vector<2x16x16x128xf32>
    %78 = vector.shape_cast %77 : vector<2x16x16x128xf32> to vector<512x128xf32>
    %79 = arith.truncf %78 : vector<512x128xf32> to vector<512x128xbf16>
    %c0_94 = arith.constant 0 : index
    %c1_95 = arith.constant 1 : index
    %c2_96 = arith.constant 2 : index
    %c0_97 = arith.constant 0 : index
    %80 = vector.load %arg8[%c0_94, %c1_95, %c2_96, %c0_97] : memref<2x18x18x128xf32, #tpu.memory_space<vmem>>, vector<2x16x16x128xf32>
    %81 = vector.shape_cast %80 : vector<2x16x16x128xf32> to vector<512x128xf32>
    %82 = arith.truncf %81 : vector<512x128xf32> to vector<512x128xbf16>
    %c0_98 = arith.constant 0 : index
    %c2_99 = arith.constant 2 : index
    %c0_100 = arith.constant 0 : index
    %c0_101 = arith.constant 0 : index
    %83 = vector.load %arg8[%c0_98, %c2_99, %c0_100, %c0_101] : memref<2x18x18x128xf32, #tpu.memory_space<vmem>>, vector<2x16x16x128xf32>
    %84 = vector.shape_cast %83 : vector<2x16x16x128xf32> to vector<512x128xf32>
    %85 = arith.truncf %84 : vector<512x128xf32> to vector<512x128xbf16>
    %c0_102 = arith.constant 0 : index
    %c2_103 = arith.constant 2 : index
    %c1_104 = arith.constant 1 : index
    %c0_105 = arith.constant 0 : index
    %86 = vector.load %arg8[%c0_102, %c2_103, %c1_104, %c0_105] : memref<2x18x18x128xf32, #tpu.memory_space<vmem>>, vector<2x16x16x128xf32>
    %87 = vector.shape_cast %86 : vector<2x16x16x128xf32> to vector<512x128xf32>
    %88 = arith.truncf %87 : vector<512x128xf32> to vector<512x128xbf16>
    %c0_106 = arith.constant 0 : index
    %c2_107 = arith.constant 2 : index
    %c2_108 = arith.constant 2 : index
    %c0_109 = arith.constant 0 : index
    %89 = vector.load %arg8[%c0_106, %c2_107, %c2_108, %c0_109] : memref<2x18x18x128xf32, #tpu.memory_space<vmem>>, vector<2x16x16x128xf32>
    %90 = vector.shape_cast %89 : vector<2x16x16x128xf32> to vector<512x128xf32>
    %91 = arith.truncf %90 : vector<512x128xf32> to vector<512x128xbf16>
    %92 = tpu.concatenate %67, %70, %73, %76, %79, %82, %85, %88, %91 in 1 : vector<512x128xbf16>, vector<512x128xbf16>, vector<512x128xbf16>, vector<512x128xbf16>, vector<512x128xbf16>, vector<512x128xbf16>, vector<512x128xbf16>, vector<512x128xbf16>, vector<512x128xbf16> -> vector<512x1152xbf16>
    %c0_110 = arith.constant 0 : index
    %c0_111 = arith.constant 0 : index
    %93 = vector.load %arg4[%c0_110, %c0_111] : memref<1152x128xbf16, #tpu.memory_space<vmem>>, vector<1152x128xbf16>
    %cst_112 = arith.constant dense<0.000000e+00> : vector<512x128xf32>
    %94 = tpu.matmul %92, %93, %cst_112 {dimension_numbers = #tpu.dot_dimension_numbers<[1], [0], [0], [1], [0, 0, 1, 1], [], []>} : vector<512x1152xbf16>, vector<1152x128xbf16>, vector<512x128xf32> -> vector<512x128xf32>
    %c0_113 = arith.constant 0 : index
    %c0_114 = arith.constant 0 : index
    %95 = vector.load %arg5[%c0_113, %c0_114] : memref<1x128xf32, #tpu.memory_space<vmem>>, vector<1x128xf32>
    %c0_115 = arith.constant 0 : index
    %c0_116 = arith.constant 0 : index
    %96 = vector.load %arg6[%c0_115, %c0_116] : memref<1x128xf32, #tpu.memory_space<vmem>>, vector<1x128xf32>
    %cst_117 = arith.constant dense<0.000000e+00> : vector<128xf32>
    %97 = vector.multi_reduction <add>, %94, %cst_117 [0] : vector<512x128xf32> to vector<128xf32>
    %98 = vector.shape_cast %97 : vector<128xf32> to vector<1x128xf32>
    %99 = arith.mulf %94, %94 : vector<512x128xf32>
    %cst_118 = arith.constant dense<0.000000e+00> : vector<128xf32>
    %100 = vector.multi_reduction <add>, %99, %cst_118 [0] : vector<512x128xf32> to vector<128xf32>
    %101 = vector.shape_cast %100 : vector<128xf32> to vector<1x128xf32>
    %cst_119 = arith.constant 0.001953125 : f32
    %102 = vector.broadcast %cst_119 : f32 to vector<1x128xf32>
    %103 = arith.mulf %98, %102 : vector<1x128xf32>
    %cst_120 = arith.constant 0.001953125 : f32
    %104 = vector.broadcast %cst_120 : f32 to vector<1x128xf32>
    %105 = arith.mulf %101, %104 : vector<1x128xf32>
    %106 = arith.mulf %103, %103 : vector<1x128xf32>
    %107 = arith.subf %105, %106 : vector<1x128xf32>
    %cst_121 = arith.constant 9.99999974E-6 : f32
    %108 = vector.broadcast %cst_121 : f32 to vector<1x128xf32>
    %109 = arith.addf %107, %108 : vector<1x128xf32>
    %110 = math.rsqrt %109 : vector<1x128xf32>
    %111 = arith.mulf %95, %110 : vector<1x128xf32>
    %112 = arith.mulf %103, %111 : vector<1x128xf32>
    %113 = arith.subf %96, %112 : vector<1x128xf32>
    %114 = vector.broadcast %111 : vector<1x128xf32> to vector<512x128xf32>
    %115 = arith.mulf %94, %114 : vector<512x128xf32>
    %116 = vector.broadcast %113 : vector<1x128xf32> to vector<512x128xf32>
    %117 = arith.addf %115, %116 : vector<512x128xf32>
    %c0_122 = arith.constant 0 : index
    %c0_123 = arith.constant 0 : index
    %c0_124 = arith.constant 0 : index
    %c0_125 = arith.constant 0 : index
    %118 = vector.load %arg0[%c0_122, %c0_123, %c0_124, %c0_125] : memref<2x16x16x128xf32, #tpu.memory_space<vmem>>, vector<2x16x16x128xf32>
    %119 = vector.shape_cast %118 : vector<2x16x16x128xf32> to vector<512x128xf32>
    %120 = arith.addf %117, %119 : vector<512x128xf32>
    %cst_126 = arith.constant 0.000000e+00 : f32
    %121 = vector.broadcast %cst_126 : f32 to vector<512x128xf32>
    %122 = arith.maximumf %120, %121 : vector<512x128xf32>
    %123 = vector.shape_cast %122 : vector<512x128xf32> to vector<2x16x16x128xf32>
    %c0_127 = arith.constant 0 : index
    %c0_128 = arith.constant 0 : index
    %c0_129 = arith.constant 0 : index
    %c0_130 = arith.constant 0 : index
    %124 = vector.load %arg7[%c0_127, %c0_128, %c0_129, %c0_130] : memref<2x16x16x128xf32, #tpu.memory_space<vmem>>, vector<2x16x16x128xf32>
    tpu.vector_store %arg7[%c0_127, %c0_128, %c0_129, %c0_130], %123 {strides = array<i32>} : memref<2x16x16x128xf32, #tpu.memory_space<vmem>>, vector<2x16x16x128xf32>,
    return
  }
}

</mosaic_0001>

<llo_original>
// kernel: tpu_custom_call.1
$region0: #{tpu_custom_call.1}
  #allocation0 [shape = 'u32[]', space=smem, size = 0x4, offset = 0x4, fixed_abs, tag = 'smem constant byte address 0x4 - core index']
  #allocation1 [shape = 'u32[72,128]{1,0:T(1,128)}', space=vmem, size = 0x9000, scoped, tag = 'internal scratch']
  #allocation2 [shape = 'f32[2,18,18,128]{3,2,1,0:T(8,128)}', space=vmem, size = 0x6c000, scoped, tag = 'scratch operand']
  %s0 = inlined_call_operand.hbm [shape: f32[2,16,16,128], index: 0, kind: input, shape index: {}]
  %s1 = inlined_call_operand.hbm [shape: bf16[1152,128], index: 1, kind: input, shape index: {}]
  %s2 = inlined_call_operand.vmem [shape: f32[1,128], index: 2, kind: input, shape index: {}]
  %s3 = inlined_call_operand.vmem [shape: f32[1,128], index: 3, kind: input, shape index: {}]
  %s4 = inlined_call_operand.hbm [shape: bf16[1152,128], index: 4, kind: input, shape index: {}]
  %s5 = inlined_call_operand.vmem [shape: f32[1,128], index: 5, kind: input, shape index: {}]
  %s6 = inlined_call_operand.vmem [shape: f32[1,128], index: 6, kind: input, shape index: {}]
  %s7 = inlined_call_operand.hbm [shape: f32[2,16,16,128], index: 7, kind: output, shape index: {}]
  %s8 = sld [smem:[#allocation0]]
  $region50: #{tpu_custom_call.1} parent=0
    _
  %s10 = ssub.s32 1, %s8
  %s11 = scalar_select 0, %s10, %s8
  $region1: #{tpu_custom_call.1} parent=0
    #allocation3 [shape = 'u8[262144]{0}', space=vmem, size = 0x40000, scoped, tag = 'input window, operand 0, single buffered']
    #allocation4 [shape = 's32[1]{0}', space=sflag, size = 0x4, scoped, tag = 'scoped memory for tpu_custom_call.1']
    #allocation5 [shape = 's32[1]{0}', space=sflag, size = 0x4, scoped, tag = 'scoped memory for tpu_custom_call.1']
    #allocation6 [shape = 'u8[294912]{0}', space=vmem, size = 0x48000, scoped, tag = 'input window, operand 1, single buffered']
    #allocation7 [shape = 's32[1]{0}', space=sflag, size = 0x4, scoped, tag = 'scoped memory for tpu_custom_call.1']
    #allocation8 [shape = 'u8[294912]{0}', space=vmem, size = 0x48000, scoped, tag = 'input window, operand 4, single buffered']
    #allocation9 [shape = 'u8[262144]{0}', space=vmem, size = 0x40000, scoped, tag = 'output window, operand 0, single buffered']
    %12 = vsyncpa [#allocation4], 0
    %13 = vsyncpa [#allocation7], 0
    %14 = vsyncpa [#allocation5], 0
    // Predicated region
    $region2: #{tpu_custom_call.1} parent=1 // pred_check
      _
    $region3: #{tpu_custom_call.1} parent=1 // pred_check_branch
      %16 = sbr.rel (0) target = $region5
    $region4: #{tpu_custom_call.1} parent=1 // pred_region
      %18 = vsyncadd [#allocation4], 0
      %s19 = sshll.u32 %s0, 4
      %s20 = int_to_ptr.hbm [resolvable:$true] %s19
      %s21 = sshll.u32 [#allocation3], 4
      %s22 = int_to_ptr.vmem [resolvable:$true] %s21
      %27 = dma.hbm_to_vmem [thread:$0]  %s20, 8192, %s22, [#allocation4], 128, 128, 8
    $region5: #{tpu_custom_call.1} parent=1 // pred_fallthru
      _
    // Predicated region
    $region6: #{tpu_custom_call.1} parent=1 // pred_check
      _
    $region7: #{tpu_custom_call.1} parent=1 // pred_check_branch
      %29 = sbr.rel (0) target = $region9
    $region8: #{tpu_custom_call.1} parent=1 // pred_region
      %31 = vsyncadd [#allocation7], 0
      %s32 = sshll.u32 %s1, 4
      %s33 = int_to_ptr.hbm [resolvable:$true] %s32
      %s34 = sshll.u32 [#allocation6], 4
      %s35 = int_to_ptr.vmem [resolvable:$true] %s34
      %40 = dma.hbm_to_vmem [thread:$0]  %s33, 9216, %s35, [#allocation7], 64, 64, 4
    $region9: #{tpu_custom_call.1} parent=1 // pred_fallthru
      _
    // Predicated region
    $region10: #{tpu_custom_call.1} parent=1 // pred_check
      _
    $region11: #{tpu_custom_call.1} parent=1 // pred_check_branch
      %42 = sbr.rel (0) target = $region13
    $region12: #{tpu_custom_call.1} parent=1 // pred_region
      _
    $region13: #{tpu_custom_call.1} parent=1 // pred_fallthru
      _
    // Predicated region
    $region14: #{tpu_custom_call.1} parent=1 // pred_check
      _
    $region15: #{tpu_custom_call.1} parent=1 // pred_check_branch
      %44 = sbr.rel (0) target = $region17
    $region16: #{tpu_custom_call.1} parent=1 // pred_region
      _
    $region17: #{tpu_custom_call.1} parent=1 // pred_fallthru
      _
    // Predicated region
    $region18: #{tpu_custom_call.1} parent=1 // pred_check
      _
    $region19: #{tpu_custom_call.1} parent=1 // pred_check_branch
      %46 = sbr.rel (0) target = $region21
    $region20: #{tpu_custom_call.1} parent=1 // pred_region
      %48 = vsyncadd [#allocation7], 0
      %s49 = sshll.u32 %s4, 4
      %s50 = int_to_ptr.hbm [resolvable:$true] %s49
      %s51 = sshll.u32 [#allocation8], 4
      %s52 = int_to_ptr.vmem [resolvable:$true] %s51
      %57 = dma.hbm_to_vmem [thread:$0]  %s50, 9216, %s52, [#allocation7], 64, 64, 4
    $region21: #{tpu_custom_call.1} parent=1 // pred_fallthru
      _
    // Predicated region
    $region22: #{tpu_custom_call.1} parent=1 // pred_check
      _
    $region23: #{tpu_custom_call.1} parent=1 // pred_check_branch
      %59 = sbr.rel (0) target = $region25
    $region24: #{tpu_custom_call.1} parent=1 // pred_region
      _
    $region25: #{tpu_custom_call.1} parent=1 // pred_fallthru
      _
    // Predicated region
    $region26: #{tpu_custom_call.1} parent=1 // pred_check
      _
    $region27: #{tpu_custom_call.1} parent=1 // pred_check_branch
      %61 = sbr.rel (0) target = $region29
    $region28: #{tpu_custom_call.1} parent=1 // pred_region
      _
    $region29: #{tpu_custom_call.1} parent=1 // pred_fallthru
      _
    // Predicated region
    $region30: #{tpu_custom_call.1} parent=1 // pred_check
      _
    $region31: #{tpu_custom_call.1} parent=1 // pred_check_branch
      %63 = sbr.rel (0) target = $region33
    $region32: #{tpu_custom_call.1} parent=1 // pred_region
      %65 = dma.done [#allocation4], 8192
    $region33: #{tpu_custom_call.1} parent=1 // pred_fallthru
      _
    // Predicated region
    $region34: #{tpu_custom_call.1} parent=1 // pred_check
      _
    $region35: #{tpu_custom_call.1} parent=1 // pred_check_branch
      %67 = sbr.rel (0) target = $region37
    $region36: #{tpu_custom_call.1} parent=1 // pred_region
      %69 = dma.done [#allocation7], 9216
    $region37: #{tpu_custom_call.1} parent=1 // pred_fallthru
      _
    // Predicated region
    $region38: #{tpu_custom_call.1} parent=1 // pred_check
      _
    $region39: #{tpu_custom_call.1} parent=1 // pred_check_branch
      %71 = sbr.rel (0) target = $region41
    $region40: #{tpu_custom_call.1} parent=1 // pred_region
      %73 = dma.done [#allocation7], 9216
    $region41: #{tpu_custom_call.1} parent=1 // pred_fallthru
      _
    %74 = vst [vmem:[#allocation2] sm:$0xff] 0.0
    %75 = vst [vmem:[#allocation2 + $0x8] sm:$0xff] 0.0
    %76 = vst [vmem:[#allocation2 + $0x10] sm:$0x3] 0.0
    %77 = vst [vmem:[#allocation2 + $0x1b0] sm:$0xff] 0.0
    %78 = vst [vmem:[#allocation2 + $0x1b8] sm:$0xff] 0.0
    %79 = vst [vmem:[#allocation2 + $0x1c0] sm:$0x3] 0.0
    %s80 = scalar_lea.vmem [#allocation2], 408
    %81 = vst [vmem:[%s80] sm:$0xff] 0.0
    %82 = vst [vmem:[%s80 + $0x8] sm:$0xff] 0.0
    %83 = vst [vmem:[%s80 + $0x10] sm:$0x3] 0.0
    %84 = vst [vmem:[%s80 + $0x1b0] sm:$0xff] 0.0
    %85 = vst [vmem:[%s80 + $0x1b8] sm:$0xff] 0.0
    %86 = vst [vmem:[%s80 + $0x1c0] sm:$0x3] 0.0
    %87 = vst [vmem:[#allocation2] sm:$0x1] 0.0
    %88 = vst [vmem:[#allocation2 + $0x18] sm:$0x1] 0.0
    %89 = vst [vmem:[#allocation2 + $0x30] sm:$0x1] 0.0
    %90 = vst [vmem:[#allocation2 + $0x48] sm:$0x1] 0.0
    %91 = vst [vmem:[#allocation2 + $0x60] sm:$0x1] 0.0
    %92 = vst [vmem:[#allocation2 + $0x78] sm:$0x1] 0.0
    %93 = vst [vmem:[#allocation2 + $0x90] sm:$0x1] 0.0
    %94 = vst [vmem:[#allocation2 + $0xa8] sm:$0x1] 0.0
    %95 = vst [vmem:[#allocation2 + $0xc0] sm:$0x1] 0.0
    %96 = vst [vmem:[#allocation2 + $0xd8] sm:$0x1] 0.0
    %97 = vst [vmem:[#allocation2 + $0xf0] sm:$0x1] 0.0
    %98 = vst [vmem:[#allocation2 + $0x108] sm:$0x1] 0.0
    %99 = vst [vmem:[#allocation2 + $0x120] sm:$0x1] 0.0
    %100 = vst [vmem:[#allocation2 + $0x138] sm:$0x1] 0.0
    %101 = vst [vmem:[#allocation2 + $0x150] sm:$0x1] 0.0
    %102 = vst [vmem:[#allocation2 + $0x168] sm:$0x1] 0.0
    %103 = vst [vmem:[#allocation2 + $0x180] sm:$0x1] 0.0
    %104 = vst [vmem:[#allocation2 + $0x198] sm:$0x1] 0.0
    %105 = vst [vmem:[#allocation2 + $0x1b0] sm:$0x1] 0.0
    %106 = vst [vmem:[#allocation2 + $0x1c8] sm:$0x1] 0.0
    %107 = vst [vmem:[#allocation2 + $0x1e0] sm:$0x1] 0.0
    %108 = vst [vmem:[#allocation2 + $0x1f8] sm:$0x1] 0.0
    %109 = vst [vmem:[#allocation2 + $0x210] sm:$0x1] 0.0
    %110 = vst [vmem:[#allocation2 + $0x228] sm:$0x1] 0.0
    %111 = vst [vmem:[#allocation2 + $0x240] sm:$0x1] 0.0
    %112 = vst [vmem:[#allocation2 + $0x258] sm:$0x1] 0.0
    %113 = vst [vmem:[#allocation2 + $0x270] sm:$0x1] 0.0
    %114 = vst [vmem:[#allocation2 + $0x288] sm:$0x1] 0.0
    %115 = vst [vmem:[#allocation2 + $0x2a0] sm:$0x1] 0.0
    %116 = vst [vmem:[#allocation2 + $0x2b8] sm:$0x1] 0.0
    %117 = vst [vmem:[#allocation2 + $0x2d0] sm:$0x1] 0.0
    %118 = vst [vmem:[#allocation2 + $0x2e8] sm:$0x1] 0.0
    %119 = vst [vmem:[#allocation2 + $0x300] sm:$0x1] 0.0
    %120 = vst [vmem:[#allocation2 + $0x318] sm:$0x1] 0.0
    %121 = vst [vmem:[#allocation2 + $0x330] sm:$0x1] 0.0
    %122 = vst [vmem:[#allocation2 + $0x348] sm:$0x1] 0.0
    %123 = vst [vmem:[#allocation2 + $0x11] sm:$0x1] 0.0
    %124 = vst [vmem:[#allocation2 + $0x29] sm:$0x1] 0.0
    %125 = vst [vmem:[#allocation2 + $0x41] sm:$0x1] 0.0
    %126 = vst [vmem:[#allocation2 + $0x59] sm:$0x1] 0.0
    %127 = vst [vmem:[#allocation2 + $0x71] sm:$0x1] 0.0
    %128 = vst [vmem:[#allocation2 + $0x89] sm:$0x1] 0.0
    %129 = vst [vmem:[#allocation2 + $0xa1] sm:$0x1] 0.0
    %130 = vst [vmem:[#allocation2 + $0xb9] sm:$0x1] 0.0
    %131 = vst [vmem:[#allocation2 + $0xd1] sm:$0x1] 0.0
    %132 = vst [vmem:[#allocation2 + $0xe9] sm:$0x1] 0.0
    %133 = vst [vmem:[#allocation2 + $0x101] sm:$0x1] 0.0
    %134 = vst [vmem:[#allocation2 + $0x119] sm:$0x1] 0.0
    %135 = vst [vmem:[#allocation2 + $0x131] sm:$0x1] 0.0
    %136 = vst [vmem:[#allocation2 + $0x149] sm:$0x1] 0.0
    %137 = vst [vmem:[#allocation2 + $0x161] sm:$0x1] 0.0
    %138 = vst [vmem:[#allocation2 + $0x179] sm:$0x1] 0.0
    %139 = vst [vmem:[#allocation2 + $0x191] sm:$0x1] 0.0
    %140 = vst [vmem:[#allocation2 + $0x1a9] sm:$0x1] 0.0
    %141 = vst [vmem:[#allocation2 + $0x1c1] sm:$0x1] 0.0
    %142 = vst [vmem:[#allocation2 + $0x1d9] sm:$0x1] 0.0
    %143 = vst [vmem:[#allocation2 + $0x1f1] sm:$0x1] 0.0
    %144 = vst [vmem:[#allocation2 + $0x209] sm:$0x1] 0.0
    %145 = vst [vmem:[#allocation2 + $0x221] sm:$0x1] 0.0
    %146 = vst [vmem:[#allocation2 + $0x239] sm:$0x1] 0.0
    %147 = vst [vmem:[#allocation2 + $0x251] sm:$0x1] 0.0
    %148 = vst [vmem:[#allocation2 + $0x269] sm:$0x1] 0.0
    %149 = vst [vmem:[#allocation2 + $0x281] sm:$0x1] 0.0
    %150 = vst [vmem:[#allocation2 + $0x299] sm:$0x1] 0.0
    %151 = vst [vmem:[#allocation2 + $0x2b1] sm:$0x1] 0.0
    %152 = vst [vmem:[#allocation2 + $0x2c9] sm:$0x1] 0.0
    %153 = vst [vmem:[#allocation2 + $0x2e1] sm:$0x1] 0.0
    %154 = vst [vmem:[#allocation2 + $0x2f9] sm:$0x1] 0.0
    %155 = vst [vmem:[#allocation2 + $0x311] sm:$0x1] 0.0
    %156 = vst [vmem:[#allocation2 + $0x329] sm:$0x1] 0.0
    %157 = vst [vmem:[#allocation2 + $0x341] sm:$0x1] 0.0
    %158 = vst [vmem:[#allocation2 + $0x359] sm:$0x1] 0.0
    %v159 = vld [vmem:[#allocation3] sm:$0xff]
    %v160 = vld [vmem:[#allocation3 + $0x8] sm:$0xff]
    %v161 = vld [vmem:[#allocation3 + $0x10] sm:$0xff]
    %v162 = vld [vmem:[#allocation3 + $0x18] sm:$0xff]
    %v163 = vld [vmem:[#allocation3 + $0x20] sm:$0xff]
    %v164 = vld [vmem:[#allocation3 + $0x28] sm:$0xff]
    %v165 = vld [vmem:[#allocation3 + $0x30] sm:$0xff]
    %v166 = vld [vmem:[#allocation3 + $0x38] sm:$0xff]
    %v167 = vld [vmem:[#allocation3 + $0x40] sm:$0xff]
    %v168 = vld [vmem:[#allocation3 + $0x48] sm:$0xff]
    %v169 = vld [vmem:[#allocation3 + $0x50] sm:$0xff]
    %v170 = vld [vmem:[#allocation3 + $0x58] sm:$0xff]
    %v171 = vld [vmem:[#allocation3 + $0x60] sm:$0xff]
    %v172 = vld [vmem:[#allocation3 + $0x68] sm:$0xff]
    %v173 = vld [vmem:[#allocation3 + $0x70] sm:$0xff]
    %v174 = vld [vmem:[#allocation3 + $0x78] sm:$0xff]
    %v175 = vld [vmem:[#allocation3 + $0x80] sm:$0xff]
    %v176 = vld [vmem:[#allocation3 + $0x88] sm:$0xff]
    %v177 = vld [vmem:[#allocation3 + $0x90] sm:$0xff]
    %v178 = vld [vmem:[#allocation3 + $0x98] sm:$0xff]
    %v179 = vld [vmem:[#allocation3 + $0xa0] sm:$0xff]
    %v180 = vld [vmem:[#allocation3 + $0xa8] sm:$0xff]
    %v181 = vld [vmem:[#allocation3 + $0xb0] sm:$0xff]
    %v182 = vld [vmem:[#allocation3 + $0xb8] sm:$0xff]
    %v183 = vld [vmem:[#allocation3 + $0xc0] sm:$0xff]
    %v184 = vld [vmem:[#allocation3 + $0xc8] sm:$0xff]
    %v185 = vld [vmem:[#allocation3 + $0xd0] sm:$0xff]
    %v186 = vld [vmem:[#allocation3 + $0xd8] sm:$0xff]
    %v187 = vld [vmem:[#allocation3 + $0xe0] sm:$0xff]
    %v188 = vld [vmem:[#allocation3 + $0xe8] sm:$0xff]
    %v189 = vld [vmem:[#allocation3 + $0xf0] sm:$0xff]
    %v190 = vld [vmem:[#allocation3 + $0xf8] sm:$0xff]
    %v191 = vld [vmem:[#allocation3 + $0x100] sm:$0xff]
    %v192 = vld [vmem:[#allocation3 + $0x108] sm:$0xff]
    %v193 = vld [vmem:[#allocation3 + $0x110] sm:$0xff]
    %v194 = vld [vmem:[#allocation3 + $0x118] sm:$0xff]
    %v195 = vld [vmem:[#allocation3 + $0x120] sm:$0xff]
    %v196 = vld [vmem:[#allocation3 + $0x128] sm:$0xff]
    %v197 = vld [vmem:[#allocation3 + $0x130] sm:$0xff]
    %v198 = vld [vmem:[#allocation3 + $0x138] sm:$0xff]
    %v199 = vld [vmem:[#allocation3 + $0x140] sm:$0xff]
    %v200 = vld [vmem:[#allocation3 + $0x148] sm:$0xff]
    %v201 = vld [vmem:[#allocation3 + $0x150] sm:$0xff]
    %v202 = vld [vmem:[#allocation3 + $0x158] sm:$0xff]
    %v203 = vld [vmem:[#allocation3 + $0x160] sm:$0xff]
    %v204 = vld [vmem:[#allocation3 + $0x168] sm:$0xff]
    %v205 = vld [vmem:[#allocation3 + $0x170] sm:$0xff]
    %v206 = vld [vmem:[#allocation3 + $0x178] sm:$0xff]
    %v207 = vld [vmem:[#allocation3 + $0x180] sm:$0xff]
    %v208 = vld [vmem:[#allocation3 + $0x188] sm:$0xff]
    %v209 = vld [vmem:[#allocation3 + $0x190] sm:$0xff]
    %v210 = vld [vmem:[#allocation3 + $0x198] sm:$0xff]
    %v211 = vld [vmem:[#allocation3 + $0x1a0] sm:$0xff]
    %v212 = vld [vmem:[#allocation3 + $0x1a8] sm:$0xff]
    %v213 = vld [vmem:[#allocation3 + $0x1b0] sm:$0xff]
    %v214 = vld [vmem:[#allocation3 + $0x1b8] sm:$0xff]
    %v215 = vld [vmem:[#allocation3 + $0x1c0] sm:$0xff]
    %v216 = vld [vmem:[#allocation3 + $0x1c8] sm:$0xff]
    %v217 = vld [vmem:[#allocation3 + $0x1d0] sm:$0xff]
    %v218 = vld [vmem:[#allocation3 + $0x1d8] sm:$0xff]
    %v219 = vld [vmem:[#allocation3 + $0x1e0] sm:$0xff]
    %v220 = vld [vmem:[#allocation3 + $0x1e8] sm:$0xff]
    %v221 = vld [vmem:[#allocation3 + $0x1f0] sm:$0xff]
    %v222 = vld [vmem:[#allocation3 + $0x1f8] sm:$0xff]
    %s223 = scalar_lea.vmem [#allocation2], 24
    %224 = vst [vmem:[%s223 + $0x1] sm:$0xff] %v159
    %225 = vst [vmem:[%s223 + $0x9] sm:$0xff] %v160
    %226 = vst [vmem:[%s223 + $0x19] sm:$0xff] %v161
    %227 = vst [vmem:[%s223 + $0x21] sm:$0xff] %v162
    %228 = vst [vmem:[%s223 + $0x31] sm:$0xff] %v163
    %229 = vst [vmem:[%s223 + $0x39] sm:$0xff] %v164
    %230 = vst [vmem:[%s223 + $0x49] sm:$0xff] %v165
    %231 = vst [vmem:[%s223 + $0x51] sm:$0xff] %v166
    %232 = vst [vmem:[%s223 + $0x61] sm:$0xff] %v167
    %233 = vst [vmem:[%s223 + $0x69] sm:$0xff] %v168
    %234 = vst [vmem:[%s223 + $0x79] sm:$0xff] %v169
    %235 = vst [vmem:[%s223 + $0x81] sm:$0xff] %v170
    %236 = vst [vmem:[%s223 + $0x91] sm:$0xff] %v171
    %237 = vst [vmem:[%s223 + $0x99] sm:$0xff] %v172
    %238 = vst [vmem:[%s223 + $0xa9] sm:$0xff] %v173
    %239 = vst [vmem:[%s223 + $0xb1] sm:$0xff] %v174
    %240 = vst [vmem:[%s223 + $0xc1] sm:$0xff] %v175
    %241 = vst [vmem:[%s223 + $0xc9] sm:$0xff] %v176
    %242 = vst [vmem:[%s223 + $0xd9] sm:$0xff] %v177
    %243 = vst [vmem:[%s223 + $0xe1] sm:$0xff] %v178
    %244 = vst [vmem:[%s223 + $0xf1] sm:$0xff] %v179
    %245 = vst [vmem:[%s223 + $0xf9] sm:$0xff] %v180
    %246 = vst [vmem:[%s223 + $0x109] sm:$0xff] %v181
    %247 = vst [vmem:[%s223 + $0x111] sm:$0xff] %v182
    %248 = vst [vmem:[%s223 + $0x121] sm:$0xff] %v183
    %249 = vst [vmem:[%s223 + $0x129] sm:$0xff] %v184
    %250 = vst [vmem:[%s223 + $0x139] sm:$0xff] %v185
    %251 = vst [vmem:[%s223 + $0x141] sm:$0xff] %v186
    %252 = vst [vmem:[%s223 + $0x151] sm:$0xff] %v187
    %253 = vst [vmem:[%s223 + $0x159] sm:$0xff] %v188
    %254 = vst [vmem:[%s223 + $0x169] sm:$0xff] %v189
    %255 = vst [vmem:[%s223 + $0x171] sm:$0xff] %v190
    %256 = vst [vmem:[%s223 + $0x1b1] sm:$0xff] %v191
    %257 = vst [vmem:[%s223 + $0x1b9] sm:$0xff] %v192
    %258 = vst [vmem:[%s223 + $0x1c9] sm:$0xff] %v193
    %259 = vst [vmem:[%s223 + $0x1d1] sm:$0xff] %v194
    %260 = vst [vmem:[%s223 + $0x1e1] sm:$0xff] %v195
    %261 = vst [vmem:[%s223 + $0x1e9] sm:$0xff] %v196
    %262 = vst [vmem:[%s223 + $0x1f9] sm:$0xff] %v197
    %263 = vst [vmem:[%s223 + $0x201] sm:$0xff] %v198
    %264 = vst [vmem:[%s223 + $0x211] sm:$0xff] %v199
    %265 = vst [vmem:[%s223 + $0x219] sm:$0xff] %v200
    %266 = vst [vmem:[%s223 + $0x229] sm:$0xff] %v201
    %267 = vst [vmem:[%s223 + $0x231] sm:$0xff] %v202
    %268 = vst [vmem:[%s223 + $0x241] sm:$0xff] %v203
    %269 = vst [vmem:[%s223 + $0x249] sm:$0xff] %v204
    %270 = vst [vmem:[%s223 + $0x259] sm:$0xff] %v205
    %271 = vst [vmem:[%s223 + $0x261] sm:$0xff] %v206
    %272 = vst [vmem:[%s223 + $0x271] sm:$0xff] %v207
    %273 = vst [vmem:[%s223 + $0x279] sm:$0xff] %v208
    %274 = vst [vmem:[%s223 + $0x289] sm:$0xff] %v209
    %275 = vst [vmem:[%s223 + $0x291] sm:$0xff] %v210
    %276 = vst [vmem:[%s223 + $0x2a1] sm:$0xff] %v211
    %277 = vst [vmem:[%s223 + $0x2a9] sm:$0xff] %v212
    %278 = vst [vmem:[%s223 + $0x2b9] sm:$0xff] %v213
    %279 = vst [vmem:[%s223 + $0x2c1] sm:$0xff] %v214
    %280 = vst [vmem:[%s223 + $0x2d1] sm:$0xff] %v215
    %281 = vst [vmem:[%s223 + $0x2d9] sm:$0xff] %v216
    %282 = vst [vmem:[%s223 + $0x2e9] sm:$0xff] %v217
    %283 = vst [vmem:[%s223 + $0x2f1] sm:$0xff] %v218
    %284 = vst [vmem:[%s223 + $0x301] sm:$0xff] %v219
    %285 = vst [vmem:[%s223 + $0x309] sm:$0xff] %v220
    %286 = vst [vmem:[%s223 + $0x319] sm:$0xff] %v221
    %287 = vst [vmem:[%s223 + $0x321] sm:$0xff] %v222
    %v288 = vld [vmem:[#allocation2] sm:$0xff]
    %v289 = vld [vmem:[#allocation2 + $0x8] sm:$0xff]
    %v290 = vld [vmem:[#allocation2 + $0x18] sm:$0xff]
    %v291 = vld [vmem:[#allocation2 + $0x20] sm:$0xff]
    %v292 = vld [vmem:[#allocation2 + $0x30] sm:$0xff]
    %v293 = vld [vmem:[#allocation2 + $0x38] sm:$0xff]
    %v294 = vld [vmem:[#allocation2 + $0x48] sm:$0xff]
    %v295 = vld [vmem:[#allocation2 + $0x50] sm:$0xff]
    %v296 = vld [vmem:[#allocation2 + $0x60] sm:$0xff]
    %v297 = vld [vmem:[#allocation2 + $0x68] sm:$0xff]
    %v298 = vld [vmem:[#allocation2 + $0x78] sm:$0xff]
    %v299 = vld [vmem:[#allocation2 + $0x80] sm:$0xff]
    %v300 = vld [vmem:[#allocation2 + $0x90] sm:$0xff]
    %v301 = vld [vmem:[#allocation2 + $0x98] sm:$0xff]
    %v302 = vld [vmem:[#allocation2 + $0xa8] sm:$0xff]
    %v303 = vld [vmem:[#allocation2 + $0xb0] sm:$0xff]
    %v304 = vld [vmem:[#allocation2 + $0xc0] sm:$0xff]
    %v305 = vld [vmem:[#allocation2 + $0xc8] sm:$0xff]
    %v306 = vld [vmem:[#allocation2 + $0xd8] sm:$0xff]
    %v307 = vld [vmem:[#allocation2 + $0xe0] sm:$0xff]
    %v308 = vld [vmem:[#allocation2 + $0xf0] sm:$0xff]
    %v309 = vld [vmem:[#allocation2 + $0xf8] sm:$0xff]
    %v310 = vld [vmem:[#allocation2 + $0x108] sm:$0xff]
    %v311 = vld [vmem:[#allocation2 + $0x110] sm:$0xff]
    %v312 = vld [vmem:[#allocation2 + $0x120] sm:$0xff]
    %v313 = vld [vmem:[#allocation2 + $0x128] sm:$0xff]
    %v314 = vld [vmem:[#allocation2 + $0x138] sm:$0xff]
    %v315 = vld [vmem:[#allocation2 + $0x140] sm:$0xff]
    %v316 = vld [vmem:[#allocation2 + $0x150] sm:$0xff]
    %v317 = vld [vmem:[#allocation2 + $0x158] sm:$0xff]
    %v318 = vld [vmem:[#allocation2 + $0x168] sm:$0xff]
    %v319 = vld [vmem:[#allocation2 + $0x170] sm:$0xff]
    %v320 = vld [vmem:[#allocation2 + $0x1b0] sm:$0xff]
    %v321 = vld [vmem:[#allocation2 + $0x1b8] sm:$0xff]
    %v322 = vld [vmem:[#allocation2 + $0x1c8] sm:$0xff]
    %v323 = vld [vmem:[#allocation2 + $0x1d0] sm:$0xff]
    %v324 = vld [vmem:[#allocation2 + $0x1e0] sm:$0xff]
    %v325 = vld [vmem:[#allocation2 + $0x1e8] sm:$0xff]
    %v326 = vld [vmem:[#allocation2 + $0x1f8] sm:$0xff]
    %v327 = vld [vmem:[#allocation2 + $0x200] sm:$0xff]
    %v328 = vld [vmem:[#allocation2 + $0x210] sm:$0xff]
    %v329 = vld [vmem:[#allocation2 + $0x218] sm:$0xff]
    %v330 = vld [vmem:[#allocation2 + $0x228] sm:$0xff]
    %v331 = vld [vmem:[#allocation2 + $0x230] sm:$0xff]
    %v332 = vld [vmem:[#allocation2 + $0x240] sm:$0xff]
    %v333 = vld [vmem:[#allocation2 + $0x248] sm:$0xff]
    %v334 = vld [vmem:[#allocation2 + $0x258] sm:$0xff]
    %v335 = vld [vmem:[#allocation2 + $0x260] sm:$0xff]
    %v336 = vld [vmem:[#allocation2 + $0x270] sm:$0xff]
    %v337 = vld [vmem:[#allocation2 + $0x278] sm:$0xff]
    %v338 = vld [vmem:[#allocation2 + $0x288] sm:$0xff]
    %v339 = vld [vmem:[#allocation2 + $0x290] sm:$0xff]
    %v340 = vld [vmem:[#allocation2 + $0x2a0] sm:$0xff]
    %v341 = vld [vmem:[#allocation2 + $0x2a8] sm:$0xff]
    %v342 = vld [vmem:[#allocation2 + $0x2b8] sm:$0xff]
    %v343 = vld [vmem:[#allocation2 + $0x2c0] sm:$0xff]
    %v344 = vld [vmem:[#allocation2 + $0x2d0] sm:$0xff]
    %v345 = vld [vmem:[#allocation2 + $0x2d8] sm:$0xff]
    %v346 = vld [vmem:[#allocation2 + $0x2e8] sm:$0xff]
    %v347 = vld [vmem:[#allocation2 + $0x2f0] sm:$0xff]
    %v348 = vld [vmem:[#allocation2 + $0x300] sm:$0xff]
    %v349 = vld [vmem:[#allocation2 + $0x308] sm:$0xff]
    %v350 = vld [vmem:[#allocation2 + $0x318] sm:$0xff]
    %v351 = vld [vmem:[#allocation2 + $0x320] sm:$0xff]
    %v352 = vpack.c.bf16 %v288, %v288
    %v353 = vpack.c.bf16 %v289, %v289
    %v354 = vpack.c.bf16 %v290, %v290
    %v355 = vpack.c.bf16 %v291, %v291
    %v356 = vpack.c.bf16 %v292, %v292
    %v357 = vpack.c.bf16 %v293, %v293
    %v358 = vpack.c.bf16 %v294, %v294
    %v359 = vpack.c.bf16 %v295, %v295
    %v360 = vpack.c.bf16 %v296, %v296
    %v361 = vpack.c.bf16 %v297, %v297
    %v362 = vpack.c.bf16 %v298, %v298
    %v363 = vpack.c.bf16 %v299, %v299
    %v364 = vpack.c.bf16 %v300, %v300
    %v365 = vpack.c.bf16 %v301, %v301
    %v366 = vpack.c.bf16 %v302, %v302
    %v367 = vpack.c.bf16 %v303, %v303
    %v368 = vpack.c.bf16 %v304, %v304
    %v369 = vpack.c.bf16 %v305, %v305
    %v370 = vpack.c.bf16 %v306, %v306
    %v371 = vpack.c.bf16 %v307, %v307
    %v372 = vpack.c.bf16 %v308, %v308
    %v373 = vpack.c.bf16 %v309, %v309
    %v374 = vpack.c.bf16 %v310, %v310
    %v375 = vpack.c.bf16 %v311, %v311
    %v376 = vpack.c.bf16 %v312, %v312
    %v377 = vpack.c.bf16 %v313, %v313
    %v378 = vpack.c.bf16 %v314, %v314
    %v379 = vpack.c.bf16 %v315, %v315
    %v380 = vpack.c.bf16 %v316, %v316
    %v381 = vpack.c.bf16 %v317, %v317
    %v382 = vpack.c.bf16 %v318, %v318
    %v383 = vpack.c.bf16 %v319, %v319
    %v384 = vpack.c.bf16 %v320, %v320
    %v385 = vpack.c.bf16 %v321, %v321
    %v386 = vpack.c.bf16 %v322, %v322
    %v387 = vpack.c.bf16 %v323, %v323
    %v388 = vpack.c.bf16 %v324, %v324
    %v389 = vpack.c.bf16 %v325, %v325
    %v390 = vpack.c.bf16 %v326, %v326
    %v391 = vpack.c.bf16 %v327, %v327
    %v392 = vpack.c.bf16 %v328, %v328
    %v393 = vpack.c.bf16 %v329, %v329
    %v394 = vpack.c.bf16 %v330, %v330
    %v395 = vpack.c.bf16 %v331, %v331
    %v396 = vpack.c.bf16 %v332, %v332
    %v397 = vpack.c.bf16 %v333, %v333
    %v398 = vpack.c.bf16 %v334, %v334
    %v399 = vpack.c.bf16 %v335, %v335
    %v400 = vpack.c.bf16 %v336, %v336
    %v401 = vpack.c.bf16 %v337, %v337
    %v402 = vpack.c.bf16 %v338, %v338
    %v403 = vpack.c.bf16 %v339, %v339
    %v404 = vpack.c.bf16 %v340, %v340
    %v405 = vpack.c.bf16 %v341, %v341
    %v406 = vpack.c.bf16 %v342, %v342
    %v407 = vpack.c.bf16 %v343, %v343
    %v408 = vpack.c.bf16 %v344, %v344
    %v409 = vpack.c.bf16 %v345, %v345
    %v410 = vpack.c.bf16 %v346, %v346
    %v411 = vpack.c.bf16 %v347, %v347
    %v412 = vpack.c.bf16 %v348, %v348
    %v413 = vpack.c.bf16 %v349, %v349
    %v414 = vpack.c.bf16 %v350, %v350
    %v415 = vpack.c.bf16 %v351, %v351
    %v416 = vld [vmem:[#allocation2 + $0x1] sm:$0xff]
    %v417 = vld [vmem:[#allocation2 + $0x9] sm:$0xff]
    %v418 = vld [vmem:[#allocation2 + $0x19] sm:$0xff]
    %v419 = vld [vmem:[#allocation2 + $0x21] sm:$0xff]
    %v420 = vld [vmem:[#allocation2 + $0x31] sm:$0xff]
    %v421 = vld [vmem:[#allocation2 + $0x39] sm:$0xff]
    %v422 = vld [vmem:[#allocation2 + $0x49] sm:$0xff]
    %v423 = vld [vmem:[#allocation2 + $0x51] sm:$0xff]
    %v424 = vld [vmem:[#allocation2 + $0x61] sm:$0xff]
    %v425 = vld [vmem:[#allocation2 + $0x69] sm:$0xff]
    %v426 = vld [vmem:[#allocation2 + $0x79] sm:$0xff]
    %v427 = vld [vmem:[#allocation2 + $0x81] sm:$0xff]
    %v428 = vld [vmem:[#allocation2 + $0x91] sm:$0xff]
    %v429 = vld [vmem:[#allocation2 + $0x99] sm:$0xff]
    %v430 = vld [vmem:[#allocation2 + $0xa9] sm:$0xff]
    %v431 = vld [vmem:[#allocation2 + $0xb1] sm:$0xff]
    %v432 = vld [vmem:[#allocation2 + $0xc1] sm:$0xff]
    %v433 = vld [vmem:[#allocation2 + $0xc9] sm:$0xff]
    %v434 = vld [vmem:[#allocation2 + $0xd9] sm:$0xff]
    %v435 = vld [vmem:[#allocation2 + $0xe1] sm:$0xff]
    %v436 = vld [vmem:[#allocation2 + $0xf1] sm:$0xff]
    %v437 = vld [vmem:[#allocation2 + $0xf9] sm:$0xff]
    %v438 = vld [vmem:[#allocation2 + $0x109] sm:$0xff]
    %v439 = vld [vmem:[#allocation2 + $0x111] sm:$0xff]
    %v440 = vld [vmem:[#allocation2 + $0x121] sm:$0xff]
    %v441 = vld [vmem:[#allocation2 + $0x129] sm:$0xff]
    %v442 = vld [vmem:[#allocation2 + $0x139] sm:$0xff]
    %v443 = vld [vmem:[#allocation2 + $0x141] sm:$0xff]
    %v444 = vld [vmem:[#allocation2 + $0x151] sm:$0xff]
    %v445 = vld [vmem:[#allocation2 + $0x159] sm:$0xff]
    %v446 = vld [vmem:[#allocation2 + $0x169] sm:$0xff]
    %v447 = vld [vmem:[#allocation2 + $0x171] sm:$0xff]
    %v448 = vld [vmem:[#allocation2 + $0x1b1] sm:$0xff]
    %v449 = vld [vmem:[#allocation2 + $0x1b9] sm:$0xff]
    %v450 = vld [vmem:[#allocation2 + $0x1c9] sm:$0xff]
    %v451 = vld [vmem:[#allocation2 + $0x1d1] sm:$0xff]
    %v452 = vld [vmem:[#allocation2 + $0x1e1] sm:$0xff]
    %v453 = vld [vmem:[#allocation2 + $0x1e9] sm:$0xff]
    %v454 = vld [vmem:[#allocation2 + $0x1f9] sm:$0xff]
    %v455 = vld [vmem:[#allocation2 + $0x201] sm:$0xff]
    %v456 = vld [vmem:[#allocation2 + $0x211] sm:$0xff]
    %v457 = vld [vmem:[#allocation2 + $0x219] sm:$0xff]
    %v458 = vld [vmem:[#allocation2 + $0x229] sm:$0xff]
    %v459 = vld [vmem:[#allocation2 + $0x231] sm:$0xff]
    %v460 = vld [vmem:[#allocation2 + $0x241] sm:$0xff]
    %v461 = vld [vmem:[#allocation2 + $0x249] sm:$0xff]
    %v462 = vld [vmem:[#allocation2 + $0x259] sm:$0xff]
    %v463 = vld [vmem:[#allocation2 + $0x261] sm:$0xff]
    %v464 = vld [vmem:[#allocation2 + $0x271] sm:$0xff]
    %v465 = vld [vmem:[#allocation2 + $0x279] sm:$0xff]
    %v466 = vld [vmem:[#allocation2 + $0x289] sm:$0xff]
    %v467 = vld [vmem:[#allocation2 + $0x291] sm:$0xff]
    %v468 = vld [vmem:[#allocation2 + $0x2a1] sm:$0xff]
    %v469 = vld [vmem:[#allocation2 + $0x2a9] sm:$0xff]
    %v470 = vld [vmem:[#allocation2 + $0x2b9] sm:$0xff]
    %v471 = vld [vmem:[#allocation2 + $0x2c1] sm:$0xff]
    %v472 = vld [vmem:[#allocation2 + $0x2d1] sm:$0xff]
    %v473 = vld [vmem:[#allocation2 + $0x2d9] sm:$0xff]
    %v474 = vld [vmem:[#allocation2 + $0x2e9] sm:$0xff]
    %v475 = vld [vmem:[#allocation2 + $0x2f1] sm:$0xff]
    %v476 = vld [vmem:[#allocation2 + $0x301] sm:$0xff]
    %v477 = vld [vmem:[#allocation2 + $0x309] sm:$0xff]
    %v478 = vld [vmem:[#allocation2 + $0x319] sm:$0xff]
    %v479 = vld [vmem:[#allocation2 + $0x321] sm:$0xff]
    %v480 = vpack.c.bf16 %v416, %v416
    %v481 = vpack.c.bf16 %v417, %v417
    %v482 = vpack.c.bf16 %v418, %v418
    %v483 = vpack.c.bf16 %v419, %v419
    %v484 = vpack.c.bf16 %v420, %v420
    %v485 = vpack.c.bf16 %v421, %v421
    %v486 = vpack.c.bf16 %v422, %v422
    %v487 = vpack.c.bf16 %v423, %v423
    %v488 = vpack.c.bf16 %v424, %v424
    %v489 = vpack.c.bf16 %v425, %v425
    %v490 = vpack.c.bf16 %v426, %v426
    %v491 = vpack.c.bf16 %v427, %v427
    %v492 = vpack.c.bf16 %v428, %v428
    %v493 = vpack.c.bf16 %v429, %v429
    %v494 = vpack.c.bf16 %v430, %v430
    %v495 = vpack.c.bf16 %v431, %v431
    %v496 = vpack.c.bf16 %v432, %v432
    %v497 = vpack.c.bf16 %v433, %v433
    %v498 = vpack.c.bf16 %v434, %v434
    %v499 = vpack.c.bf16 %v435, %v435
    %v500 = vpack.c.bf16 %v436, %v436
    %v501 = vpack.c.bf16 %v437, %v437
    %v502 = vpack.c.bf16 %v438, %v438
    %v503 = vpack.c.bf16 %v439, %v439
    %v504 = vpack.c.bf16 %v440, %v440
    %v505 = vpack.c.bf16 %v441, %v441
    %v506 = vpack.c.bf16 %v442, %v442
    %v507 = vpack.c.bf16 %v443, %v443
    %v508 = vpack.c.bf16 %v444, %v444
    %v509 = vpack.c.bf16 %v445, %v445
    %v510 = vpack.c.bf16 %v446, %v446
    %v511 = vpack.c.bf16 %v447, %v447
    %v512 = vpack.c.bf16 %v448, %v448
    %v513 = vpack.c.bf16 %v449, %v449
    %v514 = vpack.c.bf16 %v450, %v450
    %v515 = vpack.c.bf16 %v451, %v451
    %v516 = vpack.c.bf16 %v452, %v452
    %v517 = vpack.c.bf16 %v453, %v453
    %v518 = vpack.c.bf16 %v454, %v454
    %v519 = vpack.c.bf16 %v455, %v455
    %v520 = vpack.c.bf16 %v456, %v456
    %v521 = vpack.c.bf16 %v457, %v457
    %v522 = vpack.c.bf16 %v458, %v458
    %v523 = vpack.c.bf16 %v459, %v459
    %v524 = vpack.c.bf16 %v460, %v460
    %v525 = vpack.c.bf16 %v461, %v461
    %v526 = vpack.c.bf16 %v462, %v462
    %v527 = vpack.c.bf16 %v463, %v463
    %v528 = vpack.c.bf16 %v464, %v464
    %v529 = vpack.c.bf16 %v465, %v465
    %v530 = vpack.c.bf16 %v466, %v466
    %v531 = vpack.c.bf16 %v467, %v467
    %v532 = vpack.c.bf16 %v468, %v468
    %v533 = vpack.c.bf16 %v469, %v469
    %v534 = vpack.c.bf16 %v470, %v470
    %v535 = vpack.c.bf16 %v471, %v471
    %v536 = vpack.c.bf16 %v472, %v472
    %v537 = vpack.c.bf16 %v473, %v473
    %v538 = vpack.c.bf16 %v474, %v474
    %v539 = vpack.c.bf16 %v475, %v475
    %v540 = vpack.c.bf16 %v476, %v476
    %v541 = vpack.c.bf16 %v477, %v477
    %v542 = vpack.c.bf16 %v478, %v478
    %v543 = vpack.c.bf16 %v479, %v479
    %v544 = vld [vmem:[#allocation2 + $0x2] sm:$0xff]
    %v545 = vld [vmem:[#allocation2 + $0xa] sm:$0xff]
    %v546 = vld [vmem:[#allocation2 + $0x1a] sm:$0xff]
    %v547 = vld [vmem:[#allocation2 + $0x22] sm:$0xff]
    %v548 = vld [vmem:[#allocation2 + $0x32] sm:$0xff]
    %v549 = vld [vmem:[#allocation2 + $0x3a] sm:$0xff]
    %v550 = vld [vmem:[#allocation2 + $0x4a] sm:$0xff]
    %v551 = vld [vmem:[#allocation2 + $0x52] sm:$0xff]
    %v552 = vld [vmem:[#allocation2 + $0x62] sm:$0xff]
    %v553 = vld [vmem:[#allocation2 + $0x6a] sm:$0xff]
    %v554 = vld [vmem:[#allocation2 + $0x7a] sm:$0xff]
    %v555 = vld [vmem:[#allocation2 + $0x82] sm:$0xff]
    %v556 = vld [vmem:[#allocation2 + $0x92] sm:$0xff]
    %v557 = vld [vmem:[#allocation2 + $0x9a] sm:$0xff]
    %v558 = vld [vmem:[#allocation2 + $0xaa] sm:$0xff]
    %v559 = vld [vmem:[#allocation2 + $0xb2] sm:$0xff]
    %v560 = vld [vmem:[#allocation2 + $0xc2] sm:$0xff]
    %v561 = vld [vmem:[#allocation2 + $0xca] sm:$0xff]
    %v562 = vld [vmem:[#allocation2 + $0xda] sm:$0xff]
    %v563 = vld [vmem:[#allocation2 + $0xe2] sm:$0xff]
    %v564 = vld [vmem:[#allocation2 + $0xf2] sm:$0xff]
    %v565 = vld [vmem:[#allocation2 + $0xfa] sm:$0xff]
    %v566 = vld [vmem:[#allocation2 + $0x10a] sm:$0xff]
    %v567 = vld [vmem:[#allocation2 + $0x112] sm:$0xff]
    %v568 = vld [vmem:[#allocation2 + $0x122] sm:$0xff]
    %v569 = vld [vmem:[#allocation2 + $0x12a] sm:$0xff]
    %v570 = vld [vmem:[#allocation2 + $0x13a] sm:$0xff]
    %v571 = vld [vmem:[#allocation2 + $0x142] sm:$0xff]
    %v572 = vld [vmem:[#allocation2 + $0x152] sm:$0xff]
    %v573 = vld [vmem:[#allocation2 + $0x15a] sm:$0xff]
    %v574 = vld [vmem:[#allocation2 + $0x16a] sm:$0xff]
    %v575 = vld [vmem:[#allocation2 + $0x172] sm:$0xff]
    %v576 = vld [vmem:[#allocation2 + $0x1b2] sm:$0xff]
    %v577 = vld [vmem:[#allocation2 + $0x1ba] sm:$0xff]
    %v578 = vld [vmem:[#allocation2 + $0x1ca] sm:$0xff]
    %v579 = vld [vmem:[#allocation2 + $0x1d2] sm:$0xff]
    %v580 = vld [vmem:[#allocation2 + $0x1e2] sm:$0xff]
    %v581 = vld [vmem:[#allocation2 + $0x1ea] sm:$0xff]
    %v582 = vld [vmem:[#allocation2 + $0x1fa] sm:$0xff]
    %v583 = vld [vmem:[#allocation2 + $0x202] sm:$0xff]
    %v584 = vld [vmem:[#allocation2 + $0x212] sm:$0xff]
    %v585 = vld [vmem:[#allocation2 + $0x21a] sm:$0xff]
    %v586 = vld [vmem:[#allocation2 + $0x22a] sm:$0xff]
    %v587 = vld [vmem:[#allocation2 + $0x232] sm:$0xff]
    %v588 = vld [vmem:[#allocation2 + $0x242] sm:$0xff]
    %v589 = vld [vmem:[#allocation2 + $0x24a] sm:$0xff]
    %v590 = vld [vmem:[#allocation2 + $0x25a] sm:$0xff]
    %v591 = vld [vmem:[#allocation2 + $0x262] sm:$0xff]
    %v592 = vld [vmem:[#allocation2 + $0x272] sm:$0xff]
    %v593 = vld [vmem:[#allocation2 + $0x27a] sm:$0xff]
    %v594 = vld [vmem:[#allocation2 + $0x28a] sm:$0xff]
    %v595 = vld [vmem:[#allocation2 + $0x292] sm:$0xff]
    %v596 = vld [vmem:[#allocation2 + $0x2a2] sm:$0xff]
    %v597 = vld [vmem:[#allocation2 + $0x2aa] sm:$0xff]
    %v598 = vld [vmem:[#allocation2 + $0x2ba] sm:$0xff]
    %v599 = vld [vmem:[#allocation2 + $0x2c2] sm:$0xff]
    %v600 = vld [vmem:[#allocation2 + $0x2d2] sm:$0xff]
    %v601 = vld [vmem:[#allocation2 + $0x2da] sm:$0xff]
    %v602 = vld [vmem:[#allocation2 + $0x2ea] sm:$0xff]
    %v603 = vld [vmem:[#allocation2 + $0x2f2] sm:$0xff]
    %v604 = vld [vmem:[#allocation2 + $0x302] sm:$0xff]
    %v605 = vld [vmem:[#allocation2 + $0x30a] sm:$0xff]
    %v606 = vld [vmem:[#allocation2 + $0x31a] sm:$0xff]
    %v607 = vld [vmem:[#allocation2 + $0x322] sm:$0xff]
    %v608 = vpack.c.bf16 %v544, %v544
    %v609 = vpack.c.bf16 %v545, %v545
    %v610 = vpack.c.bf16 %v546, %v546
    %v611 = vpack.c.bf16 %v547, %v547
    %v612 = vpack.c.bf16 %v548, %v548
    %v613 = vpack.c.bf16 %v549, %v549
    %v614 = vpack.c.bf16 %v550, %v550
    %v615 = vpack.c.bf16 %v551, %v551
    %v616 = vpack.c.bf16 %v552, %v552
    %v617 = vpack.c.bf16 %v553, %v553
    %v618 = vpack.c.bf16 %v554, %v554
    %v619 = vpack.c.bf16 %v555, %v555
    %v620 = vpack.c.bf16 %v556, %v556
    %v621 = vpack.c.bf16 %v557, %v557
    %v622 = vpack.c.bf16 %v558, %v558
    %v623 = vpack.c.bf16 %v559, %v559
    %v624 = vpack.c.bf16 %v560, %v560
    %v625 = vpack.c.bf16 %v561, %v561
    %v626 = vpack.c.bf16 %v562, %v562
    %v627 = vpack.c.bf16 %v563, %v563
    %v628 = vpack.c.bf16 %v564, %v564
    %v629 = vpack.c.bf16 %v565, %v565
    %v630 = vpack.c.bf16 %v566, %v566
    %v631 = vpack.c.bf16 %v567, %v567
    %v632 = vpack.c.bf16 %v568, %v568
    %v633 = vpack.c.bf16 %v569, %v569
    %v634 = vpack.c.bf16 %v570, %v570
    %v635 = vpack.c.bf16 %v571, %v571
    %v636 = vpack.c.bf16 %v572, %v572
    %v637 = vpack.c.bf16 %v573, %v573
    %v638 = vpack.c.bf16 %v574, %v574
    %v639 = vpack.c.bf16 %v575, %v575
    %v640 = vpack.c.bf16 %v576, %v576
    %v641 = vpack.c.bf16 %v577, %v577
    %v642 = vpack.c.bf16 %v578, %v578
    %v643 = vpack.c.bf16 %v579, %v579
    %v644 = vpack.c.bf16 %v580, %v580
    %v645 = vpack.c.bf16 %v581, %v581
    %v646 = vpack.c.bf16 %v582, %v582
    %v647 = vpack.c.bf16 %v583, %v583
    %v648 = vpack.c.bf16 %v584, %v584
    %v649 = vpack.c.bf16 %v585, %v585
    %v650 = vpack.c.bf16 %v586, %v586
    %v651 = vpack.c.bf16 %v587, %v587
    %v652 = vpack.c.bf16 %v588, %v588
    %v653 = vpack.c.bf16 %v589, %v589
    %v654 = vpack.c.bf16 %v590, %v590
    %v655 = vpack.c.bf16 %v591, %v591
    %v656 = vpack.c.bf16 %v592, %v592
    %v657 = vpack.c.bf16 %v593, %v593
    %v658 = vpack.c.bf16 %v594, %v594
    %v659 = vpack.c.bf16 %v595, %v595
    %v660 = vpack.c.bf16 %v596, %v596
    %v661 = vpack.c.bf16 %v597, %v597
    %v662 = vpack.c.bf16 %v598, %v598
    %v663 = vpack.c.bf16 %v599, %v599
    %v664 = vpack.c.bf16 %v600, %v600
    %v665 = vpack.c.bf16 %v601, %v601
    %v666 = vpack.c.bf16 %v602, %v602
    %v667 = vpack.c.bf16 %v603, %v603
    %v668 = vpack.c.bf16 %v604, %v604
    %v669 = vpack.c.bf16 %v605, %v605
    %v670 = vpack.c.bf16 %v606, %v606
    %v671 = vpack.c.bf16 %v607, %v607
    %v672 = vld [vmem:[%s223] sm:$0xff]
    %v673 = vld [vmem:[%s223 + $0x8] sm:$0xff]
    %v674 = vld [vmem:[%s223 + $0x18] sm:$0xff]
    %v675 = vld [vmem:[%s223 + $0x20] sm:$0xff]
    %v676 = vld [vmem:[%s223 + $0x30] sm:$0xff]
    %v677 = vld [vmem:[%s223 + $0x38] sm:$0xff]
    %v678 = vld [vmem:[%s223 + $0x48] sm:$0xff]
    %v679 = vld [vmem:[%s223 + $0x50] sm:$0xff]
    %v680 = vld [vmem:[%s223 + $0x60] sm:$0xff]
    %v681 = vld [vmem:[%s223 + $0x68] sm:$0xff]
    %v682 = vld [vmem:[%s223 + $0x78] sm:$0xff]
    %v683 = vld [vmem:[%s223 + $0x80] sm:$0xff]
    %v684 = vld [vmem:[%s223 + $0x90] sm:$0xff]
    %v685 = vld [vmem:[%s223 + $0x98] sm:$0xff]
    %v686 = vld [vmem:[%s223 + $0xa8] sm:$0xff]
    %v687 = vld [vmem:[%s223 + $0xb0] sm:$0xff]
    %v688 = vld [vmem:[%s223 + $0xc0] sm:$0xff]
    %v689 = vld [vmem:[%s223 + $0xc8] sm:$0xff]
    %v690 = vld [vmem:[%s223 + $0xd8] sm:$0xff]
    %v691 = vld [vmem:[%s223 + $0xe0] sm:$0xff]
    %v692 = vld [vmem:[%s223 + $0xf0] sm:$0xff]
    %v693 = vld [vmem:[%s223 + $0xf8] sm:$0xff]
    %v694 = vld [vmem:[%s223 + $0x108] sm:$0xff]
    %v695 = vld [vmem:[%s223 + $0x110] sm:$0xff]
    %v696 = vld [vmem:[%s223 + $0x120] sm:$0xff]
    %v697 = vld [vmem:[%s223 + $0x128] sm:$0xff]
    %v698 = vld [vmem:[%s223 + $0x138] sm:$0xff]
    %v699 = vld [vmem:[%s223 + $0x140] sm:$0xff]
    %v700 = vld [vmem:[%s223 + $0x150] sm:$0xff]
    %v701 = vld [vmem:[%s223 + $0x158] sm:$0xff]
    %v702 = vld [vmem:[%s223 + $0x168] sm:$0xff]
    %v703 = vld [vmem:[%s223 + $0x170] sm:$0xff]
    %v704 = vld [vmem:[%s223 + $0x1b0] sm:$0xff]
    %v705 = vld [vmem:[%s223 + $0x1b8] sm:$0xff]
    %v706 = vld [vmem:[%s223 + $0x1c8] sm:$0xff]
    %v707 = vld [vmem:[%s223 + $0x1d0] sm:$0xff]
    %v708 = vld [vmem:[%s223 + $0x1e0] sm:$0xff]
    %v709 = vld [vmem:[%s223 + $0x1e8] sm:$0xff]
    %v710 = vld [vmem:[%s223 + $0x1f8] sm:$0xff]
    %v711 = vld [vmem:[%s223 + $0x200] sm:$0xff]
    %v712 = vld [vmem:[%s223 + $0x210] sm:$0xff]
    %v713 = vld [vmem:[%s223 + $0x218] sm:$0xff]
    %v714 = vld [vmem:[%s223 + $0x228] sm:$0xff]
    %v715 = vld [vmem:[%s223 + $0x230] sm:$0xff]
    %v716 = vld [vmem:[%s223 + $0x240] sm:$0xff]
    %v717 = vld [vmem:[%s223 + $0x248] sm:$0xff]
    %v718 = vld [vmem:[%s223 + $0x258] sm:$0xff]
    %v719 = vld [vmem:[%s223 + $0x260] sm:$0xff]
    %v720 = vld [vmem:[%s223 + $0x270] sm:$0xff]
    %v721 = vld [vmem:[%s223 + $0x278] sm:$0xff]
    %v722 = vld [vmem:[%s223 + $0x288] sm:$0xff]
    %v723 = vld [vmem:[%s223 + $0x290] sm:$0xff]
    %v724 = vld [vmem:[%s223 + $0x2a0] sm:$0xff]
    %v725 = vld [vmem:[%s223 + $0x2a8] sm:$0xff]
    %v726 = vld [vmem:[%s223 + $0x2b8] sm:$0xff]
    %v727 = vld [vmem:[%s223 + $0x2c0] sm:$0xff]
    %v728 = vld [vmem:[%s223 + $0x2d0] sm:$0xff]
    %v729 = vld [vmem:[%s223 + $0x2d8] sm:$0xff]
    %v730 = vld [vmem:[%s223 + $0x2e8] sm:$0xff]
    %v731 = vld [vmem:[%s223 + $0x2f0] sm:$0xff]
    %v732 = vld [vmem:[%s223 + $0x300] sm:$0xff]
    %v733 = vld [vmem:[%s223 + $0x308] sm:$0xff]
    %v734 = vld [vmem:[%s223 + $0x318] sm:$0xff]
    %v735 = vld [vmem:[%s223 + $0x320] sm:$0xff]
    %v736 = vpack.c.bf16 %v672, %v672
    %v737 = vpack.c.bf16 %v673, %v673
    %v738 = vpack.c.bf16 %v674, %v674
    %v739 = vpack.c.bf16 %v675, %v675
    %v740 = vpack.c.bf16 %v676, %v676
    %v741 = vpack.c.bf16 %v677, %v677
    %v742 = vpack.c.bf16 %v678, %v678
    %v743 = vpack.c.bf16 %v679, %v679
    %v744 = vpack.c.bf16 %v680, %v680
    %v745 = vpack.c.bf16 %v681, %v681
    %v746 = vpack.c.bf16 %v682, %v682
    %v747 = vpack.c.bf16 %v683, %v683
    %v748 = vpack.c.bf16 %v684, %v684
    %v749 = vpack.c.bf16 %v685, %v685
    %v750 = vpack.c.bf16 %v686, %v686
    %v751 = vpack.c.bf16 %v687, %v687
    %v752 = vpack.c.bf16 %v688, %v688
    %v753 = vpack.c.bf16 %v689, %v689
    %v754 = vpack.c.bf16 %v690, %v690
    %v755 = vpack.c.bf16 %v691, %v691
    %v756 = vpack.c.bf16 %v692, %v692
    %v757 = vpack.c.bf16 %v693, %v693
    %v758 = vpack.c.bf16 %v694, %v694
    %v759 = vpack.c.bf16 %v695, %v695
    %v760 = vpack.c.bf16 %v696, %v696
    %v761 = vpack.c.bf16 %v697, %v697
    %v762 = vpack.c.bf16 %v698, %v698
    %v763 = vpack.c.bf16 %v699, %v699
    %v764 = vpack.c.bf16 %v700, %v700
    %v765 = vpack.c.bf16 %v701, %v701
    %v766 = vpack.c.bf16 %v702, %v702
    %v767 = vpack.c.bf16 %v703, %v703
    %v768 = vpack.c.bf16 %v704, %v704
    %v769 = vpack.c.bf16 %v705, %v705
    %v770 = vpack.c.bf16 %v706, %v706
    %v771 = vpack.c.bf16 %v707, %v707
    %v772 = vpack.c.bf16 %v708, %v708
    %v773 = vpack.c.bf16 %v709, %v709
    %v774 = vpack.c.bf16 %v710, %v710
    %v775 = vpack.c.bf16 %v711, %v711
    %v776 = vpack.c.bf16 %v712, %v712
    %v777 = vpack.c.bf16 %v713, %v713
    %v778 = vpack.c.bf16 %v714, %v714
    %v779 = vpack.c.bf16 %v715, %v715
    %v780 = vpack.c.bf16 %v716, %v716
    %v781 = vpack.c.bf16 %v717, %v717
    %v782 = vpack.c.bf16 %v718, %v718
    %v783 = vpack.c.bf16 %v719, %v719
    %v784 = vpack.c.bf16 %v720, %v720
    %v785 = vpack.c.bf16 %v721, %v721
    %v786 = vpack.c.bf16 %v722, %v722
    %v787 = vpack.c.bf16 %v723, %v723
    %v788 = vpack.c.bf16 %v724, %v724
    %v789 = vpack.c.bf16 %v725, %v725
    %v790 = vpack.c.bf16 %v726, %v726
    %v791 = vpack.c.bf16 %v727, %v727
    %v792 = vpack.c.bf16 %v728, %v728
    %v793 = vpack.c.bf16 %v729, %v729
    %v794 = vpack.c.bf16 %v730, %v730
    %v795 = vpack.c.bf16 %v731, %v731
    %v796 = vpack.c.bf16 %v732, %v732
    %v797 = vpack.c.bf16 %v733, %v733
    %v798 = vpack.c.bf16 %v734, %v734
    %v799 = vpack.c.bf16 %v735, %v735
    %v800 = vld [vmem:[%s223 + $0x1] sm:$0xff]
    %v801 = vld [vmem:[%s223 + $0x9] sm:$0xff]
    %v802 = vld [vmem:[%s223 + $0x19] sm:$0xff]
    %v803 = vld [vmem:[%s223 + $0x21] sm:$0xff]
    %v804 = vld [vmem:[%s223 + $0x31] sm:$0xff]
    %v805 = vld [vmem:[%s223 + $0x39] sm:$0xff]
    %v806 = vld [vmem:[%s223 + $0x49] sm:$0xff]
    %v807 = vld [vmem:[%s223 + $0x51] sm:$0xff]
    %v808 = vld [vmem:[%s223 + $0x61] sm:$0xff]
    %v809 = vld [vmem:[%s223 + $0x69] sm:$0xff]
    %v810 = vld [vmem:[%s223 + $0x79] sm:$0xff]
    %v811 = vld [vmem:[%s223 + $0x81] sm:$0xff]
    %v812 = vld [vmem:[%s223 + $0x91] sm:$0xff]
    %v813 = vld [vmem:[%s223 + $0x99] sm:$0xff]
    %v814 = vld [vmem:[%s223 + $0xa9] sm:$0xff]
    %v815 = vld [vmem:[%s223 + $0xb1] sm:$0xff]
    %v816 = vld [vmem:[%s223 + $0xc1] sm:$0xff]
    %v817 = vld [vmem:[%s223 + $0xc9] sm:$0xff]
    %v818 = vld [vmem:[%s223 + $0xd9] sm:$0xff]
    %v819 = vld [vmem:[%s223 + $0xe1] sm:$0xff]
    %v820 = vld [vmem:[%s223 + $0xf1] sm:$0xff]
    %v821 = vld [vmem:[%s223 + $0xf9] sm:$0xff]
    %v822 = vld [vmem:[%s223 + $0x109] sm:$0xff]
    %v823 = vld [vmem:[%s223 + $0x111] sm:$0xff]
    %v824 = vld [vmem:[%s223 + $0x121] sm:$0xff]
    %v825 = vld [vmem:[%s223 + $0x129] sm:$0xff]
    %v826 = vld [vmem:[%s223 + $0x139] sm:$0xff]
    %v827 = vld [vmem:[%s223 + $0x141] sm:$0xff]
    %v828 = vld [vmem:[%s223 + $0x151] sm:$0xff]
    %v829 = vld [vmem:[%s223 + $0x159] sm:$0xff]
    %v830 = vld [vmem:[%s223 + $0x169] sm:$0xff]
    %v831 = vld [vmem:[%s223 + $0x171] sm:$0xff]
    %v832 = vld [vmem:[%s223 + $0x1b1] sm:$0xff]
    %v833 = vld [vmem:[%s223 + $0x1b9] sm:$0xff]
    %v834 = vld [vmem:[%s223 + $0x1c9] sm:$0xff]
    %v835 = vld [vmem:[%s223 + $0x1d1] sm:$0xff]
    %v836 = vld [vmem:[%s223 + $0x1e1] sm:$0xff]
    %v837 = vld [vmem:[%s223 + $0x1e9] sm:$0xff]
    %v838 = vld [vmem:[%s223 + $0x1f9] sm:$0xff]
    %v839 = vld [vmem:[%s223 + $0x201] sm:$0xff]
    %v840 = vld [vmem:[%s223 + $0x211] sm:$0xff]
    %v841 = vld [vmem:[%s223 + $0x219] sm:$0xff]
    %v842 = vld [vmem:[%s223 + $0x229] sm:$0xff]
    %v843 = vld [vmem:[%s223 + $0x231] sm:$0xff]
    %v844 = vld [vmem:[%s223 + $0x241] sm:$0xff]
    %v845 = vld [vmem:[%s223 + $0x249] sm:$0xff]
    %v846 = vld [vmem:[%s223 + $0x259] sm:$0xff]
    %v847 = vld [vmem:[%s223 + $0x261] sm:$0xff]
    %v848 = vld [vmem:[%s223 + $0x271] sm:$0xff]
    %v849 = vld [vmem:[%s223 + $0x279] sm:$0xff]
    %v850 = vld [vmem:[%s223 + $0x289] sm:$0xff]
    %v851 = vld [vmem:[%s223 + $0x291] sm:$0xff]
    %v852 = vld [vmem:[%s223 + $0x2a1] sm:$0xff]
    %v853 = vld [vmem:[%s223 + $0x2a9] sm:$0xff]
    %v854 = vld [vmem:[%s223 + $0x2b9] sm:$0xff]
    %v855 = vld [vmem:[%s223 + $0x2c1] sm:$0xff]
    %v856 = vld [vmem:[%s223 + $0x2d1] sm:$0xff]
    %v857 = vld [vmem:[%s223 + $0x2d9] sm:$0xff]
    %v858 = vld [vmem:[%s223 + $0x2e9] sm:$0xff]
    %v859 = vld [vmem:[%s223 + $0x2f1] sm:$0xff]
    %v860 = vld [vmem:[%s223 + $0x301] sm:$0xff]
    %v861 = vld [vmem:[%s223 + $0x309] sm:$0xff]
    %v862 = vld [vmem:[%s223 + $0x319] sm:$0xff]
    %v863 = vld [vmem:[%s223 + $0x321] sm:$0xff]
    %v864 = vpack.c.bf16 %v800, %v800
    %v865 = vpack.c.bf16 %v801, %v801
    %v866 = vpack.c.bf16 %v802, %v802
    %v867 = vpack.c.bf16 %v803, %v803
    %v868 = vpack.c.bf16 %v804, %v804
    %v869 = vpack.c.bf16 %v805, %v805
    %v870 = vpack.c.bf16 %v806, %v806
    %v871 = vpack.c.bf16 %v807, %v807
    %v872 = vpack.c.bf16 %v808, %v808
    %v873 = vpack.c.bf16 %v809, %v809
    %v874 = vpack.c.bf16 %v810, %v810
    %v875 = vpack.c.bf16 %v811, %v811
    %v876 = vpack.c.bf16 %v812, %v812
    %v877 = vpack.c.bf16 %v813, %v813
    %v878 = vpack.c.bf16 %v814, %v814
    %v879 = vpack.c.bf16 %v815, %v815
    %v880 = vpack.c.bf16 %v816, %v816
    %v881 = vpack.c.bf16 %v817, %v817
    %v882 = vpack.c.bf16 %v818, %v818
    %v883 = vpack.c.bf16 %v819, %v819
    %v884 = vpack.c.bf16 %v820, %v820
    %v885 = vpack.c.bf16 %v821, %v821
    %v886 = vpack.c.bf16 %v822, %v822
    %v887 = vpack.c.bf16 %v823, %v823
    %v888 = vpack.c.bf16 %v824, %v824
    %v889 = vpack.c.bf16 %v825, %v825
    %v890 = vpack.c.bf16 %v826, %v826
    %v891 = vpack.c.bf16 %v827, %v827
    %v892 = vpack.c.bf16 %v828, %v828
    %v893 = vpack.c.bf16 %v829, %v829
    %v894 = vpack.c.bf16 %v830, %v830
    %v895 = vpack.c.bf16 %v831, %v831
    %v896 = vpack.c.bf16 %v832, %v832
    %v897 = vpack.c.bf16 %v833, %v833
    %v898 = vpack.c.bf16 %v834, %v834
    %v899 = vpack.c.bf16 %v835, %v835
    %v900 = vpack.c.bf16 %v836, %v836
    %v901 = vpack.c.bf16 %v837, %v837
    %v902 = vpack.c.bf16 %v838, %v838
    %v903 = vpack.c.bf16 %v839, %v839
    %v904 = vpack.c.bf16 %v840, %v840
    %v905 = vpack.c.bf16 %v841, %v841
    %v906 = vpack.c.bf16 %v842, %v842
    %v907 = vpack.c.bf16 %v843, %v843
    %v908 = vpack.c.bf16 %v844, %v844
    %v909 = vpack.c.bf16 %v845, %v845
    %v910 = vpack.c.bf16 %v846, %v846
    %v911 = vpack.c.bf16 %v847, %v847
    %v912 = vpack.c.bf16 %v848, %v848
    %v913 = vpack.c.bf16 %v849, %v849
    %v914 = vpack.c.bf16 %v850, %v850
    %v915 = vpack.c.bf16 %v851, %v851
    %v916 = vpack.c.bf16 %v852, %v852
    %v917 = vpack.c.bf16 %v853, %v853
    %v918 = vpack.c.bf16 %v854, %v854
    %v919 = vpack.c.bf16 %v855, %v855
    %v920 = vpack.c.bf16 %v856, %v856
    %v921 = vpack.c.bf16 %v857, %v857
    %v922 = vpack.c.bf16 %v858, %v858
    %v923 = vpack.c.bf16 %v859, %v859
    %v924 = vpack.c.bf16 %v860, %v860
    %v925 = vpack.c.bf16 %v861, %v861
    %v926 = vpack.c.bf16 %v862, %v862
    %v927 = vpack.c.bf16 %v863, %v863
    %v928 = vld [vmem:[%s223 + $0x2] sm:$0xff]
    %v929 = vld [vmem:[%s223 + $0xa] sm:$0xff]
    %v930 = vld [vmem:[%s223 + $0x1a] sm:$0xff]
    %v931 = vld [vmem:[%s223 + $0x22] sm:$0xff]
    %v932 = vld [vmem:[%s223 + $0x32] sm:$0xff]
    %v933 = vld [vmem:[%s223 + $0x3a] sm:$0xff]
    %v934 = vld [vmem:[%s223 + $0x4a] sm:$0xff]
    %v935 = vld [vmem:[%s223 + $0x52] sm:$0xff]
    %v936 = vld [vmem:[%s223 + $0x62] sm:$0xff]
    %v937 = vld [vmem:[%s223 + $0x6a] sm:$0xff]
    %v938 = vld [vmem:[%s223 + $0x7a] sm:$0xff]
    %v939 = vld [vmem:[%s223 + $0x82] sm:$0xff]
    %v940 = vld [vmem:[%s223 + $0x92] sm:$0xff]
    %v941 = vld [vmem:[%s223 + $0x9a] sm:$0xff]
    %v942 = vld [vmem:[%s223 + $0xaa] sm:$0xff]
    %v943 = vld [vmem:[%s223 + $0xb2] sm:$0xff]
    %v944 = vld [vmem:[%s223 + $0xc2] sm:$0xff]
    %v945 = vld [vmem:[%s223 + $0xca] sm:$0xff]
    %v946 = vld [vmem:[%s223 + $0xda] sm:$0xff]
    %v947 = vld [vmem:[%s223 + $0xe2] sm:$0xff]
    %v948 = vld [vmem:[%s223 + $0xf2] sm:$0xff]
    %v949 = vld [vmem:[%s223 + $0xfa] sm:$0xff]
    %v950 = vld [vmem:[%s223 + $0x10a] sm:$0xff]
    %v951 = vld [vmem:[%s223 + $0x112] sm:$0xff]
    %v952 = vld [vmem:[%s223 + $0x122] sm:$0xff]
    %v953 = vld [vmem:[%s223 + $0x12a] sm:$0xff]
    %v954 = vld [vmem:[%s223 + $0x13a] sm:$0xff]
    %v955 = vld [vmem:[%s223 + $0x142] sm:$0xff]
    %v956 = vld [vmem:[%s223 + $0x152] sm:$0xff]
    %v957 = vld [vmem:[%s223 + $0x15a] sm:$0xff]
    %v958 = vld [vmem:[%s223 + $0x16a] sm:$0xff]
    %v959 = vld [vmem:[%s223 + $0x172] sm:$0xff]
    %v960 = vld [vmem:[%s223 + $0x1b2] sm:$0xff]
    %v961 = vld [vmem:[%s223 + $0x1ba] sm:$0xff]
    %v962 = vld [vmem:[%s223 + $0x1ca] sm:$0xff]
    %v963 = vld [vmem:[%s223 + $0x1d2] sm:$0xff]
    %v964 = vld [vmem:[%s223 + $0x1e2] sm:$0xff]
    %v965 = vld [vmem:[%s223 + $0x1ea] sm:$0xff]
    %v966 = vld [vmem:[%s223 + $0x1fa] sm:$0xff]
    %v967 = vld [vmem:[%s223 + $0x202] sm:$0xff]
    %v968 = vld [vmem:[%s223 + $0x212] sm:$0xff]
    %v969 = vld [vmem:[%s223 + $0x21a] sm:$0xff]
    %v970 = vld [vmem:[%s223 + $0x22a] sm:$0xff]
    %v971 = vld [vmem:[%s223 + $0x232] sm:$0xff]
    %v972 = vld [vmem:[%s223 + $0x242] sm:$0xff]
    %v973 = vld [vmem:[%s223 + $0x24a] sm:$0xff]
    %v974 = vld [vmem:[%s223 + $0x25a] sm:$0xff]
    %v975 = vld [vmem:[%s223 + $0x262] sm:$0xff]
    %v976 = vld [vmem:[%s223 + $0x272] sm:$0xff]
    %v977 = vld [vmem:[%s223 + $0x27a] sm:$0xff]
    %v978 = vld [vmem:[%s223 + $0x28a] sm:$0xff]
    %v979 = vld [vmem:[%s223 + $0x292] sm:$0xff]
    %v980 = vld [vmem:[%s223 + $0x2a2] sm:$0xff]
    %v981 = vld [vmem:[%s223 + $0x2aa] sm:$0xff]
    %v982 = vld [vmem:[%s223 + $0x2ba] sm:$0xff]
    %v983 = vld [vmem:[%s223 + $0x2c2] sm:$0xff]
    %v984 = vld [vmem:[%s223 + $0x2d2] sm:$0xff]
    %v985 = vld [vmem:[%s223 + $0x2da] sm:$0xff]
    %v986 = vld [vmem:[%s223 + $0x2ea] sm:$0xff]
    %v987 = vld [vmem:[%s223 + $0x2f2] sm:$0xff]
    %v988 = vld [vmem:[%s223 + $0x302] sm:$0xff]
    %v989 = vld [vmem:[%s223 + $0x30a] sm:$0xff]
    %v990 = vld [vmem:[%s223 + $0x31a] sm:$0xff]
    %v991 = vld [vmem:[%s223 + $0x322] sm:$0xff]
    %v992 = vpack.c.bf16 %v928, %v928
    %v993 = vpack.c.bf16 %v929, %v929
    %v994 = vpack.c.bf16 %v930, %v930
    %v995 = vpack.c.bf16 %v931, %v931
    %v996 = vpack.c.bf16 %v932, %v932
    %v997 = vpack.c.bf16 %v933, %v933
    %v998 = vpack.c.bf16 %v934, %v934
    %v999 = vpack.c.bf16 %v935, %v935
    %v1000 = vpack.c.bf16 %v936, %v936
    %v1001 = vpack.c.bf16 %v937, %v937
    %v1002 = vpack.c.bf16 %v938, %v938
    %v1003 = vpack.c.bf16 %v939, %v939
    %v1004 = vpack.c.bf16 %v940, %v940
    %v1005 = vpack.c.bf16 %v941, %v941
    %v1006 = vpack.c.bf16 %v942, %v942
    %v1007 = vpack.c.bf16 %v943, %v943
    %v1008 = vpack.c.bf16 %v944, %v944
    %v1009 = vpack.c.bf16 %v945, %v945
    %v1010 = vpack.c.bf16 %v946, %v946
    %v1011 = vpack.c.bf16 %v947, %v947
    %v1012 = vpack.c.bf16 %v948, %v948
    %v1013 = vpack.c.bf16 %v949, %v949
    %v1014 = vpack.c.bf16 %v950, %v950
    %v1015 = vpack.c.bf16 %v951, %v951
    %v1016 = vpack.c.bf16 %v952, %v952
    %v1017 = vpack.c.bf16 %v953, %v953
    %v1018 = vpack.c.bf16 %v954, %v954
    %v1019 = vpack.c.bf16 %v955, %v955
    %v1020 = vpack.c.bf16 %v956, %v956
    %v1021 = vpack.c.bf16 %v957, %v957
    %v1022 = vpack.c.bf16 %v958, %v958
    %v1023 = vpack.c.bf16 %v959, %v959
    %v1024 = vpack.c.bf16 %v960, %v960
    %v1025 = vpack.c.bf16 %v961, %v961
    %v1026 = vpack.c.bf16 %v962, %v962
    %v1027 = vpack.c.bf16 %v963, %v963
    %v1028 = vpack.c.bf16 %v964, %v964
    %v1029 = vpack.c.bf16 %v965, %v965
    %v1030 = vpack.c.bf16 %v966, %v966
    %v1031 = vpack.c.bf16 %v967, %v967
    %v1032 = vpack.c.bf16 %v968, %v968
    %v1033 = vpack.c.bf16 %v969, %v969
    %v1034 = vpack.c.bf16 %v970, %v970
    %v1035 = vpack.c.bf16 %v971, %v971
    %v1036 = vpack.c.bf16 %v972, %v972
    %v1037 = vpack.c.bf16 %v973, %v973
    %v1038 = vpack.c.bf16 %v974, %v974
    %v1039 = vpack.c.bf16 %v975, %v975
    %v1040 = vpack.c.bf16 %v976, %v976
    %v1041 = vpack.c.bf16 %v977, %v977
    %v1042 = vpack.c.bf16 %v978, %v978
    %v1043 = vpack.c.bf16 %v979, %v979
    %v1044 = vpack.c.bf16 %v980, %v980
    %v1045 = vpack.c.bf16 %v981, %v981
    %v1046 = vpack.c.bf16 %v982, %v982
    %v1047 = vpack.c.bf16 %v983, %v983
    %v1048 = vpack.c.bf16 %v984, %v984
    %v1049 = vpack.c.bf16 %v985, %v985
    %v1050 = vpack.c.bf16 %v986, %v986
    %v1051 = vpack.c.bf16 %v987, %v987
    %v1052 = vpack.c.bf16 %v988, %v988
    %v1053 = vpack.c.bf16 %v989, %v989
    %v1054 = vpack.c.bf16 %v990, %v990
    %v1055 = vpack.c.bf16 %v991, %v991
    %s1056 = scalar_lea.vmem [#allocation2], 48
    %v1057 = vld [vmem:[%s1056] sm:$0xff]
    %v1058 = vld [vmem:[%s1056 + $0x8] sm:$0xff]
    %v1059 = vld [vmem:[%s1056 + $0x18] sm:$0xff]
    %v1060 = vld [vmem:[%s1056 + $0x20] sm:$0xff]
    %v1061 = vld [vmem:[%s1056 + $0x30] sm:$0xff]
    %v1062 = vld [vmem:[%s1056 + $0x38] sm:$0xff]
    %v1063 = vld [vmem:[%s1056 + $0x48] sm:$0xff]
    %v1064 = vld [vmem:[%s1056 + $0x50] sm:$0xff]
    %v1065 = vld [vmem:[%s1056 + $0x60] sm:$0xff]
    %v1066 = vld [vmem:[%s1056 + $0x68] sm:$0xff]
    %v1067 = vld [vmem:[%s1056 + $0x78] sm:$0xff]
    %v1068 = vld [vmem:[%s1056 + $0x80] sm:$0xff]
    %v1069 = vld [vmem:[%s1056 + $0x90] sm:$0xff]
    %v1070 = vld [vmem:[%s1056 + $0x98] sm:$0xff]
    %v1071 = vld [vmem:[%s1056 + $0xa8] sm:$0xff]
    %v1072 = vld [vmem:[%s1056 + $0xb0] sm:$0xff]
    %v1073 = vld [vmem:[%s1056 + $0xc0] sm:$0xff]
    %v1074 = vld [vmem:[%s1056 + $0xc8] sm:$0xff]
    %v1075 = vld [vmem:[%s1056 + $0xd8] sm:$0xff]
    %v1076 = vld [vmem:[%s1056 + $0xe0] sm:$0xff]
    %v1077 = vld [vmem:[%s1056 + $0xf0] sm:$0xff]
    %v1078 = vld [vmem:[%s1056 + $0xf8] sm:$0xff]
    %v1079 = vld [vmem:[%s1056 + $0x108] sm:$0xff]
    %v1080 = vld [vmem:[%s1056 + $0x110] sm:$0xff]
    %v1081 = vld [vmem:[%s1056 + $0x120] sm:$0xff]
    %v1082 = vld [vmem:[%s1056 + $0x128] sm:$0xff]
    %v1083 = vld [vmem:[%s1056 + $0x138] sm:$0xff]
    %v1084 = vld [vmem:[%s1056 + $0x140] sm:$0xff]
    %v1085 = vld [vmem:[%s1056 + $0x150] sm:$0xff]
    %v1086 = vld [vmem:[%s1056 + $0x158] sm:$0xff]
    %v1087 = vld [vmem:[%s1056 + $0x168] sm:$0xff]
    %v1088 = vld [vmem:[%s1056 + $0x170] sm:$0xff]
    %v1089 = vld [vmem:[%s1056 + $0x1b0] sm:$0xff]
    %v1090 = vld [vmem:[%s1056 + $0x1b8] sm:$0xff]
    %v1091 = vld [vmem:[%s1056 + $0x1c8] sm:$0xff]
    %v1092 = vld [vmem:[%s1056 + $0x1d0] sm:$0xff]
    %v1093 = vld [vmem:[%s1056 + $0x1e0] sm:$0xff]
    %v1094 = vld [vmem:[%s1056 + $0x1e8] sm:$0xff]
    %v1095 = vld [vmem:[%s1056 + $0x1f8] sm:$0xff]
    %v1096 = vld [vmem:[%s1056 + $0x200] sm:$0xff]
    %v1097 = vld [vmem:[%s1056 + $0x210] sm:$0xff]
    %v1098 = vld [vmem:[%s1056 + $0x218] sm:$0xff]
    %v1099 = vld [vmem:[%s1056 + $0x228] sm:$0xff]
    %v1100 = vld [vmem:[%s1056 + $0x230] sm:$0xff]
    %v1101 = vld [vmem:[%s1056 + $0x240] sm:$0xff]
    %v1102 = vld [vmem:[%s1056 + $0x248] sm:$0xff]
    %v1103 = vld [vmem:[%s1056 + $0x258] sm:$0xff]
    %v1104 = vld [vmem:[%s1056 + $0x260] sm:$0xff]
    %v1105 = vld [vmem:[%s1056 + $0x270] sm:$0xff]
    %v1106 = vld [vmem:[%s1056 + $0x278] sm:$0xff]
    %v1107 = vld [vmem:[%s1056 + $0x288] sm:$0xff]
    %v1108 = vld [vmem:[%s1056 + $0x290] sm:$0xff]
    %v1109 = vld [vmem:[%s1056 + $0x2a0] sm:$0xff]
    %v1110 = vld [vmem:[%s1056 + $0x2a8] sm:$0xff]
    %v1111 = vld [vmem:[%s1056 + $0x2b8] sm:$0xff]
    %v1112 = vld [vmem:[%s1056 + $0x2c0] sm:$0xff]
    %v1113 = vld [vmem:[%s1056 + $0x2d0] sm:$0xff]
    %v1114 = vld [vmem:[%s1056 + $0x2d8] sm:$0xff]
    %v1115 = vld [vmem:[%s1056 + $0x2e8] sm:$0xff]
    %v1116 = vld [vmem:[%s1056 + $0x2f0] sm:$0xff]
    %v1117 = vld [vmem:[%s1056 + $0x300] sm:$0xff]
    %v1118 = vld [vmem:[%s1056 + $0x308] sm:$0xff]
    %v1119 = vld [vmem:[%s1056 + $0x318] sm:$0xff]
    %v1120 = vld [vmem:[%s1056 + $0x320] sm:$0xff]
    %v1121 = vpack.c.bf16 %v1057, %v1057
    %v1122 = vpack.c.bf16 %v1058, %v1058
    %v1123 = vpack.c.bf16 %v1059, %v1059
    %v1124 = vpack.c.bf16 %v1060, %v1060
    %v1125 = vpack.c.bf16 %v1061, %v1061
    %v1126 = vpack.c.bf16 %v1062, %v1062
    %v1127 = vpack.c.bf16 %v1063, %v1063
    %v1128 = vpack.c.bf16 %v1064, %v1064
    %v1129 = vpack.c.bf16 %v1065, %v1065
    %v1130 = vpack.c.bf16 %v1066, %v1066
    %v1131 = vpack.c.bf16 %v1067, %v1067
    %v1132 = vpack.c.bf16 %v1068, %v1068
    %v1133 = vpack.c.bf16 %v1069, %v1069
    %v1134 = vpack.c.bf16 %v1070, %v1070
    %v1135 = vpack.c.bf16 %v1071, %v1071
    %v1136 = vpack.c.bf16 %v1072, %v1072
    %v1137 = vpack.c.bf16 %v1073, %v1073
    %v1138 = vpack.c.bf16 %v1074, %v1074
    %v1139 = vpack.c.bf16 %v1075, %v1075
    %v1140 = vpack.c.bf16 %v1076, %v1076
    %v1141 = vpack.c.bf16 %v1077, %v1077
    %v1142 = vpack.c.bf16 %v1078, %v1078
    %v1143 = vpack.c.bf16 %v1079, %v1079
    %v1144 = vpack.c.bf16 %v1080, %v1080
    %v1145 = vpack.c.bf16 %v1081, %v1081
    %v1146 = vpack.c.bf16 %v1082, %v1082
    %v1147 = vpack.c.bf16 %v1083, %v1083
    %v1148 = vpack.c.bf16 %v1084, %v1084
    %v1149 = vpack.c.bf16 %v1085, %v1085
    %v1150 = vpack.c.bf16 %v1086, %v1086
    %v1151 = vpack.c.bf16 %v1087, %v1087
    %v1152 = vpack.c.bf16 %v1088, %v1088
    %v1153 = vpack.c.bf16 %v1089, %v1089
    %v1154 = vpack.c.bf16 %v1090, %v1090
    %v1155 = vpack.c.bf16 %v1091, %v1091
    %v1156 = vpack.c.bf16 %v1092, %v1092
    %v1157 = vpack.c.bf16 %v1093, %v1093
    %v1158 = vpack.c.bf16 %v1094, %v1094
    %v1159 = vpack.c.bf16 %v1095, %v1095
    %v1160 = vpack.c.bf16 %v1096, %v1096
    %v1161 = vpack.c.bf16 %v1097, %v1097
    %v1162 = vpack.c.bf16 %v1098, %v1098
    %v1163 = vpack.c.bf16 %v1099, %v1099
    %v1164 = vpack.c.bf16 %v1100, %v1100
    %v1165 = vpack.c.bf16 %v1101, %v1101
    %v1166 = vpack.c.bf16 %v1102, %v1102
    %v1167 = vpack.c.bf16 %v1103, %v1103
    %v1168 = vpack.c.bf16 %v1104, %v1104
    %v1169 = vpack.c.bf16 %v1105, %v1105
    %v1170 = vpack.c.bf16 %v1106, %v1106
    %v1171 = vpack.c.bf16 %v1107, %v1107
    %v1172 = vpack.c.bf16 %v1108, %v1108
    %v1173 = vpack.c.bf16 %v1109, %v1109
    %v1174 = vpack.c.bf16 %v1110, %v1110
    %v1175 = vpack.c.bf16 %v1111, %v1111
    %v1176 = vpack.c.bf16 %v1112, %v1112
    %v1177 = vpack.c.bf16 %v1113, %v1113
    %v1178 = vpack.c.bf16 %v1114, %v1114
    %v1179 = vpack.c.bf16 %v1115, %v1115
    %v1180 = vpack.c.bf16 %v1116, %v1116
    %v1181 = vpack.c.bf16 %v1117, %v1117
    %v1182 = vpack.c.bf16 %v1118, %v1118
    %v1183 = vpack.c.bf16 %v1119, %v1119
    %v1184 = vpack.c.bf16 %v1120, %v1120
    %v1185 = vld [vmem:[%s1056 + $0x1] sm:$0xff]
    %v1186 = vld [vmem:[%s1056 + $0x9] sm:$0xff]
    %v1187 = vld [vmem:[%s1056 + $0x19] sm:$0xff]
    %v1188 = vld [vmem:[%s1056 + $0x21] sm:$0xff]
    %v1189 = vld [vmem:[%s1056 + $0x31] sm:$0xff]
    %v1190 = vld [vmem:[%s1056 + $0x39] sm:$0xff]
    %v1191 = vld [vmem:[%s1056 + $0x49] sm:$0xff]
    %v1192 = vld [vmem:[%s1056 + $0x51] sm:$0xff]
    %v1193 = vld [vmem:[%s1056 + $0x61] sm:$0xff]
    %v1194 = vld [vmem:[%s1056 + $0x69] sm:$0xff]
    %v1195 = vld [vmem:[%s1056 + $0x79] sm:$0xff]
    %v1196 = vld [vmem:[%s1056 + $0x81] sm:$0xff]
    %v1197 = vld [vmem:[%s1056 + $0x91] sm:$0xff]
    %v1198 = vld [vmem:[%s1056 + $0x99] sm:$0xff]
    %v1199 = vld [vmem:[%s1056 + $0xa9] sm:$0xff]
    %v1200 = vld [vmem:[%s1056 + $0xb1] sm:$0xff]
    %v1201 = vld [vmem:[%s1056 + $0xc1] sm:$0xff]
    %v1202 = vld [vmem:[%s1056 + $0xc9] sm:$0xff]
    %v1203 = vld [vmem:[%s1056 + $0xd9] sm:$0xff]
    %v1204 = vld [vmem:[%s1056 + $0xe1] sm:$0xff]
    %v1205 = vld [vmem:[%s1056 + $0xf1] sm:$0xff]
    %v1206 = vld [vmem:[%s1056 + $0xf9] sm:$0xff]
    %v1207 = vld [vmem:[%s1056 + $0x109] sm:$0xff]
    %v1208 = vld [vmem:[%s1056 + $0x111] sm:$0xff]
    %v1209 = vld [vmem:[%s1056 + $0x121] sm:$0xff]
    %v1210 = vld [vmem:[%s1056 + $0x129] sm:$0xff]
    %v1211 = vld [vmem:[%s1056 + $0x139] sm:$0xff]
    %v1212 = vld [vmem:[%s1056 + $0x141] sm:$0xff]
    %v1213 = vld [vmem:[%s1056 + $0x151] sm:$0xff]
    %v1214 = vld [vmem:[%s1056 + $0x159] sm:$0xff]
    %v1215 = vld [vmem:[%s1056 + $0x169] sm:$0xff]
    %v1216 = vld [vmem:[%s1056 + $0x171] sm:$0xff]
    %v1217 = vld [vmem:[%s1056 + $0x1b1] sm:$0xff]
    %v1218 = vld [vmem:[%s1056 + $0x1b9] sm:$0xff]
    %v1219 = vld [vmem:[%s1056 + $0x1c9] sm:$0xff]
    %v1220 = vld [vmem:[%s1056 + $0x1d1] sm:$0xff]
    %v1221 = vld [vmem:[%s1056 + $0x1e1] sm:$0xff]
    %v1222 = vld [vmem:[%s1056 + $0x1e9] sm:$0xff]
    %v1223 = vld [vmem:[%s1056 + $0x1f9] sm:$0xff]
    %v1224 = vld [vmem:[%s1056 + $0x201] sm:$0xff]
    %v1225 = vld [vmem:[%s1056 + $0x211] sm:$0xff]
    %v1226 = vld [vmem:[%s1056 + $0x219] sm:$0xff]
    %v1227 = vld [vmem:[%s1056 + $0x229] sm:$0xff]
    %v1228 = vld [vmem:[%s1056 + $0x231] sm:$0xff]
    %v1229 = vld [vmem:[%s1056 + $0x241] sm:$0xff]
    %v1230 = vld [vmem:[%s1056 + $0x249] sm:$0xff]
    %v1231 = vld [vmem:[%s1056 + $0x259] sm:$0xff]
    %v1232 = vld [vmem:[%s1056 + $0x261] sm:$0xff]
    %v1233 = vld [vmem:[%s1056 + $0x271] sm:$0xff]
    %v1234 = vld [vmem:[%s1056 + $0x279] sm:$0xff]
    %v1235 = vld [vmem:[%s1056 + $0x289] sm:$0xff]
    %v1236 = vld [vmem:[%s1056 + $0x291] sm:$0xff]
    %v1237 = vld [vmem:[%s1056 + $0x2a1] sm:$0xff]
    %v1238 = vld [vmem:[%s1056 + $0x2a9] sm:$0xff]
    %v1239 = vld [vmem:[%s1056 + $0x2b9] sm:$0xff]
    %v1240 = vld [vmem:[%s1056 + $0x2c1] sm:$0xff]
    %v1241 = vld [vmem:[%s1056 + $0x2d1] sm:$0xff]
    %v1242 = vld [vmem:[%s1056 + $0x2d9] sm:$0xff]
    %v1243 = vld [vmem:[%s1056 + $0x2e9] sm:$0xff]
    %v1244 = vld [vmem:[%s1056 + $0x2f1] sm:$0xff]
    %v1245 = vld [vmem:[%s1056 + $0x301] sm:$0xff]
    %v1246 = vld [vmem:[%s1056 + $0x309] sm:$0xff]
    %v1247 = vld [vmem:[%s1056 + $0x319] sm:$0xff]
    %v1248 = vld [vmem:[%s1056 + $0x321] sm:$0xff]
    %v1249 = vpack.c.bf16 %v1185, %v1185
    %v1250 = vpack.c.bf16 %v1186, %v1186
    %v1251 = vpack.c.bf16 %v1187, %v1187
    %v1252 = vpack.c.bf16 %v1188, %v1188
    %v1253 = vpack.c.bf16 %v1189, %v1189
    %v1254 = vpack.c.bf16 %v1190, %v1190
    %v1255 = vpack.c.bf16 %v1191, %v1191
    %v1256 = vpack.c.bf16 %v1192, %v1192
    %v1257 = vpack.c.bf16 %v1193, %v1193
    %v1258 = vpack.c.bf16 %v1194, %v1194
    %v1259 = vpack.c.bf16 %v1195, %v1195
    %v1260 = vpack.c.bf16 %v1196, %v1196
    %v1261 = vpack.c.bf16 %v1197, %v1197
    %v1262 = vpack.c.bf16 %v1198, %v1198
    %v1263 = vpack.c.bf16 %v1199, %v1199
    %v1264 = vpack.c.bf16 %v1200, %v1200
    %v1265 = vpack.c.bf16 %v1201, %v1201
    %v1266 = vpack.c.bf16 %v1202, %v1202
    %v1267 = vpack.c.bf16 %v1203, %v1203
    %v1268 = vpack.c.bf16 %v1204, %v1204
    %v1269 = vpack.c.bf16 %v1205, %v1205
    %v1270 = vpack.c.bf16 %v1206, %v1206
    %v1271 = vpack.c.bf16 %v1207, %v1207
    %v1272 = vpack.c.bf16 %v1208, %v1208
    %v1273 = vpack.c.bf16 %v1209, %v1209
    %v1274 = vpack.c.bf16 %v1210, %v1210
    %v1275 = vpack.c.bf16 %v1211, %v1211
    %v1276 = vpack.c.bf16 %v1212, %v1212
    %v1277 = vpack.c.bf16 %v1213, %v1213
    %v1278 = vpack.c.bf16 %v1214, %v1214
    %v1279 = vpack.c.bf16 %v1215, %v1215
    %v1280 = vpack.c.bf16 %v1216, %v1216
    %v1281 = vpack.c.bf16 %v1217, %v1217
    %v1282 = vpack.c.bf16 %v1218, %v1218
    %v1283 = vpack.c.bf16 %v1219, %v1219
    %v1284 = vpack.c.bf16 %v1220, %v1220
    %v1285 = vpack.c.bf16 %v1221, %v1221
    %v1286 = vpack.c.bf16 %v1222, %v1222
    %v1287 = vpack.c.bf16 %v1223, %v1223
    %v1288 = vpack.c.bf16 %v1224, %v1224
    %v1289 = vpack.c.bf16 %v1225, %v1225
    %v1290 = vpack.c.bf16 %v1226, %v1226
    %v1291 = vpack.c.bf16 %v1227, %v1227
    %v1292 = vpack.c.bf16 %v1228, %v1228
    %v1293 = vpack.c.bf16 %v1229, %v1229
    %v1294 = vpack.c.bf16 %v1230, %v1230
    %v1295 = vpack.c.bf16 %v1231, %v1231
    %v1296 = vpack.c.bf16 %v1232, %v1232
    %v1297 = vpack.c.bf16 %v1233, %v1233
    %v1298 = vpack.c.bf16 %v1234, %v1234
    %v1299 = vpack.c.bf16 %v1235, %v1235
    %v1300 = vpack.c.bf16 %v1236, %v1236
    %v1301 = vpack.c.bf16 %v1237, %v1237
    %v1302 = vpack.c.bf16 %v1238, %v1238
    %v1303 = vpack.c.bf16 %v1239, %v1239
    %v1304 = vpack.c.bf16 %v1240, %v1240
    %v1305 = vpack.c.bf16 %v1241, %v1241
    %v1306 = vpack.c.bf16 %v1242, %v1242
    %v1307 = vpack.c.bf16 %v1243, %v1243
    %v1308 = vpack.c.bf16 %v1244, %v1244
    %v1309 = vpack.c.bf16 %v1245, %v1245
    %v1310 = vpack.c.bf16 %v1246, %v1246
    %v1311 = vpack.c.bf16 %v1247, %v1247
    %v1312 = vpack.c.bf16 %v1248, %v1248
    %v1313 = vld [vmem:[%s1056 + $0x2] sm:$0xff]
    %v1314 = vld [vmem:[%s1056 + $0xa] sm:$0xff]
    %v1315 = vld [vmem:[%s1056 + $0x1a] sm:$0xff]
    %v1316 = vld [vmem:[%s1056 + $0x22] sm:$0xff]
    %v1317 = vld [vmem:[%s1056 + $0x32] sm:$0xff]
    %v1318 = vld [vmem:[%s1056 + $0x3a] sm:$0xff]
    %v1319 = vld [vmem:[%s1056 + $0x4a] sm:$0xff]
    %v1320 = vld [vmem:[%s1056 + $0x52] sm:$0xff]
    %v1321 = vld [vmem:[%s1056 + $0x62] sm:$0xff]
    %v1322 = vld [vmem:[%s1056 + $0x6a] sm:$0xff]
    %v1323 = vld [vmem:[%s1056 + $0x7a] sm:$0xff]
    %v1324 = vld [vmem:[%s1056 + $0x82] sm:$0xff]
    %v1325 = vld [vmem:[%s1056 + $0x92] sm:$0xff]
    %v1326 = vld [vmem:[%s1056 + $0x9a] sm:$0xff]
    %v1327 = vld [vmem:[%s1056 + $0xaa] sm:$0xff]
    %v1328 = vld [vmem:[%s1056 + $0xb2] sm:$0xff]
    %v1329 = vld [vmem:[%s1056 + $0xc2] sm:$0xff]
    %v1330 = vld [vmem:[%s1056 + $0xca] sm:$0xff]
    %v1331 = vld [vmem:[%s1056 + $0xda] sm:$0xff]
    %v1332 = vld [vmem:[%s1056 + $0xe2] sm:$0xff]
    %v1333 = vld [vmem:[%s1056 + $0xf2] sm:$0xff]
    %v1334 = vld [vmem:[%s1056 + $0xfa] sm:$0xff]
    %v1335 = vld [vmem:[%s1056 + $0x10a] sm:$0xff]
    %v1336 = vld [vmem:[%s1056 + $0x112] sm:$0xff]
    %v1337 = vld [vmem:[%s1056 + $0x122] sm:$0xff]
    %v1338 = vld [vmem:[%s1056 + $0x12a] sm:$0xff]
    %v1339 = vld [vmem:[%s1056 + $0x13a] sm:$0xff]
    %v1340 = vld [vmem:[%s1056 + $0x142] sm:$0xff]
    %v1341 = vld [vmem:[%s1056 + $0x152] sm:$0xff]
    %v1342 = vld [vmem:[%s1056 + $0x15a] sm:$0xff]
    %v1343 = vld [vmem:[%s1056 + $0x16a] sm:$0xff]
    %v1344 = vld [vmem:[%s1056 + $0x172] sm:$0xff]
    %v1345 = vld [vmem:[%s1056 + $0x1b2] sm:$0xff]
    %v1346 = vld [vmem:[%s1056 + $0x1ba] sm:$0xff]
    %v1347 = vld [vmem:[%s1056 + $0x1ca] sm:$0xff]
    %v1348 = vld [vmem:[%s1056 + $0x1d2] sm:$0xff]
    %v1349 = vld [vmem:[%s1056 + $0x1e2] sm:$0xff]
    %v1350 = vld [vmem:[%s1056 + $0x1ea] sm:$0xff]
    %v1351 = vld [vmem:[%s1056 + $0x1fa] sm:$0xff]
    %v1352 = vld [vmem:[%s1056 + $0x202] sm:$0xff]
    %v1353 = vld [vmem:[%s1056 + $0x212] sm:$0xff]
    %v1354 = vld [vmem:[%s1056 + $0x21a] sm:$0xff]
    %v1355 = vld [vmem:[%s1056 + $0x22a] sm:$0xff]
    %v1356 = vld [vmem:[%s1056 + $0x232] sm:$0xff]
    %v1357 = vld [vmem:[%s1056 + $0x242] sm:$0xff]
    %v1358 = vld [vmem:[%s1056 + $0x24a] sm:$0xff]
    %v1359 = vld [vmem:[%s1056 + $0x25a] sm:$0xff]
    %v1360 = vld [vmem:[%s1056 + $0x262] sm:$0xff]
    %v1361 = vld [vmem:[%s1056 + $0x272] sm:$0xff]
    %v1362 = vld [vmem:[%s1056 + $0x27a] sm:$0xff]
    %v1363 = vld [vmem:[%s1056 + $0x28a] sm:$0xff]
    %v1364 = vld [vmem:[%s1056 + $0x292] sm:$0xff]
    %v1365 = vld [vmem:[%s1056 + $0x2a2] sm:$0xff]
    %v1366 = vld [vmem:[%s1056 + $0x2aa] sm:$0xff]
    %v1367 = vld [vmem:[%s1056 + $0x2ba] sm:$0xff]
    %v1368 = vld [vmem:[%s1056 + $0x2c2] sm:$0xff]
    %v1369 = vld [vmem:[%s1056 + $0x2d2] sm:$0xff]
    %v1370 = vld [vmem:[%s1056 + $0x2da] sm:$0xff]
    %v1371 = vld [vmem:[%s1056 + $0x2ea] sm:$0xff]
    %v1372 = vld [vmem:[%s1056 + $0x2f2] sm:$0xff]
    %v1373 = vld [vmem:[%s1056 + $0x302] sm:$0xff]
    %v1374 = vld [vmem:[%s1056 + $0x30a] sm:$0xff]
    %v1375 = vld [vmem:[%s1056 + $0x31a] sm:$0xff]
    %v1376 = vld [vmem:[%s1056 + $0x322] sm:$0xff]
    %v1377 = vpack.c.bf16 %v1313, %v1313
    %v1378 = vpack.c.bf16 %v1314, %v1314
    %v1379 = vpack.c.bf16 %v1315, %v1315
    %v1380 = vpack.c.bf16 %v1316, %v1316
    %v1381 = vpack.c.bf16 %v1317, %v1317
    %v1382 = vpack.c.bf16 %v1318, %v1318
    %v1383 = vpack.c.bf16 %v1319, %v1319
    %v1384 = vpack.c.bf16 %v1320, %v1320
    %v1385 = vpack.c.bf16 %v1321, %v1321
    %v1386 = vpack.c.bf16 %v1322, %v1322
    %v1387 = vpack.c.bf16 %v1323, %v1323
    %v1388 = vpack.c.bf16 %v1324, %v1324
    %v1389 = vpack.c.bf16 %v1325, %v1325
    %v1390 = vpack.c.bf16 %v1326, %v1326
    %v1391 = vpack.c.bf16 %v1327, %v1327
    %v1392 = vpack.c.bf16 %v1328, %v1328
    %v1393 = vpack.c.bf16 %v1329, %v1329
    %v1394 = vpack.c.bf16 %v1330, %v1330
    %v1395 = vpack.c.bf16 %v1331, %v1331
    %v1396 = vpack.c.bf16 %v1332, %v1332
    %v1397 = vpack.c.bf16 %v1333, %v1333
    %v1398 = vpack.c.bf16 %v1334, %v1334
    %v1399 = vpack.c.bf16 %v1335, %v1335
    %v1400 = vpack.c.bf16 %v1336, %v1336
    %v1401 = vpack.c.bf16 %v1337, %v1337
    %v1402 = vpack.c.bf16 %v1338, %v1338
    %v1403 = vpack.c.bf16 %v1339, %v1339
    %v1404 = vpack.c.bf16 %v1340, %v1340
    %v1405 = vpack.c.bf16 %v1341, %v1341
    %v1406 = vpack.c.bf16 %v1342, %v1342
    %v1407 = vpack.c.bf16 %v1343, %v1343
    %v1408 = vpack.c.bf16 %v1344, %v1344
    %v1409 = vpack.c.bf16 %v1345, %v1345
    %v1410 = vpack.c.bf16 %v1346, %v1346
    %v1411 = vpack.c.bf16 %v1347, %v1347
    %v1412 = vpack.c.bf16 %v1348, %v1348
    %v1413 = vpack.c.bf16 %v1349, %v1349
    %v1414 = vpack.c.bf16 %v1350, %v1350
    %v1415 = vpack.c.bf16 %v1351, %v1351
    %v1416 = vpack.c.bf16 %v1352, %v1352
    %v1417 = vpack.c.bf16 %v1353, %v1353
    %v1418 = vpack.c.bf16 %v1354, %v1354
    %v1419 = vpack.c.bf16 %v1355, %v1355
    %v1420 = vpack.c.bf16 %v1356, %v1356
    %v1421 = vpack.c.bf16 %v1357, %v1357
    %v1422 = vpack.c.bf16 %v1358, %v1358
    %v1423 = vpack.c.bf16 %v1359, %v1359
    %v1424 = vpack.c.bf16 %v1360, %v1360
    %v1425 = vpack.c.bf16 %v1361, %v1361
    %v1426 = vpack.c.bf16 %v1362, %v1362
    %v1427 = vpack.c.bf16 %v1363, %v1363
    %v1428 = vpack.c.bf16 %v1364, %v1364
    %v1429 = vpack.c.bf16 %v1365, %v1365
    %v1430 = vpack.c.bf16 %v1366, %v1366
    %v1431 = vpack.c.bf16 %v1367, %v1367
    %v1432 = vpack.c.bf16 %v1368, %v1368
    %v1433 = vpack.c.bf16 %v1369, %v1369
    %v1434 = vpack.c.bf16 %v1370, %v1370
    %v1435 = vpack.c.bf16 %v1371, %v1371
    %v1436 = vpack.c.bf16 %v1372, %v1372
    %v1437 = vpack.c.bf16 %v1373, %v1373
    %v1438 = vpack.c.bf16 %v1374, %v1374
    %v1439 = vpack.c.bf16 %v1375, %v1375
    %v1440 = vpack.c.bf16 %v1376, %v1376
    %v1505 = vunpack.c.l.b16 %v352
    %v1506 = vunpack.c.l.b16 %v353
    %v1507 = vunpack.c.l.b16 %v354
    %v1508 = vunpack.c.l.b16 %v355
    %v1509 = vunpack.c.l.b16 %v356
    %v1510 = vunpack.c.l.b16 %v357
    %v1511 = vunpack.c.l.b16 %v358
    %v1512 = vunpack.c.l.b16 %v359
    %v1513 = vunpack.c.l.b16 %v360
    %v1514 = vunpack.c.l.b16 %v361
    %v1515 = vunpack.c.l.b16 %v362
    %v1516 = vunpack.c.l.b16 %v363
    %v1517 = vunpack.c.l.b16 %v364
    %v1518 = vunpack.c.l.b16 %v365
    %v1519 = vunpack.c.l.b16 %v366
    %v1520 = vunpack.c.l.b16 %v367
    %v1521 = vunpack.c.l.b16 %v368
    %v1522 = vunpack.c.l.b16 %v369
    %v1523 = vunpack.c.l.b16 %v370
    %v1524 = vunpack.c.l.b16 %v371
    %v1525 = vunpack.c.l.b16 %v372
    %v1526 = vunpack.c.l.b16 %v373
    %v1527 = vunpack.c.l.b16 %v374
    %v1528 = vunpack.c.l.b16 %v375
    %v1529 = vunpack.c.l.b16 %v376
    %v1530 = vunpack.c.l.b16 %v377
    %v1531 = vunpack.c.l.b16 %v378
    %v1532 = vunpack.c.l.b16 %v379
    %v1533 = vunpack.c.l.b16 %v380
    %v1534 = vunpack.c.l.b16 %v381
    %v1535 = vunpack.c.l.b16 %v382
    %v1536 = vunpack.c.l.b16 %v383
    %v1537 = vunpack.c.l.b16 %v384
    %v1538 = vunpack.c.l.b16 %v385
    %v1539 = vunpack.c.l.b16 %v386
    %v1540 = vunpack.c.l.b16 %v387
    %v1541 = vunpack.c.l.b16 %v388
    %v1542 = vunpack.c.l.b16 %v389
    %v1543 = vunpack.c.l.b16 %v390
    %v1544 = vunpack.c.l.b16 %v391
    %v1545 = vunpack.c.l.b16 %v392
    %v1546 = vunpack.c.l.b16 %v393
    %v1547 = vunpack.c.l.b16 %v394
    %v1548 = vunpack.c.l.b16 %v395
    %v1549 = vunpack.c.l.b16 %v396
    %v1550 = vunpack.c.l.b16 %v397
    %v1551 = vunpack.c.l.b16 %v398
    %v1552 = vunpack.c.l.b16 %v399
    %v1553 = vunpack.c.l.b16 %v400
    %v1554 = vunpack.c.l.b16 %v401
    %v1555 = vunpack.c.l.b16 %v402
    %v1556 = vunpack.c.l.b16 %v403
    %v1557 = vunpack.c.l.b16 %v404
    %v1558 = vunpack.c.l.b16 %v405
    %v1559 = vunpack.c.l.b16 %v406
    %v1560 = vunpack.c.l.b16 %v407
    %v1561 = vunpack.c.l.b16 %v408
    %v1562 = vunpack.c.l.b16 %v409
    %v1563 = vunpack.c.l.b16 %v410
    %v1564 = vunpack.c.l.b16 %v411
    %v1565 = vunpack.c.l.b16 %v412
    %v1566 = vunpack.c.l.b16 %v413
    %v1567 = vunpack.c.l.b16 %v414
    %v1568 = vunpack.c.l.b16 %v415
    %v1569 = vpack.c.b16 %v1506, %v1505
    %v1570 = vpack.c.b16 %v1508, %v1507
    %v1571 = vpack.c.b16 %v1510, %v1509
    %v1572 = vpack.c.b16 %v1512, %v1511
    %v1573 = vpack.c.b16 %v1514, %v1513
    %v1574 = vpack.c.b16 %v1516, %v1515
    %v1575 = vpack.c.b16 %v1518, %v1517
    %v1576 = vpack.c.b16 %v1520, %v1519
    %v1577 = vpack.c.b16 %v1522, %v1521
    %v1578 = vpack.c.b16 %v1524, %v1523
    %v1579 = vpack.c.b16 %v1526, %v1525
    %v1580 = vpack.c.b16 %v1528, %v1527
    %v1581 = vpack.c.b16 %v1530, %v1529
    %v1582 = vpack.c.b16 %v1532, %v1531
    %v1583 = vpack.c.b16 %v1534, %v1533
    %v1584 = vpack.c.b16 %v1536, %v1535
    %v1585 = vpack.c.b16 %v1538, %v1537
    %v1586 = vpack.c.b16 %v1540, %v1539
    %v1587 = vpack.c.b16 %v1542, %v1541
    %v1588 = vpack.c.b16 %v1544, %v1543
    %v1589 = vpack.c.b16 %v1546, %v1545
    %v1590 = vpack.c.b16 %v1548, %v1547
    %v1591 = vpack.c.b16 %v1550, %v1549
    %v1592 = vpack.c.b16 %v1552, %v1551
    %v1593 = vpack.c.b16 %v1554, %v1553
    %v1594 = vpack.c.b16 %v1556, %v1555
    %v1595 = vpack.c.b16 %v1558, %v1557
    %v1596 = vpack.c.b16 %v1560, %v1559
    %v1597 = vpack.c.b16 %v1562, %v1561
    %v1598 = vpack.c.b16 %v1564, %v1563
    %v1599 = vpack.c.b16 %v1566, %v1565
    %v1600 = vpack.c.b16 %v1568, %v1567
    %v1697 = vunpack.c.l.b16 %v480
    %v1698 = vunpack.c.l.b16 %v481
    %v1699 = vunpack.c.l.b16 %v482
    %v1700 = vunpack.c.l.b16 %v483
    %v1701 = vunpack.c.l.b16 %v484
    %v1702 = vunpack.c.l.b16 %v485
    %v1703 = vunpack.c.l.b16 %v486
    %v1704 = vunpack.c.l.b16 %v487
    %v1705 = vunpack.c.l.b16 %v488
    %v1706 = vunpack.c.l.b16 %v489
    %v1707 = vunpack.c.l.b16 %v490
    %v1708 = vunpack.c.l.b16 %v491
    %v1709 = vunpack.c.l.b16 %v492
    %v1710 = vunpack.c.l.b16 %v493
    %v1711 = vunpack.c.l.b16 %v494
    %v1712 = vunpack.c.l.b16 %v495
    %v1713 = vunpack.c.l.b16 %v496
    %v1714 = vunpack.c.l.b16 %v497
    %v1715 = vunpack.c.l.b16 %v498
    %v1716 = vunpack.c.l.b16 %v499
    %v1717 = vunpack.c.l.b16 %v500
    %v1718 = vunpack.c.l.b16 %v501
    %v1719 = vunpack.c.l.b16 %v502
    %v1720 = vunpack.c.l.b16 %v503
    %v1721 = vunpack.c.l.b16 %v504
    %v1722 = vunpack.c.l.b16 %v505
    %v1723 = vunpack.c.l.b16 %v506
    %v1724 = vunpack.c.l.b16 %v507
    %v1725 = vunpack.c.l.b16 %v508
    %v1726 = vunpack.c.l.b16 %v509
    %v1727 = vunpack.c.l.b16 %v510
    %v1728 = vunpack.c.l.b16 %v511
    %v1729 = vunpack.c.l.b16 %v512
    %v1730 = vunpack.c.l.b16 %v513
    %v1731 = vunpack.c.l.b16 %v514
    %v1732 = vunpack.c.l.b16 %v515
    %v1733 = vunpack.c.l.b16 %v516
    %v1734 = vunpack.c.l.b16 %v517
    %v1735 = vunpack.c.l.b16 %v518
    %v1736 = vunpack.c.l.b16 %v519
    %v1737 = vunpack.c.l.b16 %v520
    %v1738 = vunpack.c.l.b16 %v521
    %v1739 = vunpack.c.l.b16 %v522
    %v1740 = vunpack.c.l.b16 %v523
    %v1741 = vunpack.c.l.b16 %v524
    %v1742 = vunpack.c.l.b16 %v525
    %v1743 = vunpack.c.l.b16 %v526
    %v1744 = vunpack.c.l.b16 %v527
    %v1745 = vunpack.c.l.b16 %v528
    %v1746 = vunpack.c.l.b16 %v529
    %v1747 = vunpack.c.l.b16 %v530
    %v1748 = vunpack.c.l.b16 %v531
    %v1749 = vunpack.c.l.b16 %v532
    %v1750 = vunpack.c.l.b16 %v533
    %v1751 = vunpack.c.l.b16 %v534
    %v1752 = vunpack.c.l.b16 %v535
    %v1753 = vunpack.c.l.b16 %v536
    %v1754 = vunpack.c.l.b16 %v537
    %v1755 = vunpack.c.l.b16 %v538
    %v1756 = vunpack.c.l.b16 %v539
    %v1757 = vunpack.c.l.b16 %v540
    %v1758 = vunpack.c.l.b16 %v541
    %v1759 = vunpack.c.l.b16 %v542
    %v1760 = vunpack.c.l.b16 %v543
    %v1761 = vpack.c.b16 %v1698, %v1697
    %v1762 = vpack.c.b16 %v1700, %v1699
    %v1763 = vpack.c.b16 %v1702, %v1701
    %v1764 = vpack.c.b16 %v1704, %v1703
    %v1765 = vpack.c.b16 %v1706, %v1705
    %v1766 = vpack.c.b16 %v1708, %v1707
    %v1767 = vpack.c.b16 %v1710, %v1709
    %v1768 = vpack.c.b16 %v1712, %v1711
    %v1769 = vpack.c.b16 %v1714, %v1713
    %v1770 = vpack.c.b16 %v1716, %v1715
    %v1771 = vpack.c.b16 %v1718, %v1717
    %v1772 = vpack.c.b16 %v1720, %v1719
    %v1773 = vpack.c.b16 %v1722, %v1721
    %v1774 = vpack.c.b16 %v1724, %v1723
    %v1775 = vpack.c.b16 %v1726, %v1725
    %v1776 = vpack.c.b16 %v1728, %v1727
    %v1777 = vpack.c.b16 %v1730, %v1729
    %v1778 = vpack.c.b16 %v1732, %v1731
    %v1779 = vpack.c.b16 %v1734, %v1733
    %v1780 = vpack.c.b16 %v1736, %v1735
    %v1781 = vpack.c.b16 %v1738, %v1737
    %v1782 = vpack.c.b16 %v1740, %v1739
    %v1783 = vpack.c.b16 %v1742, %v1741
    %v1784 = vpack.c.b16 %v1744, %v1743
    %v1785 = vpack.c.b16 %v1746, %v1745
    %v1786 = vpack.c.b16 %v1748, %v1747
    %v1787 = vpack.c.b16 %v1750, %v1749
    %v1788 = vpack.c.b16 %v1752, %v1751
    %v1789 = vpack.c.b16 %v1754, %v1753
    %v1790 = vpack.c.b16 %v1756, %v1755
    %v1791 = vpack.c.b16 %v1758, %v1757
    %v1792 = vpack.c.b16 %v1760, %v1759
    %v1889 = vunpack.c.l.b16 %v608
    %v1890 = vunpack.c.l.b16 %v609
    %v1891 = vunpack.c.l.b16 %v610
    %v1892 = vunpack.c.l.b16 %v611
    %v1893 = vunpack.c.l.b16 %v612
    %v1894 = vunpack.c.l.b16 %v613
    %v1895 = vunpack.c.l.b16 %v614
    %v1896 = vunpack.c.l.b16 %v615
    %v1897 = vunpack.c.l.b16 %v616
    %v1898 = vunpack.c.l.b16 %v617
    %v1899 = vunpack.c.l.b16 %v618
    %v1900 = vunpack.c.l.b16 %v619
    %v1901 = vunpack.c.l.b16 %v620
    %v1902 = vunpack.c.l.b16 %v621
    %v1903 = vunpack.c.l.b16 %v622
    %v1904 = vunpack.c.l.b16 %v623
    %v1905 = vunpack.c.l.b16 %v624
    %v1906 = vunpack.c.l.b16 %v625
    %v1907 = vunpack.c.l.b16 %v626
    %v1908 = vunpack.c.l.b16 %v627
    %v1909 = vunpack.c.l.b16 %v628
    %v1910 = vunpack.c.l.b16 %v629
    %v1911 = vunpack.c.l.b16 %v630
    %v1912 = vunpack.c.l.b16 %v631
    %v1913 = vunpack.c.l.b16 %v632
    %v1914 = vunpack.c.l.b16 %v633
    %v1915 = vunpack.c.l.b16 %v634
    %v1916 = vunpack.c.l.b16 %v635
    %v1917 = vunpack.c.l.b16 %v636
    %v1918 = vunpack.c.l.b16 %v637
    %v1919 = vunpack.c.l.b16 %v638
    %v1920 = vunpack.c.l.b16 %v639
    %v1921 = vunpack.c.l.b16 %v640
    %v1922 = vunpack.c.l.b16 %v641
    %v1923 = vunpack.c.l.b16 %v642
    %v1924 = vunpack.c.l.b16 %v643
    %v1925 = vunpack.c.l.b16 %v644
    %v1926 = vunpack.c.l.b16 %v645
    %v1927 = vunpack.c.l.b16 %v646
    %v1928 = vunpack.c.l.b16 %v647
    %v1929 = vunpack.c.l.b16 %v648
    %v1930 = vunpack.c.l.b16 %v649
    %v1931 = vunpack.c.l.b16 %v650
    %v1932 = vunpack.c.l.b16 %v651
    %v1933 = vunpack.c.l.b16 %v652
    %v1934 = vunpack.c.l.b16 %v653
    %v1935 = vunpack.c.l.b16 %v654
    %v1936 = vunpack.c.l.b16 %v655
    %v1937 = vunpack.c.l.b16 %v656
    %v1938 = vunpack.c.l.b16 %v657
    %v1939 = vunpack.c.l.b16 %v658
    %v1940 = vunpack.c.l.b16 %v659
    %v1941 = vunpack.c.l.b16 %v660
    %v1942 = vunpack.c.l.b16 %v661
    %v1943 = vunpack.c.l.b16 %v662
    %v1944 = vunpack.c.l.b16 %v663
    %v1945 = vunpack.c.l.b16 %v664
    %v1946 = vunpack.c.l.b16 %v665
    %v1947 = vunpack.c.l.b16 %v666
    %v1948 = vunpack.c.l.b16 %v667
    %v1949 = vunpack.c.l.b16 %v668
    %v1950 = vunpack.c.l.b16 %v669
    %v1951 = vunpack.c.l.b16 %v670
    %v1952 = vunpack.c.l.b16 %v671
    %v1953 = vpack.c.b16 %v1890, %v1889
    %v1954 = vpack.c.b16 %v1892, %v1891
    %v1955 = vpack.c.b16 %v1894, %v1893
    %v1956 = vpack.c.b16 %v1896, %v1895
    %v1957 = vpack.c.b16 %v1898, %v1897
    %v1958 = vpack.c.b16 %v1900, %v1899
    %v1959 = vpack.c.b16 %v1902, %v1901
    %v1960 = vpack.c.b16 %v1904, %v1903
    %v1961 = vpack.c.b16 %v1906, %v1905
    %v1962 = vpack.c.b16 %v1908, %v1907
    %v1963 = vpack.c.b16 %v1910, %v1909
    %v1964 = vpack.c.b16 %v1912, %v1911
    %v1965 = vpack.c.b16 %v1914, %v1913
    %v1966 = vpack.c.b16 %v1916, %v1915
    %v1967 = vpack.c.b16 %v1918, %v1917
    %v1968 = vpack.c.b16 %v1920, %v1919
    %v1969 = vpack.c.b16 %v1922, %v1921
    %v1970 = vpack.c.b16 %v1924, %v1923
    %v1971 = vpack.c.b16 %v1926, %v1925
    %v1972 = vpack.c.b16 %v1928, %v1927
    %v1973 = vpack.c.b16 %v1930, %v1929
    %v1974 = vpack.c.b16 %v1932, %v1931
    %v1975 = vpack.c.b16 %v1934, %v1933
    %v1976 = vpack.c.b16 %v1936, %v1935
    %v1977 = vpack.c.b16 %v1938, %v1937
    %v1978 = vpack.c.b16 %v1940, %v1939
    %v1979 = vpack.c.b16 %v1942, %v1941
    %v1980 = vpack.c.b16 %v1944, %v1943
    %v1981 = vpack.c.b16 %v1946, %v1945
    %v1982 = vpack.c.b16 %v1948, %v1947
    %v1983 = vpack.c.b16 %v1950, %v1949
    %v1984 = vpack.c.b16 %v1952, %v1951
    %v2081 = vunpack.c.l.b16 %v736
    %v2082 = vunpack.c.l.b16 %v737
    %v2083 = vunpack.c.l.b16 %v738
    %v2084 = vunpack.c.l.b16 %v739
    %v2085 = vunpack.c.l.b16 %v740
    %v2086 = vunpack.c.l.b16 %v741
    %v2087 = vunpack.c.l.b16 %v742
    %v2088 = vunpack.c.l.b16 %v743
    %v2089 = vunpack.c.l.b16 %v744
    %v2090 = vunpack.c.l.b16 %v745
    %v2091 = vunpack.c.l.b16 %v746
    %v2092 = vunpack.c.l.b16 %v747
    %v2093 = vunpack.c.l.b16 %v748
    %v2094 = vunpack.c.l.b16 %v749
    %v2095 = vunpack.c.l.b16 %v750
    %v2096 = vunpack.c.l.b16 %v751
    %v2097 = vunpack.c.l.b16 %v752
    %v2098 = vunpack.c.l.b16 %v753
    %v2099 = vunpack.c.l.b16 %v754
    %v2100 = vunpack.c.l.b16 %v755
    %v2101 = vunpack.c.l.b16 %v756
    %v2102 = vunpack.c.l.b16 %v757
    %v2103 = vunpack.c.l.b16 %v758
    %v2104 = vunpack.c.l.b16 %v759
    %v2105 = vunpack.c.l.b16 %v760
    %v2106 = vunpack.c.l.b16 %v761
    %v2107 = vunpack.c.l.b16 %v762
    %v2108 = vunpack.c.l.b16 %v763
    %v2109 = vunpack.c.l.b16 %v764
    %v2110 = vunpack.c.l.b16 %v765
    %v2111 = vunpack.c.l.b16 %v766
    %v2112 = vunpack.c.l.b16 %v767
    %v2113 = vunpack.c.l.b16 %v768
    %v2114 = vunpack.c.l.b16 %v769
    %v2115 = vunpack.c.l.b16 %v770
    %v2116 = vunpack.c.l.b16 %v771
    %v2117 = vunpack.c.l.b16 %v772
    %v2118 = vunpack.c.l.b16 %v773
    %v2119 = vunpack.c.l.b16 %v774
    %v2120 = vunpack.c.l.b16 %v775
    %v2121 = vunpack.c.l.b16 %v776
    %v2122 = vunpack.c.l.b16 %v777
    %v2123 = vunpack.c.l.b16 %v778
    %v2124 = vunpack.c.l.b16 %v779
    %v2125 = vunpack.c.l.b16 %v780
    %v2126 = vunpack.c.l.b16 %v781
    %v2127 = vunpack.c.l.b16 %v782
    %v2128 = vunpack.c.l.b16 %v783
    %v2129 = vunpack.c.l.b16 %v784
    %v2130 = vunpack.c.l.b16 %v785
    %v2131 = vunpack.c.l.b16 %v786
    %v2132 = vunpack.c.l.b16 %v787
    %v2133 = vunpack.c.l.b16 %v788
    %v2134 = vunpack.c.l.b16 %v789
    %v2135 = vunpack.c.l.b16 %v790
    %v2136 = vunpack.c.l.b16 %v791
    %v2137 = vunpack.c.l.b16 %v792
    %v2138 = vunpack.c.l.b16 %v793
    %v2139 = vunpack.c.l.b16 %v794
    %v2140 = vunpack.c.l.b16 %v795
    %v2141 = vunpack.c.l.b16 %v796
    %v2142 = vunpack.c.l.b16 %v797
    %v2143 = vunpack.c.l.b16 %v798
    %v2144 = vunpack.c.l.b16 %v799
    %v2145 = vpack.c.b16 %v2082, %v2081
    %v2146 = vpack.c.b16 %v2084, %v2083
    %v2147 = vpack.c.b16 %v2086, %v2085
    %v2148 = vpack.c.b16 %v2088, %v2087
    %v2149 = vpack.c.b16 %v2090, %v2089
    %v2150 = vpack.c.b16 %v2092, %v2091
    %v2151 = vpack.c.b16 %v2094, %v2093
    %v2152 = vpack.c.b16 %v2096, %v2095
    %v2153 = vpack.c.b16 %v2098, %v2097
    %v2154 = vpack.c.b16 %v2100, %v2099
    %v2155 = vpack.c.b16 %v2102, %v2101
    %v2156 = vpack.c.b16 %v2104, %v2103
    %v2157 = vpack.c.b16 %v2106, %v2105
    %v2158 = vpack.c.b16 %v2108, %v2107
    %v2159 = vpack.c.b16 %v2110, %v2109
    %v2160 = vpack.c.b16 %v2112, %v2111
    %v2161 = vpack.c.b16 %v2114, %v2113
    %v2162 = vpack.c.b16 %v2116, %v2115
    %v2163 = vpack.c.b16 %v2118, %v2117
    %v2164 = vpack.c.b16 %v2120, %v2119
    %v2165 = vpack.c.b16 %v2122, %v2121
    %v2166 = vpack.c.b16 %v2124, %v2123
    %v2167 = vpack.c.b16 %v2126, %v2125
    %v2168 = vpack.c.b16 %v2128, %v2127
    %v2169 = vpack.c.b16 %v2130, %v2129
    %v2170 = vpack.c.b16 %v2132, %v2131
    %v2171 = vpack.c.b16 %v2134, %v2133
    %v2172 = vpack.c.b16 %v2136, %v2135
    %v2173 = vpack.c.b16 %v2138, %v2137
    %v2174 = vpack.c.b16 %v2140, %v2139
    %v2175 = vpack.c.b16 %v2142, %v2141
    %v2176 = vpack.c.b16 %v2144, %v2143
    %v2273 = vunpack.c.l.b16 %v864
    %v2274 = vunpack.c.l.b16 %v865
    %v2275 = vunpack.c.l.b16 %v866
    %v2276 = vunpack.c.l.b16 %v867
    %v2277 = vunpack.c.l.b16 %v868
    %v2278 = vunpack.c.l.b16 %v869
    %v2279 = vunpack.c.l.b16 %v870
    %v2280 = vunpack.c.l.b16 %v871
    %v2281 = vunpack.c.l.b16 %v872
    %v2282 = vunpack.c.l.b16 %v873
    %v2283 = vunpack.c.l.b16 %v874
    %v2284 = vunpack.c.l.b16 %v875
    %v2285 = vunpack.c.l.b16 %v876
    %v2286 = vunpack.c.l.b16 %v877
    %v2287 = vunpack.c.l.b16 %v878
    %v2288 = vunpack.c.l.b16 %v879
    %v2289 = vunpack.c.l.b16 %v880
    %v2290 = vunpack.c.l.b16 %v881
    %v2291 = vunpack.c.l.b16 %v882
    %v2292 = vunpack.c.l.b16 %v883
    %v2293 = vunpack.c.l.b16 %v884
    %v2294 = vunpack.c.l.b16 %v885
    %v2295 = vunpack.c.l.b16 %v886
    %v2296 = vunpack.c.l.b16 %v887
    %v2297 = vunpack.c.l.b16 %v888
    %v2298 = vunpack.c.l.b16 %v889
    %v2299 = vunpack.c.l.b16 %v890
    %v2300 = vunpack.c.l.b16 %v891
    %v2301 = vunpack.c.l.b16 %v892
    %v2302 = vunpack.c.l.b16 %v893
    %v2303 = vunpack.c.l.b16 %v894
    %v2304 = vunpack.c.l.b16 %v895
    %v2305 = vunpack.c.l.b16 %v896
    %v2306 = vunpack.c.l.b16 %v897
    %v2307 = vunpack.c.l.b16 %v898
    %v2308 = vunpack.c.l.b16 %v899
    %v2309 = vunpack.c.l.b16 %v900
    %v2310 = vunpack.c.l.b16 %v901
    %v2311 = vunpack.c.l.b16 %v902
    %v2312 = vunpack.c.l.b16 %v903
    %v2313 = vunpack.c.l.b16 %v904
    %v2314 = vunpack.c.l.b16 %v905
    %v2315 = vunpack.c.l.b16 %v906
    %v2316 = vunpack.c.l.b16 %v907
    %v2317 = vunpack.c.l.b16 %v908
    %v2318 = vunpack.c.l.b16 %v909
    %v2319 = vunpack.c.l.b16 %v910
    %v2320 = vunpack.c.l.b16 %v911
    %v2321 = vunpack.c.l.b16 %v912
    %v2322 = vunpack.c.l.b16 %v913
    %v2323 = vunpack.c.l.b16 %v914
    %v2324 = vunpack.c.l.b16 %v915
    %v2325 = vunpack.c.l.b16 %v916
    %v2326 = vunpack.c.l.b16 %v917
    %v2327 = vunpack.c.l.b16 %v918
    %v2328 = vunpack.c.l.b16 %v919
    %v2329 = vunpack.c.l.b16 %v920
    %v2330 = vunpack.c.l.b16 %v921
    %v2331 = vunpack.c.l.b16 %v922
    %v2332 = vunpack.c.l.b16 %v923
    %v2333 = vunpack.c.l.b16 %v924
    %v2334 = vunpack.c.l.b16 %v925
    %v2335 = vunpack.c.l.b16 %v926
    %v2336 = vunpack.c.l.b16 %v927
    %v2337 = vpack.c.b16 %v2274, %v2273
    %v2338 = vpack.c.b16 %v2276, %v2275
    %v2339 = vpack.c.b16 %v2278, %v2277
    %v2340 = vpack.c.b16 %v2280, %v2279
    %v2341 = vpack.c.b16 %v2282, %v2281
    %v2342 = vpack.c.b16 %v2284, %v2283
    %v2343 = vpack.c.b16 %v2286, %v2285
    %v2344 = vpack.c.b16 %v2288, %v2287
    %v2345 = vpack.c.b16 %v2290, %v2289
    %v2346 = vpack.c.b16 %v2292, %v2291
    %v2347 = vpack.c.b16 %v2294, %v2293
    %v2348 = vpack.c.b16 %v2296, %v2295
    %v2349 = vpack.c.b16 %v2298, %v2297
    %v2350 = vpack.c.b16 %v2300, %v2299
    %v2351 = vpack.c.b16 %v2302, %v2301
    %v2352 = vpack.c.b16 %v2304, %v2303
    %v2353 = vpack.c.b16 %v2306, %v2305
    %v2354 = vpack.c.b16 %v2308, %v2307
    %v2355 = vpack.c.b16 %v2310, %v2309
    %v2356 = vpack.c.b16 %v2312, %v2311
    %v2357 = vpack.c.b16 %v2314, %v2313
    %v2358 = vpack.c.b16 %v2316, %v2315
    %v2359 = vpack.c.b16 %v2318, %v2317
    %v2360 = vpack.c.b16 %v2320, %v2319
    %v2361 = vpack.c.b16 %v2322, %v2321
    %v2362 = vpack.c.b16 %v2324, %v2323
    %v2363 = vpack.c.b16 %v2326, %v2325
    %v2364 = vpack.c.b16 %v2328, %v2327
    %v2365 = vpack.c.b16 %v2330, %v2329
    %v2366 = vpack.c.b16 %v2332, %v2331
    %v2367 = vpack.c.b16 %v2334, %v2333
    %v2368 = vpack.c.b16 %v2336, %v2335
    %v2465 = vunpack.c.l.b16 %v992
    %v2466 = vunpack.c.l.b16 %v993
    %v2467 = vunpack.c.l.b16 %v994
    %v2468 = vunpack.c.l.b16 %v995
    %v2469 = vunpack.c.l.b16 %v996
    %v2470 = vunpack.c.l.b16 %v997
    %v2471 = vunpack.c.l.b16 %v998
    %v2472 = vunpack.c.l.b16 %v999
    %v2473 = vunpack.c.l.b16 %v1000
    %v2474 = vunpack.c.l.b16 %v1001
    %v2475 = vunpack.c.l.b16 %v1002
    %v2476 = vunpack.c.l.b16 %v1003
    %v2477 = vunpack.c.l.b16 %v1004
    %v2478 = vunpack.c.l.b16 %v1005
    %v2479 = vunpack.c.l.b16 %v1006
    %v2480 = vunpack.c.l.b16 %v1007
    %v2481 = vunpack.c.l.b16 %v1008
    %v2482 = vunpack.c.l.b16 %v1009
    %v2483 = vunpack.c.l.b16 %v1010
    %v2484 = vunpack.c.l.b16 %v1011
    %v2485 = vunpack.c.l.b16 %v1012
    %v2486 = vunpack.c.l.b16 %v1013
    %v2487 = vunpack.c.l.b16 %v1014
    %v2488 = vunpack.c.l.b16 %v1015
    %v2489 = vunpack.c.l.b16 %v1016
    %v2490 = vunpack.c.l.b16 %v1017
    %v2491 = vunpack.c.l.b16 %v1018
    %v2492 = vunpack.c.l.b16 %v1019
    %v2493 = vunpack.c.l.b16 %v1020
    %v2494 = vunpack.c.l.b16 %v1021
    %v2495 = vunpack.c.l.b16 %v1022
    %v2496 = vunpack.c.l.b16 %v1023
    %v2497 = vunpack.c.l.b16 %v1024
    %v2498 = vunpack.c.l.b16 %v1025
    %v2499 = vunpack.c.l.b16 %v1026
    %v2500 = vunpack.c.l.b16 %v1027
    %v2501 = vunpack.c.l.b16 %v1028
    %v2502 = vunpack.c.l.b16 %v1029
    %v2503 = vunpack.c.l.b16 %v1030
    %v2504 = vunpack.c.l.b16 %v1031
    %v2505 = vunpack.c.l.b16 %v1032
    %v2506 = vunpack.c.l.b16 %v1033
    %v2507 = vunpack.c.l.b16 %v1034
    %v2508 = vunpack.c.l.b16 %v1035
    %v2509 = vunpack.c.l.b16 %v1036
    %v2510 = vunpack.c.l.b16 %v1037
    %v2511 = vunpack.c.l.b16 %v1038
    %v2512 = vunpack.c.l.b16 %v1039
    %v2513 = vunpack.c.l.b16 %v1040
    %v2514 = vunpack.c.l.b16 %v1041
    %v2515 = vunpack.c.l.b16 %v1042
    %v2516 = vunpack.c.l.b16 %v1043
    %v2517 = vunpack.c.l.b16 %v1044
    %v2518 = vunpack.c.l.b16 %v1045
    %v2519 = vunpack.c.l.b16 %v1046
    %v2520 = vunpack.c.l.b16 %v1047
    %v2521 = vunpack.c.l.b16 %v1048
    %v2522 = vunpack.c.l.b16 %v1049
    %v2523 = vunpack.c.l.b16 %v1050
    %v2524 = vunpack.c.l.b16 %v1051
    %v2525 = vunpack.c.l.b16 %v1052
    %v2526 = vunpack.c.l.b16 %v1053
    %v2527 = vunpack.c.l.b16 %v1054
    %v2528 = vunpack.c.l.b16 %v1055
    %v2529 = vpack.c.b16 %v2466, %v2465
    %v2530 = vpack.c.b16 %v2468, %v2467
    %v2531 = vpack.c.b16 %v2470, %v2469
    %v2532 = vpack.c.b16 %v2472, %v2471
    %v2533 = vpack.c.b16 %v2474, %v2473
    %v2534 = vpack.c.b16 %v2476, %v2475
    %v2535 = vpack.c.b16 %v2478, %v2477
    %v2536 = vpack.c.b16 %v2480, %v2479
    %v2537 = vpack.c.b16 %v2482, %v2481
    %v2538 = vpack.c.b16 %v2484, %v2483
    %v2539 = vpack.c.b16 %v2486, %v2485
    %v2540 = vpack.c.b16 %v2488, %v2487
    %v2541 = vpack.c.b16 %v2490, %v2489
    %v2542 = vpack.c.b16 %v2492, %v2491
    %v2543 = vpack.c.b16 %v2494, %v2493
    %v2544 = vpack.c.b16 %v2496, %v2495
    %v2545 = vpack.c.b16 %v2498, %v2497
    %v2546 = vpack.c.b16 %v2500, %v2499
    %v2547 = vpack.c.b16 %v2502, %v2501
    %v2548 = vpack.c.b16 %v2504, %v2503
    %v2549 = vpack.c.b16 %v2506, %v2505
    %v2550 = vpack.c.b16 %v2508, %v2507
    %v2551 = vpack.c.b16 %v2510, %v2509
    %v2552 = vpack.c.b16 %v2512, %v2511
    %v2553 = vpack.c.b16 %v2514, %v2513
    %v2554 = vpack.c.b16 %v2516, %v2515
    %v2555 = vpack.c.b16 %v2518, %v2517
    %v2556 = vpack.c.b16 %v2520, %v2519
    %v2557 = vpack.c.b16 %v2522, %v2521
    %v2558 = vpack.c.b16 %v2524, %v2523
    %v2559 = vpack.c.b16 %v2526, %v2525
    %v2560 = vpack.c.b16 %v2528, %v2527
    %v2657 = vunpack.c.l.b16 %v1121
    %v2658 = vunpack.c.l.b16 %v1122
    %v2659 = vunpack.c.l.b16 %v1123
    %v2660 = vunpack.c.l.b16 %v1124
    %v2661 = vunpack.c.l.b16 %v1125
    %v2662 = vunpack.c.l.b16 %v1126
    %v2663 = vunpack.c.l.b16 %v1127
    %v2664 = vunpack.c.l.b16 %v1128
    %v2665 = vunpack.c.l.b16 %v1129
    %v2666 = vunpack.c.l.b16 %v1130
    %v2667 = vunpack.c.l.b16 %v1131
    %v2668 = vunpack.c.l.b16 %v1132
    %v2669 = vunpack.c.l.b16 %v1133
    %v2670 = vunpack.c.l.b16 %v1134
    %v2671 = vunpack.c.l.b16 %v1135
    %v2672 = vunpack.c.l.b16 %v1136
    %v2673 = vunpack.c.l.b16 %v1137
    %v2674 = vunpack.c.l.b16 %v1138
    %v2675 = vunpack.c.l.b16 %v1139
    %v2676 = vunpack.c.l.b16 %v1140
    %v2677 = vunpack.c.l.b16 %v1141
    %v2678 = vunpack.c.l.b16 %v1142
    %v2679 = vunpack.c.l.b16 %v1143
    %v2680 = vunpack.c.l.b16 %v1144
    %v2681 = vunpack.c.l.b16 %v1145
    %v2682 = vunpack.c.l.b16 %v1146
    %v2683 = vunpack.c.l.b16 %v1147
    %v2684 = vunpack.c.l.b16 %v1148
    %v2685 = vunpack.c.l.b16 %v1149
    %v2686 = vunpack.c.l.b16 %v1150
    %v2687 = vunpack.c.l.b16 %v1151
    %v2688 = vunpack.c.l.b16 %v1152
    %v2689 = vunpack.c.l.b16 %v1153
    %v2690 = vunpack.c.l.b16 %v1154
    %v2691 = vunpack.c.l.b16 %v1155
    %v2692 = vunpack.c.l.b16 %v1156
    %v2693 = vunpack.c.l.b16 %v1157
    %v2694 = vunpack.c.l.b16 %v1158
    %v2695 = vunpack.c.l.b16 %v1159
    %v2696 = vunpack.c.l.b16 %v1160
    %v2697 = vunpack.c.l.b16 %v1161
    %v2698 = vunpack.c.l.b16 %v1162
    %v2699 = vunpack.c.l.b16 %v1163
    %v2700 = vunpack.c.l.b16 %v1164
    %v2701 = vunpack.c.l.b16 %v1165
    %v2702 = vunpack.c.l.b16 %v1166
    %v2703 = vunpack.c.l.b16 %v1167
    %v2704 = vunpack.c.l.b16 %v1168
    %v2705 = vunpack.c.l.b16 %v1169
    %v2706 = vunpack.c.l.b16 %v1170
    %v2707 = vunpack.c.l.b16 %v1171
    %v2708 = vunpack.c.l.b16 %v1172
    %v2709 = vunpack.c.l.b16 %v1173
    %v2710 = vunpack.c.l.b16 %v1174
    %v2711 = vunpack.c.l.b16 %v1175
    %v2712 = vunpack.c.l.b16 %v1176
    %v2713 = vunpack.c.l.b16 %v1177
    %v2714 = vunpack.c.l.b16 %v1178
    %v2715 = vunpack.c.l.b16 %v1179
    %v2716 = vunpack.c.l.b16 %v1180
    %v2717 = vunpack.c.l.b16 %v1181
    %v2718 = vunpack.c.l.b16 %v1182
    %v2719 = vunpack.c.l.b16 %v1183
    %v2720 = vunpack.c.l.b16 %v1184
    %v2721 = vpack.c.b16 %v2658, %v2657
    %v2722 = vpack.c.b16 %v2660, %v2659
    %v2723 = vpack.c.b16 %v2662, %v2661
    %v2724 = vpack.c.b16 %v2664, %v2663
    %v2725 = vpack.c.b16 %v2666, %v2665
    %v2726 = vpack.c.b16 %v2668, %v2667
    %v2727 = vpack.c.b16 %v2670, %v2669
    %v2728 = vpack.c.b16 %v2672, %v2671
    %v2729 = vpack.c.b16 %v2674, %v2673
    %v2730 = vpack.c.b16 %v2676, %v2675
    %v2731 = vpack.c.b16 %v2678, %v2677
    %v2732 = vpack.c.b16 %v2680, %v2679
    %v2733 = vpack.c.b16 %v2682, %v2681
    %v2734 = vpack.c.b16 %v2684, %v2683
    %v2735 = vpack.c.b16 %v2686, %v2685
    %v2736 = vpack.c.b16 %v2688, %v2687
    %v2737 = vpack.c.b16 %v2690, %v2689
    %v2738 = vpack.c.b16 %v2692, %v2691
    %v2739 = vpack.c.b16 %v2694, %v2693
    %v2740 = vpack.c.b16 %v2696, %v2695
    %v2741 = vpack.c.b16 %v2698, %v2697
    %v2742 = vpack.c.b16 %v2700, %v2699
    %v2743 = vpack.c.b16 %v2702, %v2701
    %v2744 = vpack.c.b16 %v2704, %v2703
    %v2745 = vpack.c.b16 %v2706, %v2705
    %v2746 = vpack.c.b16 %v2708, %v2707
    %v2747 = vpack.c.b16 %v2710, %v2709
    %v2748 = vpack.c.b16 %v2712, %v2711
    %v2749 = vpack.c.b16 %v2714, %v2713
    %v2750 = vpack.c.b16 %v2716, %v2715
    %v2751 = vpack.c.b16 %v2718, %v2717
    %v2752 = vpack.c.b16 %v2720, %v2719
    %v2849 = vunpack.c.l.b16 %v1249
    %v2850 = vunpack.c.l.b16 %v1250
    %v2851 = vunpack.c.l.b16 %v1251
    %v2852 = vunpack.c.l.b16 %v1252
    %v2853 = vunpack.c.l.b16 %v1253
    %v2854 = vunpack.c.l.b16 %v1254
    %v2855 = vunpack.c.l.b16 %v1255
    %v2856 = vunpack.c.l.b16 %v1256
    %v2857 = vunpack.c.l.b16 %v1257
    %v2858 = vunpack.c.l.b16 %v1258
    %v2859 = vunpack.c.l.b16 %v1259
    %v2860 = vunpack.c.l.b16 %v1260
    %v2861 = vunpack.c.l.b16 %v1261
    %v2862 = vunpack.c.l.b16 %v1262
    %v2863 = vunpack.c.l.b16 %v1263
    %v2864 = vunpack.c.l.b16 %v1264
    %v2865 = vunpack.c.l.b16 %v1265
    %v2866 = vunpack.c.l.b16 %v1266
    %v2867 = vunpack.c.l.b16 %v1267
    %v2868 = vunpack.c.l.b16 %v1268
    %v2869 = vunpack.c.l.b16 %v1269
    %v2870 = vunpack.c.l.b16 %v1270
    %v2871 = vunpack.c.l.b16 %v1271
    %v2872 = vunpack.c.l.b16 %v1272
    %v2873 = vunpack.c.l.b16 %v1273
    %v2874 = vunpack.c.l.b16 %v1274
    %v2875 = vunpack.c.l.b16 %v1275
    %v2876 = vunpack.c.l.b16 %v1276
    %v2877 = vunpack.c.l.b16 %v1277
    %v2878 = vunpack.c.l.b16 %v1278
    %v2879 = vunpack.c.l.b16 %v1279
    %v2880 = vunpack.c.l.b16 %v1280
    %v2881 = vunpack.c.l.b16 %v1281
    %v2882 = vunpack.c.l.b16 %v1282
    %v2883 = vunpack.c.l.b16 %v1283
    %v2884 = vunpack.c.l.b16 %v1284
    %v2885 = vunpack.c.l.b16 %v1285
    %v2886 = vunpack.c.l.b16 %v1286
    %v2887 = vunpack.c.l.b16 %v1287
    %v2888 = vunpack.c.l.b16 %v1288
    %v2889 = vunpack.c.l.b16 %v1289
    %v2890 = vunpack.c.l.b16 %v1290
    %v2891 = vunpack.c.l.b16 %v1291
    %v2892 = vunpack.c.l.b16 %v1292
    %v2893 = vunpack.c.l.b16 %v1293
    %v2894 = vunpack.c.l.b16 %v1294
    %v2895 = vunpack.c.l.b16 %v1295
    %v2896 = vunpack.c.l.b16 %v1296
    %v2897 = vunpack.c.l.b16 %v1297
    %v2898 = vunpack.c.l.b16 %v1298
    %v2899 = vunpack.c.l.b16 %v1299
    %v2900 = vunpack.c.l.b16 %v1300
    %v2901 = vunpack.c.l.b16 %v1301
    %v2902 = vunpack.c.l.b16 %v1302
    %v2903 = vunpack.c.l.b16 %v1303
    %v2904 = vunpack.c.l.b16 %v1304
    %v2905 = vunpack.c.l.b16 %v1305
    %v2906 = vunpack.c.l.b16 %v1306
    %v2907 = vunpack.c.l.b16 %v1307
    %v2908 = vunpack.c.l.b16 %v1308
    %v2909 = vunpack.c.l.b16 %v1309
    %v2910 = vunpack.c.l.b16 %v1310
    %v2911 = vunpack.c.l.b16 %v1311
    %v2912 = vunpack.c.l.b16 %v1312
    %v2913 = vpack.c.b16 %v2850, %v2849
    %v2914 = vpack.c.b16 %v2852, %v2851
    %v2915 = vpack.c.b16 %v2854, %v2853
    %v2916 = vpack.c.b16 %v2856, %v2855
    %v2917 = vpack.c.b16 %v2858, %v2857
    %v2918 = vpack.c.b16 %v2860, %v2859
    %v2919 = vpack.c.b16 %v2862, %v2861
    %v2920 = vpack.c.b16 %v2864, %v2863
    %v2921 = vpack.c.b16 %v2866, %v2865
    %v2922 = vpack.c.b16 %v2868, %v2867
    %v2923 = vpack.c.b16 %v2870, %v2869
    %v2924 = vpack.c.b16 %v2872, %v2871
    %v2925 = vpack.c.b16 %v2874, %v2873
    %v2926 = vpack.c.b16 %v2876, %v2875
    %v2927 = vpack.c.b16 %v2878, %v2877
    %v2928 = vpack.c.b16 %v2880, %v2879
    %v2929 = vpack.c.b16 %v2882, %v2881
    %v2930 = vpack.c.b16 %v2884, %v2883
    %v2931 = vpack.c.b16 %v2886, %v2885
    %v2932 = vpack.c.b16 %v2888, %v2887
    %v2933 = vpack.c.b16 %v2890, %v2889
    %v2934 = vpack.c.b16 %v2892, %v2891
    %v2935 = vpack.c.b16 %v2894, %v2893
    %v2936 = vpack.c.b16 %v2896, %v2895
    %v2937 = vpack.c.b16 %v2898, %v2897
    %v2938 = vpack.c.b16 %v2900, %v2899
    %v2939 = vpack.c.b16 %v2902, %v2901
    %v2940 = vpack.c.b16 %v2904, %v2903
    %v2941 = vpack.c.b16 %v2906, %v2905
    %v2942 = vpack.c.b16 %v2908, %v2907
    %v2943 = vpack.c.b16 %v2910, %v2909
    %v2944 = vpack.c.b16 %v2912, %v2911
    %v3041 = vunpack.c.l.b16 %v1377
    %v3042 = vunpack.c.l.b16 %v1378
    %v3043 = vunpack.c.l.b16 %v1379
    %v3044 = vunpack.c.l.b16 %v1380
    %v3045 = vunpack.c.l.b16 %v1381
    %v3046 = vunpack.c.l.b16 %v1382
    %v3047 = vunpack.c.l.b16 %v1383
    %v3048 = vunpack.c.l.b16 %v1384
    %v3049 = vunpack.c.l.b16 %v1385
    %v3050 = vunpack.c.l.b16 %v1386
    %v3051 = vunpack.c.l.b16 %v1387
    %v3052 = vunpack.c.l.b16 %v1388
    %v3053 = vunpack.c.l.b16 %v1389
    %v3054 = vunpack.c.l.b16 %v1390
    %v3055 = vunpack.c.l.b16 %v1391
    %v3056 = vunpack.c.l.b16 %v1392
    %v3057 = vunpack.c.l.b16 %v1393
    %v3058 = vunpack.c.l.b16 %v1394
    %v3059 = vunpack.c.l.b16 %v1395
    %v3060 = vunpack.c.l.b16 %v1396
    %v3061 = vunpack.c.l.b16 %v1397
    %v3062 = vunpack.c.l.b16 %v1398
    %v3063 = vunpack.c.l.b16 %v1399
    %v3064 = vunpack.c.l.b16 %v1400
    %v3065 = vunpack.c.l.b16 %v1401
    %v3066 = vunpack.c.l.b16 %v1402
    %v3067 = vunpack.c.l.b16 %v1403
    %v3068 = vunpack.c.l.b16 %v1404
    %v3069 = vunpack.c.l.b16 %v1405
    %v3070 = vunpack.c.l.b16 %v1406
    %v3071 = vunpack.c.l.b16 %v1407
    %v3072 = vunpack.c.l.b16 %v1408
    %v3073 = vunpack.c.l.b16 %v1409
    %v3074 = vunpack.c.l.b16 %v1410
    %v3075 = vunpack.c.l.b16 %v1411
    %v3076 = vunpack.c.l.b16 %v1412
    %v3077 = vunpack.c.l.b16 %v1413
    %v3078 = vunpack.c.l.b16 %v1414
    %v3079 = vunpack.c.l.b16 %v1415
    %v3080 = vunpack.c.l.b16 %v1416
    %v3081 = vunpack.c.l.b16 %v1417
    %v3082 = vunpack.c.l.b16 %v1418
    %v3083 = vunpack.c.l.b16 %v1419
    %v3084 = vunpack.c.l.b16 %v1420
    %v3085 = vunpack.c.l.b16 %v1421
    %v3086 = vunpack.c.l.b16 %v1422
    %v3087 = vunpack.c.l.b16 %v1423
    %v3088 = vunpack.c.l.b16 %v1424
    %v3089 = vunpack.c.l.b16 %v1425
    %v3090 = vunpack.c.l.b16 %v1426
    %v3091 = vunpack.c.l.b16 %v1427
    %v3092 = vunpack.c.l.b16 %v1428
    %v3093 = vunpack.c.l.b16 %v1429
    %v3094 = vunpack.c.l.b16 %v1430
    %v3095 = vunpack.c.l.b16 %v1431
    %v3096 = vunpack.c.l.b16 %v1432
    %v3097 = vunpack.c.l.b16 %v1433
    %v3098 = vunpack.c.l.b16 %v1434
    %v3099 = vunpack.c.l.b16 %v1435
    %v3100 = vunpack.c.l.b16 %v1436
    %v3101 = vunpack.c.l.b16 %v1437
    %v3102 = vunpack.c.l.b16 %v1438
    %v3103 = vunpack.c.l.b16 %v1439
    %v3104 = vunpack.c.l.b16 %v1440
    %v3105 = vpack.c.b16 %v3042, %v3041
    %v3106 = vpack.c.b16 %v3044, %v3043
    %v3107 = vpack.c.b16 %v3046, %v3045
    %v3108 = vpack.c.b16 %v3048, %v3047
    %v3109 = vpack.c.b16 %v3050, %v3049
    %v3110 = vpack.c.b16 %v3052, %v3051
    %v3111 = vpack.c.b16 %v3054, %v3053
    %v3112 = vpack.c.b16 %v3056, %v3055
    %v3113 = vpack.c.b16 %v3058, %v3057
    %v3114 = vpack.c.b16 %v3060, %v3059
    %v3115 = vpack.c.b16 %v3062, %v3061
    %v3116 = vpack.c.b16 %v3064, %v3063
    %v3117 = vpack.c.b16 %v3066, %v3065
    %v3118 = vpack.c.b16 %v3068, %v3067
    %v3119 = vpack.c.b16 %v3070, %v3069
    %v3120 = vpack.c.b16 %v3072, %v3071
    %v3121 = vpack.c.b16 %v3074, %v3073
    %v3122 = vpack.c.b16 %v3076, %v3075
    %v3123 = vpack.c.b16 %v3078, %v3077
    %v3124 = vpack.c.b16 %v3080, %v3079
    %v3125 = vpack.c.b16 %v3082, %v3081
    %v3126 = vpack.c.b16 %v3084, %v3083
    %v3127 = vpack.c.b16 %v3086, %v3085
    %v3128 = vpack.c.b16 %v3088, %v3087
    %v3129 = vpack.c.b16 %v3090, %v3089
    %v3130 = vpack.c.b16 %v3092, %v3091
    %v3131 = vpack.c.b16 %v3094, %v3093
    %v3132 = vpack.c.b16 %v3096, %v3095
    %v3133 = vpack.c.b16 %v3098, %v3097
    %v3134 = vpack.c.b16 %v3100, %v3099
    %v3135 = vpack.c.b16 %v3102, %v3101
    %v3136 = vpack.c.b16 %v3104, %v3103
    %v3169 = vld [vmem:[#allocation6] sm:$0xf]
    %v3170 = vld [vmem:[#allocation6 + $0x4] sm:$0xf]
    %v3171 = vld [vmem:[#allocation6 + $0x8] sm:$0xf]
    %v3172 = vld [vmem:[#allocation6 + $0xc] sm:$0xf]
    %v3173 = vld [vmem:[#allocation6 + $0x10] sm:$0xf]
    %v3174 = vld [vmem:[#allocation6 + $0x14] sm:$0xf]
    %v3175 = vld [vmem:[#allocation6 + $0x18] sm:$0xf]
    %v3176 = vld [vmem:[#allocation6 + $0x1c] sm:$0xf]
    %v3177 = vld [vmem:[#allocation6 + $0x20] sm:$0xf]
    %v3178 = vld [vmem:[#allocation6 + $0x24] sm:$0xf]
    %v3179 = vld [vmem:[#allocation6 + $0x28] sm:$0xf]
    %v3180 = vld [vmem:[#allocation6 + $0x2c] sm:$0xf]
    %v3181 = vld [vmem:[#allocation6 + $0x30] sm:$0xf]
    %v3182 = vld [vmem:[#allocation6 + $0x34] sm:$0xf]
    %v3183 = vld [vmem:[#allocation6 + $0x38] sm:$0xf]
    %v3184 = vld [vmem:[#allocation6 + $0x3c] sm:$0xf]
    %v3185 = vld [vmem:[#allocation6 + $0x40] sm:$0xf]
    %v3186 = vld [vmem:[#allocation6 + $0x44] sm:$0xf]
    %v3187 = vld [vmem:[#allocation6 + $0x48] sm:$0xf]
    %v3188 = vld [vmem:[#allocation6 + $0x4c] sm:$0xf]
    %v3189 = vld [vmem:[#allocation6 + $0x50] sm:$0xf]
    %v3190 = vld [vmem:[#allocation6 + $0x54] sm:$0xf]
    %v3191 = vld [vmem:[#allocation6 + $0x58] sm:$0xf]
    %v3192 = vld [vmem:[#allocation6 + $0x5c] sm:$0xf]
    %v3193 = vld [vmem:[#allocation6 + $0x60] sm:$0xf]
    %v3194 = vld [vmem:[#allocation6 + $0x64] sm:$0xf]
    %v3195 = vld [vmem:[#allocation6 + $0x68] sm:$0xf]
    %v3196 = vld [vmem:[#allocation6 + $0x6c] sm:$0xf]
    %v3197 = vld [vmem:[#allocation6 + $0x70] sm:$0xf]
    %v3198 = vld [vmem:[#allocation6 + $0x74] sm:$0xf]
    %v3199 = vld [vmem:[#allocation6 + $0x78] sm:$0xf]
    %v3200 = vld [vmem:[#allocation6 + $0x7c] sm:$0xf]
    %v3201 = vld [vmem:[#allocation6 + $0x80] sm:$0xf]
    %v3202 = vld [vmem:[#allocation6 + $0x84] sm:$0xf]
    %v3203 = vld [vmem:[#allocation6 + $0x88] sm:$0xf]
    %v3204 = vld [vmem:[#allocation6 + $0x8c] sm:$0xf]
    %v3205 = vld [vmem:[#allocation6 + $0x90] sm:$0xf]
    %v3206 = vld [vmem:[#allocation6 + $0x94] sm:$0xf]
    %v3207 = vld [vmem:[#allocation6 + $0x98] sm:$0xf]
    %v3208 = vld [vmem:[#allocation6 + $0x9c] sm:$0xf]
    %v3209 = vld [vmem:[#allocation6 + $0xa0] sm:$0xf]
    %v3210 = vld [vmem:[#allocation6 + $0xa4] sm:$0xf]
    %v3211 = vld [vmem:[#allocation6 + $0xa8] sm:$0xf]
    %v3212 = vld [vmem:[#allocation6 + $0xac] sm:$0xf]
    %v3213 = vld [vmem:[#allocation6 + $0xb0] sm:$0xf]
    %v3214 = vld [vmem:[#allocation6 + $0xb4] sm:$0xf]
    %v3215 = vld [vmem:[#allocation6 + $0xb8] sm:$0xf]
    %v3216 = vld [vmem:[#allocation6 + $0xbc] sm:$0xf]
    %v3217 = vld [vmem:[#allocation6 + $0xc0] sm:$0xf]
    %v3218 = vld [vmem:[#allocation6 + $0xc4] sm:$0xf]
    %v3219 = vld [vmem:[#allocation6 + $0xc8] sm:$0xf]
    %v3220 = vld [vmem:[#allocation6 + $0xcc] sm:$0xf]
    %v3221 = vld [vmem:[#allocation6 + $0xd0] sm:$0xf]
    %v3222 = vld [vmem:[#allocation6 + $0xd4] sm:$0xf]
    %v3223 = vld [vmem:[#allocation6 + $0xd8] sm:$0xf]
    %v3224 = vld [vmem:[#allocation6 + $0xdc] sm:$0xf]
    %v3225 = vld [vmem:[#allocation6 + $0xe0] sm:$0xf]
    %v3226 = vld [vmem:[#allocation6 + $0xe4] sm:$0xf]
    %v3227 = vld [vmem:[#allocation6 + $0xe8] sm:$0xf]
    %v3228 = vld [vmem:[#allocation6 + $0xec] sm:$0xf]
    %v3229 = vld [vmem:[#allocation6 + $0xf0] sm:$0xf]
    %v3230 = vld [vmem:[#allocation6 + $0xf4] sm:$0xf]
    %v3231 = vld [vmem:[#allocation6 + $0xf8] sm:$0xf]
    %v3232 = vld [vmem:[#allocation6 + $0xfc] sm:$0xf]
    %v3233 = vld [vmem:[#allocation6 + $0x100] sm:$0xf]
    %v3234 = vld [vmem:[#allocation6 + $0x104] sm:$0xf]
    %v3235 = vld [vmem:[#allocation6 + $0x108] sm:$0xf]
    %v3236 = vld [vmem:[#allocation6 + $0x10c] sm:$0xf]
    %v3237 = vld [vmem:[#allocation6 + $0x110] sm:$0xf]
    %v3238 = vld [vmem:[#allocation6 + $0x114] sm:$0xf]
    %v3239 = vld [vmem:[#allocation6 + $0x118] sm:$0xf]
    %v3240 = vld [vmem:[#allocation6 + $0x11c] sm:$0xf]
    %v3241 = vld [vmem:[#allocation6 + $0x120] sm:$0xf]
    %v3242 = vld [vmem:[#allocation6 + $0x124] sm:$0xf]
    %v3243 = vld [vmem:[#allocation6 + $0x128] sm:$0xf]
    %v3244 = vld [vmem:[#allocation6 + $0x12c] sm:$0xf]
    %v3245 = vld [vmem:[#allocation6 + $0x130] sm:$0xf]
    %v3246 = vld [vmem:[#allocation6 + $0x134] sm:$0xf]
    %v3247 = vld [vmem:[#allocation6 + $0x138] sm:$0xf]
    %v3248 = vld [vmem:[#allocation6 + $0x13c] sm:$0xf]
    %v3249 = vld [vmem:[#allocation6 + $0x140] sm:$0xf]
    %v3250 = vld [vmem:[#allocation6 + $0x144] sm:$0xf]
    %v3251 = vld [vmem:[#allocation6 + $0x148] sm:$0xf]
    %v3252 = vld [vmem:[#allocation6 + $0x14c] sm:$0xf]
    %v3253 = vld [vmem:[#allocation6 + $0x150] sm:$0xf]
    %v3254 = vld [vmem:[#allocation6 + $0x154] sm:$0xf]
    %v3255 = vld [vmem:[#allocation6 + $0x158] sm:$0xf]
    %v3256 = vld [vmem:[#allocation6 + $0x15c] sm:$0xf]
    %v3257 = vld [vmem:[#allocation6 + $0x160] sm:$0xf]
    %v3258 = vld [vmem:[#allocation6 + $0x164] sm:$0xf]
    %v3259 = vld [vmem:[#allocation6 + $0x168] sm:$0xf]
    %v3260 = vld [vmem:[#allocation6 + $0x16c] sm:$0xf]
    %v3261 = vld [vmem:[#allocation6 + $0x170] sm:$0xf]
    %v3262 = vld [vmem:[#allocation6 + $0x174] sm:$0xf]
    %v3263 = vld [vmem:[#allocation6 + $0x178] sm:$0xf]
    %v3264 = vld [vmem:[#allocation6 + $0x17c] sm:$0xf]
    %v3265 = vld [vmem:[#allocation6 + $0x180] sm:$0xf]
    %v3266 = vld [vmem:[#allocation6 + $0x184] sm:$0xf]
    %v3267 = vld [vmem:[#allocation6 + $0x188] sm:$0xf]
    %v3268 = vld [vmem:[#allocation6 + $0x18c] sm:$0xf]
    %v3269 = vld [vmem:[#allocation6 + $0x190] sm:$0xf]
    %v3270 = vld [vmem:[#allocation6 + $0x194] sm:$0xf]
    %v3271 = vld [vmem:[#allocation6 + $0x198] sm:$0xf]
    %v3272 = vld [vmem:[#allocation6 + $0x19c] sm:$0xf]
    %v3273 = vld [vmem:[#allocation6 + $0x1a0] sm:$0xf]
    %v3274 = vld [vmem:[#allocation6 + $0x1a4] sm:$0xf]
    %v3275 = vld [vmem:[#allocation6 + $0x1a8] sm:$0xf]
    %v3276 = vld [vmem:[#allocation6 + $0x1ac] sm:$0xf]
    %v3277 = vld [vmem:[#allocation6 + $0x1b0] sm:$0xf]
    %v3278 = vld [vmem:[#allocation6 + $0x1b4] sm:$0xf]
    %v3279 = vld [vmem:[#allocation6 + $0x1b8] sm:$0xf]
    %v3280 = vld [vmem:[#allocation6 + $0x1bc] sm:$0xf]
    %v3281 = vld [vmem:[#allocation6 + $0x1c0] sm:$0xf]
    %v3282 = vld [vmem:[#allocation6 + $0x1c4] sm:$0xf]
    %v3283 = vld [vmem:[#allocation6 + $0x1c8] sm:$0xf]
    %v3284 = vld [vmem:[#allocation6 + $0x1cc] sm:$0xf]
    %v3285 = vld [vmem:[#allocation6 + $0x1d0] sm:$0xf]
    %v3286 = vld [vmem:[#allocation6 + $0x1d4] sm:$0xf]
    %v3287 = vld [vmem:[#allocation6 + $0x1d8] sm:$0xf]
    %v3288 = vld [vmem:[#allocation6 + $0x1dc] sm:$0xf]
    %v3289 = vld [vmem:[#allocation6 + $0x1e0] sm:$0xf]
    %v3290 = vld [vmem:[#allocation6 + $0x1e4] sm:$0xf]
    %v3291 = vld [vmem:[#allocation6 + $0x1e8] sm:$0xf]
    %v3292 = vld [vmem:[#allocation6 + $0x1ec] sm:$0xf]
    %v3293 = vld [vmem:[#allocation6 + $0x1f0] sm:$0xf]
    %v3294 = vld [vmem:[#allocation6 + $0x1f4] sm:$0xf]
    %v3295 = vld [vmem:[#allocation6 + $0x1f8] sm:$0xf]
    %v3296 = vld [vmem:[#allocation6 + $0x1fc] sm:$0xf]
    %v3297 = vld [vmem:[#allocation6 + $0x200] sm:$0xf]
    %v3298 = vld [vmem:[#allocation6 + $0x204] sm:$0xf]
    %v3299 = vld [vmem:[#allocation6 + $0x208] sm:$0xf]
    %v3300 = vld [vmem:[#allocation6 + $0x20c] sm:$0xf]
    %v3301 = vld [vmem:[#allocation6 + $0x210] sm:$0xf]
    %v3302 = vld [vmem:[#allocation6 + $0x214] sm:$0xf]
    %v3303 = vld [vmem:[#allocation6 + $0x218] sm:$0xf]
    %v3304 = vld [vmem:[#allocation6 + $0x21c] sm:$0xf]
    %v3305 = vld [vmem:[#allocation6 + $0x220] sm:$0xf]
    %v3306 = vld [vmem:[#allocation6 + $0x224] sm:$0xf]
    %v3307 = vld [vmem:[#allocation6 + $0x228] sm:$0xf]
    %v3308 = vld [vmem:[#allocation6 + $0x22c] sm:$0xf]
    %v3309 = vld [vmem:[#allocation6 + $0x230] sm:$0xf]
    %v3310 = vld [vmem:[#allocation6 + $0x234] sm:$0xf]
    %v3311 = vld [vmem:[#allocation6 + $0x238] sm:$0xf]
    %v3312 = vld [vmem:[#allocation6 + $0x23c] sm:$0xf]
    %v3457 = vunpack.c.l.b16 %v3169
    %v3458 = vunpack.c.l.b16 %v3170
    %v3459 = vunpack.c.l.b16 %v3171
    %v3460 = vunpack.c.l.b16 %v3172
    %v3461 = vunpack.c.l.b16 %v3173
    %v3462 = vunpack.c.l.b16 %v3174
    %v3463 = vunpack.c.l.b16 %v3175
    %v3464 = vunpack.c.l.b16 %v3176
    %v3465 = vunpack.c.l.b16 %v3177
    %v3466 = vunpack.c.l.b16 %v3178
    %v3467 = vunpack.c.l.b16 %v3179
    %v3468 = vunpack.c.l.b16 %v3180
    %v3469 = vunpack.c.l.b16 %v3181
    %v3470 = vunpack.c.l.b16 %v3182
    %v3471 = vunpack.c.l.b16 %v3183
    %v3472 = vunpack.c.l.b16 %v3184
    %v3473 = vunpack.c.l.b16 %v3185
    %v3474 = vunpack.c.l.b16 %v3186
    %v3475 = vunpack.c.l.b16 %v3187
    %v3476 = vunpack.c.l.b16 %v3188
    %v3477 = vunpack.c.l.b16 %v3189
    %v3478 = vunpack.c.l.b16 %v3190
    %v3479 = vunpack.c.l.b16 %v3191
    %v3480 = vunpack.c.l.b16 %v3192
    %v3481 = vunpack.c.l.b16 %v3193
    %v3482 = vunpack.c.l.b16 %v3194
    %v3483 = vunpack.c.l.b16 %v3195
    %v3484 = vunpack.c.l.b16 %v3196
    %v3485 = vunpack.c.l.b16 %v3197
    %v3486 = vunpack.c.l.b16 %v3198
    %v3487 = vunpack.c.l.b16 %v3199
    %v3488 = vunpack.c.l.b16 %v3200
    %v3489 = vunpack.c.l.b16 %v3201
    %v3490 = vunpack.c.l.b16 %v3202
    %v3491 = vunpack.c.l.b16 %v3203
    %v3492 = vunpack.c.l.b16 %v3204
    %v3493 = vunpack.c.l.b16 %v3205
    %v3494 = vunpack.c.l.b16 %v3206
    %v3495 = vunpack.c.l.b16 %v3207
    %v3496 = vunpack.c.l.b16 %v3208
    %v3497 = vunpack.c.l.b16 %v3209
    %v3498 = vunpack.c.l.b16 %v3210
    %v3499 = vunpack.c.l.b16 %v3211
    %v3500 = vunpack.c.l.b16 %v3212
    %v3501 = vunpack.c.l.b16 %v3213
    %v3502 = vunpack.c.l.b16 %v3214
    %v3503 = vunpack.c.l.b16 %v3215
    %v3504 = vunpack.c.l.b16 %v3216
    %v3505 = vunpack.c.l.b16 %v3217
    %v3506 = vunpack.c.l.b16 %v3218
    %v3507 = vunpack.c.l.b16 %v3219
    %v3508 = vunpack.c.l.b16 %v3220
    %v3509 = vunpack.c.l.b16 %v3221
    %v3510 = vunpack.c.l.b16 %v3222
    %v3511 = vunpack.c.l.b16 %v3223
    %v3512 = vunpack.c.l.b16 %v3224
    %v3513 = vunpack.c.l.b16 %v3225
    %v3514 = vunpack.c.l.b16 %v3226
    %v3515 = vunpack.c.l.b16 %v3227
    %v3516 = vunpack.c.l.b16 %v3228
    %v3517 = vunpack.c.l.b16 %v3229
    %v3518 = vunpack.c.l.b16 %v3230
    %v3519 = vunpack.c.l.b16 %v3231
    %v3520 = vunpack.c.l.b16 %v3232
    %v3521 = vunpack.c.l.b16 %v3233
    %v3522 = vunpack.c.l.b16 %v3234
    %v3523 = vunpack.c.l.b16 %v3235
    %v3524 = vunpack.c.l.b16 %v3236
    %v3525 = vunpack.c.l.b16 %v3237
    %v3526 = vunpack.c.l.b16 %v3238
    %v3527 = vunpack.c.l.b16 %v3239
    %v3528 = vunpack.c.l.b16 %v3240
    %v3529 = vunpack.c.l.b16 %v3241
    %v3530 = vunpack.c.l.b16 %v3242
    %v3531 = vunpack.c.l.b16 %v3243
    %v3532 = vunpack.c.l.b16 %v3244
    %v3533 = vunpack.c.l.b16 %v3245
    %v3534 = vunpack.c.l.b16 %v3246
    %v3535 = vunpack.c.l.b16 %v3247
    %v3536 = vunpack.c.l.b16 %v3248
    %v3537 = vunpack.c.l.b16 %v3249
    %v3538 = vunpack.c.l.b16 %v3250
    %v3539 = vunpack.c.l.b16 %v3251
    %v3540 = vunpack.c.l.b16 %v3252
    %v3541 = vunpack.c.l.b16 %v3253
    %v3542 = vunpack.c.l.b16 %v3254
    %v3543 = vunpack.c.l.b16 %v3255
    %v3544 = vunpack.c.l.b16 %v3256
    %v3545 = vunpack.c.l.b16 %v3257
    %v3546 = vunpack.c.l.b16 %v3258
    %v3547 = vunpack.c.l.b16 %v3259
    %v3548 = vunpack.c.l.b16 %v3260
    %v3549 = vunpack.c.l.b16 %v3261
    %v3550 = vunpack.c.l.b16 %v3262
    %v3551 = vunpack.c.l.b16 %v3263
    %v3552 = vunpack.c.l.b16 %v3264
    %v3553 = vunpack.c.l.b16 %v3265
    %v3554 = vunpack.c.l.b16 %v3266
    %v3555 = vunpack.c.l.b16 %v3267
    %v3556 = vunpack.c.l.b16 %v3268
    %v3557 = vunpack.c.l.b16 %v3269
    %v3558 = vunpack.c.l.b16 %v3270
    %v3559 = vunpack.c.l.b16 %v3271
    %v3560 = vunpack.c.l.b16 %v3272
    %v3561 = vunpack.c.l.b16 %v3273
    %v3562 = vunpack.c.l.b16 %v3274
    %v3563 = vunpack.c.l.b16 %v3275
    %v3564 = vunpack.c.l.b16 %v3276
    %v3565 = vunpack.c.l.b16 %v3277
    %v3566 = vunpack.c.l.b16 %v3278
    %v3567 = vunpack.c.l.b16 %v3279
    %v3568 = vunpack.c.l.b16 %v3280
    %v3569 = vunpack.c.l.b16 %v3281
    %v3570 = vunpack.c.l.b16 %v3282
    %v3571 = vunpack.c.l.b16 %v3283
    %v3572 = vunpack.c.l.b16 %v3284
    %v3573 = vunpack.c.l.b16 %v3285
    %v3574 = vunpack.c.l.b16 %v3286
    %v3575 = vunpack.c.l.b16 %v3287
    %v3576 = vunpack.c.l.b16 %v3288
    %v3577 = vunpack.c.l.b16 %v3289
    %v3578 = vunpack.c.l.b16 %v3290
    %v3579 = vunpack.c.l.b16 %v3291
    %v3580 = vunpack.c.l.b16 %v3292
    %v3581 = vunpack.c.l.b16 %v3293
    %v3582 = vunpack.c.l.b16 %v3294
    %v3583 = vunpack.c.l.b16 %v3295
    %v3584 = vunpack.c.l.b16 %v3296
    %v3585 = vunpack.c.l.b16 %v3297
    %v3586 = vunpack.c.l.b16 %v3298
    %v3587 = vunpack.c.l.b16 %v3299
    %v3588 = vunpack.c.l.b16 %v3300
    %v3589 = vunpack.c.l.b16 %v3301
    %v3590 = vunpack.c.l.b16 %v3302
    %v3591 = vunpack.c.l.b16 %v3303
    %v3592 = vunpack.c.l.b16 %v3304
    %v3593 = vunpack.c.l.b16 %v3305
    %v3594 = vunpack.c.l.b16 %v3306
    %v3595 = vunpack.c.l.b16 %v3307
    %v3596 = vunpack.c.l.b16 %v3308
    %v3597 = vunpack.c.l.b16 %v3309
    %v3598 = vunpack.c.l.b16 %v3310
    %v3599 = vunpack.c.l.b16 %v3311
    %v3600 = vunpack.c.l.b16 %v3312
    %v3601 = vpack.c.b16 %v3458, %v3457
    %v3602 = vpack.c.b16 %v3460, %v3459
    %v3603 = vpack.c.b16 %v3462, %v3461
    %v3604 = vpack.c.b16 %v3464, %v3463
    %v3605 = vpack.c.b16 %v3466, %v3465
    %v3606 = vpack.c.b16 %v3468, %v3467
    %v3607 = vpack.c.b16 %v3470, %v3469
    %v3608 = vpack.c.b16 %v3472, %v3471
    %v3609 = vpack.c.b16 %v3474, %v3473
    %v3610 = vpack.c.b16 %v3476, %v3475
    %v3611 = vpack.c.b16 %v3478, %v3477
    %v3612 = vpack.c.b16 %v3480, %v3479
    %v3613 = vpack.c.b16 %v3482, %v3481
    %v3614 = vpack.c.b16 %v3484, %v3483
    %v3615 = vpack.c.b16 %v3486, %v3485
    %v3616 = vpack.c.b16 %v3488, %v3487
    %v3617 = vpack.c.b16 %v3490, %v3489
    %v3618 = vpack.c.b16 %v3492, %v3491
    %v3619 = vpack.c.b16 %v3494, %v3493
    %v3620 = vpack.c.b16 %v3496, %v3495
    %v3621 = vpack.c.b16 %v3498, %v3497
    %v3622 = vpack.c.b16 %v3500, %v3499
    %v3623 = vpack.c.b16 %v3502, %v3501
    %v3624 = vpack.c.b16 %v3504, %v3503
    %v3625 = vpack.c.b16 %v3506, %v3505
    %v3626 = vpack.c.b16 %v3508, %v3507
    %v3627 = vpack.c.b16 %v3510, %v3509
    %v3628 = vpack.c.b16 %v3512, %v3511
    %v3629 = vpack.c.b16 %v3514, %v3513
    %v3630 = vpack.c.b16 %v3516, %v3515
    %v3631 = vpack.c.b16 %v3518, %v3517
    %v3632 = vpack.c.b16 %v3520, %v3519
    %v3633 = vpack.c.b16 %v3522, %v3521
    %v3634 = vpack.c.b16 %v3524, %v3523
    %v3635 = vpack.c.b16 %v3526, %v3525
    %v3636 = vpack.c.b16 %v3528, %v3527
    %v3637 = vpack.c.b16 %v3530, %v3529
    %v3638 = vpack.c.b16 %v3532, %v3531
    %v3639 = vpack.c.b16 %v3534, %v3533
    %v3640 = vpack.c.b16 %v3536, %v3535
    %v3641 = vpack.c.b16 %v3538, %v3537
    %v3642 = vpack.c.b16 %v3540, %v3539
    %v3643 = vpack.c.b16 %v3542, %v3541
    %v3644 = vpack.c.b16 %v3544, %v3543
    %v3645 = vpack.c.b16 %v3546, %v3545
    %v3646 = vpack.c.b16 %v3548, %v3547
    %v3647 = vpack.c.b16 %v3550, %v3549
    %v3648 = vpack.c.b16 %v3552, %v3551
    %v3649 = vpack.c.b16 %v3554, %v3553
    %v3650 = vpack.c.b16 %v3556, %v3555
    %v3651 = vpack.c.b16 %v3558, %v3557
    %v3652 = vpack.c.b16 %v3560, %v3559
    %v3653 = vpack.c.b16 %v3562, %v3561
    %v3654 = vpack.c.b16 %v3564, %v3563
    %v3655 = vpack.c.b16 %v3566, %v3565
    %v3656 = vpack.c.b16 %v3568, %v3567
    %v3657 = vpack.c.b16 %v3570, %v3569
    %v3658 = vpack.c.b16 %v3572, %v3571
    %v3659 = vpack.c.b16 %v3574, %v3573
    %v3660 = vpack.c.b16 %v3576, %v3575
    %v3661 = vpack.c.b16 %v3578, %v3577
    %v3662 = vpack.c.b16 %v3580, %v3579
    %v3663 = vpack.c.b16 %v3582, %v3581
    %v3664 = vpack.c.b16 %v3584, %v3583
    %v3665 = vpack.c.b16 %v3586, %v3585
    %v3666 = vpack.c.b16 %v3588, %v3587
    %v3667 = vpack.c.b16 %v3590, %v3589
    %v3668 = vpack.c.b16 %v3592, %v3591
    %v3669 = vpack.c.b16 %v3594, %v3593
    %v3670 = vpack.c.b16 %v3596, %v3595
    %v3671 = vpack.c.b16 %v3598, %v3597
    %v3672 = vpack.c.b16 %v3600, %v3599
    %3745 = vmatpush.bf16.msra.mxu0 %v3608
    %3746 = vmatpush.bf16.msra.mxu0 %v3607
    %3747 = vmatpush.bf16.msra.mxu0 %v3606
    %3748 = vmatpush.bf16.msra.mxu0 %v3605
    %3749 = vmatpush.bf16.msra.mxu0 %v3604
    %3750 = vmatpush.bf16.msra.mxu0 %v3603
    %3751 = vmatpush.bf16.msra.mxu0 %v3602
    %3752 = vmatpush.bf16.msra.mxu0 %v3601
    %3753 = vmatmul.bf16.gmra.mxu0 %v1569
    %v3754 = vpop.f32.mrf.mxu0
    %v3755 = vadd.f32 0.0, %v3754
    %v3756 = vpop.f32.mrf.mxu0
    %v3757 = vadd.f32 0.0, %v3756
    %3758 = vmatmul.bf16.gmra.mxu0 %v1570
    %v3759 = vpop.f32.mrf.mxu0
    %v3760 = vadd.f32 0.0, %v3759
    %v3761 = vpop.f32.mrf.mxu0
    %v3762 = vadd.f32 0.0, %v3761
    %3763 = vmatmul.bf16.gmra.mxu0 %v1571
    %v3764 = vpop.f32.mrf.mxu0
    %v3765 = vadd.f32 0.0, %v3764
    %v3766 = vpop.f32.mrf.mxu0
    %v3767 = vadd.f32 0.0, %v3766
    %3768 = vmatmul.bf16.gmra.mxu0 %v1572
    %v3769 = vpop.f32.mrf.mxu0
    %v3770 = vadd.f32 0.0, %v3769
    %v3771 = vpop.f32.mrf.mxu0
    %v3772 = vadd.f32 0.0, %v3771
    %3773 = vmatmul.bf16.gmra.mxu0 %v1573
    %v3774 = vpop.f32.mrf.mxu0
    %v3775 = vadd.f32 0.0, %v3774
    %v3776 = vpop.f32.mrf.mxu0
    %v3777 = vadd.f32 0.0, %v3776
    %3778 = vmatmul.bf16.gmra.mxu0 %v1574
    %v3779 = vpop.f32.mrf.mxu0
    %v3780 = vadd.f32 0.0, %v3779
    %v3781 = vpop.f32.mrf.mxu0
    %v3782 = vadd.f32 0.0, %v3781
    %3783 = vmatmul.bf16.gmra.mxu0 %v1575
    %v3784 = vpop.f32.mrf.mxu0
    %v3785 = vadd.f32 0.0, %v3784
    %v3786 = vpop.f32.mrf.mxu0
    %v3787 = vadd.f32 0.0, %v3786
    %3788 = vmatmul.bf16.gmra.mxu0 %v1576
    %v3789 = vpop.f32.mrf.mxu0
    %v3790 = vadd.f32 0.0, %v3789
    %v3791 = vpop.f32.mrf.mxu0
    %v3792 = vadd.f32 0.0, %v3791
    %3793 = vmatmul.bf16.gmra.mxu0 %v1577
    %v3794 = vpop.f32.mrf.mxu0
    %v3795 = vadd.f32 0.0, %v3794
    %v3796 = vpop.f32.mrf.mxu0
    %v3797 = vadd.f32 0.0, %v3796
    %3798 = vmatmul.bf16.gmra.mxu0 %v1578
    %v3799 = vpop.f32.mrf.mxu0
    %v3800 = vadd.f32 0.0, %v3799
    %v3801 = vpop.f32.mrf.mxu0
    %v3802 = vadd.f32 0.0, %v3801
    %3803 = vmatmul.bf16.gmra.mxu0 %v1579
    %v3804 = vpop.f32.mrf.mxu0
    %v3805 = vadd.f32 0.0, %v3804
    %v3806 = vpop.f32.mrf.mxu0
    %v3807 = vadd.f32 0.0, %v3806
    %3808 = vmatmul.bf16.gmra.mxu0 %v1580
    %v3809 = vpop.f32.mrf.mxu0
    %v3810 = vadd.f32 0.0, %v3809
    %v3811 = vpop.f32.mrf.mxu0
    %v3812 = vadd.f32 0.0, %v3811
    %3813 = vmatmul.bf16.gmra.mxu0 %v1581
    %v3814 = vpop.f32.mrf.mxu0
    %v3815 = vadd.f32 0.0, %v3814
    %v3816 = vpop.f32.mrf.mxu0
    %v3817 = vadd.f32 0.0, %v3816
    %3818 = vmatmul.bf16.gmra.mxu0 %v1582
    %v3819 = vpop.f32.mrf.mxu0
    %v3820 = vadd.f32 0.0, %v3819
    %v3821 = vpop.f32.mrf.mxu0
    %v3822 = vadd.f32 0.0, %v3821
    %3823 = vmatmul.bf16.gmra.mxu0 %v1583
    %v3824 = vpop.f32.mrf.mxu0
    %v3825 = vadd.f32 0.0, %v3824
    %v3826 = vpop.f32.mrf.mxu0
    %v3827 = vadd.f32 0.0, %v3826
    %3828 = vmatmul.bf16.gmra.mxu0 %v1584
    %v3829 = vpop.f32.mrf.mxu0
    %v3830 = vadd.f32 0.0, %v3829
    %v3831 = vpop.f32.mrf.mxu0
    %v3832 = vadd.f32 0.0, %v3831
    %3833 = vmatmul.bf16.gmra.mxu0 %v1585
    %v3834 = vpop.f32.mrf.mxu0
    %v3835 = vadd.f32 0.0, %v3834
    %v3836 = vpop.f32.mrf.mxu0
    %v3837 = vadd.f32 0.0, %v3836
    %3838 = vmatmul.bf16.gmra.mxu0 %v1586
    %v3839 = vpop.f32.mrf.mxu0
    %v3840 = vadd.f32 0.0, %v3839
    %v3841 = vpop.f32.mrf.mxu0
    %v3842 = vadd.f32 0.0, %v3841
    %3843 = vmatmul.bf16.gmra.mxu0 %v1587
    %v3844 = vpop.f32.mrf.mxu0
    %v3845 = vadd.f32 0.0, %v3844
    %v3846 = vpop.f32.mrf.mxu0
    %v3847 = vadd.f32 0.0, %v3846
    %3848 = vmatmul.bf16.gmra.mxu0 %v1588
    %v3849 = vpop.f32.mrf.mxu0
    %v3850 = vadd.f32 0.0, %v3849
    %v3851 = vpop.f32.mrf.mxu0
    %v3852 = vadd.f32 0.0, %v3851
    %3853 = vmatmul.bf16.gmra.mxu0 %v1589
    %v3854 = vpop.f32.mrf.mxu0
    %v3855 = vadd.f32 0.0, %v3854
    %v3856 = vpop.f32.mrf.mxu0
    %v3857 = vadd.f32 0.0, %v3856
    %3858 = vmatmul.bf16.gmra.mxu0 %v1590
    %v3859 = vpop.f32.mrf.mxu0
    %v3860 = vadd.f32 0.0, %v3859
    %v3861 = vpop.f32.mrf.mxu0
    %v3862 = vadd.f32 0.0, %v3861
    %3863 = vmatmul.bf16.gmra.mxu0 %v1591
    %v3864 = vpop.f32.mrf.mxu0
    %v3865 = vadd.f32 0.0, %v3864
    %v3866 = vpop.f32.mrf.mxu0
    %v3867 = vadd.f32 0.0, %v3866
    %3868 = vmatmul.bf16.gmra.mxu0 %v1592
    %v3869 = vpop.f32.mrf.mxu0
    %v3870 = vadd.f32 0.0, %v3869
    %v3871 = vpop.f32.mrf.mxu0
    %v3872 = vadd.f32 0.0, %v3871
    %3873 = vmatmul.bf16.gmra.mxu0 %v1593
    %v3874 = vpop.f32.mrf.mxu0
    %v3875 = vadd.f32 0.0, %v3874
    %v3876 = vpop.f32.mrf.mxu0
    %v3877 = vadd.f32 0.0, %v3876
    %3878 = vmatmul.bf16.gmra.mxu0 %v1594
    %v3879 = vpop.f32.mrf.mxu0
    %v3880 = vadd.f32 0.0, %v3879
    %v3881 = vpop.f32.mrf.mxu0
    %v3882 = vadd.f32 0.0, %v3881
    %3883 = vmatmul.bf16.gmra.mxu0 %v1595
    %v3884 = vpop.f32.mrf.mxu0
    %v3885 = vadd.f32 0.0, %v3884
    %v3886 = vpop.f32.mrf.mxu0
    %v3887 = vadd.f32 0.0, %v3886
    %3888 = vmatmul.bf16.gmra.mxu0 %v1596
    %v3889 = vpop.f32.mrf.mxu0
    %v3890 = vadd.f32 0.0, %v3889
    %v3891 = vpop.f32.mrf.mxu0
    %v3892 = vadd.f32 0.0, %v3891
    %3893 = vmatmul.bf16.gmra.mxu0 %v1597
    %v3894 = vpop.f32.mrf.mxu0
    %v3895 = vadd.f32 0.0, %v3894
    %v3896 = vpop.f32.mrf.mxu0
    %v3897 = vadd.f32 0.0, %v3896
    %3898 = vmatmul.bf16.gmra.mxu0 %v1598
    %v3899 = vpop.f32.mrf.mxu0
    %v3900 = vadd.f32 0.0, %v3899
    %v3901 = vpop.f32.mrf.mxu0
    %v3902 = vadd.f32 0.0, %v3901
    %3903 = vmatmul.bf16.gmra.mxu0 %v1599
    %v3904 = vpop.f32.mrf.mxu0
    %v3905 = vadd.f32 0.0, %v3904
    %v3906 = vpop.f32.mrf.mxu0
    %v3907 = vadd.f32 0.0, %v3906
    %3908 = vmatmul.bf16.gmra.mxu0 %v1600
    %v3909 = vpop.f32.mrf.mxu0
    %v3910 = vadd.f32 0.0, %v3909
    %v3911 = vpop.f32.mrf.mxu0
    %v3912 = vadd.f32 0.0, %v3911
    %3913 = vdwg.mxu0
    %3914 = vmatpush.bf16.msra.mxu0 %v3616
    %3915 = vmatpush.bf16.msra.mxu0 %v3615
    %3916 = vmatpush.bf16.msra.mxu0 %v3614
    %3917 = vmatpush.bf16.msra.mxu0 %v3613
    %3918 = vmatpush.bf16.msra.mxu0 %v3612
    %3919 = vmatpush.bf16.msra.mxu0 %v3611
    %3920 = vmatpush.bf16.msra.mxu0 %v3610
    %3921 = vmatpush.bf16.msra.mxu0 %v3609
    %3922 = vmatmul.bf16.gmra.mxu0 %v1761
    %v3923 = vpop.f32.mrf.mxu0
    %v3924 = vadd.f32 %v3755, %v3923
    %v3925 = vpop.f32.mrf.mxu0
    %v3926 = vadd.f32 %v3757, %v3925
    %3927 = vmatmul.bf16.gmra.mxu0 %v1762
    %v3928 = vpop.f32.mrf.mxu0
    %v3929 = vadd.f32 %v3760, %v3928
    %v3930 = vpop.f32.mrf.mxu0
    %v3931 = vadd.f32 %v3762, %v3930
    %3932 = vmatmul.bf16.gmra.mxu0 %v1763
    %v3933 = vpop.f32.mrf.mxu0
    %v3934 = vadd.f32 %v3765, %v3933
    %v3935 = vpop.f32.mrf.mxu0
    %v3936 = vadd.f32 %v3767, %v3935
    %3937 = vmatmul.bf16.gmra.mxu0 %v1764
    %v3938 = vpop.f32.mrf.mxu0
    %v3939 = vadd.f32 %v3770, %v3938
    %v3940 = vpop.f32.mrf.mxu0
    %v3941 = vadd.f32 %v3772, %v3940
    %3942 = vmatmul.bf16.gmra.mxu0 %v1765
    %v3943 = vpop.f32.mrf.mxu0
    %v3944 = vadd.f32 %v3775, %v3943
    %v3945 = vpop.f32.mrf.mxu0
    %v3946 = vadd.f32 %v3777, %v3945
    %3947 = vmatmul.bf16.gmra.mxu0 %v1766
    %v3948 = vpop.f32.mrf.mxu0
    %v3949 = vadd.f32 %v3780, %v3948
    %v3950 = vpop.f32.mrf.mxu0
    %v3951 = vadd.f32 %v3782, %v3950
    %3952 = vmatmul.bf16.gmra.mxu0 %v1767
    %v3953 = vpop.f32.mrf.mxu0
    %v3954 = vadd.f32 %v3785, %v3953
    %v3955 = vpop.f32.mrf.mxu0
    %v3956 = vadd.f32 %v3787, %v3955
    %3957 = vmatmul.bf16.gmra.mxu0 %v1768
    %v3958 = vpop.f32.mrf.mxu0
    %v3959 = vadd.f32 %v3790, %v3958
    %v3960 = vpop.f32.mrf.mxu0
    %v3961 = vadd.f32 %v3792, %v3960
    %3962 = vmatmul.bf16.gmra.mxu0 %v1769
    %v3963 = vpop.f32.mrf.mxu0
    %v3964 = vadd.f32 %v3795, %v3963
    %v3965 = vpop.f32.mrf.mxu0
    %v3966 = vadd.f32 %v3797, %v3965
    %3967 = vmatmul.bf16.gmra.mxu0 %v1770
    %v3968 = vpop.f32.mrf.mxu0
    %v3969 = vadd.f32 %v3800, %v3968
    %v3970 = vpop.f32.mrf.mxu0
    %v3971 = vadd.f32 %v3802, %v3970
    %3972 = vmatmul.bf16.gmra.mxu0 %v1771
    %v3973 = vpop.f32.mrf.mxu0
    %v3974 = vadd.f32 %v3805, %v3973
    %v3975 = vpop.f32.mrf.mxu0
    %v3976 = vadd.f32 %v3807, %v3975
    %3977 = vmatmul.bf16.gmra.mxu0 %v1772
    %v3978 = vpop.f32.mrf.mxu0
    %v3979 = vadd.f32 %v3810, %v3978
    %v3980 = vpop.f32.mrf.mxu0
    %v3981 = vadd.f32 %v3812, %v3980
    %3982 = vmatmul.bf16.gmra.mxu0 %v1773
    %v3983 = vpop.f32.mrf.mxu0
    %v3984 = vadd.f32 %v3815, %v3983
    %v3985 = vpop.f32.mrf.mxu0
    %v3986 = vadd.f32 %v3817, %v3985
    %3987 = vmatmul.bf16.gmra.mxu0 %v1774
    %v3988 = vpop.f32.mrf.mxu0
    %v3989 = vadd.f32 %v3820, %v3988
    %v3990 = vpop.f32.mrf.mxu0
    %v3991 = vadd.f32 %v3822, %v3990
    %3992 = vmatmul.bf16.gmra.mxu0 %v1775
    %v3993 = vpop.f32.mrf.mxu0
    %v3994 = vadd.f32 %v3825, %v3993
    %v3995 = vpop.f32.mrf.mxu0
    %v3996 = vadd.f32 %v3827, %v3995
    %3997 = vmatmul.bf16.gmra.mxu0 %v1776
    %v3998 = vpop.f32.mrf.mxu0
    %v3999 = vadd.f32 %v3830, %v3998
    %v4000 = vpop.f32.mrf.mxu0
    %v4001 = vadd.f32 %v3832, %v4000
    %4002 = vmatmul.bf16.gmra.mxu0 %v1777
    %v4003 = vpop.f32.mrf.mxu0
    %v4004 = vadd.f32 %v3835, %v4003
    %v4005 = vpop.f32.mrf.mxu0
    %v4006 = vadd.f32 %v3837, %v4005
    %4007 = vmatmul.bf16.gmra.mxu0 %v1778
    %v4008 = vpop.f32.mrf.mxu0
    %v4009 = vadd.f32 %v3840, %v4008
    %v4010 = vpop.f32.mrf.mxu0
    %v4011 = vadd.f32 %v3842, %v4010
    %4012 = vmatmul.bf16.gmra.mxu0 %v1779
    %v4013 = vpop.f32.mrf.mxu0
    %v4014 = vadd.f32 %v3845, %v4013
    %v4015 = vpop.f32.mrf.mxu0
    %v4016 = vadd.f32 %v3847, %v4015
    %4017 = vmatmul.bf16.gmra.mxu0 %v1780
    %v4018 = vpop.f32.mrf.mxu0
    %v4019 = vadd.f32 %v3850, %v4018
    %v4020 = vpop.f32.mrf.mxu0
    %v4021 = vadd.f32 %v3852, %v4020
    %4022 = vmatmul.bf16.gmra.mxu0 %v1781
    %v4023 = vpop.f32.mrf.mxu0
    %v4024 = vadd.f32 %v3855, %v4023
    %v4025 = vpop.f32.mrf.mxu0
    %v4026 = vadd.f32 %v3857, %v4025
    %4027 = vmatmul.bf16.gmra.mxu0 %v1782
    %v4028 = vpop.f32.mrf.mxu0
    %v4029 = vadd.f32 %v3860, %v4028
    %v4030 = vpop.f32.mrf.mxu0
    %v4031 = vadd.f32 %v3862, %v4030
    %4032 = vmatmul.bf16.gmra.mxu0 %v1783
    %v4033 = vpop.f32.mrf.mxu0
    %v4034 = vadd.f32 %v3865, %v4033
    %v4035 = vpop.f32.mrf.mxu0
    %v4036 = vadd.f32 %v3867, %v4035
    %4037 = vmatmul.bf16.gmra.mxu0 %v1784
    %v4038 = vpop.f32.mrf.mxu0
    %v4039 = vadd.f32 %v3870, %v4038
    %v4040 = vpop.f32.mrf.mxu0
    %v4041 = vadd.f32 %v3872, %v4040
    %4042 = vmatmul.bf16.gmra.mxu0 %v1785
    %v4043 = vpop.f32.mrf.mxu0
    %v4044 = vadd.f32 %v3875, %v4043
    %v4045 = vpop.f32.mrf.mxu0
    %v4046 = vadd.f32 %v3877, %v4045
    %4047 = vmatmul.bf16.gmra.mxu0 %v1786
    %v4048 = vpop.f32.mrf.mxu0
    %v4049 = vadd.f32 %v3880, %v4048
    %v4050 = vpop.f32.mrf.mxu0
    %v4051 = vadd.f32 %v3882, %v4050
    %4052 = vmatmul.bf16.gmra.mxu0 %v1787
    %v4053 = vpop.f32.mrf.mxu0
    %v4054 = vadd.f32 %v3885, %v4053
    %v4055 = vpop.f32.mrf.mxu0
    %v4056 = vadd.f32 %v3887, %v4055
    %4057 = vmatmul.bf16.gmra.mxu0 %v1788
    %v4058 = vpop.f32.mrf.mxu0
    %v4059 = vadd.f32 %v3890, %v4058
    %v4060 = vpop.f32.mrf.mxu0
    %v4061 = vadd.f32 %v3892, %v4060
    %4062 = vmatmul.bf16.gmra.mxu0 %v1789
    %v4063 = vpop.f32.mrf.mxu0
    %v4064 = vadd.f32 %v3895, %v4063
    %v4065 = vpop.f32.mrf.mxu0
    %v4066 = vadd.f32 %v3897, %v4065
    %4067 = vmatmul.bf16.gmra.mxu0 %v1790
    %v4068 = vpop.f32.mrf.mxu0
    %v4069 = vadd.f32 %v3900, %v4068
    %v4070 = vpop.f32.mrf.mxu0
    %v4071 = vadd.f32 %v3902, %v4070
    %4072 = vmatmul.bf16.gmra.mxu0 %v1791
    %v4073 = vpop.f32.mrf.mxu0
    %v4074 = vadd.f32 %v3905, %v4073
    %v4075 = vpop.f32.mrf.mxu0
    %v4076 = vadd.f32 %v3907, %v4075
    %4077 = vmatmul.bf16.gmra.mxu0 %v1792
    %v4078 = vpop.f32.mrf.mxu0
    %v4079 = vadd.f32 %v3910, %v4078
    %v4080 = vpop.f32.mrf.mxu0
    %v4081 = vadd.f32 %v3912, %v4080
    %4082 = vdwg.mxu0
    %4083 = vmatpush.bf16.msra.mxu0 %v3624
    %4084 = vmatpush.bf16.msra.mxu0 %v3623
    %4085 = vmatpush.bf16.msra.mxu0 %v3622
    %4086 = vmatpush.bf16.msra.mxu0 %v3621
    %4087 = vmatpush.bf16.msra.mxu0 %v3620
    %4088 = vmatpush.bf16.msra.mxu0 %v3619
    %4089 = vmatpush.bf16.msra.mxu0 %v3618
    %4090 = vmatpush.bf16.msra.mxu0 %v3617
    %4091 = vmatmul.bf16.gmra.mxu0 %v1953
    %v4092 = vpop.f32.mrf.mxu0
    %v4093 = vadd.f32 %v3924, %v4092
    %v4094 = vpop.f32.mrf.mxu0
    %v4095 = vadd.f32 %v3926, %v4094
    %4096 = vmatmul.bf16.gmra.mxu0 %v1954
    %v4097 = vpop.f32.mrf.mxu0
    %v4098 = vadd.f32 %v3929, %v4097
    %v4099 = vpop.f32.mrf.mxu0
    %v4100 = vadd.f32 %v3931, %v4099
    %4101 = vmatmul.bf16.gmra.mxu0 %v1955
    %v4102 = vpop.f32.mrf.mxu0
    %v4103 = vadd.f32 %v3934, %v4102
    %v4104 = vpop.f32.mrf.mxu0
    %v4105 = vadd.f32 %v3936, %v4104
    %4106 = vmatmul.bf16.gmra.mxu0 %v1956
    %v4107 = vpop.f32.mrf.mxu0
    %v4108 = vadd.f32 %v3939, %v4107
    %v4109 = vpop.f32.mrf.mxu0
    %v4110 = vadd.f32 %v3941, %v4109
    %4111 = vmatmul.bf16.gmra.mxu0 %v1957
    %v4112 = vpop.f32.mrf.mxu0
    %v4113 = vadd.f32 %v3944, %v4112
    %v4114 = vpop.f32.mrf.mxu0
    %v4115 = vadd.f32 %v3946, %v4114
    %4116 = vmatmul.bf16.gmra.mxu0 %v1958
    %v4117 = vpop.f32.mrf.mxu0
    %v4118 = vadd.f32 %v3949, %v4117
    %v4119 = vpop.f32.mrf.mxu0
    %v4120 = vadd.f32 %v3951, %v4119
    %4121 = vmatmul.bf16.gmra.mxu0 %v1959
    %v4122 = vpop.f32.mrf.mxu0
    %v4123 = vadd.f32 %v3954, %v4122
    %v4124 = vpop.f32.mrf.mxu0
    %v4125 = vadd.f32 %v3956, %v4124
    %4126 = vmatmul.bf16.gmra.mxu0 %v1960
    %v4127 = vpop.f32.mrf.mxu0
    %v4128 = vadd.f32 %v3959, %v4127
    %v4129 = vpop.f32.mrf.mxu0
    %v4130 = vadd.f32 %v3961, %v4129
    %4131 = vmatmul.bf16.gmra.mxu0 %v1961
    %v4132 = vpop.f32.mrf.mxu0
    %v4133 = vadd.f32 %v3964, %v4132
    %v4134 = vpop.f32.mrf.mxu0
    %v4135 = vadd.f32 %v3966, %v4134
    %4136 = vmatmul.bf16.gmra.mxu0 %v1962
    %v4137 = vpop.f32.mrf.mxu0
    %v4138 = vadd.f32 %v3969, %v4137
    %v4139 = vpop.f32.mrf.mxu0
    %v4140 = vadd.f32 %v3971, %v4139
    %4141 = vmatmul.bf16.gmra.mxu0 %v1963
    %v4142 = vpop.f32.mrf.mxu0
    %v4143 = vadd.f32 %v3974, %v4142
    %v4144 = vpop.f32.mrf.mxu0
    %v4145 = vadd.f32 %v3976, %v4144
    %4146 = vmatmul.bf16.gmra.mxu0 %v1964
    %v4147 = vpop.f32.mrf.mxu0
    %v4148 = vadd.f32 %v3979, %v4147
    %v4149 = vpop.f32.mrf.mxu0
    %v4150 = vadd.f32 %v3981, %v4149
    %4151 = vmatmul.bf16.gmra.mxu0 %v1965
    %v4152 = vpop.f32.mrf.mxu0
    %v4153 = vadd.f32 %v3984, %v4152
    %v4154 = vpop.f32.mrf.mxu0
    %v4155 = vadd.f32 %v3986, %v4154
    %4156 = vmatmul.bf16.gmra.mxu0 %v1966
    %v4157 = vpop.f32.mrf.mxu0
    %v4158 = vadd.f32 %v3989, %v4157
    %v4159 = vpop.f32.mrf.mxu0
    %v4160 = vadd.f32 %v3991, %v4159
    %4161 = vmatmul.bf16.gmra.mxu0 %v1967
    %v4162 = vpop.f32.mrf.mxu0
    %v4163 = vadd.f32 %v3994, %v4162
    %v4164 = vpop.f32.mrf.mxu0
    %v4165 = vadd.f32 %v3996, %v4164
    %4166 = vmatmul.bf16.gmra.mxu0 %v1968
    %v4167 = vpop.f32.mrf.mxu0
    %v4168 = vadd.f32 %v3999, %v4167
    %v4169 = vpop.f32.mrf.mxu0
    %v4170 = vadd.f32 %v4001, %v4169
    %4171 = vmatmul.bf16.gmra.mxu0 %v1969
    %v4172 = vpop.f32.mrf.mxu0
    %v4173 = vadd.f32 %v4004, %v4172
    %v4174 = vpop.f32.mrf.mxu0
    %v4175 = vadd.f32 %v4006, %v4174
    %4176 = vmatmul.bf16.gmra.mxu0 %v1970
    %v4177 = vpop.f32.mrf.mxu0
    %v4178 = vadd.f32 %v4009, %v4177
    %v4179 = vpop.f32.mrf.mxu0
    %v4180 = vadd.f32 %v4011, %v4179
    %4181 = vmatmul.bf16.gmra.mxu0 %v1971
    %v4182 = vpop.f32.mrf.mxu0
    %v4183 = vadd.f32 %v4014, %v4182
    %v4184 = vpop.f32.mrf.mxu0
    %v4185 = vadd.f32 %v4016, %v4184
    %4186 = vmatmul.bf16.gmra.mxu0 %v1972
    %v4187 = vpop.f32.mrf.mxu0
    %v4188 = vadd.f32 %v4019, %v4187
    %v4189 = vpop.f32.mrf.mxu0
    %v4190 = vadd.f32 %v4021, %v4189
    %4191 = vmatmul.bf16.gmra.mxu0 %v1973
    %v4192 = vpop.f32.mrf.mxu0
    %v4193 = vadd.f32 %v4024, %v4192
    %v4194 = vpop.f32.mrf.mxu0
    %v4195 = vadd.f32 %v4026, %v4194
    %4196 = vmatmul.bf16.gmra.mxu0 %v1974
    %v4197 = vpop.f32.mrf.mxu0
    %v4198 = vadd.f32 %v4029, %v4197
    %v4199 = vpop.f32.mrf.mxu0
    %v4200 = vadd.f32 %v4031, %v4199
    %4201 = vmatmul.bf16.gmra.mxu0 %v1975
    %v4202 = vpop.f32.mrf.mxu0
    %v4203 = vadd.f32 %v4034, %v4202
    %v4204 = vpop.f32.mrf.mxu0
    %v4205 = vadd.f32 %v4036, %v4204
    %4206 = vmatmul.bf16.gmra.mxu0 %v1976
    %v4207 = vpop.f32.mrf.mxu0
    %v4208 = vadd.f32 %v4039, %v4207
    %v4209 = vpop.f32.mrf.mxu0
    %v4210 = vadd.f32 %v4041, %v4209
    %4211 = vmatmul.bf16.gmra.mxu0 %v1977
    %v4212 = vpop.f32.mrf.mxu0
    %v4213 = vadd.f32 %v4044, %v4212
    %v4214 = vpop.f32.mrf.mxu0
    %v4215 = vadd.f32 %v4046, %v4214
    %4216 = vmatmul.bf16.gmra.mxu0 %v1978
    %v4217 = vpop.f32.mrf.mxu0
    %v4218 = vadd.f32 %v4049, %v4217
    %v4219 = vpop.f32.mrf.mxu0
    %v4220 = vadd.f32 %v4051, %v4219
    %4221 = vmatmul.bf16.gmra.mxu0 %v1979
    %v4222 = vpop.f32.mrf.mxu0
    %v4223 = vadd.f32 %v4054, %v4222
    %v4224 = vpop.f32.mrf.mxu0
    %v4225 = vadd.f32 %v4056, %v4224
    %4226 = vmatmul.bf16.gmra.mxu0 %v1980
    %v4227 = vpop.f32.mrf.mxu0
    %v4228 = vadd.f32 %v4059, %v4227
    %v4229 = vpop.f32.mrf.mxu0
    %v4230 = vadd.f32 %v4061, %v4229
    %4231 = vmatmul.bf16.gmra.mxu0 %v1981
    %v4232 = vpop.f32.mrf.mxu0
    %v4233 = vadd.f32 %v4064, %v4232
    %v4234 = vpop.f32.mrf.mxu0
    %v4235 = vadd.f32 %v4066, %v4234
    %4236 = vmatmul.bf16.gmra.mxu0 %v1982
    %v4237 = vpop.f32.mrf.mxu0
    %v4238 = vadd.f32 %v4069, %v4237
    %v4239 = vpop.f32.mrf.mxu0
    %v4240 = vadd.f32 %v4071, %v4239
    %4241 = vmatmul.bf16.gmra.mxu0 %v1983
    %v4242 = vpop.f32.mrf.mxu0
    %v4243 = vadd.f32 %v4074, %v4242
    %v4244 = vpop.f32.mrf.mxu0
    %v4245 = vadd.f32 %v4076, %v4244
    %4246 = vmatmul.bf16.gmra.mxu0 %v1984
    %v4247 = vpop.f32.mrf.mxu0
    %v4248 = vadd.f32 %v4079, %v4247
    %v4249 = vpop.f32.mrf.mxu0
    %v4250 = vadd.f32 %v4081, %v4249
    %4251 = vdwg.mxu0
    %4252 = vmatpush.bf16.msra.mxu0 %v3632
    %4253 = vmatpush.bf16.msra.mxu0 %v3631
    %4254 = vmatpush.bf16.msra.mxu0 %v3630
    %4255 = vmatpush.bf16.msra.mxu0 %v3629
    %4256 = vmatpush.bf16.msra.mxu0 %v3628
    %4257 = vmatpush.bf16.msra.mxu0 %v3627
    %4258 = vmatpush.bf16.msra.mxu0 %v3626
    %4259 = vmatpush.bf16.msra.mxu0 %v3625
    %4260 = vmatmul.bf16.gmra.mxu0 %v2145
    %v4261 = vpop.f32.mrf.mxu0
    %v4262 = vadd.f32 %v4093, %v4261
    %v4263 = vpop.f32.mrf.mxu0
    %v4264 = vadd.f32 %v4095, %v4263
    %4265 = vmatmul.bf16.gmra.mxu0 %v2146
    %v4266 = vpop.f32.mrf.mxu0
    %v4267 = vadd.f32 %v4098, %v4266
    %v4268 = vpop.f32.mrf.mxu0
    %v4269 = vadd.f32 %v4100, %v4268
    %4270 = vmatmul.bf16.gmra.mxu0 %v2147
    %v4271 = vpop.f32.mrf.mxu0
    %v4272 = vadd.f32 %v4103, %v4271
    %v4273 = vpop.f32.mrf.mxu0
    %v4274 = vadd.f32 %v4105, %v4273
    %4275 = vmatmul.bf16.gmra.mxu0 %v2148
    %v4276 = vpop.f32.mrf.mxu0
    %v4277 = vadd.f32 %v4108, %v4276
    %v4278 = vpop.f32.mrf.mxu0
    %v4279 = vadd.f32 %v4110, %v4278
    %4280 = vmatmul.bf16.gmra.mxu0 %v2149
    %v4281 = vpop.f32.mrf.mxu0
    %v4282 = vadd.f32 %v4113, %v4281
    %v4283 = vpop.f32.mrf.mxu0
    %v4284 = vadd.f32 %v4115, %v4283
    %4285 = vmatmul.bf16.gmra.mxu0 %v2150
    %v4286 = vpop.f32.mrf.mxu0
    %v4287 = vadd.f32 %v4118, %v4286
    %v4288 = vpop.f32.mrf.mxu0
    %v4289 = vadd.f32 %v4120, %v4288
    %4290 = vmatmul.bf16.gmra.mxu0 %v2151
    %v4291 = vpop.f32.mrf.mxu0
    %v4292 = vadd.f32 %v4123, %v4291
    %v4293 = vpop.f32.mrf.mxu0
    %v4294 = vadd.f32 %v4125, %v4293
    %4295 = vmatmul.bf16.gmra.mxu0 %v2152
    %v4296 = vpop.f32.mrf.mxu0
    %v4297 = vadd.f32 %v4128, %v4296
    %v4298 = vpop.f32.mrf.mxu0
    %v4299 = vadd.f32 %v4130, %v4298
    %4300 = vmatmul.bf16.gmra.mxu0 %v2153
    %v4301 = vpop.f32.mrf.mxu0
    %v4302 = vadd.f32 %v4133, %v4301
    %v4303 = vpop.f32.mrf.mxu0
    %v4304 = vadd.f32 %v4135, %v4303
    %4305 = vmatmul.bf16.gmra.mxu0 %v2154
    %v4306 = vpop.f32.mrf.mxu0
    %v4307 = vadd.f32 %v4138, %v4306
    %v4308 = vpop.f32.mrf.mxu0
    %v4309 = vadd.f32 %v4140, %v4308
    %4310 = vmatmul.bf16.gmra.mxu0 %v2155
    %v4311 = vpop.f32.mrf.mxu0
    %v4312 = vadd.f32 %v4143, %v4311
    %v4313 = vpop.f32.mrf.mxu0
    %v4314 = vadd.f32 %v4145, %v4313
    %4315 = vmatmul.bf16.gmra.mxu0 %v2156
    %v4316 = vpop.f32.mrf.mxu0
    %v4317 = vadd.f32 %v4148, %v4316
    %v4318 = vpop.f32.mrf.mxu0
    %v4319 = vadd.f32 %v4150, %v4318
    %4320 = vmatmul.bf16.gmra.mxu0 %v2157
    %v4321 = vpop.f32.mrf.mxu0
    %v4322 = vadd.f32 %v4153, %v4321
    %v4323 = vpop.f32.mrf.mxu0
    %v4324 = vadd.f32 %v4155, %v4323
    %4325 = vmatmul.bf16.gmra.mxu0 %v2158
    %v4326 = vpop.f32.mrf.mxu0
    %v4327 = vadd.f32 %v4158, %v4326
    %v4328 = vpop.f32.mrf.mxu0
    %v4329 = vadd.f32 %v4160, %v4328
    %4330 = vmatmul.bf16.gmra.mxu0 %v2159
    %v4331 = vpop.f32.mrf.mxu0
    %v4332 = vadd.f32 %v4163, %v4331
    %v4333 = vpop.f32.mrf.mxu0
    %v4334 = vadd.f32 %v4165, %v4333
    %4335 = vmatmul.bf16.gmra.mxu0 %v2160
    %v4336 = vpop.f32.mrf.mxu0
    %v4337 = vadd.f32 %v4168, %v4336
    %v4338 = vpop.f32.mrf.mxu0
    %v4339 = vadd.f32 %v4170, %v4338
    %4340 = vmatmul.bf16.gmra.mxu0 %v2161
    %v4341 = vpop.f32.mrf.mxu0
    %v4342 = vadd.f32 %v4173, %v4341
    %v4343 = vpop.f32.mrf.mxu0
    %v4344 = vadd.f32 %v4175, %v4343
    %4345 = vmatmul.bf16.gmra.mxu0 %v2162
    %v4346 = vpop.f32.mrf.mxu0
    %v4347 = vadd.f32 %v4178, %v4346
    %v4348 = vpop.f32.mrf.mxu0
    %v4349 = vadd.f32 %v4180, %v4348
    %4350 = vmatmul.bf16.gmra.mxu0 %v2163
    %v4351 = vpop.f32.mrf.mxu0
    %v4352 = vadd.f32 %v4183, %v4351
    %v4353 = vpop.f32.mrf.mxu0
    %v4354 = vadd.f32 %v4185, %v4353
    %4355 = vmatmul.bf16.gmra.mxu0 %v2164
    %v4356 = vpop.f32.mrf.mxu0
    %v4357 = vadd.f32 %v4188, %v4356
    %v4358 = vpop.f32.mrf.mxu0
    %v4359 = vadd.f32 %v4190, %v4358
    %4360 = vmatmul.bf16.gmra.mxu0 %v2165
    %v4361 = vpop.f32.mrf.mxu0
    %v4362 = vadd.f32 %v4193, %v4361
    %v4363 = vpop.f32.mrf.mxu0
    %v4364 = vadd.f32 %v4195, %v4363
    %4365 = vmatmul.bf16.gmra.mxu0 %v2166
    %v4366 = vpop.f32.mrf.mxu0
    %v4367 = vadd.f32 %v4198, %v4366
    %v4368 = vpop.f32.mrf.mxu0
    %v4369 = vadd.f32 %v4200, %v4368
    %4370 = vmatmul.bf16.gmra.mxu0 %v2167
    %v4371 = vpop.f32.mrf.mxu0
    %v4372 = vadd.f32 %v4203, %v4371
    %v4373 = vpop.f32.mrf.mxu0
    %v4374 = vadd.f32 %v4205, %v4373
    %4375 = vmatmul.bf16.gmra.mxu0 %v2168
    %v4376 = vpop.f32.mrf.mxu0
    %v4377 = vadd.f32 %v4208, %v4376
    %v4378 = vpop.f32.mrf.mxu0
    %v4379 = vadd.f32 %v4210, %v4378
    %4380 = vmatmul.bf16.gmra.mxu0 %v2169
    %v4381 = vpop.f32.mrf.mxu0
    %v4382 = vadd.f32 %v4213, %v4381
    %v4383 = vpop.f32.mrf.mxu0
    %v4384 = vadd.f32 %v4215, %v4383
    %4385 = vmatmul.bf16.gmra.mxu0 %v2170
    %v4386 = vpop.f32.mrf.mxu0
    %v4387 = vadd.f32 %v4218, %v4386
    %v4388 = vpop.f32.mrf.mxu0
    %v4389 = vadd.f32 %v4220, %v4388
    %4390 = vmatmul.bf16.gmra.mxu0 %v2171
    %v4391 = vpop.f32.mrf.mxu0
    %v4392 = vadd.f32 %v4223, %v4391
    %v4393 = vpop.f32.mrf.mxu0
    %v4394 = vadd.f32 %v4225, %v4393
    %4395 = vmatmul.bf16.gmra.mxu0 %v2172
    %v4396 = vpop.f32.mrf.mxu0
    %v4397 = vadd.f32 %v4228, %v4396
    %v4398 = vpop.f32.mrf.mxu0
    %v4399 = vadd.f32 %v4230, %v4398
    %4400 = vmatmul.bf16.gmra.mxu0 %v2173
    %v4401 = vpop.f32.mrf.mxu0
    %v4402 = vadd.f32 %v4233, %v4401
    %v4403 = vpop.f32.mrf.mxu0
    %v4404 = vadd.f32 %v4235, %v4403
    %4405 = vmatmul.bf16.gmra.mxu0 %v2174
    %v4406 = vpop.f32.mrf.mxu0
    %v4407 = vadd.f32 %v4238, %v4406
    %v4408 = vpop.f32.mrf.mxu0
    %v4409 = vadd.f32 %v4240, %v4408
    %4410 = vmatmul.bf16.gmra.mxu0 %v2175
    %v4411 = vpop.f32.mrf.mxu0
    %v4412 = vadd.f32 %v4243, %v4411
    %v4413 = vpop.f32.mrf.mxu0
    %v4414 = vadd.f32 %v4245, %v4413
    %4415 = vmatmul.bf16.gmra.mxu0 %v2176
    %v4416 = vpop.f32.mrf.mxu0
    %v4417 = vadd.f32 %v4248, %v4416
    %v4418 = vpop.f32.mrf.mxu0
    %v4419 = vadd.f32 %v4250, %v4418
    %4420 = vdwg.mxu0
    %4421 = vmatpush.bf16.msra.mxu0 %v3640
    %4422 = vmatpush.bf16.msra.mxu0 %v3639
    %4423 = vmatpush.bf16.msra.mxu0 %v3638
    %4424 = vmatpush.bf16.msra.mxu0 %v3637
    %4425 = vmatpush.bf16.msra.mxu0 %v3636
    %4426 = vmatpush.bf16.msra.mxu0 %v3635
    %4427 = vmatpush.bf16.msra.mxu0 %v3634
    %4428 = vmatpush.bf16.msra.mxu0 %v3633
    %4429 = vmatmul.bf16.gmra.mxu0 %v2337
    %v4430 = vpop.f32.mrf.mxu0
    %v4431 = vadd.f32 %v4262, %v4430
    %v4432 = vpop.f32.mrf.mxu0
    %v4433 = vadd.f32 %v4264, %v4432
    %4434 = vmatmul.bf16.gmra.mxu0 %v2338
    %v4435 = vpop.f32.mrf.mxu0
    %v4436 = vadd.f32 %v4267, %v4435
    %v4437 = vpop.f32.mrf.mxu0
    %v4438 = vadd.f32 %v4269, %v4437
    %4439 = vmatmul.bf16.gmra.mxu0 %v2339
    %v4440 = vpop.f32.mrf.mxu0
    %v4441 = vadd.f32 %v4272, %v4440
    %v4442 = vpop.f32.mrf.mxu0
    %v4443 = vadd.f32 %v4274, %v4442
    %4444 = vmatmul.bf16.gmra.mxu0 %v2340
    %v4445 = vpop.f32.mrf.mxu0
    %v4446 = vadd.f32 %v4277, %v4445
    %v4447 = vpop.f32.mrf.mxu0
    %v4448 = vadd.f32 %v4279, %v4447
    %4449 = vmatmul.bf16.gmra.mxu0 %v2341
    %v4450 = vpop.f32.mrf.mxu0
    %v4451 = vadd.f32 %v4282, %v4450
    %v4452 = vpop.f32.mrf.mxu0
    %v4453 = vadd.f32 %v4284, %v4452
    %4454 = vmatmul.bf16.gmra.mxu0 %v2342
    %v4455 = vpop.f32.mrf.mxu0
    %v4456 = vadd.f32 %v4287, %v4455
    %v4457 = vpop.f32.mrf.mxu0
    %v4458 = vadd.f32 %v4289, %v4457
    %4459 = vmatmul.bf16.gmra.mxu0 %v2343
    %v4460 = vpop.f32.mrf.mxu0
    %v4461 = vadd.f32 %v4292, %v4460
    %v4462 = vpop.f32.mrf.mxu0
    %v4463 = vadd.f32 %v4294, %v4462
    %4464 = vmatmul.bf16.gmra.mxu0 %v2344
    %v4465 = vpop.f32.mrf.mxu0
    %v4466 = vadd.f32 %v4297, %v4465
    %v4467 = vpop.f32.mrf.mxu0
    %v4468 = vadd.f32 %v4299, %v4467
    %4469 = vmatmul.bf16.gmra.mxu0 %v2345
    %v4470 = vpop.f32.mrf.mxu0
    %v4471 = vadd.f32 %v4302, %v4470
    %v4472 = vpop.f32.mrf.mxu0
    %v4473 = vadd.f32 %v4304, %v4472
    %4474 = vmatmul.bf16.gmra.mxu0 %v2346
    %v4475 = vpop.f32.mrf.mxu0
    %v4476 = vadd.f32 %v4307, %v4475
    %v4477 = vpop.f32.mrf.mxu0
    %v4478 = vadd.f32 %v4309, %v4477
    %4479 = vmatmul.bf16.gmra.mxu0 %v2347
    %v4480 = vpop.f32.mrf.mxu0
    %v4481 = vadd.f32 %v4312, %v4480
    %v4482 = vpop.f32.mrf.mxu0
    %v4483 = vadd.f32 %v4314, %v4482
    %4484 = vmatmul.bf16.gmra.mxu0 %v2348
    %v4485 = vpop.f32.mrf.mxu0
    %v4486 = vadd.f32 %v4317, %v4485
    %v4487 = vpop.f32.mrf.mxu0
    %v4488 = vadd.f32 %v4319, %v4487
    %4489 = vmatmul.bf16.gmra.mxu0 %v2349
    %v4490 = vpop.f32.mrf.mxu0
    %v4491 = vadd.f32 %v4322, %v4490
    %v4492 = vpop.f32.mrf.mxu0
    %v4493 = vadd.f32 %v4324, %v4492
    %4494 = vmatmul.bf16.gmra.mxu0 %v2350
    %v4495 = vpop.f32.mrf.mxu0
    %v4496 = vadd.f32 %v4327, %v4495
    %v4497 = vpop.f32.mrf.mxu0
    %v4498 = vadd.f32 %v4329, %v4497
    %4499 = vmatmul.bf16.gmra.mxu0 %v2351
    %v4500 = vpop.f32.mrf.mxu0
    %v4501 = vadd.f32 %v4332, %v4500
    %v4502 = vpop.f32.mrf.mxu0
    %v4503 = vadd.f32 %v4334, %v4502
    %4504 = vmatmul.bf16.gmra.mxu0 %v2352
    %v4505 = vpop.f32.mrf.mxu0
    %v4506 = vadd.f32 %v4337, %v4505
    %v4507 = vpop.f32.mrf.mxu0
    %v4508 = vadd.f32 %v4339, %v4507
    %4509 = vmatmul.bf16.gmra.mxu0 %v2353
    %v4510 = vpop.f32.mrf.mxu0
    %v4511 = vadd.f32 %v4342, %v4510
    %v4512 = vpop.f32.mrf.mxu0
    %v4513 = vadd.f32 %v4344, %v4512
    %4514 = vmatmul.bf16.gmra.mxu0 %v2354
    %v4515 = vpop.f32.mrf.mxu0
    %v4516 = vadd.f32 %v4347, %v4515
    %v4517 = vpop.f32.mrf.mxu0
    %v4518 = vadd.f32 %v4349, %v4517
    %4519 = vmatmul.bf16.gmra.mxu0 %v2355
    %v4520 = vpop.f32.mrf.mxu0
    %v4521 = vadd.f32 %v4352, %v4520
    %v4522 = vpop.f32.mrf.mxu0
    %v4523 = vadd.f32 %v4354, %v4522
    %4524 = vmatmul.bf16.gmra.mxu0 %v2356
    %v4525 = vpop.f32.mrf.mxu0
    %v4526 = vadd.f32 %v4357, %v4525
    %v4527 = vpop.f32.mrf.mxu0
    %v4528 = vadd.f32 %v4359, %v4527
    %4529 = vmatmul.bf16.gmra.mxu0 %v2357
    %v4530 = vpop.f32.mrf.mxu0
    %v4531 = vadd.f32 %v4362, %v4530
    %v4532 = vpop.f32.mrf.mxu0
    %v4533 = vadd.f32 %v4364, %v4532
    %4534 = vmatmul.bf16.gmra.mxu0 %v2358
    %v4535 = vpop.f32.mrf.mxu0
    %v4536 = vadd.f32 %v4367, %v4535
    %v4537 = vpop.f32.mrf.mxu0
    %v4538 = vadd.f32 %v4369, %v4537
    %4539 = vmatmul.bf16.gmra.mxu0 %v2359
    %v4540 = vpop.f32.mrf.mxu0
    %v4541 = vadd.f32 %v4372, %v4540
    %v4542 = vpop.f32.mrf.mxu0
    %v4543 = vadd.f32 %v4374, %v4542
    %4544 = vmatmul.bf16.gmra.mxu0 %v2360
    %v4545 = vpop.f32.mrf.mxu0
    %v4546 = vadd.f32 %v4377, %v4545
    %v4547 = vpop.f32.mrf.mxu0
    %v4548 = vadd.f32 %v4379, %v4547
    %4549 = vmatmul.bf16.gmra.mxu0 %v2361
    %v4550 = vpop.f32.mrf.mxu0
    %v4551 = vadd.f32 %v4382, %v4550
    %v4552 = vpop.f32.mrf.mxu0
    %v4553 = vadd.f32 %v4384, %v4552
    %4554 = vmatmul.bf16.gmra.mxu0 %v2362
    %v4555 = vpop.f32.mrf.mxu0
    %v4556 = vadd.f32 %v4387, %v4555
    %v4557 = vpop.f32.mrf.mxu0
    %v4558 = vadd.f32 %v4389, %v4557
    %4559 = vmatmul.bf16.gmra.mxu0 %v2363
    %v4560 = vpop.f32.mrf.mxu0
    %v4561 = vadd.f32 %v4392, %v4560
    %v4562 = vpop.f32.mrf.mxu0
    %v4563 = vadd.f32 %v4394, %v4562
    %4564 = vmatmul.bf16.gmra.mxu0 %v2364
    %v4565 = vpop.f32.mrf.mxu0
    %v4566 = vadd.f32 %v4397, %v4565
    %v4567 = vpop.f32.mrf.mxu0
    %v4568 = vadd.f32 %v4399, %v4567
    %4569 = vmatmul.bf16.gmra.mxu0 %v2365
    %v4570 = vpop.f32.mrf.mxu0
    %v4571 = vadd.f32 %v4402, %v4570
    %v4572 = vpop.f32.mrf.mxu0
    %v4573 = vadd.f32 %v4404, %v4572
    %4574 = vmatmul.bf16.gmra.mxu0 %v2366
    %v4575 = vpop.f32.mrf.mxu0
    %v4576 = vadd.f32 %v4407, %v4575
    %v4577 = vpop.f32.mrf.mxu0
    %v4578 = vadd.f32 %v4409, %v4577
    %4579 = vmatmul.bf16.gmra.mxu0 %v2367
    %v4580 = vpop.f32.mrf.mxu0
    %v4581 = vadd.f32 %v4412, %v4580
    %v4582 = vpop.f32.mrf.mxu0
    %v4583 = vadd.f32 %v4414, %v4582
    %4584 = vmatmul.bf16.gmra.mxu0 %v2368
    %v4585 = vpop.f32.mrf.mxu0
    %v4586 = vadd.f32 %v4417, %v4585
    %v4587 = vpop.f32.mrf.mxu0
    %v4588 = vadd.f32 %v4419, %v4587
    %4589 = vdwg.mxu0
    %4590 = vmatpush.bf16.msra.mxu0 %v3648
    %4591 = vmatpush.bf16.msra.mxu0 %v3647
    %4592 = vmatpush.bf16.msra.mxu0 %v3646
    %4593 = vmatpush.bf16.msra.mxu0 %v3645
    %4594 = vmatpush.bf16.msra.mxu0 %v3644
    %4595 = vmatpush.bf16.msra.mxu0 %v3643
    %4596 = vmatpush.bf16.msra.mxu0 %v3642
    %4597 = vmatpush.bf16.msra.mxu0 %v3641
    %4598 = vmatmul.bf16.gmra.mxu0 %v2529
    %v4599 = vpop.f32.mrf.mxu0
    %v4600 = vadd.f32 %v4431, %v4599
    %v4601 = vpop.f32.mrf.mxu0
    %v4602 = vadd.f32 %v4433, %v4601
    %4603 = vmatmul.bf16.gmra.mxu0 %v2530
    %v4604 = vpop.f32.mrf.mxu0
    %v4605 = vadd.f32 %v4436, %v4604
    %v4606 = vpop.f32.mrf.mxu0
    %v4607 = vadd.f32 %v4438, %v4606
    %4608 = vmatmul.bf16.gmra.mxu0 %v2531
    %v4609 = vpop.f32.mrf.mxu0
    %v4610 = vadd.f32 %v4441, %v4609
    %v4611 = vpop.f32.mrf.mxu0
    %v4612 = vadd.f32 %v4443, %v4611
    %4613 = vmatmul.bf16.gmra.mxu0 %v2532
    %v4614 = vpop.f32.mrf.mxu0
    %v4615 = vadd.f32 %v4446, %v4614
    %v4616 = vpop.f32.mrf.mxu0
    %v4617 = vadd.f32 %v4448, %v4616
    %4618 = vmatmul.bf16.gmra.mxu0 %v2533
    %v4619 = vpop.f32.mrf.mxu0
    %v4620 = vadd.f32 %v4451, %v4619
    %v4621 = vpop.f32.mrf.mxu0
    %v4622 = vadd.f32 %v4453, %v4621
    %4623 = vmatmul.bf16.gmra.mxu0 %v2534
    %v4624 = vpop.f32.mrf.mxu0
    %v4625 = vadd.f32 %v4456, %v4624
    %v4626 = vpop.f32.mrf.mxu0
    %v4627 = vadd.f32 %v4458, %v4626
    %4628 = vmatmul.bf16.gmra.mxu0 %v2535
    %v4629 = vpop.f32.mrf.mxu0
    %v4630 = vadd.f32 %v4461, %v4629
    %v4631 = vpop.f32.mrf.mxu0
    %v4632 = vadd.f32 %v4463, %v4631
    %4633 = vmatmul.bf16.gmra.mxu0 %v2536
    %v4634 = vpop.f32.mrf.mxu0
    %v4635 = vadd.f32 %v4466, %v4634
    %v4636 = vpop.f32.mrf.mxu0
    %v4637 = vadd.f32 %v4468, %v4636
    %4638 = vmatmul.bf16.gmra.mxu0 %v2537
    %v4639 = vpop.f32.mrf.mxu0
    %v4640 = vadd.f32 %v4471, %v4639
    %v4641 = vpop.f32.mrf.mxu0
    %v4642 = vadd.f32 %v4473, %v4641
    %4643 = vmatmul.bf16.gmra.mxu0 %v2538
    %v4644 = vpop.f32.mrf.mxu0
    %v4645 = vadd.f32 %v4476, %v4644
    %v4646 = vpop.f32.mrf.mxu0
    %v4647 = vadd.f32 %v4478, %v4646
    %4648 = vmatmul.bf16.gmra.mxu0 %v2539
    %v4649 = vpop.f32.mrf.mxu0
    %v4650 = vadd.f32 %v4481, %v4649
    %v4651 = vpop.f32.mrf.mxu0
    %v4652 = vadd.f32 %v4483, %v4651
    %4653 = vmatmul.bf16.gmra.mxu0 %v2540
    %v4654 = vpop.f32.mrf.mxu0
    %v4655 = vadd.f32 %v4486, %v4654
    %v4656 = vpop.f32.mrf.mxu0
    %v4657 = vadd.f32 %v4488, %v4656
    %4658 = vmatmul.bf16.gmra.mxu0 %v2541
    %v4659 = vpop.f32.mrf.mxu0
    %v4660 = vadd.f32 %v4491, %v4659
    %v4661 = vpop.f32.mrf.mxu0
    %v4662 = vadd.f32 %v4493, %v4661
    %4663 = vmatmul.bf16.gmra.mxu0 %v2542
    %v4664 = vpop.f32.mrf.mxu0
    %v4665 = vadd.f32 %v4496, %v4664
    %v4666 = vpop.f32.mrf.mxu0
    %v4667 = vadd.f32 %v4498, %v4666
    %4668 = vmatmul.bf16.gmra.mxu0 %v2543
    %v4669 = vpop.f32.mrf.mxu0
    %v4670 = vadd.f32 %v4501, %v4669
    %v4671 = vpop.f32.mrf.mxu0
    %v4672 = vadd.f32 %v4503, %v4671
    %4673 = vmatmul.bf16.gmra.mxu0 %v2544
    %v4674 = vpop.f32.mrf.mxu0
    %v4675 = vadd.f32 %v4506, %v4674
    %v4676 = vpop.f32.mrf.mxu0
    %v4677 = vadd.f32 %v4508, %v4676
    %4678 = vmatmul.bf16.gmra.mxu0 %v2545
    %v4679 = vpop.f32.mrf.mxu0
    %v4680 = vadd.f32 %v4511, %v4679
    %v4681 = vpop.f32.mrf.mxu0
    %v4682 = vadd.f32 %v4513, %v4681
    %4683 = vmatmul.bf16.gmra.mxu0 %v2546
    %v4684 = vpop.f32.mrf.mxu0
    %v4685 = vadd.f32 %v4516, %v4684
    %v4686 = vpop.f32.mrf.mxu0
    %v4687 = vadd.f32 %v4518, %v4686
    %4688 = vmatmul.bf16.gmra.mxu0 %v2547
    %v4689 = vpop.f32.mrf.mxu0
    %v4690 = vadd.f32 %v4521, %v4689
    %v4691 = vpop.f32.mrf.mxu0
    %v4692 = vadd.f32 %v4523, %v4691
    %4693 = vmatmul.bf16.gmra.mxu0 %v2548
    %v4694 = vpop.f32.mrf.mxu0
    %v4695 = vadd.f32 %v4526, %v4694
    %v4696 = vpop.f32.mrf.mxu0
    %v4697 = vadd.f32 %v4528, %v4696
    %4698 = vmatmul.bf16.gmra.mxu0 %v2549
    %v4699 = vpop.f32.mrf.mxu0
    %v4700 = vadd.f32 %v4531, %v4699
    %v4701 = vpop.f32.mrf.mxu0
    %v4702 = vadd.f32 %v4533, %v4701
    %4703 = vmatmul.bf16.gmra.mxu0 %v2550
    %v4704 = vpop.f32.mrf.mxu0
    %v4705 = vadd.f32 %v4536, %v4704
    %v4706 = vpop.f32.mrf.mxu0
    %v4707 = vadd.f32 %v4538, %v4706
    %4708 = vmatmul.bf16.gmra.mxu0 %v2551
    %v4709 = vpop.f32.mrf.mxu0
    %v4710 = vadd.f32 %v4541, %v4709
    %v4711 = vpop.f32.mrf.mxu0
    %v4712 = vadd.f32 %v4543, %v4711
    %4713 = vmatmul.bf16.gmra.mxu0 %v2552
    %v4714 = vpop.f32.mrf.mxu0
    %v4715 = vadd.f32 %v4546, %v4714
    %v4716 = vpop.f32.mrf.mxu0
    %v4717 = vadd.f32 %v4548, %v4716
    %4718 = vmatmul.bf16.gmra.mxu0 %v2553
    %v4719 = vpop.f32.mrf.mxu0
    %v4720 = vadd.f32 %v4551, %v4719
    %v4721 = vpop.f32.mrf.mxu0
    %v4722 = vadd.f32 %v4553, %v4721
    %4723 = vmatmul.bf16.gmra.mxu0 %v2554
    %v4724 = vpop.f32.mrf.mxu0
    %v4725 = vadd.f32 %v4556, %v4724
    %v4726 = vpop.f32.mrf.mxu0
    %v4727 = vadd.f32 %v4558, %v4726
    %4728 = vmatmul.bf16.gmra.mxu0 %v2555
    %v4729 = vpop.f32.mrf.mxu0
    %v4730 = vadd.f32 %v4561, %v4729
    %v4731 = vpop.f32.mrf.mxu0
    %v4732 = vadd.f32 %v4563, %v4731
    %4733 = vmatmul.bf16.gmra.mxu0 %v2556
    %v4734 = vpop.f32.mrf.mxu0
    %v4735 = vadd.f32 %v4566, %v4734
    %v4736 = vpop.f32.mrf.mxu0
    %v4737 = vadd.f32 %v4568, %v4736
    %4738 = vmatmul.bf16.gmra.mxu0 %v2557
    %v4739 = vpop.f32.mrf.mxu0
    %v4740 = vadd.f32 %v4571, %v4739
    %v4741 = vpop.f32.mrf.mxu0
    %v4742 = vadd.f32 %v4573, %v4741
    %4743 = vmatmul.bf16.gmra.mxu0 %v2558
    %v4744 = vpop.f32.mrf.mxu0
    %v4745 = vadd.f32 %v4576, %v4744
    %v4746 = vpop.f32.mrf.mxu0
    %v4747 = vadd.f32 %v4578, %v4746
    %4748 = vmatmul.bf16.gmra.mxu0 %v2559
    %v4749 = vpop.f32.mrf.mxu0
    %v4750 = vadd.f32 %v4581, %v4749
    %v4751 = vpop.f32.mrf.mxu0
    %v4752 = vadd.f32 %v4583, %v4751
    %4753 = vmatmul.bf16.gmra.mxu0 %v2560
    %v4754 = vpop.f32.mrf.mxu0
    %v4755 = vadd.f32 %v4586, %v4754
    %v4756 = vpop.f32.mrf.mxu0
    %v4757 = vadd.f32 %v4588, %v4756
    %4758 = vdwg.mxu0
    %4759 = vmatpush.bf16.msra.mxu0 %v3656
    %4760 = vmatpush.bf16.msra.mxu0 %v3655
    %4761 = vmatpush.bf16.msra.mxu0 %v3654
    %4762 = vmatpush.bf16.msra.mxu0 %v3653
    %4763 = vmatpush.bf16.msra.mxu0 %v3652
    %4764 = vmatpush.bf16.msra.mxu0 %v3651
    %4765 = vmatpush.bf16.msra.mxu0 %v3650
    %4766 = vmatpush.bf16.msra.mxu0 %v3649
    %4767 = vmatmul.bf16.gmra.mxu0 %v2721
    %v4768 = vpop.f32.mrf.mxu0
    %v4769 = vadd.f32 %v4600, %v4768
    %v4770 = vpop.f32.mrf.mxu0
    %v4771 = vadd.f32 %v4602, %v4770
    %4772 = vmatmul.bf16.gmra.mxu0 %v2722
    %v4773 = vpop.f32.mrf.mxu0
    %v4774 = vadd.f32 %v4605, %v4773
    %v4775 = vpop.f32.mrf.mxu0
    %v4776 = vadd.f32 %v4607, %v4775
    %4777 = vmatmul.bf16.gmra.mxu0 %v2723
    %v4778 = vpop.f32.mrf.mxu0
    %v4779 = vadd.f32 %v4610, %v4778
    %v4780 = vpop.f32.mrf.mxu0
    %v4781 = vadd.f32 %v4612, %v4780
    %4782 = vmatmul.bf16.gmra.mxu0 %v2724
    %v4783 = vpop.f32.mrf.mxu0
    %v4784 = vadd.f32 %v4615, %v4783
    %v4785 = vpop.f32.mrf.mxu0
    %v4786 = vadd.f32 %v4617, %v4785
    %4787 = vmatmul.bf16.gmra.mxu0 %v2725
    %v4788 = vpop.f32.mrf.mxu0
    %v4789 = vadd.f32 %v4620, %v4788
    %v4790 = vpop.f32.mrf.mxu0
    %v4791 = vadd.f32 %v4622, %v4790
    %4792 = vmatmul.bf16.gmra.mxu0 %v2726
    %v4793 = vpop.f32.mrf.mxu0
    %v4794 = vadd.f32 %v4625, %v4793
    %v4795 = vpop.f32.mrf.mxu0
    %v4796 = vadd.f32 %v4627, %v4795
    %4797 = vmatmul.bf16.gmra.mxu0 %v2727
    %v4798 = vpop.f32.mrf.mxu0
    %v4799 = vadd.f32 %v4630, %v4798
    %v4800 = vpop.f32.mrf.mxu0
    %v4801 = vadd.f32 %v4632, %v4800
    %4802 = vmatmul.bf16.gmra.mxu0 %v2728
    %v4803 = vpop.f32.mrf.mxu0
    %v4804 = vadd.f32 %v4635, %v4803
    %v4805 = vpop.f32.mrf.mxu0
    %v4806 = vadd.f32 %v4637, %v4805
    %4807 = vmatmul.bf16.gmra.mxu0 %v2729
    %v4808 = vpop.f32.mrf.mxu0
    %v4809 = vadd.f32 %v4640, %v4808
    %v4810 = vpop.f32.mrf.mxu0
    %v4811 = vadd.f32 %v4642, %v4810
    %4812 = vmatmul.bf16.gmra.mxu0 %v2730
    %v4813 = vpop.f32.mrf.mxu0
    %v4814 = vadd.f32 %v4645, %v4813
    %v4815 = vpop.f32.mrf.mxu0
    %v4816 = vadd.f32 %v4647, %v4815
    %4817 = vmatmul.bf16.gmra.mxu0 %v2731
    %v4818 = vpop.f32.mrf.mxu0
    %v4819 = vadd.f32 %v4650, %v4818
    %v4820 = vpop.f32.mrf.mxu0
    %v4821 = vadd.f32 %v4652, %v4820
    %4822 = vmatmul.bf16.gmra.mxu0 %v2732
    %v4823 = vpop.f32.mrf.mxu0
    %v4824 = vadd.f32 %v4655, %v4823
    %v4825 = vpop.f32.mrf.mxu0
    %v4826 = vadd.f32 %v4657, %v4825
    %4827 = vmatmul.bf16.gmra.mxu0 %v2733
    %v4828 = vpop.f32.mrf.mxu0
    %v4829 = vadd.f32 %v4660, %v4828
    %v4830 = vpop.f32.mrf.mxu0
    %v4831 = vadd.f32 %v4662, %v4830
    %4832 = vmatmul.bf16.gmra.mxu0 %v2734
    %v4833 = vpop.f32.mrf.mxu0
    %v4834 = vadd.f32 %v4665, %v4833
    %v4835 = vpop.f32.mrf.mxu0
    %v4836 = vadd.f32 %v4667, %v4835
    %4837 = vmatmul.bf16.gmra.mxu0 %v2735
    %v4838 = vpop.f32.mrf.mxu0
    %v4839 = vadd.f32 %v4670, %v4838
    %v4840 = vpop.f32.mrf.mxu0
    %v4841 = vadd.f32 %v4672, %v4840
    %4842 = vmatmul.bf16.gmra.mxu0 %v2736
    %v4843 = vpop.f32.mrf.mxu0
    %v4844 = vadd.f32 %v4675, %v4843
    %v4845 = vpop.f32.mrf.mxu0
    %v4846 = vadd.f32 %v4677, %v4845
    %4847 = vmatmul.bf16.gmra.mxu0 %v2737
    %v4848 = vpop.f32.mrf.mxu0
    %v4849 = vadd.f32 %v4680, %v4848
    %v4850 = vpop.f32.mrf.mxu0
    %v4851 = vadd.f32 %v4682, %v4850
    %4852 = vmatmul.bf16.gmra.mxu0 %v2738
    %v4853 = vpop.f32.mrf.mxu0
    %v4854 = vadd.f32 %v4685, %v4853
    %v4855 = vpop.f32.mrf.mxu0
    %v4856 = vadd.f32 %v4687, %v4855
    %4857 = vmatmul.bf16.gmra.mxu0 %v2739
    %v4858 = vpop.f32.mrf.mxu0
    %v4859 = vadd.f32 %v4690, %v4858
    %v4860 = vpop.f32.mrf.mxu0
    %v4861 = vadd.f32 %v4692, %v4860
    %4862 = vmatmul.bf16.gmra.mxu0 %v2740
    %v4863 = vpop.f32.mrf.mxu0
    %v4864 = vadd.f32 %v4695, %v4863
    %v4865 = vpop.f32.mrf.mxu0
    %v4866 = vadd.f32 %v4697, %v4865
    %4867 = vmatmul.bf16.gmra.mxu0 %v2741
    %v4868 = vpop.f32.mrf.mxu0
    %v4869 = vadd.f32 %v4700, %v4868
    %v4870 = vpop.f32.mrf.mxu0
    %v4871 = vadd.f32 %v4702, %v4870
    %4872 = vmatmul.bf16.gmra.mxu0 %v2742
    %v4873 = vpop.f32.mrf.mxu0
    %v4874 = vadd.f32 %v4705, %v4873
    %v4875 = vpop.f32.mrf.mxu0
    %v4876 = vadd.f32 %v4707, %v4875
    %4877 = vmatmul.bf16.gmra.mxu0 %v2743
    %v4878 = vpop.f32.mrf.mxu0
    %v4879 = vadd.f32 %v4710, %v4878
    %v4880 = vpop.f32.mrf.mxu0
    %v4881 = vadd.f32 %v4712, %v4880
    %4882 = vmatmul.bf16.gmra.mxu0 %v2744
    %v4883 = vpop.f32.mrf.mxu0
    %v4884 = vadd.f32 %v4715, %v4883
    %v4885 = vpop.f32.mrf.mxu0
    %v4886 = vadd.f32 %v4717, %v4885
    %4887 = vmatmul.bf16.gmra.mxu0 %v2745
    %v4888 = vpop.f32.mrf.mxu0
    %v4889 = vadd.f32 %v4720, %v4888
    %v4890 = vpop.f32.mrf.mxu0
    %v4891 = vadd.f32 %v4722, %v4890
    %4892 = vmatmul.bf16.gmra.mxu0 %v2746
    %v4893 = vpop.f32.mrf.mxu0
    %v4894 = vadd.f32 %v4725, %v4893
    %v4895 = vpop.f32.mrf.mxu0
    %v4896 = vadd.f32 %v4727, %v4895
    %4897 = vmatmul.bf16.gmra.mxu0 %v2747
    %v4898 = vpop.f32.mrf.mxu0
    %v4899 = vadd.f32 %v4730, %v4898
    %v4900 = vpop.f32.mrf.mxu0
    %v4901 = vadd.f32 %v4732, %v4900
    %4902 = vmatmul.bf16.gmra.mxu0 %v2748
    %v4903 = vpop.f32.mrf.mxu0
    %v4904 = vadd.f32 %v4735, %v4903
    %v4905 = vpop.f32.mrf.mxu0
    %v4906 = vadd.f32 %v4737, %v4905
    %4907 = vmatmul.bf16.gmra.mxu0 %v2749
    %v4908 = vpop.f32.mrf.mxu0
    %v4909 = vadd.f32 %v4740, %v4908
    %v4910 = vpop.f32.mrf.mxu0
    %v4911 = vadd.f32 %v4742, %v4910
    %4912 = vmatmul.bf16.gmra.mxu0 %v2750
    %v4913 = vpop.f32.mrf.mxu0
    %v4914 = vadd.f32 %v4745, %v4913
    %v4915 = vpop.f32.mrf.mxu0
    %v4916 = vadd.f32 %v4747, %v4915
    %4917 = vmatmul.bf16.gmra.mxu0 %v2751
    %v4918 = vpop.f32.mrf.mxu0
    %v4919 = vadd.f32 %v4750, %v4918
    %v4920 = vpop.f32.mrf.mxu0
    %v4921 = vadd.f32 %v4752, %v4920
    %4922 = vmatmul.bf16.gmra.mxu0 %v2752
    %v4923 = vpop.f32.mrf.mxu0
    %v4924 = vadd.f32 %v4755, %v4923
    %v4925 = vpop.f32.mrf.mxu0
    %v4926 = vadd.f32 %v4757, %v4925
    %4927 = vdwg.mxu0
    %4928 = vmatpush.bf16.msra.mxu0 %v3664
    %4929 = vmatpush.bf16.msra.mxu0 %v3663
    %4930 = vmatpush.bf16.msra.mxu0 %v3662
    %4931 = vmatpush.bf16.msra.mxu0 %v3661
    %4932 = vmatpush.bf16.msra.mxu0 %v3660
    %4933 = vmatpush.bf16.msra.mxu0 %v3659
    %4934 = vmatpush.bf16.msra.mxu0 %v3658
    %4935 = vmatpush.bf16.msra.mxu0 %v3657
    %4936 = vmatmul.bf16.gmra.mxu0 %v2913
    %v4937 = vpop.f32.mrf.mxu0
    %v4938 = vadd.f32 %v4769, %v4937
    %v4939 = vpop.f32.mrf.mxu0
    %v4940 = vadd.f32 %v4771, %v4939
    %4941 = vmatmul.bf16.gmra.mxu0 %v2914
    %v4942 = vpop.f32.mrf.mxu0
    %v4943 = vadd.f32 %v4774, %v4942
    %v4944 = vpop.f32.mrf.mxu0
    %v4945 = vadd.f32 %v4776, %v4944
    %4946 = vmatmul.bf16.gmra.mxu0 %v2915
    %v4947 = vpop.f32.mrf.mxu0
    %v4948 = vadd.f32 %v4779, %v4947
    %v4949 = vpop.f32.mrf.mxu0
    %v4950 = vadd.f32 %v4781, %v4949
    %4951 = vmatmul.bf16.gmra.mxu0 %v2916
    %v4952 = vpop.f32.mrf.mxu0
    %v4953 = vadd.f32 %v4784, %v4952
    %v4954 = vpop.f32.mrf.mxu0
    %v4955 = vadd.f32 %v4786, %v4954
    %4956 = vmatmul.bf16.gmra.mxu0 %v2917
    %v4957 = vpop.f32.mrf.mxu0
    %v4958 = vadd.f32 %v4789, %v4957
    %v4959 = vpop.f32.mrf.mxu0
    %v4960 = vadd.f32 %v4791, %v4959
    %4961 = vmatmul.bf16.gmra.mxu0 %v2918
    %v4962 = vpop.f32.mrf.mxu0
    %v4963 = vadd.f32 %v4794, %v4962
    %v4964 = vpop.f32.mrf.mxu0
    %v4965 = vadd.f32 %v4796, %v4964
    %4966 = vmatmul.bf16.gmra.mxu0 %v2919
    %v4967 = vpop.f32.mrf.mxu0
    %v4968 = vadd.f32 %v4799, %v4967
    %v4969 = vpop.f32.mrf.mxu0
    %v4970 = vadd.f32 %v4801, %v4969
    %4971 = vmatmul.bf16.gmra.mxu0 %v2920
    %v4972 = vpop.f32.mrf.mxu0
    %v4973 = vadd.f32 %v4804, %v4972
    %v4974 = vpop.f32.mrf.mxu0
    %v4975 = vadd.f32 %v4806, %v4974
    %4976 = vmatmul.bf16.gmra.mxu0 %v2921
    %v4977 = vpop.f32.mrf.mxu0
    %v4978 = vadd.f32 %v4809, %v4977
    %v4979 = vpop.f32.mrf.mxu0
    %v4980 = vadd.f32 %v4811, %v4979
    %4981 = vmatmul.bf16.gmra.mxu0 %v2922
    %v4982 = vpop.f32.mrf.mxu0
    %v4983 = vadd.f32 %v4814, %v4982
    %v4984 = vpop.f32.mrf.mxu0
    %v4985 = vadd.f32 %v4816, %v4984
    %4986 = vmatmul.bf16.gmra.mxu0 %v2923
    %v4987 = vpop.f32.mrf.mxu0
    %v4988 = vadd.f32 %v4819, %v4987
    %v4989 = vpop.f32.mrf.mxu0
    %v4990 = vadd.f32 %v4821, %v4989
    %4991 = vmatmul.bf16.gmra.mxu0 %v2924
    %v4992 = vpop.f32.mrf.mxu0
    %v4993 = vadd.f32 %v4824, %v4992
    %v4994 = vpop.f32.mrf.mxu0
    %v4995 = vadd.f32 %v4826, %v4994
    %4996 = vmatmul.bf16.gmra.mxu0 %v2925
    %v4997 = vpop.f32.mrf.mxu0
    %v4998 = vadd.f32 %v4829, %v4997
    %v4999 = vpop.f32.mrf.mxu0
    %v5000 = vadd.f32 %v4831, %v4999
    %5001 = vmatmul.bf16.gmra.mxu0 %v2926
    %v5002 = vpop.f32.mrf.mxu0
    %v5003 = vadd.f32 %v4834, %v5002
    %v5004 = vpop.f32.mrf.mxu0
    %v5005 = vadd.f32 %v4836, %v5004
    %5006 = vmatmul.bf16.gmra.mxu0 %v2927
    %v5007 = vpop.f32.mrf.mxu0
    %v5008 = vadd.f32 %v4839, %v5007
    %v5009 = vpop.f32.mrf.mxu0
    %v5010 = vadd.f32 %v4841, %v5009
    %5011 = vmatmul.bf16.gmra.mxu0 %v2928
    %v5012 = vpop.f32.mrf.mxu0
    %v5013 = vadd.f32 %v4844, %v5012
    %v5014 = vpop.f32.mrf.mxu0
    %v5015 = vadd.f32 %v4846, %v5014
    %5016 = vmatmul.bf16.gmra.mxu0 %v2929
    %v5017 = vpop.f32.mrf.mxu0
    %v5018 = vadd.f32 %v4849, %v5017
    %v5019 = vpop.f32.mrf.mxu0
    %v5020 = vadd.f32 %v4851, %v5019
    %5021 = vmatmul.bf16.gmra.mxu0 %v2930
    %v5022 = vpop.f32.mrf.mxu0
    %v5023 = vadd.f32 %v4854, %v5022
    %v5024 = vpop.f32.mrf.mxu0
    %v5025 = vadd.f32 %v4856, %v5024
    %5026 = vmatmul.bf16.gmra.mxu0 %v2931
    %v5027 = vpop.f32.mrf.mxu0
    %v5028 = vadd.f32 %v4859, %v5027
    %v5029 = vpop.f32.mrf.mxu0
    %v5030 = vadd.f32 %v4861, %v5029
    %5031 = vmatmul.bf16.gmra.mxu0 %v2932
    %v5032 = vpop.f32.mrf.mxu0
    %v5033 = vadd.f32 %v4864, %v5032
    %v5034 = vpop.f32.mrf.mxu0
    %v5035 = vadd.f32 %v4866, %v5034
    %5036 = vmatmul.bf16.gmra.mxu0 %v2933
    %v5037 = vpop.f32.mrf.mxu0
    %v5038 = vadd.f32 %v4869, %v5037
    %v5039 = vpop.f32.mrf.mxu0
    %v5040 = vadd.f32 %v4871, %v5039
    %5041 = vmatmul.bf16.gmra.mxu0 %v2934
    %v5042 = vpop.f32.mrf.mxu0
    %v5043 = vadd.f32 %v4874, %v5042
    %v5044 = vpop.f32.mrf.mxu0
    %v5045 = vadd.f32 %v4876, %v5044
    %5046 = vmatmul.bf16.gmra.mxu0 %v2935
    %v5047 = vpop.f32.mrf.mxu0
    %v5048 = vadd.f32 %v4879, %v5047
    %v5049 = vpop.f32.mrf.mxu0
    %v5050 = vadd.f32 %v4881, %v5049
    %5051 = vmatmul.bf16.gmra.mxu0 %v2936
    %v5052 = vpop.f32.mrf.mxu0
    %v5053 = vadd.f32 %v4884, %v5052
    %v5054 = vpop.f32.mrf.mxu0
    %v5055 = vadd.f32 %v4886, %v5054
    %5056 = vmatmul.bf16.gmra.mxu0 %v2937
    %v5057 = vpop.f32.mrf.mxu0
    %v5058 = vadd.f32 %v4889, %v5057
    %v5059 = vpop.f32.mrf.mxu0
    %v5060 = vadd.f32 %v4891, %v5059
    %5061 = vmatmul.bf16.gmra.mxu0 %v2938
    %v5062 = vpop.f32.mrf.mxu0
    %v5063 = vadd.f32 %v4894, %v5062
    %v5064 = vpop.f32.mrf.mxu0
    %v5065 = vadd.f32 %v4896, %v5064
    %5066 = vmatmul.bf16.gmra.mxu0 %v2939
    %v5067 = vpop.f32.mrf.mxu0
    %v5068 = vadd.f32 %v4899, %v5067
    %v5069 = vpop.f32.mrf.mxu0
    %v5070 = vadd.f32 %v4901, %v5069
    %5071 = vmatmul.bf16.gmra.mxu0 %v2940
    %v5072 = vpop.f32.mrf.mxu0
    %v5073 = vadd.f32 %v4904, %v5072
    %v5074 = vpop.f32.mrf.mxu0
    %v5075 = vadd.f32 %v4906, %v5074
    %5076 = vmatmul.bf16.gmra.mxu0 %v2941
    %v5077 = vpop.f32.mrf.mxu0
    %v5078 = vadd.f32 %v4909, %v5077
    %v5079 = vpop.f32.mrf.mxu0
    %v5080 = vadd.f32 %v4911, %v5079
    %5081 = vmatmul.bf16.gmra.mxu0 %v2942
    %v5082 = vpop.f32.mrf.mxu0
    %v5083 = vadd.f32 %v4914, %v5082
    %v5084 = vpop.f32.mrf.mxu0
    %v5085 = vadd.f32 %v4916, %v5084
    %5086 = vmatmul.bf16.gmra.mxu0 %v2943
    %v5087 = vpop.f32.mrf.mxu0
    %v5088 = vadd.f32 %v4919, %v5087
    %v5089 = vpop.f32.mrf.mxu0
    %v5090 = vadd.f32 %v4921, %v5089
    %5091 = vmatmul.bf16.gmra.mxu0 %v2944
    %v5092 = vpop.f32.mrf.mxu0
    %v5093 = vadd.f32 %v4924, %v5092
    %v5094 = vpop.f32.mrf.mxu0
    %v5095 = vadd.f32 %v4926, %v5094
    %5096 = vdwg.mxu0
    %5097 = vmatpush.bf16.msra.mxu0 %v3672
    %5098 = vmatpush.bf16.msra.mxu0 %v3671
    %5099 = vmatpush.bf16.msra.mxu0 %v3670
    %5100 = vmatpush.bf16.msra.mxu0 %v3669
    %5101 = vmatpush.bf16.msra.mxu0 %v3668
    %5102 = vmatpush.bf16.msra.mxu0 %v3667
    %5103 = vmatpush.bf16.msra.mxu0 %v3666
    %5104 = vmatpush.bf16.msra.mxu0 %v3665
    %5105 = vmatmul.bf16.gmra.mxu0 %v3105
    %v5106 = vpop.f32.mrf.mxu0
    %v5107 = vadd.f32 %v4938, %v5106
    %v5108 = vpop.f32.mrf.mxu0
    %v5109 = vadd.f32 %v4940, %v5108
    %5110 = vmatmul.bf16.gmra.mxu0 %v3106
    %v5111 = vpop.f32.mrf.mxu0
    %v5112 = vadd.f32 %v4943, %v5111
    %v5113 = vpop.f32.mrf.mxu0
    %v5114 = vadd.f32 %v4945, %v5113
    %5115 = vmatmul.bf16.gmra.mxu0 %v3107
    %v5116 = vpop.f32.mrf.mxu0
    %v5117 = vadd.f32 %v4948, %v5116
    %v5118 = vpop.f32.mrf.mxu0
    %v5119 = vadd.f32 %v4950, %v5118
    %5120 = vmatmul.bf16.gmra.mxu0 %v3108
    %v5121 = vpop.f32.mrf.mxu0
    %v5122 = vadd.f32 %v4953, %v5121
    %v5123 = vpop.f32.mrf.mxu0
    %v5124 = vadd.f32 %v4955, %v5123
    %5125 = vmatmul.bf16.gmra.mxu0 %v3109
    %v5126 = vpop.f32.mrf.mxu0
    %v5127 = vadd.f32 %v4958, %v5126
    %v5128 = vpop.f32.mrf.mxu0
    %v5129 = vadd.f32 %v4960, %v5128
    %5130 = vmatmul.bf16.gmra.mxu0 %v3110
    %v5131 = vpop.f32.mrf.mxu0
    %v5132 = vadd.f32 %v4963, %v5131
    %v5133 = vpop.f32.mrf.mxu0
    %v5134 = vadd.f32 %v4965, %v5133
    %5135 = vmatmul.bf16.gmra.mxu0 %v3111
    %v5136 = vpop.f32.mrf.mxu0
    %v5137 = vadd.f32 %v4968, %v5136
    %v5138 = vpop.f32.mrf.mxu0
    %v5139 = vadd.f32 %v4970, %v5138
    %5140 = vmatmul.bf16.gmra.mxu0 %v3112
    %v5141 = vpop.f32.mrf.mxu0
    %v5142 = vadd.f32 %v4973, %v5141
    %v5143 = vpop.f32.mrf.mxu0
    %v5144 = vadd.f32 %v4975, %v5143
    %5145 = vmatmul.bf16.gmra.mxu0 %v3113
    %v5146 = vpop.f32.mrf.mxu0
    %v5147 = vadd.f32 %v4978, %v5146
    %v5148 = vpop.f32.mrf.mxu0
    %v5149 = vadd.f32 %v4980, %v5148
    %5150 = vmatmul.bf16.gmra.mxu0 %v3114
    %v5151 = vpop.f32.mrf.mxu0
    %v5152 = vadd.f32 %v4983, %v5151
    %v5153 = vpop.f32.mrf.mxu0
    %v5154 = vadd.f32 %v4985, %v5153
    %5155 = vmatmul.bf16.gmra.mxu0 %v3115
    %v5156 = vpop.f32.mrf.mxu0
    %v5157 = vadd.f32 %v4988, %v5156
    %v5158 = vpop.f32.mrf.mxu0
    %v5159 = vadd.f32 %v4990, %v5158
    %5160 = vmatmul.bf16.gmra.mxu0 %v3116
    %v5161 = vpop.f32.mrf.mxu0
    %v5162 = vadd.f32 %v4993, %v5161
    %v5163 = vpop.f32.mrf.mxu0
    %v5164 = vadd.f32 %v4995, %v5163
    %5165 = vmatmul.bf16.gmra.mxu0 %v3117
    %v5166 = vpop.f32.mrf.mxu0
    %v5167 = vadd.f32 %v4998, %v5166
    %v5168 = vpop.f32.mrf.mxu0
    %v5169 = vadd.f32 %v5000, %v5168
    %5170 = vmatmul.bf16.gmra.mxu0 %v3118
    %v5171 = vpop.f32.mrf.mxu0
    %v5172 = vadd.f32 %v5003, %v5171
    %v5173 = vpop.f32.mrf.mxu0
    %v5174 = vadd.f32 %v5005, %v5173
    %5175 = vmatmul.bf16.gmra.mxu0 %v3119
    %v5176 = vpop.f32.mrf.mxu0
    %v5177 = vadd.f32 %v5008, %v5176
    %v5178 = vpop.f32.mrf.mxu0
    %v5179 = vadd.f32 %v5010, %v5178
    %5180 = vmatmul.bf16.gmra.mxu0 %v3120
    %v5181 = vpop.f32.mrf.mxu0
    %v5182 = vadd.f32 %v5013, %v5181
    %v5183 = vpop.f32.mrf.mxu0
    %v5184 = vadd.f32 %v5015, %v5183
    %5185 = vmatmul.bf16.gmra.mxu0 %v3121
    %v5186 = vpop.f32.mrf.mxu0
    %v5187 = vadd.f32 %v5018, %v5186
    %v5188 = vpop.f32.mrf.mxu0
    %v5189 = vadd.f32 %v5020, %v5188
    %5190 = vmatmul.bf16.gmra.mxu0 %v3122
    %v5191 = vpop.f32.mrf.mxu0
    %v5192 = vadd.f32 %v5023, %v5191
    %v5193 = vpop.f32.mrf.mxu0
    %v5194 = vadd.f32 %v5025, %v5193
    %5195 = vmatmul.bf16.gmra.mxu0 %v3123
    %v5196 = vpop.f32.mrf.mxu0
    %v5197 = vadd.f32 %v5028, %v5196
    %v5198 = vpop.f32.mrf.mxu0
    %v5199 = vadd.f32 %v5030, %v5198
    %5200 = vmatmul.bf16.gmra.mxu0 %v3124
    %v5201 = vpop.f32.mrf.mxu0
    %v5202 = vadd.f32 %v5033, %v5201
    %v5203 = vpop.f32.mrf.mxu0
    %v5204 = vadd.f32 %v5035, %v5203
    %5205 = vmatmul.bf16.gmra.mxu0 %v3125
    %v5206 = vpop.f32.mrf.mxu0
    %v5207 = vadd.f32 %v5038, %v5206
    %v5208 = vpop.f32.mrf.mxu0
    %v5209 = vadd.f32 %v5040, %v5208
    %5210 = vmatmul.bf16.gmra.mxu0 %v3126
    %v5211 = vpop.f32.mrf.mxu0
    %v5212 = vadd.f32 %v5043, %v5211
    %v5213 = vpop.f32.mrf.mxu0
    %v5214 = vadd.f32 %v5045, %v5213
    %5215 = vmatmul.bf16.gmra.mxu0 %v3127
    %v5216 = vpop.f32.mrf.mxu0
    %v5217 = vadd.f32 %v5048, %v5216
    %v5218 = vpop.f32.mrf.mxu0
    %v5219 = vadd.f32 %v5050, %v5218
    %5220 = vmatmul.bf16.gmra.mxu0 %v3128
    %v5221 = vpop.f32.mrf.mxu0
    %v5222 = vadd.f32 %v5053, %v5221
    %v5223 = vpop.f32.mrf.mxu0
    %v5224 = vadd.f32 %v5055, %v5223
    %5225 = vmatmul.bf16.gmra.mxu0 %v3129
    %v5226 = vpop.f32.mrf.mxu0
    %v5227 = vadd.f32 %v5058, %v5226
    %v5228 = vpop.f32.mrf.mxu0
    %v5229 = vadd.f32 %v5060, %v5228
    %5230 = vmatmul.bf16.gmra.mxu0 %v3130
    %v5231 = vpop.f32.mrf.mxu0
    %v5232 = vadd.f32 %v5063, %v5231
    %v5233 = vpop.f32.mrf.mxu0
    %v5234 = vadd.f32 %v5065, %v5233
    %5235 = vmatmul.bf16.gmra.mxu0 %v3131
    %v5236 = vpop.f32.mrf.mxu0
    %v5237 = vadd.f32 %v5068, %v5236
    %v5238 = vpop.f32.mrf.mxu0
    %v5239 = vadd.f32 %v5070, %v5238
    %5240 = vmatmul.bf16.gmra.mxu0 %v3132
    %v5241 = vpop.f32.mrf.mxu0
    %v5242 = vadd.f32 %v5073, %v5241
    %v5243 = vpop.f32.mrf.mxu0
    %v5244 = vadd.f32 %v5075, %v5243
    %5245 = vmatmul.bf16.gmra.mxu0 %v3133
    %v5246 = vpop.f32.mrf.mxu0
    %v5247 = vadd.f32 %v5078, %v5246
    %v5248 = vpop.f32.mrf.mxu0
    %v5249 = vadd.f32 %v5080, %v5248
    %5250 = vmatmul.bf16.gmra.mxu0 %v3134
    %v5251 = vpop.f32.mrf.mxu0
    %v5252 = vadd.f32 %v5083, %v5251
    %v5253 = vpop.f32.mrf.mxu0
    %v5254 = vadd.f32 %v5085, %v5253
    %5255 = vmatmul.bf16.gmra.mxu0 %v3135
    %v5256 = vpop.f32.mrf.mxu0
    %v5257 = vadd.f32 %v5088, %v5256
    %v5258 = vpop.f32.mrf.mxu0
    %v5259 = vadd.f32 %v5090, %v5258
    %5260 = vmatmul.bf16.gmra.mxu0 %v3136
    %v5261 = vpop.f32.mrf.mxu0
    %v5262 = vadd.f32 %v5093, %v5261
    %v5263 = vpop.f32.mrf.mxu0
    %v5264 = vadd.f32 %v5095, %v5263
    %5265 = vdwg.mxu0
    %v5266 = vld [vmem:[%s2] sm:$0x1]
    %v5267 = vld [vmem:[%s3] sm:$0x1]
    %v5268 = vadd.f32 %v5107, %v5109
    %v5269 = vadd.f32 %v5268, %v5112
    %v5270 = vadd.f32 %v5269, %v5114
    %v5271 = vadd.f32 %v5270, %v5117
    %v5272 = vadd.f32 %v5271, %v5119
    %v5273 = vadd.f32 %v5272, %v5122
    %v5274 = vadd.f32 %v5273, %v5124
    %v5275 = vadd.f32 %v5274, %v5127
    %v5276 = vadd.f32 %v5275, %v5129
    %v5277 = vadd.f32 %v5276, %v5132
    %v5278 = vadd.f32 %v5277, %v5134
    %v5279 = vadd.f32 %v5278, %v5137
    %v5280 = vadd.f32 %v5279, %v5139
    %v5281 = vadd.f32 %v5280, %v5142
    %v5282 = vadd.f32 %v5281, %v5144
    %v5283 = vadd.f32 %v5282, %v5147
    %v5284 = vadd.f32 %v5283, %v5149
    %v5285 = vadd.f32 %v5284, %v5152
    %v5286 = vadd.f32 %v5285, %v5154
    %v5287 = vadd.f32 %v5286, %v5157
    %v5288 = vadd.f32 %v5287, %v5159
    %v5289 = vadd.f32 %v5288, %v5162
    %v5290 = vadd.f32 %v5289, %v5164
    %v5291 = vadd.f32 %v5290, %v5167
    %v5292 = vadd.f32 %v5291, %v5169
    %v5293 = vadd.f32 %v5292, %v5172
    %v5294 = vadd.f32 %v5293, %v5174
    %v5295 = vadd.f32 %v5294, %v5177
    %v5296 = vadd.f32 %v5295, %v5179
    %v5297 = vadd.f32 %v5296, %v5182
    %v5298 = vadd.f32 %v5297, %v5184
    %v5299 = vadd.f32 %v5298, %v5187
    %v5300 = vadd.f32 %v5299, %v5189
    %v5301 = vadd.f32 %v5300, %v5192
    %v5302 = vadd.f32 %v5301, %v5194
    %v5303 = vadd.f32 %v5302, %v5197
    %v5304 = vadd.f32 %v5303, %v5199
    %v5305 = vadd.f32 %v5304, %v5202
    %v5306 = vadd.f32 %v5305, %v5204
    %v5307 = vadd.f32 %v5306, %v5207
    %v5308 = vadd.f32 %v5307, %v5209
    %v5309 = vadd.f32 %v5308, %v5212
    %v5310 = vadd.f32 %v5309, %v5214
    %v5311 = vadd.f32 %v5310, %v5217
    %v5312 = vadd.f32 %v5311, %v5219
    %v5313 = vadd.f32 %v5312, %v5222
    %v5314 = vadd.f32 %v5313, %v5224
    %v5315 = vadd.f32 %v5314, %v5227
    %v5316 = vadd.f32 %v5315, %v5229
    %v5317 = vadd.f32 %v5316, %v5232
    %v5318 = vadd.f32 %v5317, %v5234
    %v5319 = vadd.f32 %v5318, %v5237
    %v5320 = vadd.f32 %v5319, %v5239
    %v5321 = vadd.f32 %v5320, %v5242
    %v5322 = vadd.f32 %v5321, %v5244
    %v5323 = vadd.f32 %v5322, %v5247
    %v5324 = vadd.f32 %v5323, %v5249
    %v5325 = vadd.f32 %v5324, %v5252
    %v5326 = vadd.f32 %v5325, %v5254
    %v5327 = vadd.f32 %v5326, %v5257
    %v5328 = vadd.f32 %v5327, %v5259
    %v5329 = vadd.f32 %v5328, %v5262
    %v5330 = vadd.f32 %v5329, %v5264
    %v5331 = vrot.slane %v5330, 4
    %v5332 = vadd.f32 %v5330, %v5331
    %v5333 = vrot.slane %v5332, 2
    %v5334 = vadd.f32 %v5332, %v5333
    %v5335 = vrot.slane %v5334, 1
    %v5336 = vadd.f32 %v5334, %v5335
    %v5337 = vmul.f32 %v5107, %v5107
    %v5338 = vmul.f32 %v5109, %v5109
    %v5339 = vmul.f32 %v5112, %v5112
    %v5340 = vmul.f32 %v5114, %v5114
    %v5341 = vmul.f32 %v5117, %v5117
    %v5342 = vmul.f32 %v5119, %v5119
    %v5343 = vmul.f32 %v5122, %v5122
    %v5344 = vmul.f32 %v5124, %v5124
    %v5345 = vmul.f32 %v5127, %v5127
    %v5346 = vmul.f32 %v5129, %v5129
    %v5347 = vmul.f32 %v5132, %v5132
    %v5348 = vmul.f32 %v5134, %v5134
    %v5349 = vmul.f32 %v5137, %v5137
    %v5350 = vmul.f32 %v5139, %v5139
    %v5351 = vmul.f32 %v5142, %v5142
    %v5352 = vmul.f32 %v5144, %v5144
    %v5353 = vmul.f32 %v5147, %v5147
    %v5354 = vmul.f32 %v5149, %v5149
    %v5355 = vmul.f32 %v5152, %v5152
    %v5356 = vmul.f32 %v5154, %v5154
    %v5357 = vmul.f32 %v5157, %v5157
    %v5358 = vmul.f32 %v5159, %v5159
    %v5359 = vmul.f32 %v5162, %v5162
    %v5360 = vmul.f32 %v5164, %v5164
    %v5361 = vmul.f32 %v5167, %v5167
    %v5362 = vmul.f32 %v5169, %v5169
    %v5363 = vmul.f32 %v5172, %v5172
    %v5364 = vmul.f32 %v5174, %v5174
    %v5365 = vmul.f32 %v5177, %v5177
    %v5366 = vmul.f32 %v5179, %v5179
    %v5367 = vmul.f32 %v5182, %v5182
    %v5368 = vmul.f32 %v5184, %v5184
    %v5369 = vmul.f32 %v5187, %v5187
    %v5370 = vmul.f32 %v5189, %v5189
    %v5371 = vmul.f32 %v5192, %v5192
    %v5372 = vmul.f32 %v5194, %v5194
    %v5373 = vmul.f32 %v5197, %v5197
    %v5374 = vmul.f32 %v5199, %v5199
    %v5375 = vmul.f32 %v5202, %v5202
    %v5376 = vmul.f32 %v5204, %v5204
    %v5377 = vmul.f32 %v5207, %v5207
    %v5378 = vmul.f32 %v5209, %v5209
    %v5379 = vmul.f32 %v5212, %v5212
    %v5380 = vmul.f32 %v5214, %v5214
    %v5381 = vmul.f32 %v5217, %v5217
    %v5382 = vmul.f32 %v5219, %v5219
    %v5383 = vmul.f32 %v5222, %v5222
    %v5384 = vmul.f32 %v5224, %v5224
    %v5385 = vmul.f32 %v5227, %v5227
    %v5386 = vmul.f32 %v5229, %v5229
    %v5387 = vmul.f32 %v5232, %v5232
    %v5388 = vmul.f32 %v5234, %v5234
    %v5389 = vmul.f32 %v5237, %v5237
    %v5390 = vmul.f32 %v5239, %v5239
    %v5391 = vmul.f32 %v5242, %v5242
    %v5392 = vmul.f32 %v5244, %v5244
    %v5393 = vmul.f32 %v5247, %v5247
    %v5394 = vmul.f32 %v5249, %v5249
    %v5395 = vmul.f32 %v5252, %v5252
    %v5396 = vmul.f32 %v5254, %v5254
    %v5397 = vmul.f32 %v5257, %v5257
    %v5398 = vmul.f32 %v5259, %v5259
    %v5399 = vmul.f32 %v5262, %v5262
    %v5400 = vmul.f32 %v5264, %v5264
    %v5401 = vadd.f32 %v5337, %v5338
    %v5402 = vadd.f32 %v5401, %v5339
    %v5403 = vadd.f32 %v5402, %v5340
    %v5404 = vadd.f32 %v5403, %v5341
    %v5405 = vadd.f32 %v5404, %v5342
    %v5406 = vadd.f32 %v5405, %v5343
    %v5407 = vadd.f32 %v5406, %v5344
    %v5408 = vadd.f32 %v5407, %v5345
    %v5409 = vadd.f32 %v5408, %v5346
    %v5410 = vadd.f32 %v5409, %v5347
    %v5411 = vadd.f32 %v5410, %v5348
    %v5412 = vadd.f32 %v5411, %v5349
    %v5413 = vadd.f32 %v5412, %v5350
    %v5414 = vadd.f32 %v5413, %v5351
    %v5415 = vadd.f32 %v5414, %v5352
    %v5416 = vadd.f32 %v5415, %v5353
    %v5417 = vadd.f32 %v5416, %v5354
    %v5418 = vadd.f32 %v5417, %v5355
    %v5419 = vadd.f32 %v5418, %v5356
    %v5420 = vadd.f32 %v5419, %v5357
    %v5421 = vadd.f32 %v5420, %v5358
    %v5422 = vadd.f32 %v5421, %v5359
    %v5423 = vadd.f32 %v5422, %v5360
    %v5424 = vadd.f32 %v5423, %v5361
    %v5425 = vadd.f32 %v5424, %v5362
    %v5426 = vadd.f32 %v5425, %v5363
    %v5427 = vadd.f32 %v5426, %v5364
    %v5428 = vadd.f32 %v5427, %v5365
    %v5429 = vadd.f32 %v5428, %v5366
    %v5430 = vadd.f32 %v5429, %v5367
    %v5431 = vadd.f32 %v5430, %v5368
    %v5432 = vadd.f32 %v5431, %v5369
    %v5433 = vadd.f32 %v5432, %v5370
    %v5434 = vadd.f32 %v5433, %v5371
    %v5435 = vadd.f32 %v5434, %v5372
    %v5436 = vadd.f32 %v5435, %v5373
    %v5437 = vadd.f32 %v5436, %v5374
    %v5438 = vadd.f32 %v5437, %v5375
    %v5439 = vadd.f32 %v5438, %v5376
    %v5440 = vadd.f32 %v5439, %v5377
    %v5441 = vadd.f32 %v5440, %v5378
    %v5442 = vadd.f32 %v5441, %v5379
    %v5443 = vadd.f32 %v5442, %v5380
    %v5444 = vadd.f32 %v5443, %v5381
    %v5445 = vadd.f32 %v5444, %v5382
    %v5446 = vadd.f32 %v5445, %v5383
    %v5447 = vadd.f32 %v5446, %v5384
    %v5448 = vadd.f32 %v5447, %v5385
    %v5449 = vadd.f32 %v5448, %v5386
    %v5450 = vadd.f32 %v5449, %v5387
    %v5451 = vadd.f32 %v5450, %v5388
    %v5452 = vadd.f32 %v5451, %v5389
    %v5453 = vadd.f32 %v5452, %v5390
    %v5454 = vadd.f32 %v5453, %v5391
    %v5455 = vadd.f32 %v5454, %v5392
    %v5456 = vadd.f32 %v5455, %v5393
    %v5457 = vadd.f32 %v5456, %v5394
    %v5458 = vadd.f32 %v5457, %v5395
    %v5459 = vadd.f32 %v5458, %v5396
    %v5460 = vadd.f32 %v5459, %v5397
    %v5461 = vadd.f32 %v5460, %v5398
    %v5462 = vadd.f32 %v5461, %v5399
    %v5463 = vadd.f32 %v5462, %v5400
    %v5464 = vrot.slane %v5463, 4
    %v5465 = vadd.f32 %v5463, %v5464
    %v5466 = vrot.slane %v5465, 2
    %v5467 = vadd.f32 %v5465, %v5466
    %v5468 = vrot.slane %v5467, 1
    %v5469 = vadd.f32 %v5467, %v5468
    %v5470 = vmul.f32 %v5336, 0.001953125
    %v5471 = vmul.f32 %v5469, 0.001953125
    %v5472 = vmul.f32 %v5470, %v5470
    %v5473 = vsub.f32 %v5471, %v5472
    %v5474 = vadd.f32 %v5473, 1e-05
    %v5475 = vrsqrt.pop %v5474
    %v5476 = vmul.f32 %v5475, %v5474
    %v5477 = vmul.f32 %v5476, %v5475
    %v5478 = vmul.f32 0.5, %v5477
    %v5479 = vsub.f32 1.5, %v5478
    %v5480 = vmul.f32 %v5475, %v5479
    %vm5481 = vweird.f32 %v5474
    %vm5482 = vweird.f32 %v5475
    %vm5483 = vmor %vm5481, %vm5482
    %v5484 = vsel %vm5483, %v5475, %v5480
    %v5485 = vmul.f32 %v5266, %v5484
    %v5486 = vmul.f32 %v5470, %v5485
    %v5487 = vsub.f32 %v5267, %v5486
    %v5489 = vperm.slane %v5485, 0
    %v5491 = vmul.f32 %v5107, %v5489
    %v5492 = vmul.f32 %v5109, %v5489
    %v5493 = vmul.f32 %v5112, %v5489
    %v5494 = vmul.f32 %v5114, %v5489
    %v5495 = vmul.f32 %v5117, %v5489
    %v5496 = vmul.f32 %v5119, %v5489
    %v5497 = vmul.f32 %v5122, %v5489
    %v5498 = vmul.f32 %v5124, %v5489
    %v5499 = vmul.f32 %v5127, %v5489
    %v5500 = vmul.f32 %v5129, %v5489
    %v5501 = vmul.f32 %v5132, %v5489
    %v5502 = vmul.f32 %v5134, %v5489
    %v5503 = vmul.f32 %v5137, %v5489
    %v5504 = vmul.f32 %v5139, %v5489
    %v5505 = vmul.f32 %v5142, %v5489
    %v5506 = vmul.f32 %v5144, %v5489
    %v5507 = vmul.f32 %v5147, %v5489
    %v5508 = vmul.f32 %v5149, %v5489
    %v5509 = vmul.f32 %v5152, %v5489
    %v5510 = vmul.f32 %v5154, %v5489
    %v5511 = vmul.f32 %v5157, %v5489
    %v5512 = vmul.f32 %v5159, %v5489
    %v5513 = vmul.f32 %v5162, %v5489
    %v5514 = vmul.f32 %v5164, %v5489
    %v5515 = vmul.f32 %v5167, %v5489
    %v5516 = vmul.f32 %v5169, %v5489
    %v5517 = vmul.f32 %v5172, %v5489
    %v5518 = vmul.f32 %v5174, %v5489
    %v5519 = vmul.f32 %v5177, %v5489
    %v5520 = vmul.f32 %v5179, %v5489
    %v5521 = vmul.f32 %v5182, %v5489
    %v5522 = vmul.f32 %v5184, %v5489
    %v5523 = vmul.f32 %v5187, %v5489
    %v5524 = vmul.f32 %v5189, %v5489
    %v5525 = vmul.f32 %v5192, %v5489
    %v5526 = vmul.f32 %v5194, %v5489
    %v5527 = vmul.f32 %v5197, %v5489
    %v5528 = vmul.f32 %v5199, %v5489
    %v5529 = vmul.f32 %v5202, %v5489
    %v5530 = vmul.f32 %v5204, %v5489
    %v5531 = vmul.f32 %v5207, %v5489
    %v5532 = vmul.f32 %v5209, %v5489
    %v5533 = vmul.f32 %v5212, %v5489
    %v5534 = vmul.f32 %v5214, %v5489
    %v5535 = vmul.f32 %v5217, %v5489
    %v5536 = vmul.f32 %v5219, %v5489
    %v5537 = vmul.f32 %v5222, %v5489
    %v5538 = vmul.f32 %v5224, %v5489
    %v5539 = vmul.f32 %v5227, %v5489
    %v5540 = vmul.f32 %v5229, %v5489
    %v5541 = vmul.f32 %v5232, %v5489
    %v5542 = vmul.f32 %v5234, %v5489
    %v5543 = vmul.f32 %v5237, %v5489
    %v5544 = vmul.f32 %v5239, %v5489
    %v5545 = vmul.f32 %v5242, %v5489
    %v5546 = vmul.f32 %v5244, %v5489
    %v5547 = vmul.f32 %v5247, %v5489
    %v5548 = vmul.f32 %v5249, %v5489
    %v5549 = vmul.f32 %v5252, %v5489
    %v5550 = vmul.f32 %v5254, %v5489
    %v5551 = vmul.f32 %v5257, %v5489
    %v5552 = vmul.f32 %v5259, %v5489
    %v5553 = vmul.f32 %v5262, %v5489
    %v5554 = vmul.f32 %v5264, %v5489
    %v5556 = vperm.slane %v5487, 0
    %v5558 = vadd.f32 %v5491, %v5556
    %v5559 = vadd.f32 %v5492, %v5556
    %v5560 = vadd.f32 %v5493, %v5556
    %v5561 = vadd.f32 %v5494, %v5556
    %v5562 = vadd.f32 %v5495, %v5556
    %v5563 = vadd.f32 %v5496, %v5556
    %v5564 = vadd.f32 %v5497, %v5556
    %v5565 = vadd.f32 %v5498, %v5556
    %v5566 = vadd.f32 %v5499, %v5556
    %v5567 = vadd.f32 %v5500, %v5556
    %v5568 = vadd.f32 %v5501, %v5556
    %v5569 = vadd.f32 %v5502, %v5556
    %v5570 = vadd.f32 %v5503, %v5556
    %v5571 = vadd.f32 %v5504, %v5556
    %v5572 = vadd.f32 %v5505, %v5556
    %v5573 = vadd.f32 %v5506, %v5556
    %v5574 = vadd.f32 %v5507, %v5556
    %v5575 = vadd.f32 %v5508, %v5556
    %v5576 = vadd.f32 %v5509, %v5556
    %v5577 = vadd.f32 %v5510, %v5556
    %v5578 = vadd.f32 %v5511, %v5556
    %v5579 = vadd.f32 %v5512, %v5556
    %v5580 = vadd.f32 %v5513, %v5556
    %v5581 = vadd.f32 %v5514, %v5556
    %v5582 = vadd.f32 %v5515, %v5556
    %v5583 = vadd.f32 %v5516, %v5556
    %v5584 = vadd.f32 %v5517, %v5556
    %v5585 = vadd.f32 %v5518, %v5556
    %v5586 = vadd.f32 %v5519, %v5556
    %v5587 = vadd.f32 %v5520, %v5556
    %v5588 = vadd.f32 %v5521, %v5556
    %v5589 = vadd.f32 %v5522, %v5556
    %v5590 = vadd.f32 %v5523, %v5556
    %v5591 = vadd.f32 %v5524, %v5556
    %v5592 = vadd.f32 %v5525, %v5556
    %v5593 = vadd.f32 %v5526, %v5556
    %v5594 = vadd.f32 %v5527, %v5556
    %v5595 = vadd.f32 %v5528, %v5556
    %v5596 = vadd.f32 %v5529, %v5556
    %v5597 = vadd.f32 %v5530, %v5556
    %v5598 = vadd.f32 %v5531, %v5556
    %v5599 = vadd.f32 %v5532, %v5556
    %v5600 = vadd.f32 %v5533, %v5556
    %v5601 = vadd.f32 %v5534, %v5556
    %v5602 = vadd.f32 %v5535, %v5556
    %v5603 = vadd.f32 %v5536, %v5556
    %v5604 = vadd.f32 %v5537, %v5556
    %v5605 = vadd.f32 %v5538, %v5556
    %v5606 = vadd.f32 %v5539, %v5556
    %v5607 = vadd.f32 %v5540, %v5556
    %v5608 = vadd.f32 %v5541, %v5556
    %v5609 = vadd.f32 %v5542, %v5556
    %v5610 = vadd.f32 %v5543, %v5556
    %v5611 = vadd.f32 %v5544, %v5556
    %v5612 = vadd.f32 %v5545, %v5556
    %v5613 = vadd.f32 %v5546, %v5556
    %v5614 = vadd.f32 %v5547, %v5556
    %v5615 = vadd.f32 %v5548, %v5556
    %v5616 = vadd.f32 %v5549, %v5556
    %v5617 = vadd.f32 %v5550, %v5556
    %v5618 = vadd.f32 %v5551, %v5556
    %v5619 = vadd.f32 %v5552, %v5556
    %v5620 = vadd.f32 %v5553, %v5556
    %v5621 = vadd.f32 %v5554, %v5556
    %v5622 = vmax.f32 %v5558, 0.0
    %v5623 = vmax.f32 %v5559, 0.0
    %v5624 = vmax.f32 %v5560, 0.0
    %v5625 = vmax.f32 %v5561, 0.0
    %v5626 = vmax.f32 %v5562, 0.0
    %v5627 = vmax.f32 %v5563, 0.0
    %v5628 = vmax.f32 %v5564, 0.0
    %v5629 = vmax.f32 %v5565, 0.0
    %v5630 = vmax.f32 %v5566, 0.0
    %v5631 = vmax.f32 %v5567, 0.0
    %v5632 = vmax.f32 %v5568, 0.0
    %v5633 = vmax.f32 %v5569, 0.0
    %v5634 = vmax.f32 %v5570, 0.0
    %v5635 = vmax.f32 %v5571, 0.0
    %v5636 = vmax.f32 %v5572, 0.0
    %v5637 = vmax.f32 %v5573, 0.0
    %v5638 = vmax.f32 %v5574, 0.0
    %v5639 = vmax.f32 %v5575, 0.0
    %v5640 = vmax.f32 %v5576, 0.0
    %v5641 = vmax.f32 %v5577, 0.0
    %v5642 = vmax.f32 %v5578, 0.0
    %v5643 = vmax.f32 %v5579, 0.0
    %v5644 = vmax.f32 %v5580, 0.0
    %v5645 = vmax.f32 %v5581, 0.0
    %v5646 = vmax.f32 %v5582, 0.0
    %v5647 = vmax.f32 %v5583, 0.0
    %v5648 = vmax.f32 %v5584, 0.0
    %v5649 = vmax.f32 %v5585, 0.0
    %v5650 = vmax.f32 %v5586, 0.0
    %v5651 = vmax.f32 %v5587, 0.0
    %v5652 = vmax.f32 %v5588, 0.0
    %v5653 = vmax.f32 %v5589, 0.0
    %v5654 = vmax.f32 %v5590, 0.0
    %v5655 = vmax.f32 %v5591, 0.0
    %v5656 = vmax.f32 %v5592, 0.0
    %v5657 = vmax.f32 %v5593, 0.0
    %v5658 = vmax.f32 %v5594, 0.0
    %v5659 = vmax.f32 %v5595, 0.0
    %v5660 = vmax.f32 %v5596, 0.0
    %v5661 = vmax.f32 %v5597, 0.0
    %v5662 = vmax.f32 %v5598, 0.0
    %v5663 = vmax.f32 %v5599, 0.0
    %v5664 = vmax.f32 %v5600, 0.0
    %v5665 = vmax.f32 %v5601, 0.0
    %v5666 = vmax.f32 %v5602, 0.0
    %v5667 = vmax.f32 %v5603, 0.0
    %v5668 = vmax.f32 %v5604, 0.0
    %v5669 = vmax.f32 %v5605, 0.0
    %v5670 = vmax.f32 %v5606, 0.0
    %v5671 = vmax.f32 %v5607, 0.0
    %v5672 = vmax.f32 %v5608, 0.0
    %v5673 = vmax.f32 %v5609, 0.0
    %v5674 = vmax.f32 %v5610, 0.0
    %v5675 = vmax.f32 %v5611, 0.0
    %v5676 = vmax.f32 %v5612, 0.0
    %v5677 = vmax.f32 %v5613, 0.0
    %v5678 = vmax.f32 %v5614, 0.0
    %v5679 = vmax.f32 %v5615, 0.0
    %v5680 = vmax.f32 %v5616, 0.0
    %v5681 = vmax.f32 %v5617, 0.0
    %v5682 = vmax.f32 %v5618, 0.0
    %v5683 = vmax.f32 %v5619, 0.0
    %v5684 = vmax.f32 %v5620, 0.0
    %v5685 = vmax.f32 %v5621, 0.0
    %5686 = vst [vmem:[%s223 + $0x1] sm:$0xff] %v5622
    %5687 = vst [vmem:[%s223 + $0x9] sm:$0xff] %v5623
    %5688 = vst [vmem:[%s223 + $0x19] sm:$0xff] %v5624
    %5689 = vst [vmem:[%s223 + $0x21] sm:$0xff] %v5625
    %5690 = vst [vmem:[%s223 + $0x31] sm:$0xff] %v5626
    %5691 = vst [vmem:[%s223 + $0x39] sm:$0xff] %v5627
    %5692 = vst [vmem:[%s223 + $0x49] sm:$0xff] %v5628
    %5693 = vst [vmem:[%s223 + $0x51] sm:$0xff] %v5629
    %5694 = vst [vmem:[%s223 + $0x61] sm:$0xff] %v5630
    %5695 = vst [vmem:[%s223 + $0x69] sm:$0xff] %v5631
    %5696 = vst [vmem:[%s223 + $0x79] sm:$0xff] %v5632
    %5697 = vst [vmem:[%s223 + $0x81] sm:$0xff] %v5633
    %5698 = vst [vmem:[%s223 + $0x91] sm:$0xff] %v5634
    %5699 = vst [vmem:[%s223 + $0x99] sm:$0xff] %v5635
    %5700 = vst [vmem:[%s223 + $0xa9] sm:$0xff] %v5636
    %5701 = vst [vmem:[%s223 + $0xb1] sm:$0xff] %v5637
    %5702 = vst [vmem:[%s223 + $0xc1] sm:$0xff] %v5638
    %5703 = vst [vmem:[%s223 + $0xc9] sm:$0xff] %v5639
    %5704 = vst [vmem:[%s223 + $0xd9] sm:$0xff] %v5640
    %5705 = vst [vmem:[%s223 + $0xe1] sm:$0xff] %v5641
    %5706 = vst [vmem:[%s223 + $0xf1] sm:$0xff] %v5642
    %5707 = vst [vmem:[%s223 + $0xf9] sm:$0xff] %v5643
    %5708 = vst [vmem:[%s223 + $0x109] sm:$0xff] %v5644
    %5709 = vst [vmem:[%s223 + $0x111] sm:$0xff] %v5645
    %5710 = vst [vmem:[%s223 + $0x121] sm:$0xff] %v5646
    %5711 = vst [vmem:[%s223 + $0x129] sm:$0xff] %v5647
    %5712 = vst [vmem:[%s223 + $0x139] sm:$0xff] %v5648
    %5713 = vst [vmem:[%s223 + $0x141] sm:$0xff] %v5649
    %5714 = vst [vmem:[%s223 + $0x151] sm:$0xff] %v5650
    %5715 = vst [vmem:[%s223 + $0x159] sm:$0xff] %v5651
    %5716 = vst [vmem:[%s223 + $0x169] sm:$0xff] %v5652
    %5717 = vst [vmem:[%s223 + $0x171] sm:$0xff] %v5653
    %5718 = vst [vmem:[%s223 + $0x1b1] sm:$0xff] %v5654
    %5719 = vst [vmem:[%s223 + $0x1b9] sm:$0xff] %v5655
    %5720 = vst [vmem:[%s223 + $0x1c9] sm:$0xff] %v5656
    %5721 = vst [vmem:[%s223 + $0x1d1] sm:$0xff] %v5657
    %5722 = vst [vmem:[%s223 + $0x1e1] sm:$0xff] %v5658
    %5723 = vst [vmem:[%s223 + $0x1e9] sm:$0xff] %v5659
    %5724 = vst [vmem:[%s223 + $0x1f9] sm:$0xff] %v5660
    %5725 = vst [vmem:[%s223 + $0x201] sm:$0xff] %v5661
    %5726 = vst [vmem:[%s223 + $0x211] sm:$0xff] %v5662
    %5727 = vst [vmem:[%s223 + $0x219] sm:$0xff] %v5663
    %5728 = vst [vmem:[%s223 + $0x229] sm:$0xff] %v5664
    %5729 = vst [vmem:[%s223 + $0x231] sm:$0xff] %v5665
    %5730 = vst [vmem:[%s223 + $0x241] sm:$0xff] %v5666
    %5731 = vst [vmem:[%s223 + $0x249] sm:$0xff] %v5667
    %5732 = vst [vmem:[%s223 + $0x259] sm:$0xff] %v5668
    %5733 = vst [vmem:[%s223 + $0x261] sm:$0xff] %v5669
    %5734 = vst [vmem:[%s223 + $0x271] sm:$0xff] %v5670
    %5735 = vst [vmem:[%s223 + $0x279] sm:$0xff] %v5671
    %5736 = vst [vmem:[%s223 + $0x289] sm:$0xff] %v5672
    %5737 = vst [vmem:[%s223 + $0x291] sm:$0xff] %v5673
    %5738 = vst [vmem:[%s223 + $0x2a1] sm:$0xff] %v5674
    %5739 = vst [vmem:[%s223 + $0x2a9] sm:$0xff] %v5675
    %5740 = vst [vmem:[%s223 + $0x2b9] sm:$0xff] %v5676
    %5741 = vst [vmem:[%s223 + $0x2c1] sm:$0xff] %v5677
    %5742 = vst [vmem:[%s223 + $0x2d1] sm:$0xff] %v5678
    %5743 = vst [vmem:[%s223 + $0x2d9] sm:$0xff] %v5679
    %5744 = vst [vmem:[%s223 + $0x2e9] sm:$0xff] %v5680
    %5745 = vst [vmem:[%s223 + $0x2f1] sm:$0xff] %v5681
    %5746 = vst [vmem:[%s223 + $0x301] sm:$0xff] %v5682
    %5747 = vst [vmem:[%s223 + $0x309] sm:$0xff] %v5683
    %5748 = vst [vmem:[%s223 + $0x319] sm:$0xff] %v5684
    %5749 = vst [vmem:[%s223 + $0x321] sm:$0xff] %v5685
    %v5750 = vld [vmem:[#allocation2] sm:$0xff]
    %v5751 = vld [vmem:[#allocation2 + $0x8] sm:$0xff]
    %v5752 = vld [vmem:[#allocation2 + $0x18] sm:$0xff]
    %v5753 = vld [vmem:[#allocation2 + $0x20] sm:$0xff]
    %v5754 = vld [vmem:[#allocation2 + $0x30] sm:$0xff]
    %v5755 = vld [vmem:[#allocation2 + $0x38] sm:$0xff]
    %v5756 = vld [vmem:[#allocation2 + $0x48] sm:$0xff]
    %v5757 = vld [vmem:[#allocation2 + $0x50] sm:$0xff]
    %v5758 = vld [vmem:[#allocation2 + $0x60] sm:$0xff]
    %v5759 = vld [vmem:[#allocation2 + $0x68] sm:$0xff]
    %v5760 = vld [vmem:[#allocation2 + $0x78] sm:$0xff]
    %v5761 = vld [vmem:[#allocation2 + $0x80] sm:$0xff]
    %v5762 = vld [vmem:[#allocation2 + $0x90] sm:$0xff]
    %v5763 = vld [vmem:[#allocation2 + $0x98] sm:$0xff]
    %v5764 = vld [vmem:[#allocation2 + $0xa8] sm:$0xff]
    %v5765 = vld [vmem:[#allocation2 + $0xb0] sm:$0xff]
    %v5766 = vld [vmem:[#allocation2 + $0xc0] sm:$0xff]
    %v5767 = vld [vmem:[#allocation2 + $0xc8] sm:$0xff]
    %v5768 = vld [vmem:[#allocation2 + $0xd8] sm:$0xff]
    %v5769 = vld [vmem:[#allocation2 + $0xe0] sm:$0xff]
    %v5770 = vld [vmem:[#allocation2 + $0xf0] sm:$0xff]
    %v5771 = vld [vmem:[#allocation2 + $0xf8] sm:$0xff]
    %v5772 = vld [vmem:[#allocation2 + $0x108] sm:$0xff]
    %v5773 = vld [vmem:[#allocation2 + $0x110] sm:$0xff]
    %v5774 = vld [vmem:[#allocation2 + $0x120] sm:$0xff]
    %v5775 = vld [vmem:[#allocation2 + $0x128] sm:$0xff]
    %v5776 = vld [vmem:[#allocation2 + $0x138] sm:$0xff]
    %v5777 = vld [vmem:[#allocation2 + $0x140] sm:$0xff]
    %v5778 = vld [vmem:[#allocation2 + $0x150] sm:$0xff]
    %v5779 = vld [vmem:[#allocation2 + $0x158] sm:$0xff]
    %v5780 = vld [vmem:[#allocation2 + $0x168] sm:$0xff]
    %v5781 = vld [vmem:[#allocation2 + $0x170] sm:$0xff]
    %v5782 = vld [vmem:[#allocation2 + $0x1b0] sm:$0xff]
    %v5783 = vld [vmem:[#allocation2 + $0x1b8] sm:$0xff]
    %v5784 = vld [vmem:[#allocation2 + $0x1c8] sm:$0xff]
    %v5785 = vld [vmem:[#allocation2 + $0x1d0] sm:$0xff]
    %v5786 = vld [vmem:[#allocation2 + $0x1e0] sm:$0xff]
    %v5787 = vld [vmem:[#allocation2 + $0x1e8] sm:$0xff]
    %v5788 = vld [vmem:[#allocation2 + $0x1f8] sm:$0xff]
    %v5789 = vld [vmem:[#allocation2 + $0x200] sm:$0xff]
    %v5790 = vld [vmem:[#allocation2 + $0x210] sm:$0xff]
    %v5791 = vld [vmem:[#allocation2 + $0x218] sm:$0xff]
    %v5792 = vld [vmem:[#allocation2 + $0x228] sm:$0xff]
    %v5793 = vld [vmem:[#allocation2 + $0x230] sm:$0xff]
    %v5794 = vld [vmem:[#allocation2 + $0x240] sm:$0xff]
    %v5795 = vld [vmem:[#allocation2 + $0x248] sm:$0xff]
    %v5796 = vld [vmem:[#allocation2 + $0x258] sm:$0xff]
    %v5797 = vld [vmem:[#allocation2 + $0x260] sm:$0xff]
    %v5798 = vld [vmem:[#allocation2 + $0x270] sm:$0xff]
    %v5799 = vld [vmem:[#allocation2 + $0x278] sm:$0xff]
    %v5800 = vld [vmem:[#allocation2 + $0x288] sm:$0xff]
    %v5801 = vld [vmem:[#allocation2 + $0x290] sm:$0xff]
    %v5802 = vld [vmem:[#allocation2 + $0x2a0] sm:$0xff]
    %v5803 = vld [vmem:[#allocation2 + $0x2a8] sm:$0xff]
    %v5804 = vld [vmem:[#allocation2 + $0x2b8] sm:$0xff]
    %v5805 = vld [vmem:[#allocation2 + $0x2c0] sm:$0xff]
    %v5806 = vld [vmem:[#allocation2 + $0x2d0] sm:$0xff]
    %v5807 = vld [vmem:[#allocation2 + $0x2d8] sm:$0xff]
    %v5808 = vld [vmem:[#allocation2 + $0x2e8] sm:$0xff]
    %v5809 = vld [vmem:[#allocation2 + $0x2f0] sm:$0xff]
    %v5810 = vld [vmem:[#allocation2 + $0x300] sm:$0xff]
    %v5811 = vld [vmem:[#allocation2 + $0x308] sm:$0xff]
    %v5812 = vld [vmem:[#allocation2 + $0x318] sm:$0xff]
    %v5813 = vld [vmem:[#allocation2 + $0x320] sm:$0xff]
    %v5814 = vpack.c.bf16 %v5750, %v5750
    %v5815 = vpack.c.bf16 %v5751, %v5751
    %v5816 = vpack.c.bf16 %v5752, %v5752
    %v5817 = vpack.c.bf16 %v5753, %v5753
    %v5818 = vpack.c.bf16 %v5754, %v5754
    %v5819 = vpack.c.bf16 %v5755, %v5755
    %v5820 = vpack.c.bf16 %v5756, %v5756
    %v5821 = vpack.c.bf16 %v5757, %v5757
    %v5822 = vpack.c.bf16 %v5758, %v5758
    %v5823 = vpack.c.bf16 %v5759, %v5759
    %v5824 = vpack.c.bf16 %v5760, %v5760
    %v5825 = vpack.c.bf16 %v5761, %v5761
    %v5826 = vpack.c.bf16 %v5762, %v5762
    %v5827 = vpack.c.bf16 %v5763, %v5763
    %v5828 = vpack.c.bf16 %v5764, %v5764
    %v5829 = vpack.c.bf16 %v5765, %v5765
    %v5830 = vpack.c.bf16 %v5766, %v5766
    %v5831 = vpack.c.bf16 %v5767, %v5767
    %v5832 = vpack.c.bf16 %v5768, %v5768
    %v5833 = vpack.c.bf16 %v5769, %v5769
    %v5834 = vpack.c.bf16 %v5770, %v5770
    %v5835 = vpack.c.bf16 %v5771, %v5771
    %v5836 = vpack.c.bf16 %v5772, %v5772
    %v5837 = vpack.c.bf16 %v5773, %v5773
    %v5838 = vpack.c.bf16 %v5774, %v5774
    %v5839 = vpack.c.bf16 %v5775, %v5775
    %v5840 = vpack.c.bf16 %v5776, %v5776
    %v5841 = vpack.c.bf16 %v5777, %v5777
    %v5842 = vpack.c.bf16 %v5778, %v5778
    %v5843 = vpack.c.bf16 %v5779, %v5779
    %v5844 = vpack.c.bf16 %v5780, %v5780
    %v5845 = vpack.c.bf16 %v5781, %v5781
    %v5846 = vpack.c.bf16 %v5782, %v5782
    %v5847 = vpack.c.bf16 %v5783, %v5783
    %v5848 = vpack.c.bf16 %v5784, %v5784
    %v5849 = vpack.c.bf16 %v5785, %v5785
    %v5850 = vpack.c.bf16 %v5786, %v5786
    %v5851 = vpack.c.bf16 %v5787, %v5787
    %v5852 = vpack.c.bf16 %v5788, %v5788
    %v5853 = vpack.c.bf16 %v5789, %v5789
    %v5854 = vpack.c.bf16 %v5790, %v5790
    %v5855 = vpack.c.bf16 %v5791, %v5791
    %v5856 = vpack.c.bf16 %v5792, %v5792
    %v5857 = vpack.c.bf16 %v5793, %v5793
    %v5858 = vpack.c.bf16 %v5794, %v5794
    %v5859 = vpack.c.bf16 %v5795, %v5795
    %v5860 = vpack.c.bf16 %v5796, %v5796
    %v5861 = vpack.c.bf16 %v5797, %v5797
    %v5862 = vpack.c.bf16 %v5798, %v5798
    %v5863 = vpack.c.bf16 %v5799, %v5799
    %v5864 = vpack.c.bf16 %v5800, %v5800
    %v5865 = vpack.c.bf16 %v5801, %v5801
    %v5866 = vpack.c.bf16 %v5802, %v5802
    %v5867 = vpack.c.bf16 %v5803, %v5803
    %v5868 = vpack.c.bf16 %v5804, %v5804
    %v5869 = vpack.c.bf16 %v5805, %v5805
    %v5870 = vpack.c.bf16 %v5806, %v5806
    %v5871 = vpack.c.bf16 %v5807, %v5807
    %v5872 = vpack.c.bf16 %v5808, %v5808
    %v5873 = vpack.c.bf16 %v5809, %v5809
    %v5874 = vpack.c.bf16 %v5810, %v5810
    %v5875 = vpack.c.bf16 %v5811, %v5811
    %v5876 = vpack.c.bf16 %v5812, %v5812
    %v5877 = vpack.c.bf16 %v5813, %v5813
    %v5878 = vld [vmem:[#allocation2 + $0x1] sm:$0xff]
    %v5879 = vld [vmem:[#allocation2 + $0x9] sm:$0xff]
    %v5880 = vld [vmem:[#allocation2 + $0x19] sm:$0xff]
    %v5881 = vld [vmem:[#allocation2 + $0x21] sm:$0xff]
    %v5882 = vld [vmem:[#allocation2 + $0x31] sm:$0xff]
    %v5883 = vld [vmem:[#allocation2 + $0x39] sm:$0xff]
    %v5884 = vld [vmem:[#allocation2 + $0x49] sm:$0xff]
    %v5885 = vld [vmem:[#allocation2 + $0x51] sm:$0xff]
    %v5886 = vld [vmem:[#allocation2 + $0x61] sm:$0xff]
    %v5887 = vld [vmem:[#allocation2 + $0x69] sm:$0xff]
    %v5888 = vld [vmem:[#allocation2 + $0x79] sm:$0xff]
    %v5889 = vld [vmem:[#allocation2 + $0x81] sm:$0xff]
    %v5890 = vld [vmem:[#allocation2 + $0x91] sm:$0xff]
    %v5891 = vld [vmem:[#allocation2 + $0x99] sm:$0xff]
    %v5892 = vld [vmem:[#allocation2 + $0xa9] sm:$0xff]
    %v5893 = vld [vmem:[#allocation2 + $0xb1] sm:$0xff]
    %v5894 = vld [vmem:[#allocation2 + $0xc1] sm:$0xff]
    %v5895 = vld [vmem:[#allocation2 + $0xc9] sm:$0xff]
    %v5896 = vld [vmem:[#allocation2 + $0xd9] sm:$0xff]
    %v5897 = vld [vmem:[#allocation2 + $0xe1] sm:$0xff]
    %v5898 = vld [vmem:[#allocation2 + $0xf1] sm:$0xff]
    %v5899 = vld [vmem:[#allocation2 + $0xf9] sm:$0xff]
    %v5900 = vld [vmem:[#allocation2 + $0x109] sm:$0xff]
    %v5901 = vld [vmem:[#allocation2 + $0x111] sm:$0xff]
    %v5902 = vld [vmem:[#allocation2 + $0x121] sm:$0xff]
    %v5903 = vld [vmem:[#allocation2 + $0x129] sm:$0xff]
    %v5904 = vld [vmem:[#allocation2 + $0x139] sm:$0xff]
    %v5905 = vld [vmem:[#allocation2 + $0x141] sm:$0xff]
    %v5906 = vld [vmem:[#allocation2 + $0x151] sm:$0xff]
    %v5907 = vld [vmem:[#allocation2 + $0x159] sm:$0xff]
    %v5908 = vld [vmem:[#allocation2 + $0x169] sm:$0xff]
    %v5909 = vld [vmem:[#allocation2 + $0x171] sm:$0xff]
    %v5910 = vld [vmem:[#allocation2 + $0x1b1] sm:$0xff]
    %v5911 = vld [vmem:[#allocation2 + $0x1b9] sm:$0xff]
    %v5912 = vld [vmem:[#allocation2 + $0x1c9] sm:$0xff]
    %v5913 = vld [vmem:[#allocation2 + $0x1d1] sm:$0xff]
    %v5914 = vld [vmem:[#allocation2 + $0x1e1] sm:$0xff]
    %v5915 = vld [vmem:[#allocation2 + $0x1e9] sm:$0xff]
    %v5916 = vld [vmem:[#allocation2 + $0x1f9] sm:$0xff]
    %v5917 = vld [vmem:[#allocation2 + $0x201] sm:$0xff]
    %v5918 = vld [vmem:[#allocation2 + $0x211] sm:$0xff]
    %v5919 = vld [vmem:[#allocation2 + $0x219] sm:$0xff]
    %v5920 = vld [vmem:[#allocation2 + $0x229] sm:$0xff]
    %v5921 = vld [vmem:[#allocation2 + $0x231] sm:$0xff]
    %v5922 = vld [vmem:[#allocation2 + $0x241] sm:$0xff]
    %v5923 = vld [vmem:[#allocation2 + $0x249] sm:$0xff]
    %v5924 = vld [vmem:[#allocation2 + $0x259] sm:$0xff]
    %v5925 = vld [vmem:[#allocation2 + $0x261] sm:$0xff]
    %v5926 = vld [vmem:[#allocation2 + $0x271] sm:$0xff]
    %v5927 = vld [vmem:[#allocation2 + $0x279] sm:$0xff]
    %v5928 = vld [vmem:[#allocation2 + $0x289] sm:$0xff]
    %v5929 = vld [vmem:[#allocation2 + $0x291] sm:$0xff]
    %v5930 = vld [vmem:[#allocation2 + $0x2a1] sm:$0xff]
    %v5931 = vld [vmem:[#allocation2 + $0x2a9] sm:$0xff]
    %v5932 = vld [vmem:[#allocation2 + $0x2b9] sm:$0xff]
    %v5933 = vld [vmem:[#allocation2 + $0x2c1] sm:$0xff]
    %v5934 = vld [vmem:[#allocation2 + $0x2d1] sm:$0xff]
    %v5935 = vld [vmem:[#allocation2 + $0x2d9] sm:$0xff]
    %v5936 = vld [vmem:[#allocation2 + $0x2e9] sm:$0xff]
    %v5937 = vld [vmem:[#allocation2 + $0x2f1] sm:$0xff]
    %v5938 = vld [vmem:[#allocation2 + $0x301] sm:$0xff]
    %v5939 = vld [vmem:[#allocation2 + $0x309] sm:$0xff]
    %v5940 = vld [vmem:[#allocation2 + $0x319] sm:$0xff]
    %v5941 = vld [vmem:[#allocation2 + $0x321] sm:$0xff]
    %v5942 = vpack.c.bf16 %v5878, %v5878
    %v5943 = vpack.c.bf16 %v5879, %v5879
    %v5944 = vpack.c.bf16 %v5880, %v5880
    %v5945 = vpack.c.bf16 %v5881, %v5881
    %v5946 = vpack.c.bf16 %v5882, %v5882
    %v5947 = vpack.c.bf16 %v5883, %v5883
    %v5948 = vpack.c.bf16 %v5884, %v5884
    %v5949 = vpack.c.bf16 %v5885, %v5885
    %v5950 = vpack.c.bf16 %v5886, %v5886
    %v5951 = vpack.c.bf16 %v5887, %v5887
    %v5952 = vpack.c.bf16 %v5888, %v5888
    %v5953 = vpack.c.bf16 %v5889, %v5889
    %v5954 = vpack.c.bf16 %v5890, %v5890
    %v5955 = vpack.c.bf16 %v5891, %v5891
    %v5956 = vpack.c.bf16 %v5892, %v5892
    %v5957 = vpack.c.bf16 %v5893, %v5893
    %v5958 = vpack.c.bf16 %v5894, %v5894
    %v5959 = vpack.c.bf16 %v5895, %v5895
    %v5960 = vpack.c.bf16 %v5896, %v5896
    %v5961 = vpack.c.bf16 %v5897, %v5897
    %v5962 = vpack.c.bf16 %v5898, %v5898
    %v5963 = vpack.c.bf16 %v5899, %v5899
    %v5964 = vpack.c.bf16 %v5900, %v5900
    %v5965 = vpack.c.bf16 %v5901, %v5901
    %v5966 = vpack.c.bf16 %v5902, %v5902
    %v5967 = vpack.c.bf16 %v5903, %v5903
    %v5968 = vpack.c.bf16 %v5904, %v5904
    %v5969 = vpack.c.bf16 %v5905, %v5905
    %v5970 = vpack.c.bf16 %v5906, %v5906
    %v5971 = vpack.c.bf16 %v5907, %v5907
    %v5972 = vpack.c.bf16 %v5908, %v5908
    %v5973 = vpack.c.bf16 %v5909, %v5909
    %v5974 = vpack.c.bf16 %v5910, %v5910
    %v5975 = vpack.c.bf16 %v5911, %v5911
    %v5976 = vpack.c.bf16 %v5912, %v5912
    %v5977 = vpack.c.bf16 %v5913, %v5913
    %v5978 = vpack.c.bf16 %v5914, %v5914
    %v5979 = vpack.c.bf16 %v5915, %v5915
    %v5980 = vpack.c.bf16 %v5916, %v5916
    %v5981 = vpack.c.bf16 %v5917, %v5917
    %v5982 = vpack.c.bf16 %v5918, %v5918
    %v5983 = vpack.c.bf16 %v5919, %v5919
    %v5984 = vpack.c.bf16 %v5920, %v5920
    %v5985 = vpack.c.bf16 %v5921, %v5921
    %v5986 = vpack.c.bf16 %v5922, %v5922
    %v5987 = vpack.c.bf16 %v5923, %v5923
    %v5988 = vpack.c.bf16 %v5924, %v5924
    %v5989 = vpack.c.bf16 %v5925, %v5925
    %v5990 = vpack.c.bf16 %v5926, %v5926
    %v5991 = vpack.c.bf16 %v5927, %v5927
    %v5992 = vpack.c.bf16 %v5928, %v5928
    %v5993 = vpack.c.bf16 %v5929, %v5929
    %v5994 = vpack.c.bf16 %v5930, %v5930
    %v5995 = vpack.c.bf16 %v5931, %v5931
    %v5996 = vpack.c.bf16 %v5932, %v5932
    %v5997 = vpack.c.bf16 %v5933, %v5933
    %v5998 = vpack.c.bf16 %v5934, %v5934
    %v5999 = vpack.c.bf16 %v5935, %v5935
    %v6000 = vpack.c.bf16 %v5936, %v5936
    %v6001 = vpack.c.bf16 %v5937, %v5937
    %v6002 = vpack.c.bf16 %v5938, %v5938
    %v6003 = vpack.c.bf16 %v5939, %v5939
    %v6004 = vpack.c.bf16 %v5940, %v5940
    %v6005 = vpack.c.bf16 %v5941, %v5941
    %v6006 = vld [vmem:[#allocation2 + $0x2] sm:$0xff]
    %v6007 = vld [vmem:[#allocation2 + $0xa] sm:$0xff]
    %v6008 = vld [vmem:[#allocation2 + $0x1a] sm:$0xff]
    %v6009 = vld [vmem:[#allocation2 + $0x22] sm:$0xff]
    %v6010 = vld [vmem:[#allocation2 + $0x32] sm:$0xff]
    %v6011 = vld [vmem:[#allocation2 + $0x3a] sm:$0xff]
    %v6012 = vld [vmem:[#allocation2 + $0x4a] sm:$0xff]
    %v6013 = vld [vmem:[#allocation2 + $0x52] sm:$0xff]
    %v6014 = vld [vmem:[#allocation2 + $0x62] sm:$0xff]
    %v6015 = vld [vmem:[#allocation2 + $0x6a] sm:$0xff]
    %v6016 = vld [vmem:[#allocation2 + $0x7a] sm:$0xff]
    %v6017 = vld [vmem:[#allocation2 + $0x82] sm:$0xff]
    %v6018 = vld [vmem:[#allocation2 + $0x92] sm:$0xff]
    %v6019 = vld [vmem:[#allocation2 + $0x9a] sm:$0xff]
    %v6020 = vld [vmem:[#allocation2 + $0xaa] sm:$0xff]
    %v6021 = vld [vmem:[#allocation2 + $0xb2] sm:$0xff]
    %v6022 = vld [vmem:[#allocation2 + $0xc2] sm:$0xff]
    %v6023 = vld [vmem:[#allocation2 + $0xca] sm:$0xff]
    %v6024 = vld [vmem:[#allocation2 + $0xda] sm:$0xff]
    %v6025 = vld [vmem:[#allocation2 + $0xe2] sm:$0xff]
    %v6026 = vld [vmem:[#allocation2 + $0xf2] sm:$0xff]
    %v6027 = vld [vmem:[#allocation2 + $0xfa] sm:$0xff]
    %v6028 = vld [vmem:[#allocation2 + $0x10a] sm:$0xff]
    %v6029 = vld [vmem:[#allocation2 + $0x112] sm:$0xff]
    %v6030 = vld [vmem:[#allocation2 + $0x122] sm:$0xff]
    %v6031 = vld [vmem:[#allocation2 + $0x12a] sm:$0xff]
    %v6032 = vld [vmem:[#allocation2 + $0x13a] sm:$0xff]
    %v6033 = vld [vmem:[#allocation2 + $0x142] sm:$0xff]
    %v6034 = vld [vmem:[#allocation2 + $0x152] sm:$0xff]
    %v6035 = vld [vmem:[#allocation2 + $0x15a] sm:$0xff]
    %v6036 = vld [vmem:[#allocation2 + $0x16a] sm:$0xff]
    %v6037 = vld [vmem:[#allocation2 + $0x172] sm:$0xff]
    %v6038 = vld [vmem:[#allocation2 + $0x1b2] sm:$0xff]
    %v6039 = vld [vmem:[#allocation2 + $0x1ba] sm:$0xff]
    %v6040 = vld [vmem:[#allocation2 + $0x1ca] sm:$0xff]
    %v6041 = vld [vmem:[#allocation2 + $0x1d2] sm:$0xff]
    %v6042 = vld [vmem:[#allocation2 + $0x1e2] sm:$0xff]
    %v6043 = vld [vmem:[#allocation2 + $0x1ea] sm:$0xff]
    %v6044 = vld [vmem:[#allocation2 + $0x1fa] sm:$0xff]
    %v6045 = vld [vmem:[#allocation2 + $0x202] sm:$0xff]
    %v6046 = vld [vmem:[#allocation2 + $0x212] sm:$0xff]
    %v6047 = vld [vmem:[#allocation2 + $0x21a] sm:$0xff]
    %v6048 = vld [vmem:[#allocation2 + $0x22a] sm:$0xff]
    %v6049 = vld [vmem:[#allocation2 + $0x232] sm:$0xff]
    %v6050 = vld [vmem:[#allocation2 + $0x242] sm:$0xff]
    %v6051 = vld [vmem:[#allocation2 + $0x24a] sm:$0xff]
    %v6052 = vld [vmem:[#allocation2 + $0x25a] sm:$0xff]
    %v6053 = vld [vmem:[#allocation2 + $0x262] sm:$0xff]
    %v6054 = vld [vmem:[#allocation2 + $0x272] sm:$0xff]
    %v6055 = vld [vmem:[#allocation2 + $0x27a] sm:$0xff]
    %v6056 = vld [vmem:[#allocation2 + $0x28a] sm:$0xff]
    %v6057 = vld [vmem:[#allocation2 + $0x292] sm:$0xff]
    %v6058 = vld [vmem:[#allocation2 + $0x2a2] sm:$0xff]
    %v6059 = vld [vmem:[#allocation2 + $0x2aa] sm:$0xff]
    %v6060 = vld [vmem:[#allocation2 + $0x2ba] sm:$0xff]
    %v6061 = vld [vmem:[#allocation2 + $0x2c2] sm:$0xff]
    %v6062 = vld [vmem:[#allocation2 + $0x2d2] sm:$0xff]
    %v6063 = vld [vmem:[#allocation2 + $0x2da] sm:$0xff]
    %v6064 = vld [vmem:[#allocation2 + $0x2ea] sm:$0xff]
    %v6065 = vld [vmem:[#allocation2 + $0x2f2] sm:$0xff]
    %v6066 = vld [vmem:[#allocation2 + $0x302] sm:$0xff]
    %v6067 = vld [vmem:[#allocation2 + $0x30a] sm:$0xff]
    %v6068 = vld [vmem:[#allocation2 + $0x31a] sm:$0xff]
    %v6069 = vld [vmem:[#allocation2 + $0x322] sm:$0xff]
    %v6070 = vpack.c.bf16 %v6006, %v6006
    %v6071 = vpack.c.bf16 %v6007, %v6007
    %v6072 = vpack.c.bf16 %v6008, %v6008
    %v6073 = vpack.c.bf16 %v6009, %v6009
    %v6074 = vpack.c.bf16 %v6010, %v6010
    %v6075 = vpack.c.bf16 %v6011, %v6011
    %v6076 = vpack.c.bf16 %v6012, %v6012
    %v6077 = vpack.c.bf16 %v6013, %v6013
    %v6078 = vpack.c.bf16 %v6014, %v6014
    %v6079 = vpack.c.bf16 %v6015, %v6015
    %v6080 = vpack.c.bf16 %v6016, %v6016
    %v6081 = vpack.c.bf16 %v6017, %v6017
    %v6082 = vpack.c.bf16 %v6018, %v6018
    %v6083 = vpack.c.bf16 %v6019, %v6019
    %v6084 = vpack.c.bf16 %v6020, %v6020
    %v6085 = vpack.c.bf16 %v6021, %v6021
    %v6086 = vpack.c.bf16 %v6022, %v6022
    %v6087 = vpack.c.bf16 %v6023, %v6023
    %v6088 = vpack.c.bf16 %v6024, %v6024
    %v6089 = vpack.c.bf16 %v6025, %v6025
    %v6090 = vpack.c.bf16 %v6026, %v6026
    %v6091 = vpack.c.bf16 %v6027, %v6027
    %v6092 = vpack.c.bf16 %v6028, %v6028
    %v6093 = vpack.c.bf16 %v6029, %v6029
    %v6094 = vpack.c.bf16 %v6030, %v6030
    %v6095 = vpack.c.bf16 %v6031, %v6031
    %v6096 = vpack.c.bf16 %v6032, %v6032
    %v6097 = vpack.c.bf16 %v6033, %v6033
    %v6098 = vpack.c.bf16 %v6034, %v6034
    %v6099 = vpack.c.bf16 %v6035, %v6035
    %v6100 = vpack.c.bf16 %v6036, %v6036
    %v6101 = vpack.c.bf16 %v6037, %v6037
    %v6102 = vpack.c.bf16 %v6038, %v6038
    %v6103 = vpack.c.bf16 %v6039, %v6039
    %v6104 = vpack.c.bf16 %v6040, %v6040
    %v6105 = vpack.c.bf16 %v6041, %v6041
    %v6106 = vpack.c.bf16 %v6042, %v6042
    %v6107 = vpack.c.bf16 %v6043, %v6043
    %v6108 = vpack.c.bf16 %v6044, %v6044
    %v6109 = vpack.c.bf16 %v6045, %v6045
    %v6110 = vpack.c.bf16 %v6046, %v6046
    %v6111 = vpack.c.bf16 %v6047, %v6047
    %v6112 = vpack.c.bf16 %v6048, %v6048
    %v6113 = vpack.c.bf16 %v6049, %v6049
    %v6114 = vpack.c.bf16 %v6050, %v6050
    %v6115 = vpack.c.bf16 %v6051, %v6051
    %v6116 = vpack.c.bf16 %v6052, %v6052
    %v6117 = vpack.c.bf16 %v6053, %v6053
    %v6118 = vpack.c.bf16 %v6054, %v6054
    %v6119 = vpack.c.bf16 %v6055, %v6055
    %v6120 = vpack.c.bf16 %v6056, %v6056
    %v6121 = vpack.c.bf16 %v6057, %v6057
    %v6122 = vpack.c.bf16 %v6058, %v6058
    %v6123 = vpack.c.bf16 %v6059, %v6059
    %v6124 = vpack.c.bf16 %v6060, %v6060
    %v6125 = vpack.c.bf16 %v6061, %v6061
    %v6126 = vpack.c.bf16 %v6062, %v6062
    %v6127 = vpack.c.bf16 %v6063, %v6063
    %v6128 = vpack.c.bf16 %v6064, %v6064
    %v6129 = vpack.c.bf16 %v6065, %v6065
    %v6130 = vpack.c.bf16 %v6066, %v6066
    %v6131 = vpack.c.bf16 %v6067, %v6067
    %v6132 = vpack.c.bf16 %v6068, %v6068
    %v6133 = vpack.c.bf16 %v6069, %v6069
    %v6134 = vld [vmem:[%s223] sm:$0xff]
    %v6135 = vld [vmem:[%s223 + $0x8] sm:$0xff]
    %v6136 = vld [vmem:[%s223 + $0x18] sm:$0xff]
    %v6137 = vld [vmem:[%s223 + $0x20] sm:$0xff]
    %v6138 = vld [vmem:[%s223 + $0x30] sm:$0xff]
    %v6139 = vld [vmem:[%s223 + $0x38] sm:$0xff]
    %v6140 = vld [vmem:[%s223 + $0x48] sm:$0xff]
    %v6141 = vld [vmem:[%s223 + $0x50] sm:$0xff]
    %v6142 = vld [vmem:[%s223 + $0x60] sm:$0xff]
    %v6143 = vld [vmem:[%s223 + $0x68] sm:$0xff]
    %v6144 = vld [vmem:[%s223 + $0x78] sm:$0xff]
    %v6145 = vld [vmem:[%s223 + $0x80] sm:$0xff]
    %v6146 = vld [vmem:[%s223 + $0x90] sm:$0xff]
    %v6147 = vld [vmem:[%s223 + $0x98] sm:$0xff]
    %v6148 = vld [vmem:[%s223 + $0xa8] sm:$0xff]
    %v6149 = vld [vmem:[%s223 + $0xb0] sm:$0xff]
    %v6150 = vld [vmem:[%s223 + $0xc0] sm:$0xff]
    %v6151 = vld [vmem:[%s223 + $0xc8] sm:$0xff]
    %v6152 = vld [vmem:[%s223 + $0xd8] sm:$0xff]
    %v6153 = vld [vmem:[%s223 + $0xe0] sm:$0xff]
    %v6154 = vld [vmem:[%s223 + $0xf0] sm:$0xff]
    %v6155 = vld [vmem:[%s223 + $0xf8] sm:$0xff]
    %v6156 = vld [vmem:[%s223 + $0x108] sm:$0xff]
    %v6157 = vld [vmem:[%s223 + $0x110] sm:$0xff]
    %v6158 = vld [vmem:[%s223 + $0x120] sm:$0xff]
    %v6159 = vld [vmem:[%s223 + $0x128] sm:$0xff]
    %v6160 = vld [vmem:[%s223 + $0x138] sm:$0xff]
    %v6161 = vld [vmem:[%s223 + $0x140] sm:$0xff]
    %v6162 = vld [vmem:[%s223 + $0x150] sm:$0xff]
    %v6163 = vld [vmem:[%s223 + $0x158] sm:$0xff]
    %v6164 = vld [vmem:[%s223 + $0x168] sm:$0xff]
    %v6165 = vld [vmem:[%s223 + $0x170] sm:$0xff]
    %v6166 = vld [vmem:[%s223 + $0x1b0] sm:$0xff]
    %v6167 = vld [vmem:[%s223 + $0x1b8] sm:$0xff]
    %v6168 = vld [vmem:[%s223 + $0x1c8] sm:$0xff]
    %v6169 = vld [vmem:[%s223 + $0x1d0] sm:$0xff]
    %v6170 = vld [vmem:[%s223 + $0x1e0] sm:$0xff]
    %v6171 = vld [vmem:[%s223 + $0x1e8] sm:$0xff]
    %v6172 = vld [vmem:[%s223 + $0x1f8] sm:$0xff]
    %v6173 = vld [vmem:[%s223 + $0x200] sm:$0xff]
    %v6174 = vld [vmem:[%s223 + $0x210] sm:$0xff]
    %v6175 = vld [vmem:[%s223 + $0x218] sm:$0xff]
    %v6176 = vld [vmem:[%s223 + $0x228] sm:$0xff]
    %v6177 = vld [vmem:[%s223 + $0x230] sm:$0xff]
    %v6178 = vld [vmem:[%s223 + $0x240] sm:$0xff]
    %v6179 = vld [vmem:[%s223 + $0x248] sm:$0xff]
    %v6180 = vld [vmem:[%s223 + $0x258] sm:$0xff]
    %v6181 = vld [vmem:[%s223 + $0x260] sm:$0xff]
    %v6182 = vld [vmem:[%s223 + $0x270] sm:$0xff]
    %v6183 = vld [vmem:[%s223 + $0x278] sm:$0xff]
    %v6184 = vld [vmem:[%s223 + $0x288] sm:$0xff]
    %v6185 = vld [vmem:[%s223 + $0x290] sm:$0xff]
    %v6186 = vld [vmem:[%s223 + $0x2a0] sm:$0xff]
    %v6187 = vld [vmem:[%s223 + $0x2a8] sm:$0xff]
    %v6188 = vld [vmem:[%s223 + $0x2b8] sm:$0xff]
    %v6189 = vld [vmem:[%s223 + $0x2c0] sm:$0xff]
    %v6190 = vld [vmem:[%s223 + $0x2d0] sm:$0xff]
    %v6191 = vld [vmem:[%s223 + $0x2d8] sm:$0xff]
    %v6192 = vld [vmem:[%s223 + $0x2e8] sm:$0xff]
    %v6193 = vld [vmem:[%s223 + $0x2f0] sm:$0xff]
    %v6194 = vld [vmem:[%s223 + $0x300] sm:$0xff]
    %v6195 = vld [vmem:[%s223 + $0x308] sm:$0xff]
    %v6196 = vld [vmem:[%s223 + $0x318] sm:$0xff]
    %v6197 = vld [vmem:[%s223 + $0x320] sm:$0xff]
    %v6198 = vpack.c.bf16 %v6134, %v6134
    %v6199 = vpack.c.bf16 %v6135, %v6135
    %v6200 = vpack.c.bf16 %v6136, %v6136
    %v6201 = vpack.c.bf16 %v6137, %v6137
    %v6202 = vpack.c.bf16 %v6138, %v6138
    %v6203 = vpack.c.bf16 %v6139, %v6139
    %v6204 = vpack.c.bf16 %v6140, %v6140
    %v6205 = vpack.c.bf16 %v6141, %v6141
    %v6206 = vpack.c.bf16 %v6142, %v6142
    %v6207 = vpack.c.bf16 %v6143, %v6143
    %v6208 = vpack.c.bf16 %v6144, %v6144
    %v6209 = vpack.c.bf16 %v6145, %v6145
    %v6210 = vpack.c.bf16 %v6146, %v6146
    %v6211 = vpack.c.bf16 %v6147, %v6147
    %v6212 = vpack.c.bf16 %v6148, %v6148
    %v6213 = vpack.c.bf16 %v6149, %v6149
    %v6214 = vpack.c.bf16 %v6150, %v6150
    %v6215 = vpack.c.bf16 %v6151, %v6151
    %v6216 = vpack.c.bf16 %v6152, %v6152
    %v6217 = vpack.c.bf16 %v6153, %v6153
    %v6218 = vpack.c.bf16 %v6154, %v6154
    %v6219 = vpack.c.bf16 %v6155, %v6155
    %v6220 = vpack.c.bf16 %v6156, %v6156
    %v6221 = vpack.c.bf16 %v6157, %v6157
    %v6222 = vpack.c.bf16 %v6158, %v6158
    %v6223 = vpack.c.bf16 %v6159, %v6159
    %v6224 = vpack.c.bf16 %v6160, %v6160
    %v6225 = vpack.c.bf16 %v6161, %v6161
    %v6226 = vpack.c.bf16 %v6162, %v6162
    %v6227 = vpack.c.bf16 %v6163, %v6163
    %v6228 = vpack.c.bf16 %v6164, %v6164
    %v6229 = vpack.c.bf16 %v6165, %v6165
    %v6230 = vpack.c.bf16 %v6166, %v6166
    %v6231 = vpack.c.bf16 %v6167, %v6167
    %v6232 = vpack.c.bf16 %v6168, %v6168
    %v6233 = vpack.c.bf16 %v6169, %v6169
    %v6234 = vpack.c.bf16 %v6170, %v6170
    %v6235 = vpack.c.bf16 %v6171, %v6171
    %v6236 = vpack.c.bf16 %v6172, %v6172
    %v6237 = vpack.c.bf16 %v6173, %v6173
    %v6238 = vpack.c.bf16 %v6174, %v6174
    %v6239 = vpack.c.bf16 %v6175, %v6175
    %v6240 = vpack.c.bf16 %v6176, %v6176
    %v6241 = vpack.c.bf16 %v6177, %v6177
    %v6242 = vpack.c.bf16 %v6178, %v6178
    %v6243 = vpack.c.bf16 %v6179, %v6179
    %v6244 = vpack.c.bf16 %v6180, %v6180
    %v6245 = vpack.c.bf16 %v6181, %v6181
    %v6246 = vpack.c.bf16 %v6182, %v6182
    %v6247 = vpack.c.bf16 %v6183, %v6183
    %v6248 = vpack.c.bf16 %v6184, %v6184
    %v6249 = vpack.c.bf16 %v6185, %v6185
    %v6250 = vpack.c.bf16 %v6186, %v6186
    %v6251 = vpack.c.bf16 %v6187, %v6187
    %v6252 = vpack.c.bf16 %v6188, %v6188
    %v6253 = vpack.c.bf16 %v6189, %v6189
    %v6254 = vpack.c.bf16 %v6190, %v6190
    %v6255 = vpack.c.bf16 %v6191, %v6191
    %v6256 = vpack.c.bf16 %v6192, %v6192
    %v6257 = vpack.c.bf16 %v6193, %v6193
    %v6258 = vpack.c.bf16 %v6194, %v6194
    %v6259 = vpack.c.bf16 %v6195, %v6195
    %v6260 = vpack.c.bf16 %v6196, %v6196
    %v6261 = vpack.c.bf16 %v6197, %v6197
    %v6262 = vld [vmem:[%s223 + $0x1] sm:$0xff]
    %v6263 = vld [vmem:[%s223 + $0x9] sm:$0xff]
    %v6264 = vld [vmem:[%s223 + $0x19] sm:$0xff]
    %v6265 = vld [vmem:[%s223 + $0x21] sm:$0xff]
    %v6266 = vld [vmem:[%s223 + $0x31] sm:$0xff]
    %v6267 = vld [vmem:[%s223 + $0x39] sm:$0xff]
    %v6268 = vld [vmem:[%s223 + $0x49] sm:$0xff]
    %v6269 = vld [vmem:[%s223 + $0x51] sm:$0xff]
    %v6270 = vld [vmem:[%s223 + $0x61] sm:$0xff]
    %v6271 = vld [vmem:[%s223 + $0x69] sm:$0xff]
    %v6272 = vld [vmem:[%s223 + $0x79] sm:$0xff]
    %v6273 = vld [vmem:[%s223 + $0x81] sm:$0xff]
    %v6274 = vld [vmem:[%s223 + $0x91] sm:$0xff]
    %v6275 = vld [vmem:[%s223 + $0x99] sm:$0xff]
    %v6276 = vld [vmem:[%s223 + $0xa9] sm:$0xff]
    %v6277 = vld [vmem:[%s223 + $0xb1] sm:$0xff]
    %v6278 = vld [vmem:[%s223 + $0xc1] sm:$0xff]
    %v6279 = vld [vmem:[%s223 + $0xc9] sm:$0xff]
    %v6280 = vld [vmem:[%s223 + $0xd9] sm:$0xff]
    %v6281 = vld [vmem:[%s223 + $0xe1] sm:$0xff]
    %v6282 = vld [vmem:[%s223 + $0xf1] sm:$0xff]
    %v6283 = vld [vmem:[%s223 + $0xf9] sm:$0xff]
    %v6284 = vld [vmem:[%s223 + $0x109] sm:$0xff]
    %v6285 = vld [vmem:[%s223 + $0x111] sm:$0xff]
    %v6286 = vld [vmem:[%s223 + $0x121] sm:$0xff]
    %v6287 = vld [vmem:[%s223 + $0x129] sm:$0xff]
    %v6288 = vld [vmem:[%s223 + $0x139] sm:$0xff]
    %v6289 = vld [vmem:[%s223 + $0x141] sm:$0xff]
    %v6290 = vld [vmem:[%s223 + $0x151] sm:$0xff]
    %v6291 = vld [vmem:[%s223 + $0x159] sm:$0xff]
    %v6292 = vld [vmem:[%s223 + $0x169] sm:$0xff]
    %v6293 = vld [vmem:[%s223 + $0x171] sm:$0xff]
    %v6294 = vld [vmem:[%s223 + $0x1b1] sm:$0xff]
    %v6295 = vld [vmem:[%s223 + $0x1b9] sm:$0xff]
    %v6296 = vld [vmem:[%s223 + $0x1c9] sm:$0xff]
    %v6297 = vld [vmem:[%s223 + $0x1d1] sm:$0xff]
    %v6298 = vld [vmem:[%s223 + $0x1e1] sm:$0xff]
    %v6299 = vld [vmem:[%s223 + $0x1e9] sm:$0xff]
    %v6300 = vld [vmem:[%s223 + $0x1f9] sm:$0xff]
    %v6301 = vld [vmem:[%s223 + $0x201] sm:$0xff]
    %v6302 = vld [vmem:[%s223 + $0x211] sm:$0xff]
    %v6303 = vld [vmem:[%s223 + $0x219] sm:$0xff]
    %v6304 = vld [vmem:[%s223 + $0x229] sm:$0xff]
    %v6305 = vld [vmem:[%s223 + $0x231] sm:$0xff]
    %v6306 = vld [vmem:[%s223 + $0x241] sm:$0xff]
    %v6307 = vld [vmem:[%s223 + $0x249] sm:$0xff]
    %v6308 = vld [vmem:[%s223 + $0x259] sm:$0xff]
    %v6309 = vld [vmem:[%s223 + $0x261] sm:$0xff]
    %v6310 = vld [vmem:[%s223 + $0x271] sm:$0xff]
    %v6311 = vld [vmem:[%s223 + $0x279] sm:$0xff]
    %v6312 = vld [vmem:[%s223 + $0x289] sm:$0xff]
    %v6313 = vld [vmem:[%s223 + $0x291] sm:$0xff]
    %v6314 = vld [vmem:[%s223 + $0x2a1] sm:$0xff]
    %v6315 = vld [vmem:[%s223 + $0x2a9] sm:$0xff]
    %v6316 = vld [vmem:[%s223 + $0x2b9] sm:$0xff]
    %v6317 = vld [vmem:[%s223 + $0x2c1] sm:$0xff]
    %v6318 = vld [vmem:[%s223 + $0x2d1] sm:$0xff]
    %v6319 = vld [vmem:[%s223 + $0x2d9] sm:$0xff]
    %v6320 = vld [vmem:[%s223 + $0x2e9] sm:$0xff]
    %v6321 = vld [vmem:[%s223 + $0x2f1] sm:$0xff]
    %v6322 = vld [vmem:[%s223 + $0x301] sm:$0xff]
    %v6323 = vld [vmem:[%s223 + $0x309] sm:$0xff]
    %v6324 = vld [vmem:[%s223 + $0x319] sm:$0xff]
    %v6325 = vld [vmem:[%s223 + $0x321] sm:$0xff]
    %v6326 = vpack.c.bf16 %v6262, %v6262
    %v6327 = vpack.c.bf16 %v6263, %v6263
    %v6328 = vpack.c.bf16 %v6264, %v6264
    %v6329 = vpack.c.bf16 %v6265, %v6265
    %v6330 = vpack.c.bf16 %v6266, %v6266
    %v6331 = vpack.c.bf16 %v6267, %v6267
    %v6332 = vpack.c.bf16 %v6268, %v6268
    %v6333 = vpack.c.bf16 %v6269, %v6269
    %v6334 = vpack.c.bf16 %v6270, %v6270
    %v6335 = vpack.c.bf16 %v6271, %v6271
    %v6336 = vpack.c.bf16 %v6272, %v6272
    %v6337 = vpack.c.bf16 %v6273, %v6273
    %v6338 = vpack.c.bf16 %v6274, %v6274
    %v6339 = vpack.c.bf16 %v6275, %v6275
    %v6340 = vpack.c.bf16 %v6276, %v6276
    %v6341 = vpack.c.bf16 %v6277, %v6277
    %v6342 = vpack.c.bf16 %v6278, %v6278
    %v6343 = vpack.c.bf16 %v6279, %v6279
    %v6344 = vpack.c.bf16 %v6280, %v6280
    %v6345 = vpack.c.bf16 %v6281, %v6281
    %v6346 = vpack.c.bf16 %v6282, %v6282
    %v6347 = vpack.c.bf16 %v6283, %v6283
    %v6348 = vpack.c.bf16 %v6284, %v6284
    %v6349 = vpack.c.bf16 %v6285, %v6285
    %v6350 = vpack.c.bf16 %v6286, %v6286
    %v6351 = vpack.c.bf16 %v6287, %v6287
    %v6352 = vpack.c.bf16 %v6288, %v6288
    %v6353 = vpack.c.bf16 %v6289, %v6289
    %v6354 = vpack.c.bf16 %v6290, %v6290
    %v6355 = vpack.c.bf16 %v6291, %v6291
    %v6356 = vpack.c.bf16 %v6292, %v6292
    %v6357 = vpack.c.bf16 %v6293, %v6293
    %v6358 = vpack.c.bf16 %v6294, %v6294
    %v6359 = vpack.c.bf16 %v6295, %v6295
    %v6360 = vpack.c.bf16 %v6296, %v6296
    %v6361 = vpack.c.bf16 %v6297, %v6297
    %v6362 = vpack.c.bf16 %v6298, %v6298
    %v6363 = vpack.c.bf16 %v6299, %v6299
    %v6364 = vpack.c.bf16 %v6300, %v6300
    %v6365 = vpack.c.bf16 %v6301, %v6301
    %v6366 = vpack.c.bf16 %v6302, %v6302
    %v6367 = vpack.c.bf16 %v6303, %v6303
    %v6368 = vpack.c.bf16 %v6304, %v6304
    %v6369 = vpack.c.bf16 %v6305, %v6305
    %v6370 = vpack.c.bf16 %v6306, %v6306
    %v6371 = vpack.c.bf16 %v6307, %v6307
    %v6372 = vpack.c.bf16 %v6308, %v6308
    %v6373 = vpack.c.bf16 %v6309, %v6309
    %v6374 = vpack.c.bf16 %v6310, %v6310
    %v6375 = vpack.c.bf16 %v6311, %v6311
    %v6376 = vpack.c.bf16 %v6312, %v6312
    %v6377 = vpack.c.bf16 %v6313, %v6313
    %v6378 = vpack.c.bf16 %v6314, %v6314
    %v6379 = vpack.c.bf16 %v6315, %v6315
    %v6380 = vpack.c.bf16 %v6316, %v6316
    %v6381 = vpack.c.bf16 %v6317, %v6317
    %v6382 = vpack.c.bf16 %v6318, %v6318
    %v6383 = vpack.c.bf16 %v6319, %v6319
    %v6384 = vpack.c.bf16 %v6320, %v6320
    %v6385 = vpack.c.bf16 %v6321, %v6321
    %v6386 = vpack.c.bf16 %v6322, %v6322
    %v6387 = vpack.c.bf16 %v6323, %v6323
    %v6388 = vpack.c.bf16 %v6324, %v6324
    %v6389 = vpack.c.bf16 %v6325, %v6325
    %v6390 = vld [vmem:[%s223 + $0x2] sm:$0xff]
    %v6391 = vld [vmem:[%s223 + $0xa] sm:$0xff]
    %v6392 = vld [vmem:[%s223 + $0x1a] sm:$0xff]
    %v6393 = vld [vmem:[%s223 + $0x22] sm:$0xff]
    %v6394 = vld [vmem:[%s223 + $0x32] sm:$0xff]
    %v6395 = vld [vmem:[%s223 + $0x3a] sm:$0xff]
    %v6396 = vld [vmem:[%s223 + $0x4a] sm:$0xff]
    %v6397 = vld [vmem:[%s223 + $0x52] sm:$0xff]
    %v6398 = vld [vmem:[%s223 + $0x62] sm:$0xff]
    %v6399 = vld [vmem:[%s223 + $0x6a] sm:$0xff]
    %v6400 = vld [vmem:[%s223 + $0x7a] sm:$0xff]
    %v6401 = vld [vmem:[%s223 + $0x82] sm:$0xff]
    %v6402 = vld [vmem:[%s223 + $0x92] sm:$0xff]
    %v6403 = vld [vmem:[%s223 + $0x9a] sm:$0xff]
    %v6404 = vld [vmem:[%s223 + $0xaa] sm:$0xff]
    %v6405 = vld [vmem:[%s223 + $0xb2] sm:$0xff]
    %v6406 = vld [vmem:[%s223 + $0xc2] sm:$0xff]
    %v6407 = vld [vmem:[%s223 + $0xca] sm:$0xff]
    %v6408 = vld [vmem:[%s223 + $0xda] sm:$0xff]
    %v6409 = vld [vmem:[%s223 + $0xe2] sm:$0xff]
    %v6410 = vld [vmem:[%s223 + $0xf2] sm:$0xff]
    %v6411 = vld [vmem:[%s223 + $0xfa] sm:$0xff]
    %v6412 = vld [vmem:[%s223 + $0x10a] sm:$0xff]
    %v6413 = vld [vmem:[%s223 + $0x112] sm:$0xff]
    %v6414 = vld [vmem:[%s223 + $0x122] sm:$0xff]
    %v6415 = vld [vmem:[%s223 + $0x12a] sm:$0xff]
    %v6416 = vld [vmem:[%s223 + $0x13a] sm:$0xff]
    %v6417 = vld [vmem:[%s223 + $0x142] sm:$0xff]
    %v6418 = vld [vmem:[%s223 + $0x152] sm:$0xff]
    %v6419 = vld [vmem:[%s223 + $0x15a] sm:$0xff]
    %v6420 = vld [vmem:[%s223 + $0x16a] sm:$0xff]
    %v6421 = vld [vmem:[%s223 + $0x172] sm:$0xff]
    %v6422 = vld [vmem:[%s223 + $0x1b2] sm:$0xff]
    %v6423 = vld [vmem:[%s223 + $0x1ba] sm:$0xff]
    %v6424 = vld [vmem:[%s223 + $0x1ca] sm:$0xff]
    %v6425 = vld [vmem:[%s223 + $0x1d2] sm:$0xff]
    %v6426 = vld [vmem:[%s223 + $0x1e2] sm:$0xff]
    %v6427 = vld [vmem:[%s223 + $0x1ea] sm:$0xff]
    %v6428 = vld [vmem:[%s223 + $0x1fa] sm:$0xff]
    %v6429 = vld [vmem:[%s223 + $0x202] sm:$0xff]
    %v6430 = vld [vmem:[%s223 + $0x212] sm:$0xff]
    %v6431 = vld [vmem:[%s223 + $0x21a] sm:$0xff]
    %v6432 = vld [vmem:[%s223 + $0x22a] sm:$0xff]
    %v6433 = vld [vmem:[%s223 + $0x232] sm:$0xff]
    %v6434 = vld [vmem:[%s223 + $0x242] sm:$0xff]
    %v6435 = vld [vmem:[%s223 + $0x24a] sm:$0xff]
    %v6436 = vld [vmem:[%s223 + $0x25a] sm:$0xff]
    %v6437 = vld [vmem:[%s223 + $0x262] sm:$0xff]
    %v6438 = vld [vmem:[%s223 + $0x272] sm:$0xff]
    %v6439 = vld [vmem:[%s223 + $0x27a] sm:$0xff]
    %v6440 = vld [vmem:[%s223 + $0x28a] sm:$0xff]
    %v6441 = vld [vmem:[%s223 + $0x292] sm:$0xff]
    %v6442 = vld [vmem:[%s223 + $0x2a2] sm:$0xff]
    %v6443 = vld [vmem:[%s223 + $0x2aa] sm:$0xff]
    %v6444 = vld [vmem:[%s223 + $0x2ba] sm:$0xff]
    %v6445 = vld [vmem:[%s223 + $0x2c2] sm:$0xff]
    %v6446 = vld [vmem:[%s223 + $0x2d2] sm:$0xff]
    %v6447 = vld [vmem:[%s223 + $0x2da] sm:$0xff]
    %v6448 = vld [vmem:[%s223 + $0x2ea] sm:$0xff]
    %v6449 = vld [vmem:[%s223 + $0x2f2] sm:$0xff]
    %v6450 = vld [vmem:[%s223 + $0x302] sm:$0xff]
    %v6451 = vld [vmem:[%s223 + $0x30a] sm:$0xff]
    %v6452 = vld [vmem:[%s223 + $0x31a] sm:$0xff]
    %v6453 = vld [vmem:[%s223 + $0x322] sm:$0xff]
    %v6454 = vpack.c.bf16 %v6390, %v6390
    %v6455 = vpack.c.bf16 %v6391, %v6391
    %v6456 = vpack.c.bf16 %v6392, %v6392
    %v6457 = vpack.c.bf16 %v6393, %v6393
    %v6458 = vpack.c.bf16 %v6394, %v6394
    %v6459 = vpack.c.bf16 %v6395, %v6395
    %v6460 = vpack.c.bf16 %v6396, %v6396
    %v6461 = vpack.c.bf16 %v6397, %v6397
    %v6462 = vpack.c.bf16 %v6398, %v6398
    %v6463 = vpack.c.bf16 %v6399, %v6399
    %v6464 = vpack.c.bf16 %v6400, %v6400
    %v6465 = vpack.c.bf16 %v6401, %v6401
    %v6466 = vpack.c.bf16 %v6402, %v6402
    %v6467 = vpack.c.bf16 %v6403, %v6403
    %v6468 = vpack.c.bf16 %v6404, %v6404
    %v6469 = vpack.c.bf16 %v6405, %v6405
    %v6470 = vpack.c.bf16 %v6406, %v6406
    %v6471 = vpack.c.bf16 %v6407, %v6407
    %v6472 = vpack.c.bf16 %v6408, %v6408
    %v6473 = vpack.c.bf16 %v6409, %v6409
    %v6474 = vpack.c.bf16 %v6410, %v6410
    %v6475 = vpack.c.bf16 %v6411, %v6411
    %v6476 = vpack.c.bf16 %v6412, %v6412
    %v6477 = vpack.c.bf16 %v6413, %v6413
    %v6478 = vpack.c.bf16 %v6414, %v6414
    %v6479 = vpack.c.bf16 %v6415, %v6415
    %v6480 = vpack.c.bf16 %v6416, %v6416
    %v6481 = vpack.c.bf16 %v6417, %v6417
    %v6482 = vpack.c.bf16 %v6418, %v6418
    %v6483 = vpack.c.bf16 %v6419, %v6419
    %v6484 = vpack.c.bf16 %v6420, %v6420
    %v6485 = vpack.c.bf16 %v6421, %v6421
    %v6486 = vpack.c.bf16 %v6422, %v6422
    %v6487 = vpack.c.bf16 %v6423, %v6423
    %v6488 = vpack.c.bf16 %v6424, %v6424
    %v6489 = vpack.c.bf16 %v6425, %v6425
    %v6490 = vpack.c.bf16 %v6426, %v6426
    %v6491 = vpack.c.bf16 %v6427, %v6427
    %v6492 = vpack.c.bf16 %v6428, %v6428
    %v6493 = vpack.c.bf16 %v6429, %v6429
    %v6494 = vpack.c.bf16 %v6430, %v6430
    %v6495 = vpack.c.bf16 %v6431, %v6431
    %v6496 = vpack.c.bf16 %v6432, %v6432
    %v6497 = vpack.c.bf16 %v6433, %v6433
    %v6498 = vpack.c.bf16 %v6434, %v6434
    %v6499 = vpack.c.bf16 %v6435, %v6435
    %v6500 = vpack.c.bf16 %v6436, %v6436
    %v6501 = vpack.c.bf16 %v6437, %v6437
    %v6502 = vpack.c.bf16 %v6438, %v6438
    %v6503 = vpack.c.bf16 %v6439, %v6439
    %v6504 = vpack.c.bf16 %v6440, %v6440
    %v6505 = vpack.c.bf16 %v6441, %v6441
    %v6506 = vpack.c.bf16 %v6442, %v6442
    %v6507 = vpack.c.bf16 %v6443, %v6443
    %v6508 = vpack.c.bf16 %v6444, %v6444
    %v6509 = vpack.c.bf16 %v6445, %v6445
    %v6510 = vpack.c.bf16 %v6446, %v6446
    %v6511 = vpack.c.bf16 %v6447, %v6447
    %v6512 = vpack.c.bf16 %v6448, %v6448
    %v6513 = vpack.c.bf16 %v6449, %v6449
    %v6514 = vpack.c.bf16 %v6450, %v6450
    %v6515 = vpack.c.bf16 %v6451, %v6451
    %v6516 = vpack.c.bf16 %v6452, %v6452
    %v6517 = vpack.c.bf16 %v6453, %v6453
    %v6518 = vld [vmem:[%s1056] sm:$0xff]
    %v6519 = vld [vmem:[%s1056 + $0x8] sm:$0xff]
    %v6520 = vld [vmem:[%s1056 + $0x18] sm:$0xff]
    %v6521 = vld [vmem:[%s1056 + $0x20] sm:$0xff]
    %v6522 = vld [vmem:[%s1056 + $0x30] sm:$0xff]
    %v6523 = vld [vmem:[%s1056 + $0x38] sm:$0xff]
    %v6524 = vld [vmem:[%s1056 + $0x48] sm:$0xff]
    %v6525 = vld [vmem:[%s1056 + $0x50] sm:$0xff]
    %v6526 = vld [vmem:[%s1056 + $0x60] sm:$0xff]
    %v6527 = vld [vmem:[%s1056 + $0x68] sm:$0xff]
    %v6528 = vld [vmem:[%s1056 + $0x78] sm:$0xff]
    %v6529 = vld [vmem:[%s1056 + $0x80] sm:$0xff]
    %v6530 = vld [vmem:[%s1056 + $0x90] sm:$0xff]
    %v6531 = vld [vmem:[%s1056 + $0x98] sm:$0xff]
    %v6532 = vld [vmem:[%s1056 + $0xa8] sm:$0xff]
    %v6533 = vld [vmem:[%s1056 + $0xb0] sm:$0xff]
    %v6534 = vld [vmem:[%s1056 + $0xc0] sm:$0xff]
    %v6535 = vld [vmem:[%s1056 + $0xc8] sm:$0xff]
    %v6536 = vld [vmem:[%s1056 + $0xd8] sm:$0xff]
    %v6537 = vld [vmem:[%s1056 + $0xe0] sm:$0xff]
    %v6538 = vld [vmem:[%s1056 + $0xf0] sm:$0xff]
    %v6539 = vld [vmem:[%s1056 + $0xf8] sm:$0xff]
    %v6540 = vld [vmem:[%s1056 + $0x108] sm:$0xff]
    %v6541 = vld [vmem:[%s1056 + $0x110] sm:$0xff]
    %v6542 = vld [vmem:[%s1056 + $0x120] sm:$0xff]
    %v6543 = vld [vmem:[%s1056 + $0x128] sm:$0xff]
    %v6544 = vld [vmem:[%s1056 + $0x138] sm:$0xff]
    %v6545 = vld [vmem:[%s1056 + $0x140] sm:$0xff]
    %v6546 = vld [vmem:[%s1056 + $0x150] sm:$0xff]
    %v6547 = vld [vmem:[%s1056 + $0x158] sm:$0xff]
    %v6548 = vld [vmem:[%s1056 + $0x168] sm:$0xff]
    %v6549 = vld [vmem:[%s1056 + $0x170] sm:$0xff]
    %v6550 = vld [vmem:[%s1056 + $0x1b0] sm:$0xff]
    %v6551 = vld [vmem:[%s1056 + $0x1b8] sm:$0xff]
    %v6552 = vld [vmem:[%s1056 + $0x1c8] sm:$0xff]
    %v6553 = vld [vmem:[%s1056 + $0x1d0] sm:$0xff]
    %v6554 = vld [vmem:[%s1056 + $0x1e0] sm:$0xff]
    %v6555 = vld [vmem:[%s1056 + $0x1e8] sm:$0xff]
    %v6556 = vld [vmem:[%s1056 + $0x1f8] sm:$0xff]
    %v6557 = vld [vmem:[%s1056 + $0x200] sm:$0xff]
    %v6558 = vld [vmem:[%s1056 + $0x210] sm:$0xff]
    %v6559 = vld [vmem:[%s1056 + $0x218] sm:$0xff]
    %v6560 = vld [vmem:[%s1056 + $0x228] sm:$0xff]
    %v6561 = vld [vmem:[%s1056 + $0x230] sm:$0xff]
    %v6562 = vld [vmem:[%s1056 + $0x240] sm:$0xff]
    %v6563 = vld [vmem:[%s1056 + $0x248] sm:$0xff]
    %v6564 = vld [vmem:[%s1056 + $0x258] sm:$0xff]
    %v6565 = vld [vmem:[%s1056 + $0x260] sm:$0xff]
    %v6566 = vld [vmem:[%s1056 + $0x270] sm:$0xff]
    %v6567 = vld [vmem:[%s1056 + $0x278] sm:$0xff]
    %v6568 = vld [vmem:[%s1056 + $0x288] sm:$0xff]
    %v6569 = vld [vmem:[%s1056 + $0x290] sm:$0xff]
    %v6570 = vld [vmem:[%s1056 + $0x2a0] sm:$0xff]
    %v6571 = vld [vmem:[%s1056 + $0x2a8] sm:$0xff]
    %v6572 = vld [vmem:[%s1056 + $0x2b8] sm:$0xff]
    %v6573 = vld [vmem:[%s1056 + $0x2c0] sm:$0xff]
    %v6574 = vld [vmem:[%s1056 + $0x2d0] sm:$0xff]
    %v6575 = vld [vmem:[%s1056 + $0x2d8] sm:$0xff]
    %v6576 = vld [vmem:[%s1056 + $0x2e8] sm:$0xff]
    %v6577 = vld [vmem:[%s1056 + $0x2f0] sm:$0xff]
    %v6578 = vld [vmem:[%s1056 + $0x300] sm:$0xff]
    %v6579 = vld [vmem:[%s1056 + $0x308] sm:$0xff]
    %v6580 = vld [vmem:[%s1056 + $0x318] sm:$0xff]
    %v6581 = vld [vmem:[%s1056 + $0x320] sm:$0xff]
    %v6582 = vpack.c.bf16 %v6518, %v6518
    %v6583 = vpack.c.bf16 %v6519, %v6519
    %v6584 = vpack.c.bf16 %v6520, %v6520
    %v6585 = vpack.c.bf16 %v6521, %v6521
    %v6586 = vpack.c.bf16 %v6522, %v6522
    %v6587 = vpack.c.bf16 %v6523, %v6523
    %v6588 = vpack.c.bf16 %v6524, %v6524
    %v6589 = vpack.c.bf16 %v6525, %v6525
    %v6590 = vpack.c.bf16 %v6526, %v6526
    %v6591 = vpack.c.bf16 %v6527, %v6527
    %v6592 = vpack.c.bf16 %v6528, %v6528
    %v6593 = vpack.c.bf16 %v6529, %v6529
    %v6594 = vpack.c.bf16 %v6530, %v6530
    %v6595 = vpack.c.bf16 %v6531, %v6531
    %v6596 = vpack.c.bf16 %v6532, %v6532
    %v6597 = vpack.c.bf16 %v6533, %v6533
    %v6598 = vpack.c.bf16 %v6534, %v6534
    %v6599 = vpack.c.bf16 %v6535, %v6535
    %v6600 = vpack.c.bf16 %v6536, %v6536
    %v6601 = vpack.c.bf16 %v6537, %v6537
    %v6602 = vpack.c.bf16 %v6538, %v6538
    %v6603 = vpack.c.bf16 %v6539, %v6539
    %v6604 = vpack.c.bf16 %v6540, %v6540
    %v6605 = vpack.c.bf16 %v6541, %v6541
    %v6606 = vpack.c.bf16 %v6542, %v6542
    %v6607 = vpack.c.bf16 %v6543, %v6543
    %v6608 = vpack.c.bf16 %v6544, %v6544
    %v6609 = vpack.c.bf16 %v6545, %v6545
    %v6610 = vpack.c.bf16 %v6546, %v6546
    %v6611 = vpack.c.bf16 %v6547, %v6547
    %v6612 = vpack.c.bf16 %v6548, %v6548
    %v6613 = vpack.c.bf16 %v6549, %v6549
    %v6614 = vpack.c.bf16 %v6550, %v6550
    %v6615 = vpack.c.bf16 %v6551, %v6551
    %v6616 = vpack.c.bf16 %v6552, %v6552
    %v6617 = vpack.c.bf16 %v6553, %v6553
    %v6618 = vpack.c.bf16 %v6554, %v6554
    %v6619 = vpack.c.bf16 %v6555, %v6555
    %v6620 = vpack.c.bf16 %v6556, %v6556
    %v6621 = vpack.c.bf16 %v6557, %v6557
    %v6622 = vpack.c.bf16 %v6558, %v6558
    %v6623 = vpack.c.bf16 %v6559, %v6559
    %v6624 = vpack.c.bf16 %v6560, %v6560
    %v6625 = vpack.c.bf16 %v6561, %v6561
    %v6626 = vpack.c.bf16 %v6562, %v6562
    %v6627 = vpack.c.bf16 %v6563, %v6563
    %v6628 = vpack.c.bf16 %v6564, %v6564
    %v6629 = vpack.c.bf16 %v6565, %v6565
    %v6630 = vpack.c.bf16 %v6566, %v6566
    %v6631 = vpack.c.bf16 %v6567, %v6567
    %v6632 = vpack.c.bf16 %v6568, %v6568
    %v6633 = vpack.c.bf16 %v6569, %v6569
    %v6634 = vpack.c.bf16 %v6570, %v6570
    %v6635 = vpack.c.bf16 %v6571, %v6571
    %v6636 = vpack.c.bf16 %v6572, %v6572
    %v6637 = vpack.c.bf16 %v6573, %v6573
    %v6638 = vpack.c.bf16 %v6574, %v6574
    %v6639 = vpack.c.bf16 %v6575, %v6575
    %v6640 = vpack.c.bf16 %v6576, %v6576
    %v6641 = vpack.c.bf16 %v6577, %v6577
    %v6642 = vpack.c.bf16 %v6578, %v6578
    %v6643 = vpack.c.bf16 %v6579, %v6579
    %v6644 = vpack.c.bf16 %v6580, %v6580
    %v6645 = vpack.c.bf16 %v6581, %v6581
    %v6646 = vld [vmem:[%s1056 + $0x1] sm:$0xff]
    %v6647 = vld [vmem:[%s1056 + $0x9] sm:$0xff]
    %v6648 = vld [vmem:[%s1056 + $0x19] sm:$0xff]
    %v6649 = vld [vmem:[%s1056 + $0x21] sm:$0xff]
    %v6650 = vld [vmem:[%s1056 + $0x31] sm:$0xff]
    %v6651 = vld [vmem:[%s1056 + $0x39] sm:$0xff]
    %v6652 = vld [vmem:[%s1056 + $0x49] sm:$0xff]
    %v6653 = vld [vmem:[%s1056 + $0x51] sm:$0xff]
    %v6654 = vld [vmem:[%s1056 + $0x61] sm:$0xff]
    %v6655 = vld [vmem:[%s1056 + $0x69] sm:$0xff]
    %v6656 = vld [vmem:[%s1056 + $0x79] sm:$0xff]
    %v6657 = vld [vmem:[%s1056 + $0x81] sm:$0xff]
    %v6658 = vld [vmem:[%s1056 + $0x91] sm:$0xff]
    %v6659 = vld [vmem:[%s1056 + $0x99] sm:$0xff]
    %v6660 = vld [vmem:[%s1056 + $0xa9] sm:$0xff]
    %v6661 = vld [vmem:[%s1056 + $0xb1] sm:$0xff]
    %v6662 = vld [vmem:[%s1056 + $0xc1] sm:$0xff]
    %v6663 = vld [vmem:[%s1056 + $0xc9] sm:$0xff]
    %v6664 = vld [vmem:[%s1056 + $0xd9] sm:$0xff]
    %v6665 = vld [vmem:[%s1056 + $0xe1] sm:$0xff]
    %v6666 = vld [vmem:[%s1056 + $0xf1] sm:$0xff]
    %v6667 = vld [vmem:[%s1056 + $0xf9] sm:$0xff]
    %v6668 = vld [vmem:[%s1056 + $0x109] sm:$0xff]
    %v6669 = vld [vmem:[%s1056 + $0x111] sm:$0xff]
    %v6670 = vld [vmem:[%s1056 + $0x121] sm:$0xff]
    %v6671 = vld [vmem:[%s1056 + $0x129] sm:$0xff]
    %v6672 = vld [vmem:[%s1056 + $0x139] sm:$0xff]
    %v6673 = vld [vmem:[%s1056 + $0x141] sm:$0xff]
    %v6674 = vld [vmem:[%s1056 + $0x151] sm:$0xff]
    %v6675 = vld [vmem:[%s1056 + $0x159] sm:$0xff]
    %v6676 = vld [vmem:[%s1056 + $0x169] sm:$0xff]
    %v6677 = vld [vmem:[%s1056 + $0x171] sm:$0xff]
    %v6678 = vld [vmem:[%s1056 + $0x1b1] sm:$0xff]
    %v6679 = vld [vmem:[%s1056 + $0x1b9] sm:$0xff]
    %v6680 = vld [vmem:[%s1056 + $0x1c9] sm:$0xff]
    %v6681 = vld [vmem:[%s1056 + $0x1d1] sm:$0xff]
    %v6682 = vld [vmem:[%s1056 + $0x1e1] sm:$0xff]
    %v6683 = vld [vmem:[%s1056 + $0x1e9] sm:$0xff]
    %v6684 = vld [vmem:[%s1056 + $0x1f9] sm:$0xff]
    %v6685 = vld [vmem:[%s1056 + $0x201] sm:$0xff]
    %v6686 = vld [vmem:[%s1056 + $0x211] sm:$0xff]
    %v6687 = vld [vmem:[%s1056 + $0x219] sm:$0xff]
    %v6688 = vld [vmem:[%s1056 + $0x229] sm:$0xff]
    %v6689 = vld [vmem:[%s1056 + $0x231] sm:$0xff]
    %v6690 = vld [vmem:[%s1056 + $0x241] sm:$0xff]
    %v6691 = vld [vmem:[%s1056 + $0x249] sm:$0xff]
    %v6692 = vld [vmem:[%s1056 + $0x259] sm:$0xff]
    %v6693 = vld [vmem:[%s1056 + $0x261] sm:$0xff]
    %v6694 = vld [vmem:[%s1056 + $0x271] sm:$0xff]
    %v6695 = vld [vmem:[%s1056 + $0x279] sm:$0xff]
    %v6696 = vld [vmem:[%s1056 + $0x289] sm:$0xff]
    %v6697 = vld [vmem:[%s1056 + $0x291] sm:$0xff]
    %v6698 = vld [vmem:[%s1056 + $0x2a1] sm:$0xff]
    %v6699 = vld [vmem:[%s1056 + $0x2a9] sm:$0xff]
    %v6700 = vld [vmem:[%s1056 + $0x2b9] sm:$0xff]
    %v6701 = vld [vmem:[%s1056 + $0x2c1] sm:$0xff]
    %v6702 = vld [vmem:[%s1056 + $0x2d1] sm:$0xff]
    %v6703 = vld [vmem:[%s1056 + $0x2d9] sm:$0xff]
    %v6704 = vld [vmem:[%s1056 + $0x2e9] sm:$0xff]
    %v6705 = vld [vmem:[%s1056 + $0x2f1] sm:$0xff]
    %v6706 = vld [vmem:[%s1056 + $0x301] sm:$0xff]
    %v6707 = vld [vmem:[%s1056 + $0x309] sm:$0xff]
    %v6708 = vld [vmem:[%s1056 + $0x319] sm:$0xff]
    %v6709 = vld [vmem:[%s1056 + $0x321] sm:$0xff]
    %v6710 = vpack.c.bf16 %v6646, %v6646
    %v6711 = vpack.c.bf16 %v6647, %v6647
    %v6712 = vpack.c.bf16 %v6648, %v6648
    %v6713 = vpack.c.bf16 %v6649, %v6649
    %v6714 = vpack.c.bf16 %v6650, %v6650
    %v6715 = vpack.c.bf16 %v6651, %v6651
    %v6716 = vpack.c.bf16 %v6652, %v6652
    %v6717 = vpack.c.bf16 %v6653, %v6653
    %v6718 = vpack.c.bf16 %v6654, %v6654
    %v6719 = vpack.c.bf16 %v6655, %v6655
    %v6720 = vpack.c.bf16 %v6656, %v6656
    %v6721 = vpack.c.bf16 %v6657, %v6657
    %v6722 = vpack.c.bf16 %v6658, %v6658
    %v6723 = vpack.c.bf16 %v6659, %v6659
    %v6724 = vpack.c.bf16 %v6660, %v6660
    %v6725 = vpack.c.bf16 %v6661, %v6661
    %v6726 = vpack.c.bf16 %v6662, %v6662
    %v6727 = vpack.c.bf16 %v6663, %v6663
    %v6728 = vpack.c.bf16 %v6664, %v6664
    %v6729 = vpack.c.bf16 %v6665, %v6665
    %v6730 = vpack.c.bf16 %v6666, %v6666
    %v6731 = vpack.c.bf16 %v6667, %v6667
    %v6732 = vpack.c.bf16 %v6668, %v6668
    %v6733 = vpack.c.bf16 %v6669, %v6669
    %v6734 = vpack.c.bf16 %v6670, %v6670
    %v6735 = vpack.c.bf16 %v6671, %v6671
    %v6736 = vpack.c.bf16 %v6672, %v6672
    %v6737 = vpack.c.bf16 %v6673, %v6673
    %v6738 = vpack.c.bf16 %v6674, %v6674
    %v6739 = vpack.c.bf16 %v6675, %v6675
    %v6740 = vpack.c.bf16 %v6676, %v6676
    %v6741 = vpack.c.bf16 %v6677, %v6677
    %v6742 = vpack.c.bf16 %v6678, %v6678
    %v6743 = vpack.c.bf16 %v6679, %v6679
    %v6744 = vpack.c.bf16 %v6680, %v6680
    %v6745 = vpack.c.bf16 %v6681, %v6681
    %v6746 = vpack.c.bf16 %v6682, %v6682
    %v6747 = vpack.c.bf16 %v6683, %v6683
    %v6748 = vpack.c.bf16 %v6684, %v6684
    %v6749 = vpack.c.bf16 %v6685, %v6685
    %v6750 = vpack.c.bf16 %v6686, %v6686
    %v6751 = vpack.c.bf16 %v6687, %v6687
    %v6752 = vpack.c.bf16 %v6688, %v6688
    %v6753 = vpack.c.bf16 %v6689, %v6689
    %v6754 = vpack.c.bf16 %v6690, %v6690
    %v6755 = vpack.c.bf16 %v6691, %v6691
    %v6756 = vpack.c.bf16 %v6692, %v6692
    %v6757 = vpack.c.bf16 %v6693, %v6693
    %v6758 = vpack.c.bf16 %v6694, %v6694
    %v6759 = vpack.c.bf16 %v6695, %v6695
    %v6760 = vpack.c.bf16 %v6696, %v6696
    %v6761 = vpack.c.bf16 %v6697, %v6697
    %v6762 = vpack.c.bf16 %v6698, %v6698
    %v6763 = vpack.c.bf16 %v6699, %v6699
    %v6764 = vpack.c.bf16 %v6700, %v6700
    %v6765 = vpack.c.bf16 %v6701, %v6701
    %v6766 = vpack.c.bf16 %v6702, %v6702
    %v6767 = vpack.c.bf16 %v6703, %v6703
    %v6768 = vpack.c.bf16 %v6704, %v6704
    %v6769 = vpack.c.bf16 %v6705, %v6705
    %v6770 = vpack.c.bf16 %v6706, %v6706
    %v6771 = vpack.c.bf16 %v6707, %v6707
    %v6772 = vpack.c.bf16 %v6708, %v6708
    %v6773 = vpack.c.bf16 %v6709, %v6709
    %v6774 = vld [vmem:[%s1056 + $0x2] sm:$0xff]
    %v6775 = vld [vmem:[%s1056 + $0xa] sm:$0xff]
    %v6776 = vld [vmem:[%s1056 + $0x1a] sm:$0xff]
    %v6777 = vld [vmem:[%s1056 + $0x22] sm:$0xff]
    %v6778 = vld [vmem:[%s1056 + $0x32] sm:$0xff]
    %v6779 = vld [vmem:[%s1056 + $0x3a] sm:$0xff]
    %v6780 = vld [vmem:[%s1056 + $0x4a] sm:$0xff]
    %v6781 = vld [vmem:[%s1056 + $0x52] sm:$0xff]
    %v6782 = vld [vmem:[%s1056 + $0x62] sm:$0xff]
    %v6783 = vld [vmem:[%s1056 + $0x6a] sm:$0xff]
    %v6784 = vld [vmem:[%s1056 + $0x7a] sm:$0xff]
    %v6785 = vld [vmem:[%s1056 + $0x82] sm:$0xff]
    %v6786 = vld [vmem:[%s1056 + $0x92] sm:$0xff]
    %v6787 = vld [vmem:[%s1056 + $0x9a] sm:$0xff]
    %v6788 = vld [vmem:[%s1056 + $0xaa] sm:$0xff]
    %v6789 = vld [vmem:[%s1056 + $0xb2] sm:$0xff]
    %v6790 = vld [vmem:[%s1056 + $0xc2] sm:$0xff]
    %v6791 = vld [vmem:[%s1056 + $0xca] sm:$0xff]
    %v6792 = vld [vmem:[%s1056 + $0xda] sm:$0xff]
    %v6793 = vld [vmem:[%s1056 + $0xe2] sm:$0xff]
    %v6794 = vld [vmem:[%s1056 + $0xf2] sm:$0xff]
    %v6795 = vld [vmem:[%s1056 + $0xfa] sm:$0xff]
    %v6796 = vld [vmem:[%s1056 + $0x10a] sm:$0xff]
    %v6797 = vld [vmem:[%s1056 + $0x112] sm:$0xff]
    %v6798 = vld [vmem:[%s1056 + $0x122] sm:$0xff]
    %v6799 = vld [vmem:[%s1056 + $0x12a] sm:$0xff]
    %v6800 = vld [vmem:[%s1056 + $0x13a] sm:$0xff]
    %v6801 = vld [vmem:[%s1056 + $0x142] sm:$0xff]
    %v6802 = vld [vmem:[%s1056 + $0x152] sm:$0xff]
    %v6803 = vld [vmem:[%s1056 + $0x15a] sm:$0xff]
    %v6804 = vld [vmem:[%s1056 + $0x16a] sm:$0xff]
    %v6805 = vld [vmem:[%s1056 + $0x172] sm:$0xff]
    %v6806 = vld [vmem:[%s1056 + $0x1b2] sm:$0xff]
    %v6807 = vld [vmem:[%s1056 + $0x1ba] sm:$0xff]
    %v6808 = vld [vmem:[%s1056 + $0x1ca] sm:$0xff]
    %v6809 = vld [vmem:[%s1056 + $0x1d2] sm:$0xff]
    %v6810 = vld [vmem:[%s1056 + $0x1e2] sm:$0xff]
    %v6811 = vld [vmem:[%s1056 + $0x1ea] sm:$0xff]
    %v6812 = vld [vmem:[%s1056 + $0x1fa] sm:$0xff]
    %v6813 = vld [vmem:[%s1056 + $0x202] sm:$0xff]
    %v6814 = vld [vmem:[%s1056 + $0x212] sm:$0xff]
    %v6815 = vld [vmem:[%s1056 + $0x21a] sm:$0xff]
    %v6816 = vld [vmem:[%s1056 + $0x22a] sm:$0xff]
    %v6817 = vld [vmem:[%s1056 + $0x232] sm:$0xff]
    %v6818 = vld [vmem:[%s1056 + $0x242] sm:$0xff]
    %v6819 = vld [vmem:[%s1056 + $0x24a] sm:$0xff]
    %v6820 = vld [vmem:[%s1056 + $0x25a] sm:$0xff]
    %v6821 = vld [vmem:[%s1056 + $0x262] sm:$0xff]
    %v6822 = vld [vmem:[%s1056 + $0x272] sm:$0xff]
    %v6823 = vld [vmem:[%s1056 + $0x27a] sm:$0xff]
    %v6824 = vld [vmem:[%s1056 + $0x28a] sm:$0xff]
    %v6825 = vld [vmem:[%s1056 + $0x292] sm:$0xff]
    %v6826 = vld [vmem:[%s1056 + $0x2a2] sm:$0xff]
    %v6827 = vld [vmem:[%s1056 + $0x2aa] sm:$0xff]
    %v6828 = vld [vmem:[%s1056 + $0x2ba] sm:$0xff]
    %v6829 = vld [vmem:[%s1056 + $0x2c2] sm:$0xff]
    %v6830 = vld [vmem:[%s1056 + $0x2d2] sm:$0xff]
    %v6831 = vld [vmem:[%s1056 + $0x2da] sm:$0xff]
    %v6832 = vld [vmem:[%s1056 + $0x2ea] sm:$0xff]
    %v6833 = vld [vmem:[%s1056 + $0x2f2] sm:$0xff]
    %v6834 = vld [vmem:[%s1056 + $0x302] sm:$0xff]
    %v6835 = vld [vmem:[%s1056 + $0x30a] sm:$0xff]
    %v6836 = vld [vmem:[%s1056 + $0x31a] sm:$0xff]
    %v6837 = vld [vmem:[%s1056 + $0x322] sm:$0xff]
    %v6838 = vpack.c.bf16 %v6774, %v6774
    %v6839 = vpack.c.bf16 %v6775, %v6775
    %v6840 = vpack.c.bf16 %v6776, %v6776
    %v6841 = vpack.c.bf16 %v6777, %v6777
    %v6842 = vpack.c.bf16 %v6778, %v6778
    %v6843 = vpack.c.bf16 %v6779, %v6779
    %v6844 = vpack.c.bf16 %v6780, %v6780
    %v6845 = vpack.c.bf16 %v6781, %v6781
    %v6846 = vpack.c.bf16 %v6782, %v6782
    %v6847 = vpack.c.bf16 %v6783, %v6783
    %v6848 = vpack.c.bf16 %v6784, %v6784
    %v6849 = vpack.c.bf16 %v6785, %v6785
    %v6850 = vpack.c.bf16 %v6786, %v6786
    %v6851 = vpack.c.bf16 %v6787, %v6787
    %v6852 = vpack.c.bf16 %v6788, %v6788
    %v6853 = vpack.c.bf16 %v6789, %v6789
    %v6854 = vpack.c.bf16 %v6790, %v6790
    %v6855 = vpack.c.bf16 %v6791, %v6791
    %v6856 = vpack.c.bf16 %v6792, %v6792
    %v6857 = vpack.c.bf16 %v6793, %v6793
    %v6858 = vpack.c.bf16 %v6794, %v6794
    %v6859 = vpack.c.bf16 %v6795, %v6795
    %v6860 = vpack.c.bf16 %v6796, %v6796
    %v6861 = vpack.c.bf16 %v6797, %v6797
    %v6862 = vpack.c.bf16 %v6798, %v6798
    %v6863 = vpack.c.bf16 %v6799, %v6799
    %v6864 = vpack.c.bf16 %v6800, %v6800
    %v6865 = vpack.c.bf16 %v6801, %v6801
    %v6866 = vpack.c.bf16 %v6802, %v6802
    %v6867 = vpack.c.bf16 %v6803, %v6803
    %v6868 = vpack.c.bf16 %v6804, %v6804
    %v6869 = vpack.c.bf16 %v6805, %v6805
    %v6870 = vpack.c.bf16 %v6806, %v6806
    %v6871 = vpack.c.bf16 %v6807, %v6807
    %v6872 = vpack.c.bf16 %v6808, %v6808
    %v6873 = vpack.c.bf16 %v6809, %v6809
    %v6874 = vpack.c.bf16 %v6810, %v6810
    %v6875 = vpack.c.bf16 %v6811, %v6811
    %v6876 = vpack.c.bf16 %v6812, %v6812
    %v6877 = vpack.c.bf16 %v6813, %v6813
    %v6878 = vpack.c.bf16 %v6814, %v6814
    %v6879 = vpack.c.bf16 %v6815, %v6815
    %v6880 = vpack.c.bf16 %v6816, %v6816
    %v6881 = vpack.c.bf16 %v6817, %v6817
    %v6882 = vpack.c.bf16 %v6818, %v6818
    %v6883 = vpack.c.bf16 %v6819, %v6819
    %v6884 = vpack.c.bf16 %v6820, %v6820
    %v6885 = vpack.c.bf16 %v6821, %v6821
    %v6886 = vpack.c.bf16 %v6822, %v6822
    %v6887 = vpack.c.bf16 %v6823, %v6823
    %v6888 = vpack.c.bf16 %v6824, %v6824
    %v6889 = vpack.c.bf16 %v6825, %v6825
    %v6890 = vpack.c.bf16 %v6826, %v6826
    %v6891 = vpack.c.bf16 %v6827, %v6827
    %v6892 = vpack.c.bf16 %v6828, %v6828
    %v6893 = vpack.c.bf16 %v6829, %v6829
    %v6894 = vpack.c.bf16 %v6830, %v6830
    %v6895 = vpack.c.bf16 %v6831, %v6831
    %v6896 = vpack.c.bf16 %v6832, %v6832
    %v6897 = vpack.c.bf16 %v6833, %v6833
    %v6898 = vpack.c.bf16 %v6834, %v6834
    %v6899 = vpack.c.bf16 %v6835, %v6835
    %v6900 = vpack.c.bf16 %v6836, %v6836
    %v6901 = vpack.c.bf16 %v6837, %v6837
    %v6966 = vunpack.c.l.b16 %v5814
    %v6967 = vunpack.c.l.b16 %v5815
    %v6968 = vunpack.c.l.b16 %v5816
    %v6969 = vunpack.c.l.b16 %v5817
    %v6970 = vunpack.c.l.b16 %v5818
    %v6971 = vunpack.c.l.b16 %v5819
    %v6972 = vunpack.c.l.b16 %v5820
    %v6973 = vunpack.c.l.b16 %v5821
    %v6974 = vunpack.c.l.b16 %v5822
    %v6975 = vunpack.c.l.b16 %v5823
    %v6976 = vunpack.c.l.b16 %v5824
    %v6977 = vunpack.c.l.b16 %v5825
    %v6978 = vunpack.c.l.b16 %v5826
    %v6979 = vunpack.c.l.b16 %v5827
    %v6980 = vunpack.c.l.b16 %v5828
    %v6981 = vunpack.c.l.b16 %v5829
    %v6982 = vunpack.c.l.b16 %v5830
    %v6983 = vunpack.c.l.b16 %v5831
    %v6984 = vunpack.c.l.b16 %v5832
    %v6985 = vunpack.c.l.b16 %v5833
    %v6986 = vunpack.c.l.b16 %v5834
    %v6987 = vunpack.c.l.b16 %v5835
    %v6988 = vunpack.c.l.b16 %v5836
    %v6989 = vunpack.c.l.b16 %v5837
    %v6990 = vunpack.c.l.b16 %v5838
    %v6991 = vunpack.c.l.b16 %v5839
    %v6992 = vunpack.c.l.b16 %v5840
    %v6993 = vunpack.c.l.b16 %v5841
    %v6994 = vunpack.c.l.b16 %v5842
    %v6995 = vunpack.c.l.b16 %v5843
    %v6996 = vunpack.c.l.b16 %v5844
    %v6997 = vunpack.c.l.b16 %v5845
    %v6998 = vunpack.c.l.b16 %v5846
    %v6999 = vunpack.c.l.b16 %v5847
    %v7000 = vunpack.c.l.b16 %v5848
    %v7001 = vunpack.c.l.b16 %v5849
    %v7002 = vunpack.c.l.b16 %v5850
    %v7003 = vunpack.c.l.b16 %v5851
    %v7004 = vunpack.c.l.b16 %v5852
    %v7005 = vunpack.c.l.b16 %v5853
    %v7006 = vunpack.c.l.b16 %v5854
    %v7007 = vunpack.c.l.b16 %v5855
    %v7008 = vunpack.c.l.b16 %v5856
    %v7009 = vunpack.c.l.b16 %v5857
    %v7010 = vunpack.c.l.b16 %v5858
    %v7011 = vunpack.c.l.b16 %v5859
    %v7012 = vunpack.c.l.b16 %v5860
    %v7013 = vunpack.c.l.b16 %v5861
    %v7014 = vunpack.c.l.b16 %v5862
    %v7015 = vunpack.c.l.b16 %v5863
    %v7016 = vunpack.c.l.b16 %v5864
    %v7017 = vunpack.c.l.b16 %v5865
    %v7018 = vunpack.c.l.b16 %v5866
    %v7019 = vunpack.c.l.b16 %v5867
    %v7020 = vunpack.c.l.b16 %v5868
    %v7021 = vunpack.c.l.b16 %v5869
    %v7022 = vunpack.c.l.b16 %v5870
    %v7023 = vunpack.c.l.b16 %v5871
    %v7024 = vunpack.c.l.b16 %v5872
    %v7025 = vunpack.c.l.b16 %v5873
    %v7026 = vunpack.c.l.b16 %v5874
    %v7027 = vunpack.c.l.b16 %v5875
    %v7028 = vunpack.c.l.b16 %v5876
    %v7029 = vunpack.c.l.b16 %v5877
    %v7030 = vpack.c.b16 %v6967, %v6966
    %v7031 = vpack.c.b16 %v6969, %v6968
    %v7032 = vpack.c.b16 %v6971, %v6970
    %v7033 = vpack.c.b16 %v6973, %v6972
    %v7034 = vpack.c.b16 %v6975, %v6974
    %v7035 = vpack.c.b16 %v6977, %v6976
    %v7036 = vpack.c.b16 %v6979, %v6978
    %v7037 = vpack.c.b16 %v6981, %v6980
    %v7038 = vpack.c.b16 %v6983, %v6982
    %v7039 = vpack.c.b16 %v6985, %v6984
    %v7040 = vpack.c.b16 %v6987, %v6986
    %v7041 = vpack.c.b16 %v6989, %v6988
    %v7042 = vpack.c.b16 %v6991, %v6990
    %v7043 = vpack.c.b16 %v6993, %v6992
    %v7044 = vpack.c.b16 %v6995, %v6994
    %v7045 = vpack.c.b16 %v6997, %v6996
    %v7046 = vpack.c.b16 %v6999, %v6998
    %v7047 = vpack.c.b16 %v7001, %v7000
    %v7048 = vpack.c.b16 %v7003, %v7002
    %v7049 = vpack.c.b16 %v7005, %v7004
    %v7050 = vpack.c.b16 %v7007, %v7006
    %v7051 = vpack.c.b16 %v7009, %v7008
    %v7052 = vpack.c.b16 %v7011, %v7010
    %v7053 = vpack.c.b16 %v7013, %v7012
    %v7054 = vpack.c.b16 %v7015, %v7014
    %v7055 = vpack.c.b16 %v7017, %v7016
    %v7056 = vpack.c.b16 %v7019, %v7018
    %v7057 = vpack.c.b16 %v7021, %v7020
    %v7058 = vpack.c.b16 %v7023, %v7022
    %v7059 = vpack.c.b16 %v7025, %v7024
    %v7060 = vpack.c.b16 %v7027, %v7026
    %v7061 = vpack.c.b16 %v7029, %v7028
    %v7158 = vunpack.c.l.b16 %v5942
    %v7159 = vunpack.c.l.b16 %v5943
    %v7160 = vunpack.c.l.b16 %v5944
    %v7161 = vunpack.c.l.b16 %v5945
    %v7162 = vunpack.c.l.b16 %v5946
    %v7163 = vunpack.c.l.b16 %v5947
    %v7164 = vunpack.c.l.b16 %v5948
    %v7165 = vunpack.c.l.b16 %v5949
    %v7166 = vunpack.c.l.b16 %v5950
    %v7167 = vunpack.c.l.b16 %v5951
    %v7168 = vunpack.c.l.b16 %v5952
    %v7169 = vunpack.c.l.b16 %v5953
    %v7170 = vunpack.c.l.b16 %v5954
    %v7171 = vunpack.c.l.b16 %v5955
    %v7172 = vunpack.c.l.b16 %v5956
    %v7173 = vunpack.c.l.b16 %v5957
    %v7174 = vunpack.c.l.b16 %v5958
    %v7175 = vunpack.c.l.b16 %v5959
    %v7176 = vunpack.c.l.b16 %v5960
    %v7177 = vunpack.c.l.b16 %v5961
    %v7178 = vunpack.c.l.b16 %v5962
    %v7179 = vunpack.c.l.b16 %v5963
    %v7180 = vunpack.c.l.b16 %v5964
    %v7181 = vunpack.c.l.b16 %v5965
    %v7182 = vunpack.c.l.b16 %v5966
    %v7183 = vunpack.c.l.b16 %v5967
    %v7184 = vunpack.c.l.b16 %v5968
    %v7185 = vunpack.c.l.b16 %v5969
    %v7186 = vunpack.c.l.b16 %v5970
    %v7187 = vunpack.c.l.b16 %v5971
    %v7188 = vunpack.c.l.b16 %v5972
    %v7189 = vunpack.c.l.b16 %v5973
    %v7190 = vunpack.c.l.b16 %v5974
    %v7191 = vunpack.c.l.b16 %v5975
    %v7192 = vunpack.c.l.b16 %v5976
    %v7193 = vunpack.c.l.b16 %v5977
    %v7194 = vunpack.c.l.b16 %v5978
    %v7195 = vunpack.c.l.b16 %v5979
    %v7196 = vunpack.c.l.b16 %v5980
    %v7197 = vunpack.c.l.b16 %v5981
    %v7198 = vunpack.c.l.b16 %v5982
    %v7199 = vunpack.c.l.b16 %v5983
    %v7200 = vunpack.c.l.b16 %v5984
    %v7201 = vunpack.c.l.b16 %v5985
    %v7202 = vunpack.c.l.b16 %v5986
    %v7203 = vunpack.c.l.b16 %v5987
    %v7204 = vunpack.c.l.b16 %v5988
    %v7205 = vunpack.c.l.b16 %v5989
    %v7206 = vunpack.c.l.b16 %v5990
    %v7207 = vunpack.c.l.b16 %v5991
    %v7208 = vunpack.c.l.b16 %v5992
    %v7209 = vunpack.c.l.b16 %v5993
    %v7210 = vunpack.c.l.b16 %v5994
    %v7211 = vunpack.c.l.b16 %v5995
    %v7212 = vunpack.c.l.b16 %v5996
    %v7213 = vunpack.c.l.b16 %v5997
    %v7214 = vunpack.c.l.b16 %v5998
    %v7215 = vunpack.c.l.b16 %v5999
    %v7216 = vunpack.c.l.b16 %v6000
    %v7217 = vunpack.c.l.b16 %v6001
    %v7218 = vunpack.c.l.b16 %v6002
    %v7219 = vunpack.c.l.b16 %v6003
    %v7220 = vunpack.c.l.b16 %v6004
    %v7221 = vunpack.c.l.b16 %v6005
    %v7222 = vpack.c.b16 %v7159, %v7158
    %v7223 = vpack.c.b16 %v7161, %v7160
    %v7224 = vpack.c.b16 %v7163, %v7162
    %v7225 = vpack.c.b16 %v7165, %v7164
    %v7226 = vpack.c.b16 %v7167, %v7166
    %v7227 = vpack.c.b16 %v7169, %v7168
    %v7228 = vpack.c.b16 %v7171, %v7170
    %v7229 = vpack.c.b16 %v7173, %v7172
    %v7230 = vpack.c.b16 %v7175, %v7174
    %v7231 = vpack.c.b16 %v7177, %v7176
    %v7232 = vpack.c.b16 %v7179, %v7178
    %v7233 = vpack.c.b16 %v7181, %v7180
    %v7234 = vpack.c.b16 %v7183, %v7182
    %v7235 = vpack.c.b16 %v7185, %v7184
    %v7236 = vpack.c.b16 %v7187, %v7186
    %v7237 = vpack.c.b16 %v7189, %v7188
    %v7238 = vpack.c.b16 %v7191, %v7190
    %v7239 = vpack.c.b16 %v7193, %v7192
    %v7240 = vpack.c.b16 %v7195, %v7194
    %v7241 = vpack.c.b16 %v7197, %v7196
    %v7242 = vpack.c.b16 %v7199, %v7198
    %v7243 = vpack.c.b16 %v7201, %v7200
    %v7244 = vpack.c.b16 %v7203, %v7202
    %v7245 = vpack.c.b16 %v7205, %v7204
    %v7246 = vpack.c.b16 %v7207, %v7206
    %v7247 = vpack.c.b16 %v7209, %v7208
    %v7248 = vpack.c.b16 %v7211, %v7210
    %v7249 = vpack.c.b16 %v7213, %v7212
    %v7250 = vpack.c.b16 %v7215, %v7214
    %v7251 = vpack.c.b16 %v7217, %v7216
    %v7252 = vpack.c.b16 %v7219, %v7218
    %v7253 = vpack.c.b16 %v7221, %v7220
    %v7350 = vunpack.c.l.b16 %v6070
    %v7351 = vunpack.c.l.b16 %v6071
    %v7352 = vunpack.c.l.b16 %v6072
    %v7353 = vunpack.c.l.b16 %v6073
    %v7354 = vunpack.c.l.b16 %v6074
    %v7355 = vunpack.c.l.b16 %v6075
    %v7356 = vunpack.c.l.b16 %v6076
    %v7357 = vunpack.c.l.b16 %v6077
    %v7358 = vunpack.c.l.b16 %v6078
    %v7359 = vunpack.c.l.b16 %v6079
    %v7360 = vunpack.c.l.b16 %v6080
    %v7361 = vunpack.c.l.b16 %v6081
    %v7362 = vunpack.c.l.b16 %v6082
    %v7363 = vunpack.c.l.b16 %v6083
    %v7364 = vunpack.c.l.b16 %v6084
    %v7365 = vunpack.c.l.b16 %v6085
    %v7366 = vunpack.c.l.b16 %v6086
    %v7367 = vunpack.c.l.b16 %v6087
    %v7368 = vunpack.c.l.b16 %v6088
    %v7369 = vunpack.c.l.b16 %v6089
    %v7370 = vunpack.c.l.b16 %v6090
    %v7371 = vunpack.c.l.b16 %v6091
    %v7372 = vunpack.c.l.b16 %v6092
    %v7373 = vunpack.c.l.b16 %v6093
    %v7374 = vunpack.c.l.b16 %v6094
    %v7375 = vunpack.c.l.b16 %v6095
    %v7376 = vunpack.c.l.b16 %v6096
    %v7377 = vunpack.c.l.b16 %v6097
    %v7378 = vunpack.c.l.b16 %v6098
    %v7379 = vunpack.c.l.b16 %v6099
    %v7380 = vunpack.c.l.b16 %v6100
    %v7381 = vunpack.c.l.b16 %v6101
    %v7382 = vunpack.c.l.b16 %v6102
    %v7383 = vunpack.c.l.b16 %v6103
    %v7384 = vunpack.c.l.b16 %v6104
    %v7385 = vunpack.c.l.b16 %v6105
    %v7386 = vunpack.c.l.b16 %v6106
    %v7387 = vunpack.c.l.b16 %v6107
    %v7388 = vunpack.c.l.b16 %v6108
    %v7389 = vunpack.c.l.b16 %v6109
    %v7390 = vunpack.c.l.b16 %v6110
    %v7391 = vunpack.c.l.b16 %v6111
    %v7392 = vunpack.c.l.b16 %v6112
    %v7393 = vunpack.c.l.b16 %v6113
    %v7394 = vunpack.c.l.b16 %v6114
    %v7395 = vunpack.c.l.b16 %v6115
    %v7396 = vunpack.c.l.b16 %v6116
    %v7397 = vunpack.c.l.b16 %v6117
    %v7398 = vunpack.c.l.b16 %v6118
    %v7399 = vunpack.c.l.b16 %v6119
    %v7400 = vunpack.c.l.b16 %v6120
    %v7401 = vunpack.c.l.b16 %v6121
    %v7402 = vunpack.c.l.b16 %v6122
    %v7403 = vunpack.c.l.b16 %v6123
    %v7404 = vunpack.c.l.b16 %v6124
    %v7405 = vunpack.c.l.b16 %v6125
    %v7406 = vunpack.c.l.b16 %v6126
    %v7407 = vunpack.c.l.b16 %v6127
    %v7408 = vunpack.c.l.b16 %v6128
    %v7409 = vunpack.c.l.b16 %v6129
    %v7410 = vunpack.c.l.b16 %v6130
    %v7411 = vunpack.c.l.b16 %v6131
    %v7412 = vunpack.c.l.b16 %v6132
    %v7413 = vunpack.c.l.b16 %v6133
    %v7414 = vpack.c.b16 %v7351, %v7350
    %v7415 = vpack.c.b16 %v7353, %v7352
    %v7416 = vpack.c.b16 %v7355, %v7354
    %v7417 = vpack.c.b16 %v7357, %v7356
    %v7418 = vpack.c.b16 %v7359, %v7358
    %v7419 = vpack.c.b16 %v7361, %v7360
    %v7420 = vpack.c.b16 %v7363, %v7362
    %v7421 = vpack.c.b16 %v7365, %v7364
    %v7422 = vpack.c.b16 %v7367, %v7366
    %v7423 = vpack.c.b16 %v7369, %v7368
    %v7424 = vpack.c.b16 %v7371, %v7370
    %v7425 = vpack.c.b16 %v7373, %v7372
    %v7426 = vpack.c.b16 %v7375, %v7374
    %v7427 = vpack.c.b16 %v7377, %v7376
    %v7428 = vpack.c.b16 %v7379, %v7378
    %v7429 = vpack.c.b16 %v7381, %v7380
    %v7430 = vpack.c.b16 %v7383, %v7382
    %v7431 = vpack.c.b16 %v7385, %v7384
    %v7432 = vpack.c.b16 %v7387, %v7386
    %v7433 = vpack.c.b16 %v7389, %v7388
    %v7434 = vpack.c.b16 %v7391, %v7390
    %v7435 = vpack.c.b16 %v7393, %v7392
    %v7436 = vpack.c.b16 %v7395, %v7394
    %v7437 = vpack.c.b16 %v7397, %v7396
    %v7438 = vpack.c.b16 %v7399, %v7398
    %v7439 = vpack.c.b16 %v7401, %v7400
    %v7440 = vpack.c.b16 %v7403, %v7402
    %v7441 = vpack.c.b16 %v7405, %v7404
    %v7442 = vpack.c.b16 %v7407, %v7406
    %v7443 = vpack.c.b16 %v7409, %v7408
    %v7444 = vpack.c.b16 %v7411, %v7410
    %v7445 = vpack.c.b16 %v7413, %v7412
    %v7542 = vunpack.c.l.b16 %v6198
    %v7543 = vunpack.c.l.b16 %v6199
    %v7544 = vunpack.c.l.b16 %v6200
    %v7545 = vunpack.c.l.b16 %v6201
    %v7546 = vunpack.c.l.b16 %v6202
    %v7547 = vunpack.c.l.b16 %v6203
    %v7548 = vunpack.c.l.b16 %v6204
    %v7549 = vunpack.c.l.b16 %v6205
    %v7550 = vunpack.c.l.b16 %v6206
    %v7551 = vunpack.c.l.b16 %v6207
    %v7552 = vunpack.c.l.b16 %v6208
    %v7553 = vunpack.c.l.b16 %v6209
    %v7554 = vunpack.c.l.b16 %v6210
    %v7555 = vunpack.c.l.b16 %v6211
    %v7556 = vunpack.c.l.b16 %v6212
    %v7557 = vunpack.c.l.b16 %v6213
    %v7558 = vunpack.c.l.b16 %v6214
    %v7559 = vunpack.c.l.b16 %v6215
    %v7560 = vunpack.c.l.b16 %v6216
    %v7561 = vunpack.c.l.b16 %v6217
    %v7562 = vunpack.c.l.b16 %v6218
    %v7563 = vunpack.c.l.b16 %v6219
    %v7564 = vunpack.c.l.b16 %v6220
    %v7565 = vunpack.c.l.b16 %v6221
    %v7566 = vunpack.c.l.b16 %v6222
    %v7567 = vunpack.c.l.b16 %v6223
    %v7568 = vunpack.c.l.b16 %v6224
    %v7569 = vunpack.c.l.b16 %v6225
    %v7570 = vunpack.c.l.b16 %v6226
    %v7571 = vunpack.c.l.b16 %v6227
    %v7572 = vunpack.c.l.b16 %v6228
    %v7573 = vunpack.c.l.b16 %v6229
    %v7574 = vunpack.c.l.b16 %v6230
    %v7575 = vunpack.c.l.b16 %v6231
    %v7576 = vunpack.c.l.b16 %v6232
    %v7577 = vunpack.c.l.b16 %v6233
    %v7578 = vunpack.c.l.b16 %v6234
    %v7579 = vunpack.c.l.b16 %v6235
    %v7580 = vunpack.c.l.b16 %v6236
    %v7581 = vunpack.c.l.b16 %v6237
    %v7582 = vunpack.c.l.b16 %v6238
    %v7583 = vunpack.c.l.b16 %v6239
    %v7584 = vunpack.c.l.b16 %v6240
    %v7585 = vunpack.c.l.b16 %v6241
    %v7586 = vunpack.c.l.b16 %v6242
    %v7587 = vunpack.c.l.b16 %v6243
    %v7588 = vunpack.c.l.b16 %v6244
    %v7589 = vunpack.c.l.b16 %v6245
    %v7590 = vunpack.c.l.b16 %v6246
    %v7591 = vunpack.c.l.b16 %v6247
    %v7592 = vunpack.c.l.b16 %v6248
    %v7593 = vunpack.c.l.b16 %v6249
    %v7594 = vunpack.c.l.b16 %v6250
    %v7595 = vunpack.c.l.b16 %v6251
    %v7596 = vunpack.c.l.b16 %v6252
    %v7597 = vunpack.c.l.b16 %v6253
    %v7598 = vunpack.c.l.b16 %v6254
    %v7599 = vunpack.c.l.b16 %v6255
    %v7600 = vunpack.c.l.b16 %v6256
    %v7601 = vunpack.c.l.b16 %v6257
    %v7602 = vunpack.c.l.b16 %v6258
    %v7603 = vunpack.c.l.b16 %v6259
    %v7604 = vunpack.c.l.b16 %v6260
    %v7605 = vunpack.c.l.b16 %v6261
    %v7606 = vpack.c.b16 %v7543, %v7542
    %v7607 = vpack.c.b16 %v7545, %v7544
    %v7608 = vpack.c.b16 %v7547, %v7546
    %v7609 = vpack.c.b16 %v7549, %v7548
    %v7610 = vpack.c.b16 %v7551, %v7550
    %v7611 = vpack.c.b16 %v7553, %v7552
    %v7612 = vpack.c.b16 %v7555, %v7554
    %v7613 = vpack.c.b16 %v7557, %v7556
    %v7614 = vpack.c.b16 %v7559, %v7558
    %v7615 = vpack.c.b16 %v7561, %v7560
    %v7616 = vpack.c.b16 %v7563, %v7562
    %v7617 = vpack.c.b16 %v7565, %v7564
    %v7618 = vpack.c.b16 %v7567, %v7566
    %v7619 = vpack.c.b16 %v7569, %v7568
    %v7620 = vpack.c.b16 %v7571, %v7570
    %v7621 = vpack.c.b16 %v7573, %v7572
    %v7622 = vpack.c.b16 %v7575, %v7574
    %v7623 = vpack.c.b16 %v7577, %v7576
    %v7624 = vpack.c.b16 %v7579, %v7578
    %v7625 = vpack.c.b16 %v7581, %v7580
    %v7626 = vpack.c.b16 %v7583, %v7582
    %v7627 = vpack.c.b16 %v7585, %v7584
    %v7628 = vpack.c.b16 %v7587, %v7586
    %v7629 = vpack.c.b16 %v7589, %v7588
    %v7630 = vpack.c.b16 %v7591, %v7590
    %v7631 = vpack.c.b16 %v7593, %v7592
    %v7632 = vpack.c.b16 %v7595, %v7594
    %v7633 = vpack.c.b16 %v7597, %v7596
    %v7634 = vpack.c.b16 %v7599, %v7598
    %v7635 = vpack.c.b16 %v7601, %v7600
    %v7636 = vpack.c.b16 %v7603, %v7602
    %v7637 = vpack.c.b16 %v7605, %v7604
    %v7734 = vunpack.c.l.b16 %v6326
    %v7735 = vunpack.c.l.b16 %v6327
    %v7736 = vunpack.c.l.b16 %v6328
    %v7737 = vunpack.c.l.b16 %v6329
    %v7738 = vunpack.c.l.b16 %v6330
    %v7739 = vunpack.c.l.b16 %v6331
    %v7740 = vunpack.c.l.b16 %v6332
    %v7741 = vunpack.c.l.b16 %v6333
    %v7742 = vunpack.c.l.b16 %v6334
    %v7743 = vunpack.c.l.b16 %v6335
    %v7744 = vunpack.c.l.b16 %v6336
    %v7745 = vunpack.c.l.b16 %v6337
    %v7746 = vunpack.c.l.b16 %v6338
    %v7747 = vunpack.c.l.b16 %v6339
    %v7748 = vunpack.c.l.b16 %v6340
    %v7749 = vunpack.c.l.b16 %v6341
    %v7750 = vunpack.c.l.b16 %v6342
    %v7751 = vunpack.c.l.b16 %v6343
    %v7752 = vunpack.c.l.b16 %v6344
    %v7753 = vunpack.c.l.b16 %v6345
    %v7754 = vunpack.c.l.b16 %v6346
    %v7755 = vunpack.c.l.b16 %v6347
    %v7756 = vunpack.c.l.b16 %v6348
    %v7757 = vunpack.c.l.b16 %v6349
    %v7758 = vunpack.c.l.b16 %v6350
    %v7759 = vunpack.c.l.b16 %v6351
    %v7760 = vunpack.c.l.b16 %v6352
    %v7761 = vunpack.c.l.b16 %v6353
    %v7762 = vunpack.c.l.b16 %v6354
    %v7763 = vunpack.c.l.b16 %v6355
    %v7764 = vunpack.c.l.b16 %v6356
    %v7765 = vunpack.c.l.b16 %v6357
    %v7766 = vunpack.c.l.b16 %v6358
    %v7767 = vunpack.c.l.b16 %v6359
    %v7768 = vunpack.c.l.b16 %v6360
    %v7769 = vunpack.c.l.b16 %v6361
    %v7770 = vunpack.c.l.b16 %v6362
    %v7771 = vunpack.c.l.b16 %v6363
    %v7772 = vunpack.c.l.b16 %v6364
    %v7773 = vunpack.c.l.b16 %v6365
    %v7774 = vunpack.c.l.b16 %v6366
    %v7775 = vunpack.c.l.b16 %v6367
    %v7776 = vunpack.c.l.b16 %v6368
    %v7777 = vunpack.c.l.b16 %v6369
    %v7778 = vunpack.c.l.b16 %v6370
    %v7779 = vunpack.c.l.b16 %v6371
    %v7780 = vunpack.c.l.b16 %v6372
    %v7781 = vunpack.c.l.b16 %v6373
    %v7782 = vunpack.c.l.b16 %v6374
    %v7783 = vunpack.c.l.b16 %v6375
    %v7784 = vunpack.c.l.b16 %v6376
    %v7785 = vunpack.c.l.b16 %v6377
    %v7786 = vunpack.c.l.b16 %v6378
    %v7787 = vunpack.c.l.b16 %v6379
    %v7788 = vunpack.c.l.b16 %v6380
    %v7789 = vunpack.c.l.b16 %v6381
    %v7790 = vunpack.c.l.b16 %v6382
    %v7791 = vunpack.c.l.b16 %v6383
    %v7792 = vunpack.c.l.b16 %v6384
    %v7793 = vunpack.c.l.b16 %v6385
    %v7794 = vunpack.c.l.b16 %v6386
    %v7795 = vunpack.c.l.b16 %v6387
    %v7796 = vunpack.c.l.b16 %v6388
    %v7797 = vunpack.c.l.b16 %v6389
    %v7798 = vpack.c.b16 %v7735, %v7734
    %v7799 = vpack.c.b16 %v7737, %v7736
    %v7800 = vpack.c.b16 %v7739, %v7738
    %v7801 = vpack.c.b16 %v7741, %v7740
    %v7802 = vpack.c.b16 %v7743, %v7742
    %v7803 = vpack.c.b16 %v7745, %v7744
    %v7804 = vpack.c.b16 %v7747, %v7746
    %v7805 = vpack.c.b16 %v7749, %v7748
    %v7806 = vpack.c.b16 %v7751, %v7750
    %v7807 = vpack.c.b16 %v7753, %v7752
    %v7808 = vpack.c.b16 %v7755, %v7754
    %v7809 = vpack.c.b16 %v7757, %v7756
    %v7810 = vpack.c.b16 %v7759, %v7758
    %v7811 = vpack.c.b16 %v7761, %v7760
    %v7812 = vpack.c.b16 %v7763, %v7762
    %v7813 = vpack.c.b16 %v7765, %v7764
    %v7814 = vpack.c.b16 %v7767, %v7766
    %v7815 = vpack.c.b16 %v7769, %v7768
    %v7816 = vpack.c.b16 %v7771, %v7770
    %v7817 = vpack.c.b16 %v7773, %v7772
    %v7818 = vpack.c.b16 %v7775, %v7774
    %v7819 = vpack.c.b16 %v7777, %v7776
    %v7820 = vpack.c.b16 %v7779, %v7778
    %v7821 = vpack.c.b16 %v7781, %v7780
    %v7822 = vpack.c.b16 %v7783, %v7782
    %v7823 = vpack.c.b16 %v7785, %v7784
    %v7824 = vpack.c.b16 %v7787, %v7786
    %v7825 = vpack.c.b16 %v7789, %v7788
    %v7826 = vpack.c.b16 %v7791, %v7790
    %v7827 = vpack.c.b16 %v7793, %v7792
    %v7828 = vpack.c.b16 %v7795, %v7794
    %v7829 = vpack.c.b16 %v7797, %v7796
    %v7926 = vunpack.c.l.b16 %v6454
    %v7927 = vunpack.c.l.b16 %v6455
    %v7928 = vunpack.c.l.b16 %v6456
    %v7929 = vunpack.c.l.b16 %v6457
    %v7930 = vunpack.c.l.b16 %v6458
    %v7931 = vunpack.c.l.b16 %v6459
    %v7932 = vunpack.c.l.b16 %v6460
    %v7933 = vunpack.c.l.b16 %v6461
    %v7934 = vunpack.c.l.b16 %v6462
    %v7935 = vunpack.c.l.b16 %v6463
    %v7936 = vunpack.c.l.b16 %v6464
    %v7937 = vunpack.c.l.b16 %v6465
    %v7938 = vunpack.c.l.b16 %v6466
    %v7939 = vunpack.c.l.b16 %v6467
    %v7940 = vunpack.c.l.b16 %v6468
    %v7941 = vunpack.c.l.b16 %v6469
    %v7942 = vunpack.c.l.b16 %v6470
    %v7943 = vunpack.c.l.b16 %v6471
    %v7944 = vunpack.c.l.b16 %v6472
    %v7945 = vunpack.c.l.b16 %v6473
    %v7946 = vunpack.c.l.b16 %v6474
    %v7947 = vunpack.c.l.b16 %v6475
    %v7948 = vunpack.c.l.b16 %v6476
    %v7949 = vunpack.c.l.b16 %v6477
    %v7950 = vunpack.c.l.b16 %v6478
    %v7951 = vunpack.c.l.b16 %v6479
    %v7952 = vunpack.c.l.b16 %v6480
    %v7953 = vunpack.c.l.b16 %v6481
    %v7954 = vunpack.c.l.b16 %v6482
    %v7955 = vunpack.c.l.b16 %v6483
    %v7956 = vunpack.c.l.b16 %v6484
    %v7957 = vunpack.c.l.b16 %v6485
    %v7958 = vunpack.c.l.b16 %v6486
    %v7959 = vunpack.c.l.b16 %v6487
    %v7960 = vunpack.c.l.b16 %v6488
    %v7961 = vunpack.c.l.b16 %v6489
    %v7962 = vunpack.c.l.b16 %v6490
    %v7963 = vunpack.c.l.b16 %v6491
    %v7964 = vunpack.c.l.b16 %v6492
    %v7965 = vunpack.c.l.b16 %v6493
    %v7966 = vunpack.c.l.b16 %v6494
    %v7967 = vunpack.c.l.b16 %v6495
    %v7968 = vunpack.c.l.b16 %v6496
    %v7969 = vunpack.c.l.b16 %v6497
    %v7970 = vunpack.c.l.b16 %v6498
    %v7971 = vunpack.c.l.b16 %v6499
    %v7972 = vunpack.c.l.b16 %v6500
    %v7973 = vunpack.c.l.b16 %v6501
    %v7974 = vunpack.c.l.b16 %v6502
    %v7975 = vunpack.c.l.b16 %v6503
    %v7976 = vunpack.c.l.b16 %v6504
    %v7977 = vunpack.c.l.b16 %v6505
    %v7978 = vunpack.c.l.b16 %v6506
    %v7979 = vunpack.c.l.b16 %v6507
    %v7980 = vunpack.c.l.b16 %v6508
    %v7981 = vunpack.c.l.b16 %v6509
    %v7982 = vunpack.c.l.b16 %v6510
    %v7983 = vunpack.c.l.b16 %v6511
    %v7984 = vunpack.c.l.b16 %v6512
    %v7985 = vunpack.c.l.b16 %v6513
    %v7986 = vunpack.c.l.b16 %v6514
    %v7987 = vunpack.c.l.b16 %v6515
    %v7988 = vunpack.c.l.b16 %v6516
    %v7989 = vunpack.c.l.b16 %v6517
    %v7990 = vpack.c.b16 %v7927, %v7926
    %v7991 = vpack.c.b16 %v7929, %v7928
    %v7992 = vpack.c.b16 %v7931, %v7930
    %v7993 = vpack.c.b16 %v7933, %v7932
    %v7994 = vpack.c.b16 %v7935, %v7934
    %v7995 = vpack.c.b16 %v7937, %v7936
    %v7996 = vpack.c.b16 %v7939, %v7938
    %v7997 = vpack.c.b16 %v7941, %v7940
    %v7998 = vpack.c.b16 %v7943, %v7942
    %v7999 = vpack.c.b16 %v7945, %v7944
    %v8000 = vpack.c.b16 %v7947, %v7946
    %v8001 = vpack.c.b16 %v7949, %v7948
    %v8002 = vpack.c.b16 %v7951, %v7950
    %v8003 = vpack.c.b16 %v7953, %v7952
    %v8004 = vpack.c.b16 %v7955, %v7954
    %v8005 = vpack.c.b16 %v7957, %v7956
    %v8006 = vpack.c.b16 %v7959, %v7958
    %v8007 = vpack.c.b16 %v7961, %v7960
    %v8008 = vpack.c.b16 %v7963, %v7962
    %v8009 = vpack.c.b16 %v7965, %v7964
    %v8010 = vpack.c.b16 %v7967, %v7966
    %v8011 = vpack.c.b16 %v7969, %v7968
    %v8012 = vpack.c.b16 %v7971, %v7970
    %v8013 = vpack.c.b16 %v7973, %v7972
    %v8014 = vpack.c.b16 %v7975, %v7974
    %v8015 = vpack.c.b16 %v7977, %v7976
    %v8016 = vpack.c.b16 %v7979, %v7978
    %v8017 = vpack.c.b16 %v7981, %v7980
    %v8018 = vpack.c.b16 %v7983, %v7982
    %v8019 = vpack.c.b16 %v7985, %v7984
    %v8020 = vpack.c.b16 %v7987, %v7986
    %v8021 = vpack.c.b16 %v7989, %v7988
    %v8118 = vunpack.c.l.b16 %v6582
    %v8119 = vunpack.c.l.b16 %v6583
    %v8120 = vunpack.c.l.b16 %v6584
    %v8121 = vunpack.c.l.b16 %v6585
    %v8122 = vunpack.c.l.b16 %v6586
    %v8123 = vunpack.c.l.b16 %v6587
    %v8124 = vunpack.c.l.b16 %v6588
    %v8125 = vunpack.c.l.b16 %v6589
    %v8126 = vunpack.c.l.b16 %v6590
    %v8127 = vunpack.c.l.b16 %v6591
    %v8128 = vunpack.c.l.b16 %v6592
    %v8129 = vunpack.c.l.b16 %v6593
    %v8130 = vunpack.c.l.b16 %v6594
    %v8131 = vunpack.c.l.b16 %v6595
    %v8132 = vunpack.c.l.b16 %v6596
    %v8133 = vunpack.c.l.b16 %v6597
    %v8134 = vunpack.c.l.b16 %v6598
    %v8135 = vunpack.c.l.b16 %v6599
    %v8136 = vunpack.c.l.b16 %v6600
    %v8137 = vunpack.c.l.b16 %v6601
    %v8138 = vunpack.c.l.b16 %v6602
    %v8139 = vunpack.c.l.b16 %v6603
    %v8140 = vunpack.c.l.b16 %v6604
    %v8141 = vunpack.c.l.b16 %v6605
    %v8142 = vunpack.c.l.b16 %v6606
    %v8143 = vunpack.c.l.b16 %v6607
    %v8144 = vunpack.c.l.b16 %v6608
    %v8145 = vunpack.c.l.b16 %v6609
    %v8146 = vunpack.c.l.b16 %v6610
    %v8147 = vunpack.c.l.b16 %v6611
    %v8148 = vunpack.c.l.b16 %v6612
    %v8149 = vunpack.c.l.b16 %v6613
    %v8150 = vunpack.c.l.b16 %v6614
    %v8151 = vunpack.c.l.b16 %v6615
    %v8152 = vunpack.c.l.b16 %v6616
    %v8153 = vunpack.c.l.b16 %v6617
    %v8154 = vunpack.c.l.b16 %v6618
    %v8155 = vunpack.c.l.b16 %v6619
    %v8156 = vunpack.c.l.b16 %v6620
    %v8157 = vunpack.c.l.b16 %v6621
    %v8158 = vunpack.c.l.b16 %v6622
    %v8159 = vunpack.c.l.b16 %v6623
    %v8160 = vunpack.c.l.b16 %v6624
    %v8161 = vunpack.c.l.b16 %v6625
    %v8162 = vunpack.c.l.b16 %v6626
    %v8163 = vunpack.c.l.b16 %v6627
    %v8164 = vunpack.c.l.b16 %v6628
    %v8165 = vunpack.c.l.b16 %v6629
    %v8166 = vunpack.c.l.b16 %v6630
    %v8167 = vunpack.c.l.b16 %v6631
    %v8168 = vunpack.c.l.b16 %v6632
    %v8169 = vunpack.c.l.b16 %v6633
    %v8170 = vunpack.c.l.b16 %v6634
    %v8171 = vunpack.c.l.b16 %v6635
    %v8172 = vunpack.c.l.b16 %v6636
    %v8173 = vunpack.c.l.b16 %v6637
    %v8174 = vunpack.c.l.b16 %v6638
    %v8175 = vunpack.c.l.b16 %v6639
    %v8176 = vunpack.c.l.b16 %v6640
    %v8177 = vunpack.c.l.b16 %v6641
    %v8178 = vunpack.c.l.b16 %v6642
    %v8179 = vunpack.c.l.b16 %v6643
    %v8180 = vunpack.c.l.b16 %v6644
    %v8181 = vunpack.c.l.b16 %v6645
    %v8182 = vpack.c.b16 %v8119, %v8118
    %v8183 = vpack.c.b16 %v8121, %v8120
    %v8184 = vpack.c.b16 %v8123, %v8122
    %v8185 = vpack.c.b16 %v8125, %v8124
    %v8186 = vpack.c.b16 %v8127, %v8126
    %v8187 = vpack.c.b16 %v8129, %v8128
    %v8188 = vpack.c.b16 %v8131, %v8130
    %v8189 = vpack.c.b16 %v8133, %v8132
    %v8190 = vpack.c.b16 %v8135, %v8134
    %v8191 = vpack.c.b16 %v8137, %v8136
    %v8192 = vpack.c.b16 %v8139, %v8138
    %v8193 = vpack.c.b16 %v8141, %v8140
    %v8194 = vpack.c.b16 %v8143, %v8142
    %v8195 = vpack.c.b16 %v8145, %v8144
    %v8196 = vpack.c.b16 %v8147, %v8146
    %v8197 = vpack.c.b16 %v8149, %v8148
    %v8198 = vpack.c.b16 %v8151, %v8150
    %v8199 = vpack.c.b16 %v8153, %v8152
    %v8200 = vpack.c.b16 %v8155, %v8154
    %v8201 = vpack.c.b16 %v8157, %v8156
    %v8202 = vpack.c.b16 %v8159, %v8158
    %v8203 = vpack.c.b16 %v8161, %v8160
    %v8204 = vpack.c.b16 %v8163, %v8162
    %v8205 = vpack.c.b16 %v8165, %v8164
    %v8206 = vpack.c.b16 %v8167, %v8166
    %v8207 = vpack.c.b16 %v8169, %v8168
    %v8208 = vpack.c.b16 %v8171, %v8170
    %v8209 = vpack.c.b16 %v8173, %v8172
    %v8210 = vpack.c.b16 %v8175, %v8174
    %v8211 = vpack.c.b16 %v8177, %v8176
    %v8212 = vpack.c.b16 %v8179, %v8178
    %v8213 = vpack.c.b16 %v8181, %v8180
    %v8310 = vunpack.c.l.b16 %v6710
    %v8311 = vunpack.c.l.b16 %v6711
    %v8312 = vunpack.c.l.b16 %v6712
    %v8313 = vunpack.c.l.b16 %v6713
    %v8314 = vunpack.c.l.b16 %v6714
    %v8315 = vunpack.c.l.b16 %v6715
    %v8316 = vunpack.c.l.b16 %v6716
    %v8317 = vunpack.c.l.b16 %v6717
    %v8318 = vunpack.c.l.b16 %v6718
    %v8319 = vunpack.c.l.b16 %v6719
    %v8320 = vunpack.c.l.b16 %v6720
    %v8321 = vunpack.c.l.b16 %v6721
    %v8322 = vunpack.c.l.b16 %v6722
    %v8323 = vunpack.c.l.b16 %v6723
    %v8324 = vunpack.c.l.b16 %v6724
    %v8325 = vunpack.c.l.b16 %v6725
    %v8326 = vunpack.c.l.b16 %v6726
    %v8327 = vunpack.c.l.b16 %v6727
    %v8328 = vunpack.c.l.b16 %v6728
    %v8329 = vunpack.c.l.b16 %v6729
    %v8330 = vunpack.c.l.b16 %v6730
    %v8331 = vunpack.c.l.b16 %v6731
    %v8332 = vunpack.c.l.b16 %v6732
    %v8333 = vunpack.c.l.b16 %v6733
    %v8334 = vunpack.c.l.b16 %v6734
    %v8335 = vunpack.c.l.b16 %v6735
    %v8336 = vunpack.c.l.b16 %v6736
    %v8337 = vunpack.c.l.b16 %v6737
    %v8338 = vunpack.c.l.b16 %v6738
    %v8339 = vunpack.c.l.b16 %v6739
    %v8340 = vunpack.c.l.b16 %v6740
    %v8341 = vunpack.c.l.b16 %v6741
    %v8342 = vunpack.c.l.b16 %v6742
    %v8343 = vunpack.c.l.b16 %v6743
    %v8344 = vunpack.c.l.b16 %v6744
    %v8345 = vunpack.c.l.b16 %v6745
    %v8346 = vunpack.c.l.b16 %v6746
    %v8347 = vunpack.c.l.b16 %v6747
    %v8348 = vunpack.c.l.b16 %v6748
    %v8349 = vunpack.c.l.b16 %v6749
    %v8350 = vunpack.c.l.b16 %v6750
    %v8351 = vunpack.c.l.b16 %v6751
    %v8352 = vunpack.c.l.b16 %v6752
    %v8353 = vunpack.c.l.b16 %v6753
    %v8354 = vunpack.c.l.b16 %v6754
    %v8355 = vunpack.c.l.b16 %v6755
    %v8356 = vunpack.c.l.b16 %v6756
    %v8357 = vunpack.c.l.b16 %v6757
    %v8358 = vunpack.c.l.b16 %v6758
    %v8359 = vunpack.c.l.b16 %v6759
    %v8360 = vunpack.c.l.b16 %v6760
    %v8361 = vunpack.c.l.b16 %v6761
    %v8362 = vunpack.c.l.b16 %v6762
    %v8363 = vunpack.c.l.b16 %v6763
    %v8364 = vunpack.c.l.b16 %v6764
    %v8365 = vunpack.c.l.b16 %v6765
    %v8366 = vunpack.c.l.b16 %v6766
    %v8367 = vunpack.c.l.b16 %v6767
    %v8368 = vunpack.c.l.b16 %v6768
    %v8369 = vunpack.c.l.b16 %v6769
    %v8370 = vunpack.c.l.b16 %v6770
    %v8371 = vunpack.c.l.b16 %v6771
    %v8372 = vunpack.c.l.b16 %v6772
    %v8373 = vunpack.c.l.b16 %v6773
    %v8374 = vpack.c.b16 %v8311, %v8310
    %v8375 = vpack.c.b16 %v8313, %v8312
    %v8376 = vpack.c.b16 %v8315, %v8314
    %v8377 = vpack.c.b16 %v8317, %v8316
    %v8378 = vpack.c.b16 %v8319, %v8318
    %v8379 = vpack.c.b16 %v8321, %v8320
    %v8380 = vpack.c.b16 %v8323, %v8322
    %v8381 = vpack.c.b16 %v8325, %v8324
    %v8382 = vpack.c.b16 %v8327, %v8326
    %v8383 = vpack.c.b16 %v8329, %v8328
    %v8384 = vpack.c.b16 %v8331, %v8330
    %v8385 = vpack.c.b16 %v8333, %v8332
    %v8386 = vpack.c.b16 %v8335, %v8334
    %v8387 = vpack.c.b16 %v8337, %v8336
    %v8388 = vpack.c.b16 %v8339, %v8338
    %v8389 = vpack.c.b16 %v8341, %v8340
    %v8390 = vpack.c.b16 %v8343, %v8342
    %v8391 = vpack.c.b16 %v8345, %v8344
    %v8392 = vpack.c.b16 %v8347, %v8346
    %v8393 = vpack.c.b16 %v8349, %v8348
    %v8394 = vpack.c.b16 %v8351, %v8350
    %v8395 = vpack.c.b16 %v8353, %v8352
    %v8396 = vpack.c.b16 %v8355, %v8354
    %v8397 = vpack.c.b16 %v8357, %v8356
    %v8398 = vpack.c.b16 %v8359, %v8358
    %v8399 = vpack.c.b16 %v8361, %v8360
    %v8400 = vpack.c.b16 %v8363, %v8362
    %v8401 = vpack.c.b16 %v8365, %v8364
    %v8402 = vpack.c.b16 %v8367, %v8366
    %v8403 = vpack.c.b16 %v8369, %v8368
    %v8404 = vpack.c.b16 %v8371, %v8370
    %v8405 = vpack.c.b16 %v8373, %v8372
    %v8502 = vunpack.c.l.b16 %v6838
    %v8503 = vunpack.c.l.b16 %v6839
    %v8504 = vunpack.c.l.b16 %v6840
    %v8505 = vunpack.c.l.b16 %v6841
    %v8506 = vunpack.c.l.b16 %v6842
    %v8507 = vunpack.c.l.b16 %v6843
    %v8508 = vunpack.c.l.b16 %v6844
    %v8509 = vunpack.c.l.b16 %v6845
    %v8510 = vunpack.c.l.b16 %v6846
    %v8511 = vunpack.c.l.b16 %v6847
    %v8512 = vunpack.c.l.b16 %v6848
    %v8513 = vunpack.c.l.b16 %v6849
    %v8514 = vunpack.c.l.b16 %v6850
    %v8515 = vunpack.c.l.b16 %v6851
    %v8516 = vunpack.c.l.b16 %v6852
    %v8517 = vunpack.c.l.b16 %v6853
    %v8518 = vunpack.c.l.b16 %v6854
    %v8519 = vunpack.c.l.b16 %v6855
    %v8520 = vunpack.c.l.b16 %v6856
    %v8521 = vunpack.c.l.b16 %v6857
    %v8522 = vunpack.c.l.b16 %v6858
    %v8523 = vunpack.c.l.b16 %v6859
    %v8524 = vunpack.c.l.b16 %v6860
    %v8525 = vunpack.c.l.b16 %v6861
    %v8526 = vunpack.c.l.b16 %v6862
    %v8527 = vunpack.c.l.b16 %v6863
    %v8528 = vunpack.c.l.b16 %v6864
    %v8529 = vunpack.c.l.b16 %v6865
    %v8530 = vunpack.c.l.b16 %v6866
    %v8531 = vunpack.c.l.b16 %v6867
    %v8532 = vunpack.c.l.b16 %v6868
    %v8533 = vunpack.c.l.b16 %v6869
    %v8534 = vunpack.c.l.b16 %v6870
    %v8535 = vunpack.c.l.b16 %v6871
    %v8536 = vunpack.c.l.b16 %v6872
    %v8537 = vunpack.c.l.b16 %v6873
    %v8538 = vunpack.c.l.b16 %v6874
    %v8539 = vunpack.c.l.b16 %v6875
    %v8540 = vunpack.c.l.b16 %v6876
    %v8541 = vunpack.c.l.b16 %v6877
    %v8542 = vunpack.c.l.b16 %v6878
    %v8543 = vunpack.c.l.b16 %v6879
    %v8544 = vunpack.c.l.b16 %v6880
    %v8545 = vunpack.c.l.b16 %v6881
    %v8546 = vunpack.c.l.b16 %v6882
    %v8547 = vunpack.c.l.b16 %v6883
    %v8548 = vunpack.c.l.b16 %v6884
    %v8549 = vunpack.c.l.b16 %v6885
    %v8550 = vunpack.c.l.b16 %v6886
    %v8551 = vunpack.c.l.b16 %v6887
    %v8552 = vunpack.c.l.b16 %v6888
    %v8553 = vunpack.c.l.b16 %v6889
    %v8554 = vunpack.c.l.b16 %v6890
    %v8555 = vunpack.c.l.b16 %v6891
    %v8556 = vunpack.c.l.b16 %v6892
    %v8557 = vunpack.c.l.b16 %v6893
    %v8558 = vunpack.c.l.b16 %v6894
    %v8559 = vunpack.c.l.b16 %v6895
    %v8560 = vunpack.c.l.b16 %v6896
    %v8561 = vunpack.c.l.b16 %v6897
    %v8562 = vunpack.c.l.b16 %v6898
    %v8563 = vunpack.c.l.b16 %v6899
    %v8564 = vunpack.c.l.b16 %v6900
    %v8565 = vunpack.c.l.b16 %v6901
    %v8566 = vpack.c.b16 %v8503, %v8502
    %v8567 = vpack.c.b16 %v8505, %v8504
    %v8568 = vpack.c.b16 %v8507, %v8506
    %v8569 = vpack.c.b16 %v8509, %v8508
    %v8570 = vpack.c.b16 %v8511, %v8510
    %v8571 = vpack.c.b16 %v8513, %v8512
    %v8572 = vpack.c.b16 %v8515, %v8514
    %v8573 = vpack.c.b16 %v8517, %v8516
    %v8574 = vpack.c.b16 %v8519, %v8518
    %v8575 = vpack.c.b16 %v8521, %v8520
    %v8576 = vpack.c.b16 %v8523, %v8522
    %v8577 = vpack.c.b16 %v8525, %v8524
    %v8578 = vpack.c.b16 %v8527, %v8526
    %v8579 = vpack.c.b16 %v8529, %v8528
    %v8580 = vpack.c.b16 %v8531, %v8530
    %v8581 = vpack.c.b16 %v8533, %v8532
    %v8582 = vpack.c.b16 %v8535, %v8534
    %v8583 = vpack.c.b16 %v8537, %v8536
    %v8584 = vpack.c.b16 %v8539, %v8538
    %v8585 = vpack.c.b16 %v8541, %v8540
    %v8586 = vpack.c.b16 %v8543, %v8542
    %v8587 = vpack.c.b16 %v8545, %v8544
    %v8588 = vpack.c.b16 %v8547, %v8546
    %v8589 = vpack.c.b16 %v8549, %v8548
    %v8590 = vpack.c.b16 %v8551, %v8550
    %v8591 = vpack.c.b16 %v8553, %v8552
    %v8592 = vpack.c.b16 %v8555, %v8554
    %v8593 = vpack.c.b16 %v8557, %v8556
    %v8594 = vpack.c.b16 %v8559, %v8558
    %v8595 = vpack.c.b16 %v8561, %v8560
    %v8596 = vpack.c.b16 %v8563, %v8562
    %v8597 = vpack.c.b16 %v8565, %v8564
    %v8630 = vld [vmem:[#allocation8] sm:$0xf]
    %v8631 = vld [vmem:[#allocation8 + $0x4] sm:$0xf]
    %v8632 = vld [vmem:[#allocation8 + $0x8] sm:$0xf]
    %v8633 = vld [vmem:[#allocation8 + $0xc] sm:$0xf]
    %v8634 = vld [vmem:[#allocation8 + $0x10] sm:$0xf]
    %v8635 = vld [vmem:[#allocation8 + $0x14] sm:$0xf]
    %v8636 = vld [vmem:[#allocation8 + $0x18] sm:$0xf]
    %v8637 = vld [vmem:[#allocation8 + $0x1c] sm:$0xf]
    %v8638 = vld [vmem:[#allocation8 + $0x20] sm:$0xf]
    %v8639 = vld [vmem:[#allocation8 + $0x24] sm:$0xf]
    %v8640 = vld [vmem:[#allocation8 + $0x28] sm:$0xf]
    %v8641 = vld [vmem:[#allocation8 + $0x2c] sm:$0xf]
    %v8642 = vld [vmem:[#allocation8 + $0x30] sm:$0xf]
    %v8643 = vld [vmem:[#allocation8 + $0x34] sm:$0xf]
    %v8644 = vld [vmem:[#allocation8 + $0x38] sm:$0xf]
    %v8645 = vld [vmem:[#allocation8 + $0x3c] sm:$0xf]
    %v8646 = vld [vmem:[#allocation8 + $0x40] sm:$0xf]
    %v8647 = vld [vmem:[#allocation8 + $0x44] sm:$0xf]
    %v8648 = vld [vmem:[#allocation8 + $0x48] sm:$0xf]
    %v8649 = vld [vmem:[#allocation8 + $0x4c] sm:$0xf]
    %v8650 = vld [vmem:[#allocation8 + $0x50] sm:$0xf]
    %v8651 = vld [vmem:[#allocation8 + $0x54] sm:$0xf]
    %v8652 = vld [vmem:[#allocation8 + $0x58] sm:$0xf]
    %v8653 = vld [vmem:[#allocation8 + $0x5c] sm:$0xf]
    %v8654 = vld [vmem:[#allocation8 + $0x60] sm:$0xf]
    %v8655 = vld [vmem:[#allocation8 + $0x64] sm:$0xf]
    %v8656 = vld [vmem:[#allocation8 + $0x68] sm:$0xf]
    %v8657 = vld [vmem:[#allocation8 + $0x6c] sm:$0xf]
    %v8658 = vld [vmem:[#allocation8 + $0x70] sm:$0xf]
    %v8659 = vld [vmem:[#allocation8 + $0x74] sm:$0xf]
    %v8660 = vld [vmem:[#allocation8 + $0x78] sm:$0xf]
    %v8661 = vld [vmem:[#allocation8 + $0x7c] sm:$0xf]
    %v8662 = vld [vmem:[#allocation8 + $0x80] sm:$0xf]
    %v8663 = vld [vmem:[#allocation8 + $0x84] sm:$0xf]
    %v8664 = vld [vmem:[#allocation8 + $0x88] sm:$0xf]
    %v8665 = vld [vmem:[#allocation8 + $0x8c] sm:$0xf]
    %v8666 = vld [vmem:[#allocation8 + $0x90] sm:$0xf]
    %v8667 = vld [vmem:[#allocation8 + $0x94] sm:$0xf]
    %v8668 = vld [vmem:[#allocation8 + $0x98] sm:$0xf]
    %v8669 = vld [vmem:[#allocation8 + $0x9c] sm:$0xf]
    %v8670 = vld [vmem:[#allocation8 + $0xa0] sm:$0xf]
    %v8671 = vld [vmem:[#allocation8 + $0xa4] sm:$0xf]
    %v8672 = vld [vmem:[#allocation8 + $0xa8] sm:$0xf]
    %v8673 = vld [vmem:[#allocation8 + $0xac] sm:$0xf]
    %v8674 = vld [vmem:[#allocation8 + $0xb0] sm:$0xf]
    %v8675 = vld [vmem:[#allocation8 + $0xb4] sm:$0xf]
    %v8676 = vld [vmem:[#allocation8 + $0xb8] sm:$0xf]
    %v8677 = vld [vmem:[#allocation8 + $0xbc] sm:$0xf]
    %v8678 = vld [vmem:[#allocation8 + $0xc0] sm:$0xf]
    %v8679 = vld [vmem:[#allocation8 + $0xc4] sm:$0xf]
    %v8680 = vld [vmem:[#allocation8 + $0xc8] sm:$0xf]
    %v8681 = vld [vmem:[#allocation8 + $0xcc] sm:$0xf]
    %v8682 = vld [vmem:[#allocation8 + $0xd0] sm:$0xf]
    %v8683 = vld [vmem:[#allocation8 + $0xd4] sm:$0xf]
    %v8684 = vld [vmem:[#allocation8 + $0xd8] sm:$0xf]
    %v8685 = vld [vmem:[#allocation8 + $0xdc] sm:$0xf]
    %v8686 = vld [vmem:[#allocation8 + $0xe0] sm:$0xf]
    %v8687 = vld [vmem:[#allocation8 + $0xe4] sm:$0xf]
    %v8688 = vld [vmem:[#allocation8 + $0xe8] sm:$0xf]
    %v8689 = vld [vmem:[#allocation8 + $0xec] sm:$0xf]
    %v8690 = vld [vmem:[#allocation8 + $0xf0] sm:$0xf]
    %v8691 = vld [vmem:[#allocation8 + $0xf4] sm:$0xf]
    %v8692 = vld [vmem:[#allocation8 + $0xf8] sm:$0xf]
    %v8693 = vld [vmem:[#allocation8 + $0xfc] sm:$0xf]
    %v8694 = vld [vmem:[#allocation8 + $0x100] sm:$0xf]
    %v8695 = vld [vmem:[#allocation8 + $0x104] sm:$0xf]
    %v8696 = vld [vmem:[#allocation8 + $0x108] sm:$0xf]
    %v8697 = vld [vmem:[#allocation8 + $0x10c] sm:$0xf]
    %v8698 = vld [vmem:[#allocation8 + $0x110] sm:$0xf]
    %v8699 = vld [vmem:[#allocation8 + $0x114] sm:$0xf]
    %v8700 = vld [vmem:[#allocation8 + $0x118] sm:$0xf]
    %v8701 = vld [vmem:[#allocation8 + $0x11c] sm:$0xf]
    %v8702 = vld [vmem:[#allocation8 + $0x120] sm:$0xf]
    %v8703 = vld [vmem:[#allocation8 + $0x124] sm:$0xf]
    %v8704 = vld [vmem:[#allocation8 + $0x128] sm:$0xf]
    %v8705 = vld [vmem:[#allocation8 + $0x12c] sm:$0xf]
    %v8706 = vld [vmem:[#allocation8 + $0x130] sm:$0xf]
    %v8707 = vld [vmem:[#allocation8 + $0x134] sm:$0xf]
    %v8708 = vld [vmem:[#allocation8 + $0x138] sm:$0xf]
    %v8709 = vld [vmem:[#allocation8 + $0x13c] sm:$0xf]
    %v8710 = vld [vmem:[#allocation8 + $0x140] sm:$0xf]
    %v8711 = vld [vmem:[#allocation8 + $0x144] sm:$0xf]
    %v8712 = vld [vmem:[#allocation8 + $0x148] sm:$0xf]
    %v8713 = vld [vmem:[#allocation8 + $0x14c] sm:$0xf]
    %v8714 = vld [vmem:[#allocation8 + $0x150] sm:$0xf]
    %v8715 = vld [vmem:[#allocation8 + $0x154] sm:$0xf]
    %v8716 = vld [vmem:[#allocation8 + $0x158] sm:$0xf]
    %v8717 = vld [vmem:[#allocation8 + $0x15c] sm:$0xf]
    %v8718 = vld [vmem:[#allocation8 + $0x160] sm:$0xf]
    %v8719 = vld [vmem:[#allocation8 + $0x164] sm:$0xf]
    %v8720 = vld [vmem:[#allocation8 + $0x168] sm:$0xf]
    %v8721 = vld [vmem:[#allocation8 + $0x16c] sm:$0xf]
    %v8722 = vld [vmem:[#allocation8 + $0x170] sm:$0xf]
    %v8723 = vld [vmem:[#allocation8 + $0x174] sm:$0xf]
    %v8724 = vld [vmem:[#allocation8 + $0x178] sm:$0xf]
    %v8725 = vld [vmem:[#allocation8 + $0x17c] sm:$0xf]
    %v8726 = vld [vmem:[#allocation8 + $0x180] sm:$0xf]
    %v8727 = vld [vmem:[#allocation8 + $0x184] sm:$0xf]
    %v8728 = vld [vmem:[#allocation8 + $0x188] sm:$0xf]
    %v8729 = vld [vmem:[#allocation8 + $0x18c] sm:$0xf]
    %v8730 = vld [vmem:[#allocation8 + $0x190] sm:$0xf]
    %v8731 = vld [vmem:[#allocation8 + $0x194] sm:$0xf]
    %v8732 = vld [vmem:[#allocation8 + $0x198] sm:$0xf]
    %v8733 = vld [vmem:[#allocation8 + $0x19c] sm:$0xf]
    %v8734 = vld [vmem:[#allocation8 + $0x1a0] sm:$0xf]
    %v8735 = vld [vmem:[#allocation8 + $0x1a4] sm:$0xf]
    %v8736 = vld [vmem:[#allocation8 + $0x1a8] sm:$0xf]
    %v8737 = vld [vmem:[#allocation8 + $0x1ac] sm:$0xf]
    %v8738 = vld [vmem:[#allocation8 + $0x1b0] sm:$0xf]
    %v8739 = vld [vmem:[#allocation8 + $0x1b4] sm:$0xf]
    %v8740 = vld [vmem:[#allocation8 + $0x1b8] sm:$0xf]
    %v8741 = vld [vmem:[#allocation8 + $0x1bc] sm:$0xf]
    %v8742 = vld [vmem:[#allocation8 + $0x1c0] sm:$0xf]
    %v8743 = vld [vmem:[#allocation8 + $0x1c4] sm:$0xf]
    %v8744 = vld [vmem:[#allocation8 + $0x1c8] sm:$0xf]
    %v8745 = vld [vmem:[#allocation8 + $0x1cc] sm:$0xf]
    %v8746 = vld [vmem:[#allocation8 + $0x1d0] sm:$0xf]
    %v8747 = vld [vmem:[#allocation8 + $0x1d4] sm:$0xf]
    %v8748 = vld [vmem:[#allocation8 + $0x1d8] sm:$0xf]
    %v8749 = vld [vmem:[#allocation8 + $0x1dc] sm:$0xf]
    %v8750 = vld [vmem:[#allocation8 + $0x1e0] sm:$0xf]
    %v8751 = vld [vmem:[#allocation8 + $0x1e4] sm:$0xf]
    %v8752 = vld [vmem:[#allocation8 + $0x1e8] sm:$0xf]
    %v8753 = vld [vmem:[#allocation8 + $0x1ec] sm:$0xf]
    %v8754 = vld [vmem:[#allocation8 + $0x1f0] sm:$0xf]
    %v8755 = vld [vmem:[#allocation8 + $0x1f4] sm:$0xf]
    %v8756 = vld [vmem:[#allocation8 + $0x1f8] sm:$0xf]
    %v8757 = vld [vmem:[#allocation8 + $0x1fc] sm:$0xf]
    %v8758 = vld [vmem:[#allocation8 + $0x200] sm:$0xf]
    %v8759 = vld [vmem:[#allocation8 + $0x204] sm:$0xf]
    %v8760 = vld [vmem:[#allocation8 + $0x208] sm:$0xf]
    %v8761 = vld [vmem:[#allocation8 + $0x20c] sm:$0xf]
    %v8762 = vld [vmem:[#allocation8 + $0x210] sm:$0xf]
    %v8763 = vld [vmem:[#allocation8 + $0x214] sm:$0xf]
    %v8764 = vld [vmem:[#allocation8 + $0x218] sm:$0xf]
    %v8765 = vld [vmem:[#allocation8 + $0x21c] sm:$0xf]
    %v8766 = vld [vmem:[#allocation8 + $0x220] sm:$0xf]
    %v8767 = vld [vmem:[#allocation8 + $0x224] sm:$0xf]
    %v8768 = vld [vmem:[#allocation8 + $0x228] sm:$0xf]
    %v8769 = vld [vmem:[#allocation8 + $0x22c] sm:$0xf]
    %v8770 = vld [vmem:[#allocation8 + $0x230] sm:$0xf]
    %v8771 = vld [vmem:[#allocation8 + $0x234] sm:$0xf]
    %v8772 = vld [vmem:[#allocation8 + $0x238] sm:$0xf]
    %v8773 = vld [vmem:[#allocation8 + $0x23c] sm:$0xf]
    %v8918 = vunpack.c.l.b16 %v8630
    %v8919 = vunpack.c.l.b16 %v8631
    %v8920 = vunpack.c.l.b16 %v8632
    %v8921 = vunpack.c.l.b16 %v8633
    %v8922 = vunpack.c.l.b16 %v8634
    %v8923 = vunpack.c.l.b16 %v8635
    %v8924 = vunpack.c.l.b16 %v8636
    %v8925 = vunpack.c.l.b16 %v8637
    %v8926 = vunpack.c.l.b16 %v8638
    %v8927 = vunpack.c.l.b16 %v8639
    %v8928 = vunpack.c.l.b16 %v8640
    %v8929 = vunpack.c.l.b16 %v8641
    %v8930 = vunpack.c.l.b16 %v8642
    %v8931 = vunpack.c.l.b16 %v8643
    %v8932 = vunpack.c.l.b16 %v8644
    %v8933 = vunpack.c.l.b16 %v8645
    %v8934 = vunpack.c.l.b16 %v8646
    %v8935 = vunpack.c.l.b16 %v8647
    %v8936 = vunpack.c.l.b16 %v8648
    %v8937 = vunpack.c.l.b16 %v8649
    %v8938 = vunpack.c.l.b16 %v8650
    %v8939 = vunpack.c.l.b16 %v8651
    %v8940 = vunpack.c.l.b16 %v8652
    %v8941 = vunpack.c.l.b16 %v8653
    %v8942 = vunpack.c.l.b16 %v8654
    %v8943 = vunpack.c.l.b16 %v8655
    %v8944 = vunpack.c.l.b16 %v8656
    %v8945 = vunpack.c.l.b16 %v8657
    %v8946 = vunpack.c.l.b16 %v8658
    %v8947 = vunpack.c.l.b16 %v8659
    %v8948 = vunpack.c.l.b16 %v8660
    %v8949 = vunpack.c.l.b16 %v8661
    %v8950 = vunpack.c.l.b16 %v8662
    %v8951 = vunpack.c.l.b16 %v8663
    %v8952 = vunpack.c.l.b16 %v8664
    %v8953 = vunpack.c.l.b16 %v8665
    %v8954 = vunpack.c.l.b16 %v8666
    %v8955 = vunpack.c.l.b16 %v8667
    %v8956 = vunpack.c.l.b16 %v8668
    %v8957 = vunpack.c.l.b16 %v8669
    %v8958 = vunpack.c.l.b16 %v8670
    %v8959 = vunpack.c.l.b16 %v8671
    %v8960 = vunpack.c.l.b16 %v8672
    %v8961 = vunpack.c.l.b16 %v8673
    %v8962 = vunpack.c.l.b16 %v8674
    %v8963 = vunpack.c.l.b16 %v8675
    %v8964 = vunpack.c.l.b16 %v8676
    %v8965 = vunpack.c.l.b16 %v8677
    %v8966 = vunpack.c.l.b16 %v8678
    %v8967 = vunpack.c.l.b16 %v8679
    %v8968 = vunpack.c.l.b16 %v8680
    %v8969 = vunpack.c.l.b16 %v8681
    %v8970 = vunpack.c.l.b16 %v8682
    %v8971 = vunpack.c.l.b16 %v8683
    %v8972 = vunpack.c.l.b16 %v8684
    %v8973 = vunpack.c.l.b16 %v8685
    %v8974 = vunpack.c.l.b16 %v8686
    %v8975 = vunpack.c.l.b16 %v8687
    %v8976 = vunpack.c.l.b16 %v8688
    %v8977 = vunpack.c.l.b16 %v8689
    %v8978 = vunpack.c.l.b16 %v8690
    %v8979 = vunpack.c.l.b16 %v8691
    %v8980 = vunpack.c.l.b16 %v8692
    %v8981 = vunpack.c.l.b16 %v8693
    %v8982 = vunpack.c.l.b16 %v8694
    %v8983 = vunpack.c.l.b16 %v8695
    %v8984 = vunpack.c.l.b16 %v8696
    %v8985 = vunpack.c.l.b16 %v8697
    %v8986 = vunpack.c.l.b16 %v8698
    %v8987 = vunpack.c.l.b16 %v8699
    %v8988 = vunpack.c.l.b16 %v8700
    %v8989 = vunpack.c.l.b16 %v8701
    %v8990 = vunpack.c.l.b16 %v8702
    %v8991 = vunpack.c.l.b16 %v8703
    %v8992 = vunpack.c.l.b16 %v8704
    %v8993 = vunpack.c.l.b16 %v8705
    %v8994 = vunpack.c.l.b16 %v8706
    %v8995 = vunpack.c.l.b16 %v8707
    %v8996 = vunpack.c.l.b16 %v8708
    %v8997 = vunpack.c.l.b16 %v8709
    %v8998 = vunpack.c.l.b16 %v8710
    %v8999 = vunpack.c.l.b16 %v8711
    %v9000 = vunpack.c.l.b16 %v8712
    %v9001 = vunpack.c.l.b16 %v8713
    %v9002 = vunpack.c.l.b16 %v8714
    %v9003 = vunpack.c.l.b16 %v8715
    %v9004 = vunpack.c.l.b16 %v8716
    %v9005 = vunpack.c.l.b16 %v8717
    %v9006 = vunpack.c.l.b16 %v8718
    %v9007 = vunpack.c.l.b16 %v8719
    %v9008 = vunpack.c.l.b16 %v8720
    %v9009 = vunpack.c.l.b16 %v8721
    %v9010 = vunpack.c.l.b16 %v8722
    %v9011 = vunpack.c.l.b16 %v8723
    %v9012 = vunpack.c.l.b16 %v8724
    %v9013 = vunpack.c.l.b16 %v8725
    %v9014 = vunpack.c.l.b16 %v8726
    %v9015 = vunpack.c.l.b16 %v8727
    %v9016 = vunpack.c.l.b16 %v8728
    %v9017 = vunpack.c.l.b16 %v8729
    %v9018 = vunpack.c.l.b16 %v8730
    %v9019 = vunpack.c.l.b16 %v8731
    %v9020 = vunpack.c.l.b16 %v8732
    %v9021 = vunpack.c.l.b16 %v8733
    %v9022 = vunpack.c.l.b16 %v8734
    %v9023 = vunpack.c.l.b16 %v8735
    %v9024 = vunpack.c.l.b16 %v8736
    %v9025 = vunpack.c.l.b16 %v8737
    %v9026 = vunpack.c.l.b16 %v8738
    %v9027 = vunpack.c.l.b16 %v8739
    %v9028 = vunpack.c.l.b16 %v8740
    %v9029 = vunpack.c.l.b16 %v8741
    %v9030 = vunpack.c.l.b16 %v8742
    %v9031 = vunpack.c.l.b16 %v8743
    %v9032 = vunpack.c.l.b16 %v8744
    %v9033 = vunpack.c.l.b16 %v8745
    %v9034 = vunpack.c.l.b16 %v8746
    %v9035 = vunpack.c.l.b16 %v8747
    %v9036 = vunpack.c.l.b16 %v8748
    %v9037 = vunpack.c.l.b16 %v8749
    %v9038 = vunpack.c.l.b16 %v8750
    %v9039 = vunpack.c.l.b16 %v8751
    %v9040 = vunpack.c.l.b16 %v8752
    %v9041 = vunpack.c.l.b16 %v8753
    %v9042 = vunpack.c.l.b16 %v8754
    %v9043 = vunpack.c.l.b16 %v8755
    %v9044 = vunpack.c.l.b16 %v8756
    %v9045 = vunpack.c.l.b16 %v8757
    %v9046 = vunpack.c.l.b16 %v8758
    %v9047 = vunpack.c.l.b16 %v8759
    %v9048 = vunpack.c.l.b16 %v8760
    %v9049 = vunpack.c.l.b16 %v8761
    %v9050 = vunpack.c.l.b16 %v8762
    %v9051 = vunpack.c.l.b16 %v8763
    %v9052 = vunpack.c.l.b16 %v8764
    %v9053 = vunpack.c.l.b16 %v8765
    %v9054 = vunpack.c.l.b16 %v8766
    %v9055 = vunpack.c.l.b16 %v8767
    %v9056 = vunpack.c.l.b16 %v8768
    %v9057 = vunpack.c.l.b16 %v8769
    %v9058 = vunpack.c.l.b16 %v8770
    %v9059 = vunpack.c.l.b16 %v8771
    %v9060 = vunpack.c.l.b16 %v8772
    %v9061 = vunpack.c.l.b16 %v8773
    %v9062 = vpack.c.b16 %v8919, %v8918
    %v9063 = vpack.c.b16 %v8921, %v8920
    %v9064 = vpack.c.b16 %v8923, %v8922
    %v9065 = vpack.c.b16 %v8925, %v8924
    %v9066 = vpack.c.b16 %v8927, %v8926
    %v9067 = vpack.c.b16 %v8929, %v8928
    %v9068 = vpack.c.b16 %v8931, %v8930
    %v9069 = vpack.c.b16 %v8933, %v8932
    %v9070 = vpack.c.b16 %v8935, %v8934
    %v9071 = vpack.c.b16 %v8937, %v8936
    %v9072 = vpack.c.b16 %v8939, %v8938
    %v9073 = vpack.c.b16 %v8941, %v8940
    %v9074 = vpack.c.b16 %v8943, %v8942
    %v9075 = vpack.c.b16 %v8945, %v8944
    %v9076 = vpack.c.b16 %v8947, %v8946
    %v9077 = vpack.c.b16 %v8949, %v8948
    %v9078 = vpack.c.b16 %v8951, %v8950
    %v9079 = vpack.c.b16 %v8953, %v8952
    %v9080 = vpack.c.b16 %v8955, %v8954
    %v9081 = vpack.c.b16 %v8957, %v8956
    %v9082 = vpack.c.b16 %v8959, %v8958
    %v9083 = vpack.c.b16 %v8961, %v8960
    %v9084 = vpack.c.b16 %v8963, %v8962
    %v9085 = vpack.c.b16 %v8965, %v8964
    %v9086 = vpack.c.b16 %v8967, %v8966
    %v9087 = vpack.c.b16 %v8969, %v8968
    %v9088 = vpack.c.b16 %v8971, %v8970
    %v9089 = vpack.c.b16 %v8973, %v8972
    %v9090 = vpack.c.b16 %v8975, %v8974
    %v9091 = vpack.c.b16 %v8977, %v8976
    %v9092 = vpack.c.b16 %v8979, %v8978
    %v9093 = vpack.c.b16 %v8981, %v8980
    %v9094 = vpack.c.b16 %v8983, %v8982
    %v9095 = vpack.c.b16 %v8985, %v8984
    %v9096 = vpack.c.b16 %v8987, %v8986
    %v9097 = vpack.c.b16 %v8989, %v8988
    %v9098 = vpack.c.b16 %v8991, %v8990
    %v9099 = vpack.c.b16 %v8993, %v8992
    %v9100 = vpack.c.b16 %v8995, %v8994
    %v9101 = vpack.c.b16 %v8997, %v8996
    %v9102 = vpack.c.b16 %v8999, %v8998
    %v9103 = vpack.c.b16 %v9001, %v9000
    %v9104 = vpack.c.b16 %v9003, %v9002
    %v9105 = vpack.c.b16 %v9005, %v9004
    %v9106 = vpack.c.b16 %v9007, %v9006
    %v9107 = vpack.c.b16 %v9009, %v9008
    %v9108 = vpack.c.b16 %v9011, %v9010
    %v9109 = vpack.c.b16 %v9013, %v9012
    %v9110 = vpack.c.b16 %v9015, %v9014
    %v9111 = vpack.c.b16 %v9017, %v9016
    %v9112 = vpack.c.b16 %v9019, %v9018
    %v9113 = vpack.c.b16 %v9021, %v9020
    %v9114 = vpack.c.b16 %v9023, %v9022
    %v9115 = vpack.c.b16 %v9025, %v9024
    %v9116 = vpack.c.b16 %v9027, %v9026
    %v9117 = vpack.c.b16 %v9029, %v9028
    %v9118 = vpack.c.b16 %v9031, %v9030
    %v9119 = vpack.c.b16 %v9033, %v9032
    %v9120 = vpack.c.b16 %v9035, %v9034
    %v9121 = vpack.c.b16 %v9037, %v9036
    %v9122 = vpack.c.b16 %v9039, %v9038
    %v9123 = vpack.c.b16 %v9041, %v9040
    %v9124 = vpack.c.b16 %v9043, %v9042
    %v9125 = vpack.c.b16 %v9045, %v9044
    %v9126 = vpack.c.b16 %v9047, %v9046
    %v9127 = vpack.c.b16 %v9049, %v9048
    %v9128 = vpack.c.b16 %v9051, %v9050
    %v9129 = vpack.c.b16 %v9053, %v9052
    %v9130 = vpack.c.b16 %v9055, %v9054
    %v9131 = vpack.c.b16 %v9057, %v9056
    %v9132 = vpack.c.b16 %v9059, %v9058
    %v9133 = vpack.c.b16 %v9061, %v9060
    %9206 = vmatpush.bf16.msra.mxu0 %v9069
    %9207 = vmatpush.bf16.msra.mxu0 %v9068
    %9208 = vmatpush.bf16.msra.mxu0 %v9067
    %9209 = vmatpush.bf16.msra.mxu0 %v9066
    %9210 = vmatpush.bf16.msra.mxu0 %v9065
    %9211 = vmatpush.bf16.msra.mxu0 %v9064
    %9212 = vmatpush.bf16.msra.mxu0 %v9063
    %9213 = vmatpush.bf16.msra.mxu0 %v9062
    %9214 = vmatmul.bf16.gmra.mxu0 %v7030
    %v9215 = vpop.f32.mrf.mxu0
    %v9216 = vadd.f32 0.0, %v9215
    %v9217 = vpop.f32.mrf.mxu0
    %v9218 = vadd.f32 0.0, %v9217
    %9219 = vmatmul.bf16.gmra.mxu0 %v7031
    %v9220 = vpop.f32.mrf.mxu0
    %v9221 = vadd.f32 0.0, %v9220
    %v9222 = vpop.f32.mrf.mxu0
    %v9223 = vadd.f32 0.0, %v9222
    %9224 = vmatmul.bf16.gmra.mxu0 %v7032
    %v9225 = vpop.f32.mrf.mxu0
    %v9226 = vadd.f32 0.0, %v9225
    %v9227 = vpop.f32.mrf.mxu0
    %v9228 = vadd.f32 0.0, %v9227
    %9229 = vmatmul.bf16.gmra.mxu0 %v7033
    %v9230 = vpop.f32.mrf.mxu0
    %v9231 = vadd.f32 0.0, %v9230
    %v9232 = vpop.f32.mrf.mxu0
    %v9233 = vadd.f32 0.0, %v9232
    %9234 = vmatmul.bf16.gmra.mxu0 %v7034
    %v9235 = vpop.f32.mrf.mxu0
    %v9236 = vadd.f32 0.0, %v9235
    %v9237 = vpop.f32.mrf.mxu0
    %v9238 = vadd.f32 0.0, %v9237
    %9239 = vmatmul.bf16.gmra.mxu0 %v7035
    %v9240 = vpop.f32.mrf.mxu0
    %v9241 = vadd.f32 0.0, %v9240
    %v9242 = vpop.f32.mrf.mxu0
    %v9243 = vadd.f32 0.0, %v9242
    %9244 = vmatmul.bf16.gmra.mxu0 %v7036
    %v9245 = vpop.f32.mrf.mxu0
    %v9246 = vadd.f32 0.0, %v9245
    %v9247 = vpop.f32.mrf.mxu0
    %v9248 = vadd.f32 0.0, %v9247
    %9249 = vmatmul.bf16.gmra.mxu0 %v7037
    %v9250 = vpop.f32.mrf.mxu0
    %v9251 = vadd.f32 0.0, %v9250
    %v9252 = vpop.f32.mrf.mxu0
    %v9253 = vadd.f32 0.0, %v9252
    %9254 = vmatmul.bf16.gmra.mxu0 %v7038
    %v9255 = vpop.f32.mrf.mxu0
    %v9256 = vadd.f32 0.0, %v9255
    %v9257 = vpop.f32.mrf.mxu0
    %v9258 = vadd.f32 0.0, %v9257
    %9259 = vmatmul.bf16.gmra.mxu0 %v7039
    %v9260 = vpop.f32.mrf.mxu0
    %v9261 = vadd.f32 0.0, %v9260
    %v9262 = vpop.f32.mrf.mxu0
    %v9263 = vadd.f32 0.0, %v9262
    %9264 = vmatmul.bf16.gmra.mxu0 %v7040
    %v9265 = vpop.f32.mrf.mxu0
    %v9266 = vadd.f32 0.0, %v9265
    %v9267 = vpop.f32.mrf.mxu0
    %v9268 = vadd.f32 0.0, %v9267
    %9269 = vmatmul.bf16.gmra.mxu0 %v7041
    %v9270 = vpop.f32.mrf.mxu0
    %v9271 = vadd.f32 0.0, %v9270
    %v9272 = vpop.f32.mrf.mxu0
    %v9273 = vadd.f32 0.0, %v9272
    %9274 = vmatmul.bf16.gmra.mxu0 %v7042
    %v9275 = vpop.f32.mrf.mxu0
    %v9276 = vadd.f32 0.0, %v9275
    %v9277 = vpop.f32.mrf.mxu0
    %v9278 = vadd.f32 0.0, %v9277
    %9279 = vmatmul.bf16.gmra.mxu0 %v7043
    %v9280 = vpop.f32.mrf.mxu0
    %v9281 = vadd.f32 0.0, %v9280
    %v9282 = vpop.f32.mrf.mxu0
    %v9283 = vadd.f32 0.0, %v9282
    %9284 = vmatmul.bf16.gmra.mxu0 %v7044
    %v9285 = vpop.f32.mrf.mxu0
    %v9286 = vadd.f32 0.0, %v9285
    %v9287 = vpop.f32.mrf.mxu0
    %v9288 = vadd.f32 0.0, %v9287
    %9289 = vmatmul.bf16.gmra.mxu0 %v7045
    %v9290 = vpop.f32.mrf.mxu0
    %v9291 = vadd.f32 0.0, %v9290
    %v9292 = vpop.f32.mrf.mxu0
    %v9293 = vadd.f32 0.0, %v9292
    %9294 = vmatmul.bf16.gmra.mxu0 %v7046
    %v9295 = vpop.f32.mrf.mxu0
    %v9296 = vadd.f32 0.0, %v9295
    %v9297 = vpop.f32.mrf.mxu0
    %v9298 = vadd.f32 0.0, %v9297
    %9299 = vmatmul.bf16.gmra.mxu0 %v7047
    %v9300 = vpop.f32.mrf.mxu0
    %v9301 = vadd.f32 0.0, %v9300
    %v9302 = vpop.f32.mrf.mxu0
    %v9303 = vadd.f32 0.0, %v9302
    %9304 = vmatmul.bf16.gmra.mxu0 %v7048
    %v9305 = vpop.f32.mrf.mxu0
    %v9306 = vadd.f32 0.0, %v9305
    %v9307 = vpop.f32.mrf.mxu0
    %v9308 = vadd.f32 0.0, %v9307
    %9309 = vmatmul.bf16.gmra.mxu0 %v7049
    %v9310 = vpop.f32.mrf.mxu0
    %v9311 = vadd.f32 0.0, %v9310
    %v9312 = vpop.f32.mrf.mxu0
    %v9313 = vadd.f32 0.0, %v9312
    %9314 = vmatmul.bf16.gmra.mxu0 %v7050
    %v9315 = vpop.f32.mrf.mxu0
    %v9316 = vadd.f32 0.0, %v9315
    %v9317 = vpop.f32.mrf.mxu0
    %v9318 = vadd.f32 0.0, %v9317
    %9319 = vmatmul.bf16.gmra.mxu0 %v7051
    %v9320 = vpop.f32.mrf.mxu0
    %v9321 = vadd.f32 0.0, %v9320
    %v9322 = vpop.f32.mrf.mxu0
    %v9323 = vadd.f32 0.0, %v9322
    %9324 = vmatmul.bf16.gmra.mxu0 %v7052
    %v9325 = vpop.f32.mrf.mxu0
    %v9326 = vadd.f32 0.0, %v9325
    %v9327 = vpop.f32.mrf.mxu0
    %v9328 = vadd.f32 0.0, %v9327
    %9329 = vmatmul.bf16.gmra.mxu0 %v7053
    %v9330 = vpop.f32.mrf.mxu0
    %v9331 = vadd.f32 0.0, %v9330
    %v9332 = vpop.f32.mrf.mxu0
    %v9333 = vadd.f32 0.0, %v9332
    %9334 = vmatmul.bf16.gmra.mxu0 %v7054
    %v9335 = vpop.f32.mrf.mxu0
    %v9336 = vadd.f32 0.0, %v9335
    %v9337 = vpop.f32.mrf.mxu0
    %v9338 = vadd.f32 0.0, %v9337
    %9339 = vmatmul.bf16.gmra.mxu0 %v7055
    %v9340 = vpop.f32.mrf.mxu0
    %v9341 = vadd.f32 0.0, %v9340
    %v9342 = vpop.f32.mrf.mxu0
    %v9343 = vadd.f32 0.0, %v9342
    %9344 = vmatmul.bf16.gmra.mxu0 %v7056
    %v9345 = vpop.f32.mrf.mxu0
    %v9346 = vadd.f32 0.0, %v9345
    %v9347 = vpop.f32.mrf.mxu0
    %v9348 = vadd.f32 0.0, %v9347
    %9349 = vmatmul.bf16.gmra.mxu0 %v7057
    %v9350 = vpop.f32.mrf.mxu0
    %v9351 = vadd.f32 0.0, %v9350
    %v9352 = vpop.f32.mrf.mxu0
    %v9353 = vadd.f32 0.0, %v9352
    %9354 = vmatmul.bf16.gmra.mxu0 %v7058
    %v9355 = vpop.f32.mrf.mxu0
    %v9356 = vadd.f32 0.0, %v9355
    %v9357 = vpop.f32.mrf.mxu0
    %v9358 = vadd.f32 0.0, %v9357
    %9359 = vmatmul.bf16.gmra.mxu0 %v7059
    %v9360 = vpop.f32.mrf.mxu0
    %v9361 = vadd.f32 0.0, %v9360
    %v9362 = vpop.f32.mrf.mxu0
    %v9363 = vadd.f32 0.0, %v9362
    %9364 = vmatmul.bf16.gmra.mxu0 %v7060
    %v9365 = vpop.f32.mrf.mxu0
    %v9366 = vadd.f32 0.0, %v9365
    %v9367 = vpop.f32.mrf.mxu0
    %v9368 = vadd.f32 0.0, %v9367
    %9369 = vmatmul.bf16.gmra.mxu0 %v7061
    %v9370 = vpop.f32.mrf.mxu0
    %v9371 = vadd.f32 0.0, %v9370
    %v9372 = vpop.f32.mrf.mxu0
    %v9373 = vadd.f32 0.0, %v9372
    %9374 = vdwg.mxu0
    %9375 = vmatpush.bf16.msra.mxu0 %v9077
    %9376 = vmatpush.bf16.msra.mxu0 %v9076
    %9377 = vmatpush.bf16.msra.mxu0 %v9075
    %9378 = vmatpush.bf16.msra.mxu0 %v9074
    %9379 = vmatpush.bf16.msra.mxu0 %v9073
    %9380 = vmatpush.bf16.msra.mxu0 %v9072
    %9381 = vmatpush.bf16.msra.mxu0 %v9071
    %9382 = vmatpush.bf16.msra.mxu0 %v9070
    %9383 = vmatmul.bf16.gmra.mxu0 %v7222
    %v9384 = vpop.f32.mrf.mxu0
    %v9385 = vadd.f32 %v9216, %v9384
    %v9386 = vpop.f32.mrf.mxu0
    %v9387 = vadd.f32 %v9218, %v9386
    %9388 = vmatmul.bf16.gmra.mxu0 %v7223
    %v9389 = vpop.f32.mrf.mxu0
    %v9390 = vadd.f32 %v9221, %v9389
    %v9391 = vpop.f32.mrf.mxu0
    %v9392 = vadd.f32 %v9223, %v9391
    %9393 = vmatmul.bf16.gmra.mxu0 %v7224
    %v9394 = vpop.f32.mrf.mxu0
    %v9395 = vadd.f32 %v9226, %v9394
    %v9396 = vpop.f32.mrf.mxu0
    %v9397 = vadd.f32 %v9228, %v9396
    %9398 = vmatmul.bf16.gmra.mxu0 %v7225
    %v9399 = vpop.f32.mrf.mxu0
    %v9400 = vadd.f32 %v9231, %v9399
    %v9401 = vpop.f32.mrf.mxu0
    %v9402 = vadd.f32 %v9233, %v9401
    %9403 = vmatmul.bf16.gmra.mxu0 %v7226
    %v9404 = vpop.f32.mrf.mxu0
    %v9405 = vadd.f32 %v9236, %v9404
    %v9406 = vpop.f32.mrf.mxu0
    %v9407 = vadd.f32 %v9238, %v9406
    %9408 = vmatmul.bf16.gmra.mxu0 %v7227
    %v9409 = vpop.f32.mrf.mxu0
    %v9410 = vadd.f32 %v9241, %v9409
    %v9411 = vpop.f32.mrf.mxu0
    %v9412 = vadd.f32 %v9243, %v9411
    %9413 = vmatmul.bf16.gmra.mxu0 %v7228
    %v9414 = vpop.f32.mrf.mxu0
    %v9415 = vadd.f32 %v9246, %v9414
    %v9416 = vpop.f32.mrf.mxu0
    %v9417 = vadd.f32 %v9248, %v9416
    %9418 = vmatmul.bf16.gmra.mxu0 %v7229
    %v9419 = vpop.f32.mrf.mxu0
    %v9420 = vadd.f32 %v9251, %v9419
    %v9421 = vpop.f32.mrf.mxu0
    %v9422 = vadd.f32 %v9253, %v9421
    %9423 = vmatmul.bf16.gmra.mxu0 %v7230
    %v9424 = vpop.f32.mrf.mxu0
    %v9425 = vadd.f32 %v9256, %v9424
    %v9426 = vpop.f32.mrf.mxu0
    %v9427 = vadd.f32 %v9258, %v9426
    %9428 = vmatmul.bf16.gmra.mxu0 %v7231
    %v9429 = vpop.f32.mrf.mxu0
    %v9430 = vadd.f32 %v9261, %v9429
    %v9431 = vpop.f32.mrf.mxu0
    %v9432 = vadd.f32 %v9263, %v9431
    %9433 = vmatmul.bf16.gmra.mxu0 %v7232
    %v9434 = vpop.f32.mrf.mxu0
    %v9435 = vadd.f32 %v9266, %v9434
    %v9436 = vpop.f32.mrf.mxu0
    %v9437 = vadd.f32 %v9268, %v9436
    %9438 = vmatmul.bf16.gmra.mxu0 %v7233
    %v9439 = vpop.f32.mrf.mxu0
    %v9440 = vadd.f32 %v9271, %v9439
    %v9441 = vpop.f32.mrf.mxu0
    %v9442 = vadd.f32 %v9273, %v9441
    %9443 = vmatmul.bf16.gmra.mxu0 %v7234
    %v9444 = vpop.f32.mrf.mxu0
    %v9445 = vadd.f32 %v9276, %v9444
    %v9446 = vpop.f32.mrf.mxu0
    %v9447 = vadd.f32 %v9278, %v9446
    %9448 = vmatmul.bf16.gmra.mxu0 %v7235
    %v9449 = vpop.f32.mrf.mxu0
    %v9450 = vadd.f32 %v9281, %v9449
    %v9451 = vpop.f32.mrf.mxu0
    %v9452 = vadd.f32 %v9283, %v9451
    %9453 = vmatmul.bf16.gmra.mxu0 %v7236
    %v9454 = vpop.f32.mrf.mxu0
    %v9455 = vadd.f32 %v9286, %v9454
    %v9456 = vpop.f32.mrf.mxu0
    %v9457 = vadd.f32 %v9288, %v9456
    %9458 = vmatmul.bf16.gmra.mxu0 %v7237
    %v9459 = vpop.f32.mrf.mxu0
    %v9460 = vadd.f32 %v9291, %v9459
    %v9461 = vpop.f32.mrf.mxu0
    %v9462 = vadd.f32 %v9293, %v9461
    %9463 = vmatmul.bf16.gmra.mxu0 %v7238
    %v9464 = vpop.f32.mrf.mxu0
    %v9465 = vadd.f32 %v9296, %v9464
    %v9466 = vpop.f32.mrf.mxu0
    %v9467 = vadd.f32 %v9298, %v9466
    %9468 = vmatmul.bf16.gmra.mxu0 %v7239
    %v9469 = vpop.f32.mrf.mxu0
    %v9470 = vadd.f32 %v9301, %v9469
    %v9471 = vpop.f32.mrf.mxu0
    %v9472 = vadd.f32 %v9303, %v9471
    %9473 = vmatmul.bf16.gmra.mxu0 %v7240
    %v9474 = vpop.f32.mrf.mxu0
    %v9475 = vadd.f32 %v9306, %v9474
    %v9476 = vpop.f32.mrf.mxu0
    %v9477 = vadd.f32 %v9308, %v9476
    %9478 = vmatmul.bf16.gmra.mxu0 %v7241
    %v9479 = vpop.f32.mrf.mxu0
    %v9480 = vadd.f32 %v9311, %v9479
    %v9481 = vpop.f32.mrf.mxu0
    %v9482 = vadd.f32 %v9313, %v9481
    %9483 = vmatmul.bf16.gmra.mxu0 %v7242
    %v9484 = vpop.f32.mrf.mxu0
    %v9485 = vadd.f32 %v9316, %v9484
    %v9486 = vpop.f32.mrf.mxu0
    %v9487 = vadd.f32 %v9318, %v9486
    %9488 = vmatmul.bf16.gmra.mxu0 %v7243
    %v9489 = vpop.f32.mrf.mxu0
    %v9490 = vadd.f32 %v9321, %v9489
    %v9491 = vpop.f32.mrf.mxu0
    %v9492 = vadd.f32 %v9323, %v9491
    %9493 = vmatmul.bf16.gmra.mxu0 %v7244
    %v9494 = vpop.f32.mrf.mxu0
    %v9495 = vadd.f32 %v9326, %v9494
    %v9496 = vpop.f32.mrf.mxu0
    %v9497 = vadd.f32 %v9328, %v9496
    %9498 = vmatmul.bf16.gmra.mxu0 %v7245
    %v9499 = vpop.f32.mrf.mxu0
    %v9500 = vadd.f32 %v9331, %v9499
    %v9501 = vpop.f32.mrf.mxu0
    %v9502 = vadd.f32 %v9333, %v9501
    %9503 = vmatmul.bf16.gmra.mxu0 %v7246
    %v9504 = vpop.f32.mrf.mxu0
    %v9505 = vadd.f32 %v9336, %v9504
    %v9506 = vpop.f32.mrf.mxu0
    %v9507 = vadd.f32 %v9338, %v9506
    %9508 = vmatmul.bf16.gmra.mxu0 %v7247
    %v9509 = vpop.f32.mrf.mxu0
    %v9510 = vadd.f32 %v9341, %v9509
    %v9511 = vpop.f32.mrf.mxu0
    %v9512 = vadd.f32 %v9343, %v9511
    %9513 = vmatmul.bf16.gmra.mxu0 %v7248
    %v9514 = vpop.f32.mrf.mxu0
    %v9515 = vadd.f32 %v9346, %v9514
    %v9516 = vpop.f32.mrf.mxu0
    %v9517 = vadd.f32 %v9348, %v9516
    %9518 = vmatmul.bf16.gmra.mxu0 %v7249
    %v9519 = vpop.f32.mrf.mxu0
    %v9520 = vadd.f32 %v9351, %v9519
    %v9521 = vpop.f32.mrf.mxu0
    %v9522 = vadd.f32 %v9353, %v9521
    %9523 = vmatmul.bf16.gmra.mxu0 %v7250
    %v9524 = vpop.f32.mrf.mxu0
    %v9525 = vadd.f32 %v9356, %v9524
    %v9526 = vpop.f32.mrf.mxu0
    %v9527 = vadd.f32 %v9358, %v9526
    %9528 = vmatmul.bf16.gmra.mxu0 %v7251
    %v9529 = vpop.f32.mrf.mxu0
    %v9530 = vadd.f32 %v9361, %v9529
    %v9531 = vpop.f32.mrf.mxu0
    %v9532 = vadd.f32 %v9363, %v9531
    %9533 = vmatmul.bf16.gmra.mxu0 %v7252
    %v9534 = vpop.f32.mrf.mxu0
    %v9535 = vadd.f32 %v9366, %v9534
    %v9536 = vpop.f32.mrf.mxu0
    %v9537 = vadd.f32 %v9368, %v9536
    %9538 = vmatmul.bf16.gmra.mxu0 %v7253
    %v9539 = vpop.f32.mrf.mxu0
    %v9540 = vadd.f32 %v9371, %v9539
    %v9541 = vpop.f32.mrf.mxu0
    %v9542 = vadd.f32 %v9373, %v9541
    %9543 = vdwg.mxu0
    %9544 = vmatpush.bf16.msra.mxu0 %v9085
    %9545 = vmatpush.bf16.msra.mxu0 %v9084
    %9546 = vmatpush.bf16.msra.mxu0 %v9083
    %9547 = vmatpush.bf16.msra.mxu0 %v9082
    %9548 = vmatpush.bf16.msra.mxu0 %v9081
    %9549 = vmatpush.bf16.msra.mxu0 %v9080
    %9550 = vmatpush.bf16.msra.mxu0 %v9079
    %9551 = vmatpush.bf16.msra.mxu0 %v9078
    %9552 = vmatmul.bf16.gmra.mxu0 %v7414
    %v9553 = vpop.f32.mrf.mxu0
    %v9554 = vadd.f32 %v9385, %v9553
    %v9555 = vpop.f32.mrf.mxu0
    %v9556 = vadd.f32 %v9387, %v9555
    %9557 = vmatmul.bf16.gmra.mxu0 %v7415
    %v9558 = vpop.f32.mrf.mxu0
    %v9559 = vadd.f32 %v9390, %v9558
    %v9560 = vpop.f32.mrf.mxu0
    %v9561 = vadd.f32 %v9392, %v9560
    %9562 = vmatmul.bf16.gmra.mxu0 %v7416
    %v9563 = vpop.f32.mrf.mxu0
    %v9564 = vadd.f32 %v9395, %v9563
    %v9565 = vpop.f32.mrf.mxu0
    %v9566 = vadd.f32 %v9397, %v9565
    %9567 = vmatmul.bf16.gmra.mxu0 %v7417
    %v9568 = vpop.f32.mrf.mxu0
    %v9569 = vadd.f32 %v9400, %v9568
    %v9570 = vpop.f32.mrf.mxu0
    %v9571 = vadd.f32 %v9402, %v9570
    %9572 = vmatmul.bf16.gmra.mxu0 %v7418
    %v9573 = vpop.f32.mrf.mxu0
    %v9574 = vadd.f32 %v9405, %v9573
    %v9575 = vpop.f32.mrf.mxu0
    %v9576 = vadd.f32 %v9407, %v9575
    %9577 = vmatmul.bf16.gmra.mxu0 %v7419
    %v9578 = vpop.f32.mrf.mxu0
    %v9579 = vadd.f32 %v9410, %v9578
    %v9580 = vpop.f32.mrf.mxu0
    %v9581 = vadd.f32 %v9412, %v9580
    %9582 = vmatmul.bf16.gmra.mxu0 %v7420
    %v9583 = vpop.f32.mrf.mxu0
    %v9584 = vadd.f32 %v9415, %v9583
    %v9585 = vpop.f32.mrf.mxu0
    %v9586 = vadd.f32 %v9417, %v9585
    %9587 = vmatmul.bf16.gmra.mxu0 %v7421
    %v9588 = vpop.f32.mrf.mxu0
    %v9589 = vadd.f32 %v9420, %v9588
    %v9590 = vpop.f32.mrf.mxu0
    %v9591 = vadd.f32 %v9422, %v9590
    %9592 = vmatmul.bf16.gmra.mxu0 %v7422
    %v9593 = vpop.f32.mrf.mxu0
    %v9594 = vadd.f32 %v9425, %v9593
    %v9595 = vpop.f32.mrf.mxu0
    %v9596 = vadd.f32 %v9427, %v9595
    %9597 = vmatmul.bf16.gmra.mxu0 %v7423
    %v9598 = vpop.f32.mrf.mxu0
    %v9599 = vadd.f32 %v9430, %v9598
    %v9600 = vpop.f32.mrf.mxu0
    %v9601 = vadd.f32 %v9432, %v9600
    %9602 = vmatmul.bf16.gmra.mxu0 %v7424
    %v9603 = vpop.f32.mrf.mxu0
    %v9604 = vadd.f32 %v9435, %v9603
    %v9605 = vpop.f32.mrf.mxu0
    %v9606 = vadd.f32 %v9437, %v9605
    %9607 = vmatmul.bf16.gmra.mxu0 %v7425
    %v9608 = vpop.f32.mrf.mxu0
    %v9609 = vadd.f32 %v9440, %v9608
    %v9610 = vpop.f32.mrf.mxu0
    %v9611 = vadd.f32 %v9442, %v9610
    %9612 = vmatmul.bf16.gmra.mxu0 %v7426
    %v9613 = vpop.f32.mrf.mxu0
    %v9614 = vadd.f32 %v9445, %v9613
    %v9615 = vpop.f32.mrf.mxu0
    %v9616 = vadd.f32 %v9447, %v9615
    %9617 = vmatmul.bf16.gmra.mxu0 %v7427
    %v9618 = vpop.f32.mrf.mxu0
    %v9619 = vadd.f32 %v9450, %v9618
    %v9620 = vpop.f32.mrf.mxu0
    %v9621 = vadd.f32 %v9452, %v9620
    %9622 = vmatmul.bf16.gmra.mxu0 %v7428
    %v9623 = vpop.f32.mrf.mxu0
    %v9624 = vadd.f32 %v9455, %v9623
    %v9625 = vpop.f32.mrf.mxu0
    %v9626 = vadd.f32 %v9457, %v9625
    %9627 = vmatmul.bf16.gmra.mxu0 %v7429
    %v9628 = vpop.f32.mrf.mxu0
    %v9629 = vadd.f32 %v9460, %v9628
    %v9630 = vpop.f32.mrf.mxu0
    %v9631 = vadd.f32 %v9462, %v9630
    %9632 = vmatmul.bf16.gmra.mxu0 %v7430
    %v9633 = vpop.f32.mrf.mxu0
    %v9634 = vadd.f32 %v9465, %v9633
    %v9635 = vpop.f32.mrf.mxu0
    %v9636 = vadd.f32 %v9467, %v9635
    %9637 = vmatmul.bf16.gmra.mxu0 %v7431
    %v9638 = vpop.f32.mrf.mxu0
    %v9639 = vadd.f32 %v9470, %v9638
    %v9640 = vpop.f32.mrf.mxu0
    %v9641 = vadd.f32 %v9472, %v9640
    %9642 = vmatmul.bf16.gmra.mxu0 %v7432
    %v9643 = vpop.f32.mrf.mxu0
    %v9644 = vadd.f32 %v9475, %v9643
    %v9645 = vpop.f32.mrf.mxu0
    %v9646 = vadd.f32 %v9477, %v9645
    %9647 = vmatmul.bf16.gmra.mxu0 %v7433
    %v9648 = vpop.f32.mrf.mxu0
    %v9649 = vadd.f32 %v9480, %v9648
    %v9650 = vpop.f32.mrf.mxu0
    %v9651 = vadd.f32 %v9482, %v9650
    %9652 = vmatmul.bf16.gmra.mxu0 %v7434
    %v9653 = vpop.f32.mrf.mxu0
    %v9654 = vadd.f32 %v9485, %v9653
    %v9655 = vpop.f32.mrf.mxu0
    %v9656 = vadd.f32 %v9487, %v9655
    %9657 = vmatmul.bf16.gmra.mxu0 %v7435
    %v9658 = vpop.f32.mrf.mxu0
    %v9659 = vadd.f32 %v9490, %v9658
    %v9660 = vpop.f32.mrf.mxu0
    %v9661 = vadd.f32 %v9492, %v9660
    %9662 = vmatmul.bf16.gmra.mxu0 %v7436
    %v9663 = vpop.f32.mrf.mxu0
    %v9664 = vadd.f32 %v9495, %v9663
    %v9665 = vpop.f32.mrf.mxu0
    %v9666 = vadd.f32 %v9497, %v9665
    %9667 = vmatmul.bf16.gmra.mxu0 %v7437
    %v9668 = vpop.f32.mrf.mxu0
    %v9669 = vadd.f32 %v9500, %v9668
    %v9670 = vpop.f32.mrf.mxu0
    %v9671 = vadd.f32 %v9502, %v9670
    %9672 = vmatmul.bf16.gmra.mxu0 %v7438
    %v9673 = vpop.f32.mrf.mxu0
    %v9674 = vadd.f32 %v9505, %v9673
    %v9675 = vpop.f32.mrf.mxu0
    %v9676 = vadd.f32 %v9507, %v9675
    %9677 = vmatmul.bf16.gmra.mxu0 %v7439
    %v9678 = vpop.f32.mrf.mxu0
    %v9679 = vadd.f32 %v9510, %v9678
    %v9680 = vpop.f32.mrf.mxu0
    %v9681 = vadd.f32 %v9512, %v9680
    %9682 = vmatmul.bf16.gmra.mxu0 %v7440
    %v9683 = vpop.f32.mrf.mxu0
    %v9684 = vadd.f32 %v9515, %v9683
    %v9685 = vpop.f32.mrf.mxu0
    %v9686 = vadd.f32 %v9517, %v9685
    %9687 = vmatmul.bf16.gmra.mxu0 %v7441
    %v9688 = vpop.f32.mrf.mxu0
    %v9689 = vadd.f32 %v9520, %v9688
    %v9690 = vpop.f32.mrf.mxu0
    %v9691 = vadd.f32 %v9522, %v9690
    %9692 = vmatmul.bf16.gmra.mxu0 %v7442
    %v9693 = vpop.f32.mrf.mxu0
    %v9694 = vadd.f32 %v9525, %v9693
    %v9695 = vpop.f32.mrf.mxu0
    %v9696 = vadd.f32 %v9527, %v9695
    %9697 = vmatmul.bf16.gmra.mxu0 %v7443
    %v9698 = vpop.f32.mrf.mxu0
    %v9699 = vadd.f32 %v9530, %v9698
    %v9700 = vpop.f32.mrf.mxu0
    %v9701 = vadd.f32 %v9532, %v9700
    %9702 = vmatmul.bf16.gmra.mxu0 %v7444
    %v9703 = vpop.f32.mrf.mxu0
    %v9704 = vadd.f32 %v9535, %v9703
    %v9705 = vpop.f32.mrf.mxu0
    %v9706 = vadd.f32 %v9537, %v9705
    %9707 = vmatmul.bf16.gmra.mxu0 %v7445
    %v9708 = vpop.f32.mrf.mxu0
    %v9709 = vadd.f32 %v9540, %v9708
    %v9710 = vpop.f32.mrf.mxu0
    %v9711 = vadd.f32 %v9542, %v9710
    %9712 = vdwg.mxu0
    %9713 = vmatpush.bf16.msra.mxu0 %v9093
    %9714 = vmatpush.bf16.msra.mxu0 %v9092
    %9715 = vmatpush.bf16.msra.mxu0 %v9091
    %9716 = vmatpush.bf16.msra.mxu0 %v9090
    %9717 = vmatpush.bf16.msra.mxu0 %v9089
    %9718 = vmatpush.bf16.msra.mxu0 %v9088
    %9719 = vmatpush.bf16.msra.mxu0 %v9087
    %9720 = vmatpush.bf16.msra.mxu0 %v9086
    %9721 = vmatmul.bf16.gmra.mxu0 %v7606
    %v9722 = vpop.f32.mrf.mxu0
    %v9723 = vadd.f32 %v9554, %v9722
    %v9724 = vpop.f32.mrf.mxu0
    %v9725 = vadd.f32 %v9556, %v9724
    %9726 = vmatmul.bf16.gmra.mxu0 %v7607
    %v9727 = vpop.f32.mrf.mxu0
    %v9728 = vadd.f32 %v9559, %v9727
    %v9729 = vpop.f32.mrf.mxu0
    %v9730 = vadd.f32 %v9561, %v9729
    %9731 = vmatmul.bf16.gmra.mxu0 %v7608
    %v9732 = vpop.f32.mrf.mxu0
    %v9733 = vadd.f32 %v9564, %v9732
    %v9734 = vpop.f32.mrf.mxu0
    %v9735 = vadd.f32 %v9566, %v9734
    %9736 = vmatmul.bf16.gmra.mxu0 %v7609
    %v9737 = vpop.f32.mrf.mxu0
    %v9738 = vadd.f32 %v9569, %v9737
    %v9739 = vpop.f32.mrf.mxu0
    %v9740 = vadd.f32 %v9571, %v9739
    %9741 = vmatmul.bf16.gmra.mxu0 %v7610
    %v9742 = vpop.f32.mrf.mxu0
    %v9743 = vadd.f32 %v9574, %v9742
    %v9744 = vpop.f32.mrf.mxu0
    %v9745 = vadd.f32 %v9576, %v9744
    %9746 = vmatmul.bf16.gmra.mxu0 %v7611
    %v9747 = vpop.f32.mrf.mxu0
    %v9748 = vadd.f32 %v9579, %v9747
    %v9749 = vpop.f32.mrf.mxu0
    %v9750 = vadd.f32 %v9581, %v9749
    %9751 = vmatmul.bf16.gmra.mxu0 %v7612
    %v9752 = vpop.f32.mrf.mxu0
    %v9753 = vadd.f32 %v9584, %v9752
    %v9754 = vpop.f32.mrf.mxu0
    %v9755 = vadd.f32 %v9586, %v9754
    %9756 = vmatmul.bf16.gmra.mxu0 %v7613
    %v9757 = vpop.f32.mrf.mxu0
    %v9758 = vadd.f32 %v9589, %v9757
    %v9759 = vpop.f32.mrf.mxu0
    %v9760 = vadd.f32 %v9591, %v9759
    %9761 = vmatmul.bf16.gmra.mxu0 %v7614
    %v9762 = vpop.f32.mrf.mxu0
    %v9763 = vadd.f32 %v9594, %v9762
    %v9764 = vpop.f32.mrf.mxu0
    %v9765 = vadd.f32 %v9596, %v9764
    %9766 = vmatmul.bf16.gmra.mxu0 %v7615
    %v9767 = vpop.f32.mrf.mxu0
    %v9768 = vadd.f32 %v9599, %v9767
    %v9769 = vpop.f32.mrf.mxu0
    %v9770 = vadd.f32 %v9601, %v9769
    %9771 = vmatmul.bf16.gmra.mxu0 %v7616
    %v9772 = vpop.f32.mrf.mxu0
    %v9773 = vadd.f32 %v9604, %v9772
    %v9774 = vpop.f32.mrf.mxu0
    %v9775 = vadd.f32 %v9606, %v9774
    %9776 = vmatmul.bf16.gmra.mxu0 %v7617
    %v9777 = vpop.f32.mrf.mxu0
    %v9778 = vadd.f32 %v9609, %v9777
    %v9779 = vpop.f32.mrf.mxu0
    %v9780 = vadd.f32 %v9611, %v9779
    %9781 = vmatmul.bf16.gmra.mxu0 %v7618
    %v9782 = vpop.f32.mrf.mxu0
    %v9783 = vadd.f32 %v9614, %v9782
    %v9784 = vpop.f32.mrf.mxu0
    %v9785 = vadd.f32 %v9616, %v9784
    %9786 = vmatmul.bf16.gmra.mxu0 %v7619
    %v9787 = vpop.f32.mrf.mxu0
    %v9788 = vadd.f32 %v9619, %v9787
    %v9789 = vpop.f32.mrf.mxu0
    %v9790 = vadd.f32 %v9621, %v9789
    %9791 = vmatmul.bf16.gmra.mxu0 %v7620
    %v9792 = vpop.f32.mrf.mxu0
    %v9793 = vadd.f32 %v9624, %v9792
    %v9794 = vpop.f32.mrf.mxu0
    %v9795 = vadd.f32 %v9626, %v9794
    %9796 = vmatmul.bf16.gmra.mxu0 %v7621
    %v9797 = vpop.f32.mrf.mxu0
    %v9798 = vadd.f32 %v9629, %v9797
    %v9799 = vpop.f32.mrf.mxu0
    %v9800 = vadd.f32 %v9631, %v9799
    %9801 = vmatmul.bf16.gmra.mxu0 %v7622
    %v9802 = vpop.f32.mrf.mxu0
    %v9803 = vadd.f32 %v9634, %v9802
    %v9804 = vpop.f32.mrf.mxu0
    %v9805 = vadd.f32 %v9636, %v9804
    %9806 = vmatmul.bf16.gmra.mxu0 %v7623
    %v9807 = vpop.f32.mrf.mxu0
    %v9808 = vadd.f32 %v9639, %v9807
    %v9809 = vpop.f32.mrf.mxu0
    %v9810 = vadd.f32 %v9641, %v9809
    %9811 = vmatmul.bf16.gmra.mxu0 %v7624
    %v9812 = vpop.f32.mrf.mxu0
    %v9813 = vadd.f32 %v9644, %v9812
    %v9814 = vpop.f32.mrf.mxu0
    %v9815 = vadd.f32 %v9646, %v9814
    %9816 = vmatmul.bf16.gmra.mxu0 %v7625
    %v9817 = vpop.f32.mrf.mxu0
    %v9818 = vadd.f32 %v9649, %v9817
    %v9819 = vpop.f32.mrf.mxu0
    %v9820 = vadd.f32 %v9651, %v9819
    %9821 = vmatmul.bf16.gmra.mxu0 %v7626
    %v9822 = vpop.f32.mrf.mxu0
    %v9823 = vadd.f32 %v9654, %v9822
    %v9824 = vpop.f32.mrf.mxu0
    %v9825 = vadd.f32 %v9656, %v9824
    %9826 = vmatmul.bf16.gmra.mxu0 %v7627
    %v9827 = vpop.f32.mrf.mxu0
    %v9828 = vadd.f32 %v9659, %v9827
    %v9829 = vpop.f32.mrf.mxu0
    %v9830 = vadd.f32 %v9661, %v9829
    %9831 = vmatmul.bf16.gmra.mxu0 %v7628
    %v9832 = vpop.f32.mrf.mxu0
    %v9833 = vadd.f32 %v9664, %v9832
    %v9834 = vpop.f32.mrf.mxu0
    %v9835 = vadd.f32 %v9666, %v9834
    %9836 = vmatmul.bf16.gmra.mxu0 %v7629
    %v9837 = vpop.f32.mrf.mxu0
    %v9838 = vadd.f32 %v9669, %v9837
    %v9839 = vpop.f32.mrf.mxu0
    %v9840 = vadd.f32 %v9671, %v9839
    %9841 = vmatmul.bf16.gmra.mxu0 %v7630
    %v9842 = vpop.f32.mrf.mxu0
    %v9843 = vadd.f32 %v9674, %v9842
    %v9844 = vpop.f32.mrf.mxu0
    %v9845 = vadd.f32 %v9676, %v9844
    %9846 = vmatmul.bf16.gmra.mxu0 %v7631
    %v9847 = vpop.f32.mrf.mxu0
    %v9848 = vadd.f32 %v9679, %v9847
    %v9849 = vpop.f32.mrf.mxu0
    %v9850 = vadd.f32 %v9681, %v9849
    %9851 = vmatmul.bf16.gmra.mxu0 %v7632
    %v9852 = vpop.f32.mrf.mxu0
    %v9853 = vadd.f32 %v9684, %v9852
    %v9854 = vpop.f32.mrf.mxu0
    %v9855 = vadd.f32 %v9686, %v9854
    %9856 = vmatmul.bf16.gmra.mxu0 %v7633
    %v9857 = vpop.f32.mrf.mxu0
    %v9858 = vadd.f32 %v9689, %v9857
    %v9859 = vpop.f32.mrf.mxu0
    %v9860 = vadd.f32 %v9691, %v9859
    %9861 = vmatmul.bf16.gmra.mxu0 %v7634
    %v9862 = vpop.f32.mrf.mxu0
    %v9863 = vadd.f32 %v9694, %v9862
    %v9864 = vpop.f32.mrf.mxu0
    %v9865 = vadd.f32 %v9696, %v9864
    %9866 = vmatmul.bf16.gmra.mxu0 %v7635
    %v9867 = vpop.f32.mrf.mxu0
    %v9868 = vadd.f32 %v9699, %v9867
    %v9869 = vpop.f32.mrf.mxu0
    %v9870 = vadd.f32 %v9701, %v9869
    %9871 = vmatmul.bf16.gmra.mxu0 %v7636
    %v9872 = vpop.f32.mrf.mxu0
    %v9873 = vadd.f32 %v9704, %v9872
    %v9874 = vpop.f32.mrf.mxu0
    %v9875 = vadd.f32 %v9706, %v9874
    %9876 = vmatmul.bf16.gmra.mxu0 %v7637
    %v9877 = vpop.f32.mrf.mxu0
    %v9878 = vadd.f32 %v9709, %v9877
    %v9879 = vpop.f32.mrf.mxu0
    %v9880 = vadd.f32 %v9711, %v9879
    %9881 = vdwg.mxu0
    %9882 = vmatpush.bf16.msra.mxu0 %v9101
    %9883 = vmatpush.bf16.msra.mxu0 %v9100
    %9884 = vmatpush.bf16.msra.mxu0 %v9099
    %9885 = vmatpush.bf16.msra.mxu0 %v9098
    %9886 = vmatpush.bf16.msra.mxu0 %v9097
    %9887 = vmatpush.bf16.msra.mxu0 %v9096
    %9888 = vmatpush.bf16.msra.mxu0 %v9095
    %9889 = vmatpush.bf16.msra.mxu0 %v9094
    %9890 = vmatmul.bf16.gmra.mxu0 %v7798
    %v9891 = vpop.f32.mrf.mxu0
    %v9892 = vadd.f32 %v9723, %v9891
    %v9893 = vpop.f32.mrf.mxu0
    %v9894 = vadd.f32 %v9725, %v9893
    %9895 = vmatmul.bf16.gmra.mxu0 %v7799
    %v9896 = vpop.f32.mrf.mxu0
    %v9897 = vadd.f32 %v9728, %v9896
    %v9898 = vpop.f32.mrf.mxu0
    %v9899 = vadd.f32 %v9730, %v9898
    %9900 = vmatmul.bf16.gmra.mxu0 %v7800
    %v9901 = vpop.f32.mrf.mxu0
    %v9902 = vadd.f32 %v9733, %v9901
    %v9903 = vpop.f32.mrf.mxu0
    %v9904 = vadd.f32 %v9735, %v9903
    %9905 = vmatmul.bf16.gmra.mxu0 %v7801
    %v9906 = vpop.f32.mrf.mxu0
    %v9907 = vadd.f32 %v9738, %v9906
    %v9908 = vpop.f32.mrf.mxu0
    %v9909 = vadd.f32 %v9740, %v9908
    %9910 = vmatmul.bf16.gmra.mxu0 %v7802
    %v9911 = vpop.f32.mrf.mxu0
    %v9912 = vadd.f32 %v9743, %v9911
    %v9913 = vpop.f32.mrf.mxu0
    %v9914 = vadd.f32 %v9745, %v9913
    %9915 = vmatmul.bf16.gmra.mxu0 %v7803
    %v9916 = vpop.f32.mrf.mxu0
    %v9917 = vadd.f32 %v9748, %v9916
    %v9918 = vpop.f32.mrf.mxu0
    %v9919 = vadd.f32 %v9750, %v9918
    %9920 = vmatmul.bf16.gmra.mxu0 %v7804
    %v9921 = vpop.f32.mrf.mxu0
    %v9922 = vadd.f32 %v9753, %v9921
    %v9923 = vpop.f32.mrf.mxu0
    %v9924 = vadd.f32 %v9755, %v9923
    %9925 = vmatmul.bf16.gmra.mxu0 %v7805
    %v9926 = vpop.f32.mrf.mxu0
    %v9927 = vadd.f32 %v9758, %v9926
    %v9928 = vpop.f32.mrf.mxu0
    %v9929 = vadd.f32 %v9760, %v9928
    %9930 = vmatmul.bf16.gmra.mxu0 %v7806
    %v9931 = vpop.f32.mrf.mxu0
    %v9932 = vadd.f32 %v9763, %v9931
    %v9933 = vpop.f32.mrf.mxu0
    %v9934 = vadd.f32 %v9765, %v9933
    %9935 = vmatmul.bf16.gmra.mxu0 %v7807
    %v9936 = vpop.f32.mrf.mxu0
    %v9937 = vadd.f32 %v9768, %v9936
    %v9938 = vpop.f32.mrf.mxu0
    %v9939 = vadd.f32 %v9770, %v9938
    %9940 = vmatmul.bf16.gmra.mxu0 %v7808
    %v9941 = vpop.f32.mrf.mxu0
    %v9942 = vadd.f32 %v9773, %v9941
    %v9943 = vpop.f32.mrf.mxu0
    %v9944 = vadd.f32 %v9775, %v9943
    %9945 = vmatmul.bf16.gmra.mxu0 %v7809
    %v9946 = vpop.f32.mrf.mxu0
    %v9947 = vadd.f32 %v9778, %v9946
    %v9948 = vpop.f32.mrf.mxu0
    %v9949 = vadd.f32 %v9780, %v9948
    %9950 = vmatmul.bf16.gmra.mxu0 %v7810
    %v9951 = vpop.f32.mrf.mxu0
    %v9952 = vadd.f32 %v9783, %v9951
    %v9953 = vpop.f32.mrf.mxu0
    %v9954 = vadd.f32 %v9785, %v9953
    %9955 = vmatmul.bf16.gmra.mxu0 %v7811
    %v9956 = vpop.f32.mrf.mxu0
    %v9957 = vadd.f32 %v9788, %v9956
    %v9958 = vpop.f32.mrf.mxu0
    %v9959 = vadd.f32 %v9790, %v9958
    %9960 = vmatmul.bf16.gmra.mxu0 %v7812
    %v9961 = vpop.f32.mrf.mxu0
    %v9962 = vadd.f32 %v9793, %v9961
    %v9963 = vpop.f32.mrf.mxu0
    %v9964 = vadd.f32 %v9795, %v9963
    %9965 = vmatmul.bf16.gmra.mxu0 %v7813
    %v9966 = vpop.f32.mrf.mxu0
    %v9967 = vadd.f32 %v9798, %v9966
    %v9968 = vpop.f32.mrf.mxu0
    %v9969 = vadd.f32 %v9800, %v9968
    %9970 = vmatmul.bf16.gmra.mxu0 %v7814
    %v9971 = vpop.f32.mrf.mxu0
    %v9972 = vadd.f32 %v9803, %v9971
    %v9973 = vpop.f32.mrf.mxu0
    %v9974 = vadd.f32 %v9805, %v9973
    %9975 = vmatmul.bf16.gmra.mxu0 %v7815
    %v9976 = vpop.f32.mrf.mxu0
    %v9977 = vadd.f32 %v9808, %v9976
    %v9978 = vpop.f32.mrf.mxu0
    %v9979 = vadd.f32 %v9810, %v9978
    %9980 = vmatmul.bf16.gmra.mxu0 %v7816
    %v9981 = vpop.f32.mrf.mxu0
    %v9982 = vadd.f32 %v9813, %v9981
    %v9983 = vpop.f32.mrf.mxu0
    %v9984 = vadd.f32 %v9815, %v9983
    %9985 = vmatmul.bf16.gmra.mxu0 %v7817
    %v9986 = vpop.f32.mrf.mxu0
    %v9987 = vadd.f32 %v9818, %v9986
    %v9988 = vpop.f32.mrf.mxu0
    %v9989 = vadd.f32 %v9820, %v9988
    %9990 = vmatmul.bf16.gmra.mxu0 %v7818
    %v9991 = vpop.f32.mrf.mxu0
    %v9992 = vadd.f32 %v9823, %v9991
    %v9993 = vpop.f32.mrf.mxu0
    %v9994 = vadd.f32 %v9825, %v9993
    %9995 = vmatmul.bf16.gmra.mxu0 %v7819
    %v9996 = vpop.f32.mrf.mxu0
    %v9997 = vadd.f32 %v9828, %v9996
    %v9998 = vpop.f32.mrf.mxu0
    %v9999 = vadd.f32 %v9830, %v9998
    %10000 = vmatmul.bf16.gmra.mxu0 %v7820
    %v10001 = vpop.f32.mrf.mxu0
    %v10002 = vadd.f32 %v9833, %v10001
    %v10003 = vpop.f32.mrf.mxu0
    %v10004 = vadd.f32 %v9835, %v10003
    %10005 = vmatmul.bf16.gmra.mxu0 %v7821
    %v10006 = vpop.f32.mrf.mxu0
    %v10007 = vadd.f32 %v9838, %v10006
    %v10008 = vpop.f32.mrf.mxu0
    %v10009 = vadd.f32 %v9840, %v10008
    %10010 = vmatmul.bf16.gmra.mxu0 %v7822
    %v10011 = vpop.f32.mrf.mxu0
    %v10012 = vadd.f32 %v9843, %v10011
    %v10013 = vpop.f32.mrf.mxu0
    %v10014 = vadd.f32 %v9845, %v10013
    %10015 = vmatmul.bf16.gmra.mxu0 %v7823
    %v10016 = vpop.f32.mrf.mxu0
    %v10017 = vadd.f32 %v9848, %v10016
    %v10018 = vpop.f32.mrf.mxu0
    %v10019 = vadd.f32 %v9850, %v10018
    %10020 = vmatmul.bf16.gmra.mxu0 %v7824
    %v10021 = vpop.f32.mrf.mxu0
    %v10022 = vadd.f32 %v9853, %v10021
    %v10023 = vpop.f32.mrf.mxu0
    %v10024 = vadd.f32 %v9855, %v10023
    %10025 = vmatmul.bf16.gmra.mxu0 %v7825
    %v10026 = vpop.f32.mrf.mxu0
    %v10027 = vadd.f32 %v9858, %v10026
    %v10028 = vpop.f32.mrf.mxu0
    %v10029 = vadd.f32 %v9860, %v10028
    %10030 = vmatmul.bf16.gmra.mxu0 %v7826
    %v10031 = vpop.f32.mrf.mxu0
    %v10032 = vadd.f32 %v9863, %v10031
    %v10033 = vpop.f32.mrf.mxu0
    %v10034 = vadd.f32 %v9865, %v10033
    %10035 = vmatmul.bf16.gmra.mxu0 %v7827
    %v10036 = vpop.f32.mrf.mxu0
    %v10037 = vadd.f32 %v9868, %v10036
    %v10038 = vpop.f32.mrf.mxu0
    %v10039 = vadd.f32 %v9870, %v10038
    %10040 = vmatmul.bf16.gmra.mxu0 %v7828
    %v10041 = vpop.f32.mrf.mxu0
    %v10042 = vadd.f32 %v9873, %v10041
    %v10043 = vpop.f32.mrf.mxu0
    %v10044 = vadd.f32 %v9875, %v10043
    %10045 = vmatmul.bf16.gmra.mxu0 %v7829
    %v10046 = vpop.f32.mrf.mxu0
    %v10047 = vadd.f32 %v9878, %v10046
    %v10048 = vpop.f32.mrf.mxu0
    %v10049 = vadd.f32 %v9880, %v10048
    %10050 = vdwg.mxu0
    %10051 = vmatpush.bf16.msra.mxu0 %v9109
    %10052 = vmatpush.bf16.msra.mxu0 %v9108
    %10053 = vmatpush.bf16.msra.mxu0 %v9107
    %10054 = vmatpush.bf16.msra.mxu0 %v9106
    %10055 = vmatpush.bf16.msra.mxu0 %v9105
    %10056 = vmatpush.bf16.msra.mxu0 %v9104
    %10057 = vmatpush.bf16.msra.mxu0 %v9103
    %10058 = vmatpush.bf16.msra.mxu0 %v9102
    %10059 = vmatmul.bf16.gmra.mxu0 %v7990
    %v10060 = vpop.f32.mrf.mxu0
    %v10061 = vadd.f32 %v9892, %v10060
    %v10062 = vpop.f32.mrf.mxu0
    %v10063 = vadd.f32 %v9894, %v10062
    %10064 = vmatmul.bf16.gmra.mxu0 %v7991
    %v10065 = vpop.f32.mrf.mxu0
    %v10066 = vadd.f32 %v9897, %v10065
    %v10067 = vpop.f32.mrf.mxu0
    %v10068 = vadd.f32 %v9899, %v10067
    %10069 = vmatmul.bf16.gmra.mxu0 %v7992
    %v10070 = vpop.f32.mrf.mxu0
    %v10071 = vadd.f32 %v9902, %v10070
    %v10072 = vpop.f32.mrf.mxu0
    %v10073 = vadd.f32 %v9904, %v10072
    %10074 = vmatmul.bf16.gmra.mxu0 %v7993
    %v10075 = vpop.f32.mrf.mxu0
    %v10076 = vadd.f32 %v9907, %v10075
    %v10077 = vpop.f32.mrf.mxu0
    %v10078 = vadd.f32 %v9909, %v10077
    %10079 = vmatmul.bf16.gmra.mxu0 %v7994
    %v10080 = vpop.f32.mrf.mxu0
    %v10081 = vadd.f32 %v9912, %v10080
    %v10082 = vpop.f32.mrf.mxu0
    %v10083 = vadd.f32 %v9914, %v10082
    %10084 = vmatmul.bf16.gmra.mxu0 %v7995
    %v10085 = vpop.f32.mrf.mxu0
    %v10086 = vadd.f32 %v9917, %v10085
    %v10087 = vpop.f32.mrf.mxu0
    %v10088 = vadd.f32 %v9919, %v10087
    %10089 = vmatmul.bf16.gmra.mxu0 %v7996
    %v10090 = vpop.f32.mrf.mxu0
    %v10091 = vadd.f32 %v9922, %v10090
    %v10092 = vpop.f32.mrf.mxu0
    %v10093 = vadd.f32 %v9924, %v10092
    %10094 = vmatmul.bf16.gmra.mxu0 %v7997
    %v10095 = vpop.f32.mrf.mxu0
    %v10096 = vadd.f32 %v9927, %v10095
    %v10097 = vpop.f32.mrf.mxu0
    %v10098 = vadd.f32 %v9929, %v10097
    %10099 = vmatmul.bf16.gmra.mxu0 %v7998
    %v10100 = vpop.f32.mrf.mxu0
    %v10101 = vadd.f32 %v9932, %v10100
    %v10102 = vpop.f32.mrf.mxu0
    %v10103 = vadd.f32 %v9934, %v10102
    %10104 = vmatmul.bf16.gmra.mxu0 %v7999
    %v10105 = vpop.f32.mrf.mxu0
    %v10106 = vadd.f32 %v9937, %v10105
    %v10107 = vpop.f32.mrf.mxu0
    %v10108 = vadd.f32 %v9939, %v10107
    %10109 = vmatmul.bf16.gmra.mxu0 %v8000
    %v10110 = vpop.f32.mrf.mxu0
    %v10111 = vadd.f32 %v9942, %v10110
    %v10112 = vpop.f32.mrf.mxu0
    %v10113 = vadd.f32 %v9944, %v10112
    %10114 = vmatmul.bf16.gmra.mxu0 %v8001
    %v10115 = vpop.f32.mrf.mxu0
    %v10116 = vadd.f32 %v9947, %v10115
    %v10117 = vpop.f32.mrf.mxu0
    %v10118 = vadd.f32 %v9949, %v10117
    %10119 = vmatmul.bf16.gmra.mxu0 %v8002
    %v10120 = vpop.f32.mrf.mxu0
    %v10121 = vadd.f32 %v9952, %v10120
    %v10122 = vpop.f32.mrf.mxu0
    %v10123 = vadd.f32 %v9954, %v10122
    %10124 = vmatmul.bf16.gmra.mxu0 %v8003
    %v10125 = vpop.f32.mrf.mxu0
    %v10126 = vadd.f32 %v9957, %v10125
    %v10127 = vpop.f32.mrf.mxu0
    %v10128 = vadd.f32 %v9959, %v10127
    %10129 = vmatmul.bf16.gmra.mxu0 %v8004
    %v10130 = vpop.f32.mrf.mxu0
    %v10131 = vadd.f32 %v9962, %v10130
    %v10132 = vpop.f32.mrf.mxu0
    %v10133 = vadd.f32 %v9964, %v10132
    %10134 = vmatmul.bf16.gmra.mxu0 %v8005
    %v10135 = vpop.f32.mrf.mxu0
    %v10136 = vadd.f32 %v9967, %v10135
    %v10137 = vpop.f32.mrf.mxu0
    %v10138 = vadd.f32 %v9969, %v10137
    %10139 = vmatmul.bf16.gmra.mxu0 %v8006
    %v10140 = vpop.f32.mrf.mxu0
    %v10141 = vadd.f32 %v9972, %v10140
    %v10142 = vpop.f32.mrf.mxu0
    %v10143 = vadd.f32 %v9974, %v10142
    %10144 = vmatmul.bf16.gmra.mxu0 %v8007
    %v10145 = vpop.f32.mrf.mxu0
    %v10146 = vadd.f32 %v9977, %v10145
    %v10147 = vpop.f32.mrf.mxu0
    %v10148 = vadd.f32 %v9979, %v10147
    %10149 = vmatmul.bf16.gmra.mxu0 %v8008
    %v10150 = vpop.f32.mrf.mxu0
    %v10151 = vadd.f32 %v9982, %v10150
    %v10152 = vpop.f32.mrf.mxu0
    %v10153 = vadd.f32 %v9984, %v10152
    %10154 = vmatmul.bf16.gmra.mxu0 %v8009
    %v10155 = vpop.f32.mrf.mxu0
    %v10156 = vadd.f32 %v9987, %v10155
    %v10157 = vpop.f32.mrf.mxu0
    %v10158 = vadd.f32 %v9989, %v10157
    %10159 = vmatmul.bf16.gmra.mxu0 %v8010
    %v10160 = vpop.f32.mrf.mxu0
    %v10161 = vadd.f32 %v9992, %v10160
    %v10162 = vpop.f32.mrf.mxu0
    %v10163 = vadd.f32 %v9994, %v10162
    %10164 = vmatmul.bf16.gmra.mxu0 %v8011
    %v10165 = vpop.f32.mrf.mxu0
    %v10166 = vadd.f32 %v9997, %v10165
    %v10167 = vpop.f32.mrf.mxu0
    %v10168 = vadd.f32 %v9999, %v10167
    %10169 = vmatmul.bf16.gmra.mxu0 %v8012
    %v10170 = vpop.f32.mrf.mxu0
    %v10171 = vadd.f32 %v10002, %v10170
    %v10172 = vpop.f32.mrf.mxu0
    %v10173 = vadd.f32 %v10004, %v10172
    %10174 = vmatmul.bf16.gmra.mxu0 %v8013
    %v10175 = vpop.f32.mrf.mxu0
    %v10176 = vadd.f32 %v10007, %v10175
    %v10177 = vpop.f32.mrf.mxu0
    %v10178 = vadd.f32 %v10009, %v10177
    %10179 = vmatmul.bf16.gmra.mxu0 %v8014
    %v10180 = vpop.f32.mrf.mxu0
    %v10181 = vadd.f32 %v10012, %v10180
    %v10182 = vpop.f32.mrf.mxu0
    %v10183 = vadd.f32 %v10014, %v10182
    %10184 = vmatmul.bf16.gmra.mxu0 %v8015
    %v10185 = vpop.f32.mrf.mxu0
    %v10186 = vadd.f32 %v10017, %v10185
    %v10187 = vpop.f32.mrf.mxu0
    %v10188 = vadd.f32 %v10019, %v10187
    %10189 = vmatmul.bf16.gmra.mxu0 %v8016
    %v10190 = vpop.f32.mrf.mxu0
    %v10191 = vadd.f32 %v10022, %v10190
    %v10192 = vpop.f32.mrf.mxu0
    %v10193 = vadd.f32 %v10024, %v10192
    %10194 = vmatmul.bf16.gmra.mxu0 %v8017
    %v10195 = vpop.f32.mrf.mxu0
    %v10196 = vadd.f32 %v10027, %v10195
    %v10197 = vpop.f32.mrf.mxu0
    %v10198 = vadd.f32 %v10029, %v10197
    %10199 = vmatmul.bf16.gmra.mxu0 %v8018
    %v10200 = vpop.f32.mrf.mxu0
    %v10201 = vadd.f32 %v10032, %v10200
    %v10202 = vpop.f32.mrf.mxu0
    %v10203 = vadd.f32 %v10034, %v10202
    %10204 = vmatmul.bf16.gmra.mxu0 %v8019
    %v10205 = vpop.f32.mrf.mxu0
    %v10206 = vadd.f32 %v10037, %v10205
    %v10207 = vpop.f32.mrf.mxu0
    %v10208 = vadd.f32 %v10039, %v10207
    %10209 = vmatmul.bf16.gmra.mxu0 %v8020
    %v10210 = vpop.f32.mrf.mxu0
    %v10211 = vadd.f32 %v10042, %v10210
    %v10212 = vpop.f32.mrf.mxu0
    %v10213 = vadd.f32 %v10044, %v10212
    %10214 = vmatmul.bf16.gmra.mxu0 %v8021
    %v10215 = vpop.f32.mrf.mxu0
    %v10216 = vadd.f32 %v10047, %v10215
    %v10217 = vpop.f32.mrf.mxu0
    %v10218 = vadd.f32 %v10049, %v10217
    %10219 = vdwg.mxu0
    %10220 = vmatpush.bf16.msra.mxu0 %v9117
    %10221 = vmatpush.bf16.msra.mxu0 %v9116
    %10222 = vmatpush.bf16.msra.mxu0 %v9115
    %10223 = vmatpush.bf16.msra.mxu0 %v9114
    %10224 = vmatpush.bf16.msra.mxu0 %v9113
    %10225 = vmatpush.bf16.msra.mxu0 %v9112
    %10226 = vmatpush.bf16.msra.mxu0 %v9111
    %10227 = vmatpush.bf16.msra.mxu0 %v9110
    %10228 = vmatmul.bf16.gmra.mxu0 %v8182
    %v10229 = vpop.f32.mrf.mxu0
    %v10230 = vadd.f32 %v10061, %v10229
    %v10231 = vpop.f32.mrf.mxu0
    %v10232 = vadd.f32 %v10063, %v10231
    %10233 = vmatmul.bf16.gmra.mxu0 %v8183
    %v10234 = vpop.f32.mrf.mxu0
    %v10235 = vadd.f32 %v10066, %v10234
    %v10236 = vpop.f32.mrf.mxu0
    %v10237 = vadd.f32 %v10068, %v10236
    %10238 = vmatmul.bf16.gmra.mxu0 %v8184
    %v10239 = vpop.f32.mrf.mxu0
    %v10240 = vadd.f32 %v10071, %v10239
    %v10241 = vpop.f32.mrf.mxu0
    %v10242 = vadd.f32 %v10073, %v10241
    %10243 = vmatmul.bf16.gmra.mxu0 %v8185
    %v10244 = vpop.f32.mrf.mxu0
    %v10245 = vadd.f32 %v10076, %v10244
    %v10246 = vpop.f32.mrf.mxu0
    %v10247 = vadd.f32 %v10078, %v10246
    %10248 = vmatmul.bf16.gmra.mxu0 %v8186
    %v10249 = vpop.f32.mrf.mxu0
    %v10250 = vadd.f32 %v10081, %v10249
    %v10251 = vpop.f32.mrf.mxu0
    %v10252 = vadd.f32 %v10083, %v10251
    %10253 = vmatmul.bf16.gmra.mxu0 %v8187
    %v10254 = vpop.f32.mrf.mxu0
    %v10255 = vadd.f32 %v10086, %v10254
    %v10256 = vpop.f32.mrf.mxu0
    %v10257 = vadd.f32 %v10088, %v10256
    %10258 = vmatmul.bf16.gmra.mxu0 %v8188
    %v10259 = vpop.f32.mrf.mxu0
    %v10260 = vadd.f32 %v10091, %v10259
    %v10261 = vpop.f32.mrf.mxu0
    %v10262 = vadd.f32 %v10093, %v10261
    %10263 = vmatmul.bf16.gmra.mxu0 %v8189
    %v10264 = vpop.f32.mrf.mxu0
    %v10265 = vadd.f32 %v10096, %v10264
    %v10266 = vpop.f32.mrf.mxu0
    %v10267 = vadd.f32 %v10098, %v10266
    %10268 = vmatmul.bf16.gmra.mxu0 %v8190
    %v10269 = vpop.f32.mrf.mxu0
    %v10270 = vadd.f32 %v10101, %v10269
    %v10271 = vpop.f32.mrf.mxu0
    %v10272 = vadd.f32 %v10103, %v10271
    %10273 = vmatmul.bf16.gmra.mxu0 %v8191
    %v10274 = vpop.f32.mrf.mxu0
    %v10275 = vadd.f32 %v10106, %v10274
    %v10276 = vpop.f32.mrf.mxu0
    %v10277 = vadd.f32 %v10108, %v10276
    %10278 = vmatmul.bf16.gmra.mxu0 %v8192
    %v10279 = vpop.f32.mrf.mxu0
    %v10280 = vadd.f32 %v10111, %v10279
    %v10281 = vpop.f32.mrf.mxu0
    %v10282 = vadd.f32 %v10113, %v10281
    %10283 = vmatmul.bf16.gmra.mxu0 %v8193
    %v10284 = vpop.f32.mrf.mxu0
    %v10285 = vadd.f32 %v10116, %v10284
    %v10286 = vpop.f32.mrf.mxu0
    %v10287 = vadd.f32 %v10118, %v10286
    %10288 = vmatmul.bf16.gmra.mxu0 %v8194
    %v10289 = vpop.f32.mrf.mxu0
    %v10290 = vadd.f32 %v10121, %v10289
    %v10291 = vpop.f32.mrf.mxu0
    %v10292 = vadd.f32 %v10123, %v10291
    %10293 = vmatmul.bf16.gmra.mxu0 %v8195
    %v10294 = vpop.f32.mrf.mxu0
    %v10295 = vadd.f32 %v10126, %v10294
    %v10296 = vpop.f32.mrf.mxu0
    %v10297 = vadd.f32 %v10128, %v10296
    %10298 = vmatmul.bf16.gmra.mxu0 %v8196
    %v10299 = vpop.f32.mrf.mxu0
    %v10300 = vadd.f32 %v10131, %v10299
    %v10301 = vpop.f32.mrf.mxu0
    %v10302 = vadd.f32 %v10133, %v10301
    %10303 = vmatmul.bf16.gmra.mxu0 %v8197
    %v10304 = vpop.f32.mrf.mxu0
    %v10305 = vadd.f32 %v10136, %v10304
    %v10306 = vpop.f32.mrf.mxu0
    %v10307 = vadd.f32 %v10138, %v10306
    %10308 = vmatmul.bf16.gmra.mxu0 %v8198
    %v10309 = vpop.f32.mrf.mxu0
    %v10310 = vadd.f32 %v10141, %v10309
    %v10311 = vpop.f32.mrf.mxu0
    %v10312 = vadd.f32 %v10143, %v10311
    %10313 = vmatmul.bf16.gmra.mxu0 %v8199
    %v10314 = vpop.f32.mrf.mxu0
    %v10315 = vadd.f32 %v10146, %v10314
    %v10316 = vpop.f32.mrf.mxu0
    %v10317 = vadd.f32 %v10148, %v10316
    %10318 = vmatmul.bf16.gmra.mxu0 %v8200
    %v10319 = vpop.f32.mrf.mxu0
    %v10320 = vadd.f32 %v10151, %v10319
    %v10321 = vpop.f32.mrf.mxu0
    %v10322 = vadd.f32 %v10153, %v10321
    %10323 = vmatmul.bf16.gmra.mxu0 %v8201
    %v10324 = vpop.f32.mrf.mxu0
    %v10325 = vadd.f32 %v10156, %v10324
    %v10326 = vpop.f32.mrf.mxu0
    %v10327 = vadd.f32 %v10158, %v10326
    %10328 = vmatmul.bf16.gmra.mxu0 %v8202
    %v10329 = vpop.f32.mrf.mxu0
    %v10330 = vadd.f32 %v10161, %v10329
    %v10331 = vpop.f32.mrf.mxu0
    %v10332 = vadd.f32 %v10163, %v10331
    %10333 = vmatmul.bf16.gmra.mxu0 %v8203
    %v10334 = vpop.f32.mrf.mxu0
    %v10335 = vadd.f32 %v10166, %v10334
    %v10336 = vpop.f32.mrf.mxu0
    %v10337 = vadd.f32 %v10168, %v10336
    %10338 = vmatmul.bf16.gmra.mxu0 %v8204
    %v10339 = vpop.f32.mrf.mxu0
    %v10340 = vadd.f32 %v10171, %v10339
    %v10341 = vpop.f32.mrf.mxu0
    %v10342 = vadd.f32 %v10173, %v10341
    %10343 = vmatmul.bf16.gmra.mxu0 %v8205
    %v10344 = vpop.f32.mrf.mxu0
    %v10345 = vadd.f32 %v10176, %v10344
    %v10346 = vpop.f32.mrf.mxu0
    %v10347 = vadd.f32 %v10178, %v10346
    %10348 = vmatmul.bf16.gmra.mxu0 %v8206
    %v10349 = vpop.f32.mrf.mxu0
    %v10350 = vadd.f32 %v10181, %v10349
    %v10351 = vpop.f32.mrf.mxu0
    %v10352 = vadd.f32 %v10183, %v10351
    %10353 = vmatmul.bf16.gmra.mxu0 %v8207
    %v10354 = vpop.f32.mrf.mxu0
    %v10355 = vadd.f32 %v10186, %v10354
    %v10356 = vpop.f32.mrf.mxu0
    %v10357 = vadd.f32 %v10188, %v10356
    %10358 = vmatmul.bf16.gmra.mxu0 %v8208
    %v10359 = vpop.f32.mrf.mxu0
    %v10360 = vadd.f32 %v10191, %v10359
    %v10361 = vpop.f32.mrf.mxu0
    %v10362 = vadd.f32 %v10193, %v10361
    %10363 = vmatmul.bf16.gmra.mxu0 %v8209
    %v10364 = vpop.f32.mrf.mxu0
    %v10365 = vadd.f32 %v10196, %v10364
    %v10366 = vpop.f32.mrf.mxu0
    %v10367 = vadd.f32 %v10198, %v10366
    %10368 = vmatmul.bf16.gmra.mxu0 %v8210
    %v10369 = vpop.f32.mrf.mxu0
    %v10370 = vadd.f32 %v10201, %v10369
    %v10371 = vpop.f32.mrf.mxu0
    %v10372 = vadd.f32 %v10203, %v10371
    %10373 = vmatmul.bf16.gmra.mxu0 %v8211
    %v10374 = vpop.f32.mrf.mxu0
    %v10375 = vadd.f32 %v10206, %v10374
    %v10376 = vpop.f32.mrf.mxu0
    %v10377 = vadd.f32 %v10208, %v10376
    %10378 = vmatmul.bf16.gmra.mxu0 %v8212
    %v10379 = vpop.f32.mrf.mxu0
    %v10380 = vadd.f32 %v10211, %v10379
    %v10381 = vpop.f32.mrf.mxu0
    %v10382 = vadd.f32 %v10213, %v10381
    %10383 = vmatmul.bf16.gmra.mxu0 %v8213
    %v10384 = vpop.f32.mrf.mxu0
    %v10385 = vadd.f32 %v10216, %v10384
    %v10386 = vpop.f32.mrf.mxu0
    %v10387 = vadd.f32 %v10218, %v10386
    %10388 = vdwg.mxu0
    %10389 = vmatpush.bf16.msra.mxu0 %v9125
    %10390 = vmatpush.bf16.msra.mxu0 %v9124
    %10391 = vmatpush.bf16.msra.mxu0 %v9123
    %10392 = vmatpush.bf16.msra.mxu0 %v9122
    %10393 = vmatpush.bf16.msra.mxu0 %v9121
    %10394 = vmatpush.bf16.msra.mxu0 %v9120
    %10395 = vmatpush.bf16.msra.mxu0 %v9119
    %10396 = vmatpush.bf16.msra.mxu0 %v9118
    %10397 = vmatmul.bf16.gmra.mxu0 %v8374
    %v10398 = vpop.f32.mrf.mxu0
    %v10399 = vadd.f32 %v10230, %v10398
    %v10400 = vpop.f32.mrf.mxu0
    %v10401 = vadd.f32 %v10232, %v10400
    %10402 = vmatmul.bf16.gmra.mxu0 %v8375
    %v10403 = vpop.f32.mrf.mxu0
    %v10404 = vadd.f32 %v10235, %v10403
    %v10405 = vpop.f32.mrf.mxu0
    %v10406 = vadd.f32 %v10237, %v10405
    %10407 = vmatmul.bf16.gmra.mxu0 %v8376
    %v10408 = vpop.f32.mrf.mxu0
    %v10409 = vadd.f32 %v10240, %v10408
    %v10410 = vpop.f32.mrf.mxu0
    %v10411 = vadd.f32 %v10242, %v10410
    %10412 = vmatmul.bf16.gmra.mxu0 %v8377
    %v10413 = vpop.f32.mrf.mxu0
    %v10414 = vadd.f32 %v10245, %v10413
    %v10415 = vpop.f32.mrf.mxu0
    %v10416 = vadd.f32 %v10247, %v10415
    %10417 = vmatmul.bf16.gmra.mxu0 %v8378
    %v10418 = vpop.f32.mrf.mxu0
    %v10419 = vadd.f32 %v10250, %v10418
    %v10420 = vpop.f32.mrf.mxu0
    %v10421 = vadd.f32 %v10252, %v10420
    %10422 = vmatmul.bf16.gmra.mxu0 %v8379
    %v10423 = vpop.f32.mrf.mxu0
    %v10424 = vadd.f32 %v10255, %v10423
    %v10425 = vpop.f32.mrf.mxu0
    %v10426 = vadd.f32 %v10257, %v10425
    %10427 = vmatmul.bf16.gmra.mxu0 %v8380
    %v10428 = vpop.f32.mrf.mxu0
    %v10429 = vadd.f32 %v10260, %v10428
    %v10430 = vpop.f32.mrf.mxu0
    %v10431 = vadd.f32 %v10262, %v10430
    %10432 = vmatmul.bf16.gmra.mxu0 %v8381
    %v10433 = vpop.f32.mrf.mxu0
    %v10434 = vadd.f32 %v10265, %v10433
    %v10435 = vpop.f32.mrf.mxu0
    %v10436 = vadd.f32 %v10267, %v10435
    %10437 = vmatmul.bf16.gmra.mxu0 %v8382
    %v10438 = vpop.f32.mrf.mxu0
    %v10439 = vadd.f32 %v10270, %v10438
    %v10440 = vpop.f32.mrf.mxu0
    %v10441 = vadd.f32 %v10272, %v10440
    %10442 = vmatmul.bf16.gmra.mxu0 %v8383
    %v10443 = vpop.f32.mrf.mxu0
    %v10444 = vadd.f32 %v10275, %v10443
    %v10445 = vpop.f32.mrf.mxu0
    %v10446 = vadd.f32 %v10277, %v10445
    %10447 = vmatmul.bf16.gmra.mxu0 %v8384
    %v10448 = vpop.f32.mrf.mxu0
    %v10449 = vadd.f32 %v10280, %v10448
    %v10450 = vpop.f32.mrf.mxu0
    %v10451 = vadd.f32 %v10282, %v10450
    %10452 = vmatmul.bf16.gmra.mxu0 %v8385
    %v10453 = vpop.f32.mrf.mxu0
    %v10454 = vadd.f32 %v10285, %v10453
    %v10455 = vpop.f32.mrf.mxu0
    %v10456 = vadd.f32 %v10287, %v10455
    %10457 = vmatmul.bf16.gmra.mxu0 %v8386
    %v10458 = vpop.f32.mrf.mxu0
    %v10459 = vadd.f32 %v10290, %v10458
    %v10460 = vpop.f32.mrf.mxu0
    %v10461 = vadd.f32 %v10292, %v10460
    %10462 = vmatmul.bf16.gmra.mxu0 %v8387
    %v10463 = vpop.f32.mrf.mxu0
    %v10464 = vadd.f32 %v10295, %v10463
    %v10465 = vpop.f32.mrf.mxu0
    %v10466 = vadd.f32 %v10297, %v10465
    %10467 = vmatmul.bf16.gmra.mxu0 %v8388
    %v10468 = vpop.f32.mrf.mxu0
    %v10469 = vadd.f32 %v10300, %v10468
    %v10470 = vpop.f32.mrf.mxu0
    %v10471 = vadd.f32 %v10302, %v10470
    %10472 = vmatmul.bf16.gmra.mxu0 %v8389
    %v10473 = vpop.f32.mrf.mxu0
    %v10474 = vadd.f32 %v10305, %v10473
    %v10475 = vpop.f32.mrf.mxu0
    %v10476 = vadd.f32 %v10307, %v10475
    %10477 = vmatmul.bf16.gmra.mxu0 %v8390
    %v10478 = vpop.f32.mrf.mxu0
    %v10479 = vadd.f32 %v10310, %v10478
    %v10480 = vpop.f32.mrf.mxu0
    %v10481 = vadd.f32 %v10312, %v10480
    %10482 = vmatmul.bf16.gmra.mxu0 %v8391
    %v10483 = vpop.f32.mrf.mxu0
    %v10484 = vadd.f32 %v10315, %v10483
    %v10485 = vpop.f32.mrf.mxu0
    %v10486 = vadd.f32 %v10317, %v10485
    %10487 = vmatmul.bf16.gmra.mxu0 %v8392
    %v10488 = vpop.f32.mrf.mxu0
    %v10489 = vadd.f32 %v10320, %v10488
    %v10490 = vpop.f32.mrf.mxu0
    %v10491 = vadd.f32 %v10322, %v10490
    %10492 = vmatmul.bf16.gmra.mxu0 %v8393
    %v10493 = vpop.f32.mrf.mxu0
    %v10494 = vadd.f32 %v10325, %v10493
    %v10495 = vpop.f32.mrf.mxu0
    %v10496 = vadd.f32 %v10327, %v10495
    %10497 = vmatmul.bf16.gmra.mxu0 %v8394
    %v10498 = vpop.f32.mrf.mxu0
    %v10499 = vadd.f32 %v10330, %v10498
    %v10500 = vpop.f32.mrf.mxu0
    %v10501 = vadd.f32 %v10332, %v10500
    %10502 = vmatmul.bf16.gmra.mxu0 %v8395
    %v10503 = vpop.f32.mrf.mxu0
    %v10504 = vadd.f32 %v10335, %v10503
    %v10505 = vpop.f32.mrf.mxu0
    %v10506 = vadd.f32 %v10337, %v10505
    %10507 = vmatmul.bf16.gmra.mxu0 %v8396
    %v10508 = vpop.f32.mrf.mxu0
    %v10509 = vadd.f32 %v10340, %v10508
    %v10510 = vpop.f32.mrf.mxu0
    %v10511 = vadd.f32 %v10342, %v10510
    %10512 = vmatmul.bf16.gmra.mxu0 %v8397
    %v10513 = vpop.f32.mrf.mxu0
    %v10514 = vadd.f32 %v10345, %v10513
    %v10515 = vpop.f32.mrf.mxu0
    %v10516 = vadd.f32 %v10347, %v10515
    %10517 = vmatmul.bf16.gmra.mxu0 %v8398
    %v10518 = vpop.f32.mrf.mxu0
    %v10519 = vadd.f32 %v10350, %v10518
    %v10520 = vpop.f32.mrf.mxu0
    %v10521 = vadd.f32 %v10352, %v10520
    %10522 = vmatmul.bf16.gmra.mxu0 %v8399
    %v10523 = vpop.f32.mrf.mxu0
    %v10524 = vadd.f32 %v10355, %v10523
    %v10525 = vpop.f32.mrf.mxu0
    %v10526 = vadd.f32 %v10357, %v10525
    %10527 = vmatmul.bf16.gmra.mxu0 %v8400
    %v10528 = vpop.f32.mrf.mxu0
    %v10529 = vadd.f32 %v10360, %v10528
    %v10530 = vpop.f32.mrf.mxu0
    %v10531 = vadd.f32 %v10362, %v10530
    %10532 = vmatmul.bf16.gmra.mxu0 %v8401
    %v10533 = vpop.f32.mrf.mxu0
    %v10534 = vadd.f32 %v10365, %v10533
    %v10535 = vpop.f32.mrf.mxu0
    %v10536 = vadd.f32 %v10367, %v10535
    %10537 = vmatmul.bf16.gmra.mxu0 %v8402
    %v10538 = vpop.f32.mrf.mxu0
    %v10539 = vadd.f32 %v10370, %v10538
    %v10540 = vpop.f32.mrf.mxu0
    %v10541 = vadd.f32 %v10372, %v10540
    %10542 = vmatmul.bf16.gmra.mxu0 %v8403
    %v10543 = vpop.f32.mrf.mxu0
    %v10544 = vadd.f32 %v10375, %v10543
    %v10545 = vpop.f32.mrf.mxu0
    %v10546 = vadd.f32 %v10377, %v10545
    %10547 = vmatmul.bf16.gmra.mxu0 %v8404
    %v10548 = vpop.f32.mrf.mxu0
    %v10549 = vadd.f32 %v10380, %v10548
    %v10550 = vpop.f32.mrf.mxu0
    %v10551 = vadd.f32 %v10382, %v10550
    %10552 = vmatmul.bf16.gmra.mxu0 %v8405
    %v10553 = vpop.f32.mrf.mxu0
    %v10554 = vadd.f32 %v10385, %v10553
    %v10555 = vpop.f32.mrf.mxu0
    %v10556 = vadd.f32 %v10387, %v10555
    %10557 = vdwg.mxu0
    %10558 = vmatpush.bf16.msra.mxu0 %v9133
    %10559 = vmatpush.bf16.msra.mxu0 %v9132
    %10560 = vmatpush.bf16.msra.mxu0 %v9131
    %10561 = vmatpush.bf16.msra.mxu0 %v9130
    %10562 = vmatpush.bf16.msra.mxu0 %v9129
    %10563 = vmatpush.bf16.msra.mxu0 %v9128
    %10564 = vmatpush.bf16.msra.mxu0 %v9127
    %10565 = vmatpush.bf16.msra.mxu0 %v9126
    %10566 = vmatmul.bf16.gmra.mxu0 %v8566
    %v10567 = vpop.f32.mrf.mxu0
    %v10568 = vadd.f32 %v10399, %v10567
    %v10569 = vpop.f32.mrf.mxu0
    %v10570 = vadd.f32 %v10401, %v10569
    %10571 = vmatmul.bf16.gmra.mxu0 %v8567
    %v10572 = vpop.f32.mrf.mxu0
    %v10573 = vadd.f32 %v10404, %v10572
    %v10574 = vpop.f32.mrf.mxu0
    %v10575 = vadd.f32 %v10406, %v10574
    %10576 = vmatmul.bf16.gmra.mxu0 %v8568
    %v10577 = vpop.f32.mrf.mxu0
    %v10578 = vadd.f32 %v10409, %v10577
    %v10579 = vpop.f32.mrf.mxu0
    %v10580 = vadd.f32 %v10411, %v10579
    %10581 = vmatmul.bf16.gmra.mxu0 %v8569
    %v10582 = vpop.f32.mrf.mxu0
    %v10583 = vadd.f32 %v10414, %v10582
    %v10584 = vpop.f32.mrf.mxu0
    %v10585 = vadd.f32 %v10416, %v10584
    %10586 = vmatmul.bf16.gmra.mxu0 %v8570
    %v10587 = vpop.f32.mrf.mxu0
    %v10588 = vadd.f32 %v10419, %v10587
    %v10589 = vpop.f32.mrf.mxu0
    %v10590 = vadd.f32 %v10421, %v10589
    %10591 = vmatmul.bf16.gmra.mxu0 %v8571
    %v10592 = vpop.f32.mrf.mxu0
    %v10593 = vadd.f32 %v10424, %v10592
    %v10594 = vpop.f32.mrf.mxu0
    %v10595 = vadd.f32 %v10426, %v10594
    %10596 = vmatmul.bf16.gmra.mxu0 %v8572
    %v10597 = vpop.f32.mrf.mxu0
    %v10598 = vadd.f32 %v10429, %v10597
    %v10599 = vpop.f32.mrf.mxu0
    %v10600 = vadd.f32 %v10431, %v10599
    %10601 = vmatmul.bf16.gmra.mxu0 %v8573
    %v10602 = vpop.f32.mrf.mxu0
    %v10603 = vadd.f32 %v10434, %v10602
    %v10604 = vpop.f32.mrf.mxu0
    %v10605 = vadd.f32 %v10436, %v10604
    %10606 = vmatmul.bf16.gmra.mxu0 %v8574
    %v10607 = vpop.f32.mrf.mxu0
    %v10608 = vadd.f32 %v10439, %v10607
    %v10609 = vpop.f32.mrf.mxu0
    %v10610 = vadd.f32 %v10441, %v10609
    %10611 = vmatmul.bf16.gmra.mxu0 %v8575
    %v10612 = vpop.f32.mrf.mxu0
    %v10613 = vadd.f32 %v10444, %v10612
    %v10614 = vpop.f32.mrf.mxu0
    %v10615 = vadd.f32 %v10446, %v10614
    %10616 = vmatmul.bf16.gmra.mxu0 %v8576
    %v10617 = vpop.f32.mrf.mxu0
    %v10618 = vadd.f32 %v10449, %v10617
    %v10619 = vpop.f32.mrf.mxu0
    %v10620 = vadd.f32 %v10451, %v10619
    %10621 = vmatmul.bf16.gmra.mxu0 %v8577
    %v10622 = vpop.f32.mrf.mxu0
    %v10623 = vadd.f32 %v10454, %v10622
    %v10624 = vpop.f32.mrf.mxu0
    %v10625 = vadd.f32 %v10456, %v10624
    %10626 = vmatmul.bf16.gmra.mxu0 %v8578
    %v10627 = vpop.f32.mrf.mxu0
    %v10628 = vadd.f32 %v10459, %v10627
    %v10629 = vpop.f32.mrf.mxu0
    %v10630 = vadd.f32 %v10461, %v10629
    %10631 = vmatmul.bf16.gmra.mxu0 %v8579
    %v10632 = vpop.f32.mrf.mxu0
    %v10633 = vadd.f32 %v10464, %v10632
    %v10634 = vpop.f32.mrf.mxu0
    %v10635 = vadd.f32 %v10466, %v10634
    %10636 = vmatmul.bf16.gmra.mxu0 %v8580
    %v10637 = vpop.f32.mrf.mxu0
    %v10638 = vadd.f32 %v10469, %v10637
    %v10639 = vpop.f32.mrf.mxu0
    %v10640 = vadd.f32 %v10471, %v10639
    %10641 = vmatmul.bf16.gmra.mxu0 %v8581
    %v10642 = vpop.f32.mrf.mxu0
    %v10643 = vadd.f32 %v10474, %v10642
    %v10644 = vpop.f32.mrf.mxu0
    %v10645 = vadd.f32 %v10476, %v10644
    %10646 = vmatmul.bf16.gmra.mxu0 %v8582
    %v10647 = vpop.f32.mrf.mxu0
    %v10648 = vadd.f32 %v10479, %v10647
    %v10649 = vpop.f32.mrf.mxu0
    %v10650 = vadd.f32 %v10481, %v10649
    %10651 = vmatmul.bf16.gmra.mxu0 %v8583
    %v10652 = vpop.f32.mrf.mxu0
    %v10653 = vadd.f32 %v10484, %v10652
    %v10654 = vpop.f32.mrf.mxu0
    %v10655 = vadd.f32 %v10486, %v10654
    %10656 = vmatmul.bf16.gmra.mxu0 %v8584
    %v10657 = vpop.f32.mrf.mxu0
    %v10658 = vadd.f32 %v10489, %v10657
    %v10659 = vpop.f32.mrf.mxu0
    %v10660 = vadd.f32 %v10491, %v10659
    %10661 = vmatmul.bf16.gmra.mxu0 %v8585
    %v10662 = vpop.f32.mrf.mxu0
    %v10663 = vadd.f32 %v10494, %v10662
    %v10664 = vpop.f32.mrf.mxu0
    %v10665 = vadd.f32 %v10496, %v10664
    %10666 = vmatmul.bf16.gmra.mxu0 %v8586
    %v10667 = vpop.f32.mrf.mxu0
    %v10668 = vadd.f32 %v10499, %v10667
    %v10669 = vpop.f32.mrf.mxu0
    %v10670 = vadd.f32 %v10501, %v10669
    %10671 = vmatmul.bf16.gmra.mxu0 %v8587
    %v10672 = vpop.f32.mrf.mxu0
    %v10673 = vadd.f32 %v10504, %v10672
    %v10674 = vpop.f32.mrf.mxu0
    %v10675 = vadd.f32 %v10506, %v10674
    %10676 = vmatmul.bf16.gmra.mxu0 %v8588
    %v10677 = vpop.f32.mrf.mxu0
    %v10678 = vadd.f32 %v10509, %v10677
    %v10679 = vpop.f32.mrf.mxu0
    %v10680 = vadd.f32 %v10511, %v10679
    %10681 = vmatmul.bf16.gmra.mxu0 %v8589
    %v10682 = vpop.f32.mrf.mxu0
    %v10683 = vadd.f32 %v10514, %v10682
    %v10684 = vpop.f32.mrf.mxu0
    %v10685 = vadd.f32 %v10516, %v10684
    %10686 = vmatmul.bf16.gmra.mxu0 %v8590
    %v10687 = vpop.f32.mrf.mxu0
    %v10688 = vadd.f32 %v10519, %v10687
    %v10689 = vpop.f32.mrf.mxu0
    %v10690 = vadd.f32 %v10521, %v10689
    %10691 = vmatmul.bf16.gmra.mxu0 %v8591
    %v10692 = vpop.f32.mrf.mxu0
    %v10693 = vadd.f32 %v10524, %v10692
    %v10694 = vpop.f32.mrf.mxu0
    %v10695 = vadd.f32 %v10526, %v10694
    %10696 = vmatmul.bf16.gmra.mxu0 %v8592
    %v10697 = vpop.f32.mrf.mxu0
    %v10698 = vadd.f32 %v10529, %v10697
    %v10699 = vpop.f32.mrf.mxu0
    %v10700 = vadd.f32 %v10531, %v10699
    %10701 = vmatmul.bf16.gmra.mxu0 %v8593
    %v10702 = vpop.f32.mrf.mxu0
    %v10703 = vadd.f32 %v10534, %v10702
    %v10704 = vpop.f32.mrf.mxu0
    %v10705 = vadd.f32 %v10536, %v10704
    %10706 = vmatmul.bf16.gmra.mxu0 %v8594
    %v10707 = vpop.f32.mrf.mxu0
    %v10708 = vadd.f32 %v10539, %v10707
    %v10709 = vpop.f32.mrf.mxu0
    %v10710 = vadd.f32 %v10541, %v10709
    %10711 = vmatmul.bf16.gmra.mxu0 %v8595
    %v10712 = vpop.f32.mrf.mxu0
    %v10713 = vadd.f32 %v10544, %v10712
    %v10714 = vpop.f32.mrf.mxu0
    %v10715 = vadd.f32 %v10546, %v10714
    %10716 = vmatmul.bf16.gmra.mxu0 %v8596
    %v10717 = vpop.f32.mrf.mxu0
    %v10718 = vadd.f32 %v10549, %v10717
    %v10719 = vpop.f32.mrf.mxu0
    %v10720 = vadd.f32 %v10551, %v10719
    %10721 = vmatmul.bf16.gmra.mxu0 %v8597
    %v10722 = vpop.f32.mrf.mxu0
    %v10723 = vadd.f32 %v10554, %v10722
    %v10724 = vpop.f32.mrf.mxu0
    %v10725 = vadd.f32 %v10556, %v10724
    %10726 = vdwg.mxu0
    %v10727 = vld [vmem:[%s5] sm:$0x1]
    %v10728 = vld [vmem:[%s6] sm:$0x1]
    %v10729 = vadd.f32 %v10568, %v10570
    %v10730 = vadd.f32 %v10729, %v10573
    %v10731 = vadd.f32 %v10730, %v10575
    %v10732 = vadd.f32 %v10731, %v10578
    %v10733 = vadd.f32 %v10732, %v10580
    %v10734 = vadd.f32 %v10733, %v10583
    %v10735 = vadd.f32 %v10734, %v10585
    %v10736 = vadd.f32 %v10735, %v10588
    %v10737 = vadd.f32 %v10736, %v10590
    %v10738 = vadd.f32 %v10737, %v10593
    %v10739 = vadd.f32 %v10738, %v10595
    %v10740 = vadd.f32 %v10739, %v10598
    %v10741 = vadd.f32 %v10740, %v10600
    %v10742 = vadd.f32 %v10741, %v10603
    %v10743 = vadd.f32 %v10742, %v10605
    %v10744 = vadd.f32 %v10743, %v10608
    %v10745 = vadd.f32 %v10744, %v10610
    %v10746 = vadd.f32 %v10745, %v10613
    %v10747 = vadd.f32 %v10746, %v10615
    %v10748 = vadd.f32 %v10747, %v10618
    %v10749 = vadd.f32 %v10748, %v10620
    %v10750 = vadd.f32 %v10749, %v10623
    %v10751 = vadd.f32 %v10750, %v10625
    %v10752 = vadd.f32 %v10751, %v10628
    %v10753 = vadd.f32 %v10752, %v10630
    %v10754 = vadd.f32 %v10753, %v10633
    %v10755 = vadd.f32 %v10754, %v10635
    %v10756 = vadd.f32 %v10755, %v10638
    %v10757 = vadd.f32 %v10756, %v10640
    %v10758 = vadd.f32 %v10757, %v10643
    %v10759 = vadd.f32 %v10758, %v10645
    %v10760 = vadd.f32 %v10759, %v10648
    %v10761 = vadd.f32 %v10760, %v10650
    %v10762 = vadd.f32 %v10761, %v10653
    %v10763 = vadd.f32 %v10762, %v10655
    %v10764 = vadd.f32 %v10763, %v10658
    %v10765 = vadd.f32 %v10764, %v10660
    %v10766 = vadd.f32 %v10765, %v10663
    %v10767 = vadd.f32 %v10766, %v10665
    %v10768 = vadd.f32 %v10767, %v10668
    %v10769 = vadd.f32 %v10768, %v10670
    %v10770 = vadd.f32 %v10769, %v10673
    %v10771 = vadd.f32 %v10770, %v10675
    %v10772 = vadd.f32 %v10771, %v10678
    %v10773 = vadd.f32 %v10772, %v10680
    %v10774 = vadd.f32 %v10773, %v10683
    %v10775 = vadd.f32 %v10774, %v10685
    %v10776 = vadd.f32 %v10775, %v10688
    %v10777 = vadd.f32 %v10776, %v10690
    %v10778 = vadd.f32 %v10777, %v10693
    %v10779 = vadd.f32 %v10778, %v10695
    %v10780 = vadd.f32 %v10779, %v10698
    %v10781 = vadd.f32 %v10780, %v10700
    %v10782 = vadd.f32 %v10781, %v10703
    %v10783 = vadd.f32 %v10782, %v10705
    %v10784 = vadd.f32 %v10783, %v10708
    %v10785 = vadd.f32 %v10784, %v10710
    %v10786 = vadd.f32 %v10785, %v10713
    %v10787 = vadd.f32 %v10786, %v10715
    %v10788 = vadd.f32 %v10787, %v10718
    %v10789 = vadd.f32 %v10788, %v10720
    %v10790 = vadd.f32 %v10789, %v10723
    %v10791 = vadd.f32 %v10790, %v10725
    %v10792 = vrot.slane %v10791, 4
    %v10793 = vadd.f32 %v10791, %v10792
    %v10794 = vrot.slane %v10793, 2
    %v10795 = vadd.f32 %v10793, %v10794
    %v10796 = vrot.slane %v10795, 1
    %v10797 = vadd.f32 %v10795, %v10796
    %v10798 = vmul.f32 %v10568, %v10568
    %v10799 = vmul.f32 %v10570, %v10570
    %v10800 = vmul.f32 %v10573, %v10573
    %v10801 = vmul.f32 %v10575, %v10575
    %v10802 = vmul.f32 %v10578, %v10578
    %v10803 = vmul.f32 %v10580, %v10580
    %v10804 = vmul.f32 %v10583, %v10583
    %v10805 = vmul.f32 %v10585, %v10585
    %v10806 = vmul.f32 %v10588, %v10588
    %v10807 = vmul.f32 %v10590, %v10590
    %v10808 = vmul.f32 %v10593, %v10593
    %v10809 = vmul.f32 %v10595, %v10595
    %v10810 = vmul.f32 %v10598, %v10598
    %v10811 = vmul.f32 %v10600, %v10600
    %v10812 = vmul.f32 %v10603, %v10603
    %v10813 = vmul.f32 %v10605, %v10605
    %v10814 = vmul.f32 %v10608, %v10608
    %v10815 = vmul.f32 %v10610, %v10610
    %v10816 = vmul.f32 %v10613, %v10613
    %v10817 = vmul.f32 %v10615, %v10615
    %v10818 = vmul.f32 %v10618, %v10618
    %v10819 = vmul.f32 %v10620, %v10620
    %v10820 = vmul.f32 %v10623, %v10623
    %v10821 = vmul.f32 %v10625, %v10625
    %v10822 = vmul.f32 %v10628, %v10628
    %v10823 = vmul.f32 %v10630, %v10630
    %v10824 = vmul.f32 %v10633, %v10633
    %v10825 = vmul.f32 %v10635, %v10635
    %v10826 = vmul.f32 %v10638, %v10638
    %v10827 = vmul.f32 %v10640, %v10640
    %v10828 = vmul.f32 %v10643, %v10643
    %v10829 = vmul.f32 %v10645, %v10645
    %v10830 = vmul.f32 %v10648, %v10648
    %v10831 = vmul.f32 %v10650, %v10650
    %v10832 = vmul.f32 %v10653, %v10653
    %v10833 = vmul.f32 %v10655, %v10655
    %v10834 = vmul.f32 %v10658, %v10658
    %v10835 = vmul.f32 %v10660, %v10660
    %v10836 = vmul.f32 %v10663, %v10663
    %v10837 = vmul.f32 %v10665, %v10665
    %v10838 = vmul.f32 %v10668, %v10668
    %v10839 = vmul.f32 %v10670, %v10670
    %v10840 = vmul.f32 %v10673, %v10673
    %v10841 = vmul.f32 %v10675, %v10675
    %v10842 = vmul.f32 %v10678, %v10678
    %v10843 = vmul.f32 %v10680, %v10680
    %v10844 = vmul.f32 %v10683, %v10683
    %v10845 = vmul.f32 %v10685, %v10685
    %v10846 = vmul.f32 %v10688, %v10688
    %v10847 = vmul.f32 %v10690, %v10690
    %v10848 = vmul.f32 %v10693, %v10693
    %v10849 = vmul.f32 %v10695, %v10695
    %v10850 = vmul.f32 %v10698, %v10698
    %v10851 = vmul.f32 %v10700, %v10700
    %v10852 = vmul.f32 %v10703, %v10703
    %v10853 = vmul.f32 %v10705, %v10705
    %v10854 = vmul.f32 %v10708, %v10708
    %v10855 = vmul.f32 %v10710, %v10710
    %v10856 = vmul.f32 %v10713, %v10713
    %v10857 = vmul.f32 %v10715, %v10715
    %v10858 = vmul.f32 %v10718, %v10718
    %v10859 = vmul.f32 %v10720, %v10720
    %v10860 = vmul.f32 %v10723, %v10723
    %v10861 = vmul.f32 %v10725, %v10725
    %v10862 = vadd.f32 %v10798, %v10799
    %v10863 = vadd.f32 %v10862, %v10800
    %v10864 = vadd.f32 %v10863, %v10801
    %v10865 = vadd.f32 %v10864, %v10802
    %v10866 = vadd.f32 %v10865, %v10803
    %v10867 = vadd.f32 %v10866, %v10804
    %v10868 = vadd.f32 %v10867, %v10805
    %v10869 = vadd.f32 %v10868, %v10806
    %v10870 = vadd.f32 %v10869, %v10807
    %v10871 = vadd.f32 %v10870, %v10808
    %v10872 = vadd.f32 %v10871, %v10809
    %v10873 = vadd.f32 %v10872, %v10810
    %v10874 = vadd.f32 %v10873, %v10811
    %v10875 = vadd.f32 %v10874, %v10812
    %v10876 = vadd.f32 %v10875, %v10813
    %v10877 = vadd.f32 %v10876, %v10814
    %v10878 = vadd.f32 %v10877, %v10815
    %v10879 = vadd.f32 %v10878, %v10816
    %v10880 = vadd.f32 %v10879, %v10817
    %v10881 = vadd.f32 %v10880, %v10818
    %v10882 = vadd.f32 %v10881, %v10819
    %v10883 = vadd.f32 %v10882, %v10820
    %v10884 = vadd.f32 %v10883, %v10821
    %v10885 = vadd.f32 %v10884, %v10822
    %v10886 = vadd.f32 %v10885, %v10823
    %v10887 = vadd.f32 %v10886, %v10824
    %v10888 = vadd.f32 %v10887, %v10825
    %v10889 = vadd.f32 %v10888, %v10826
    %v10890 = vadd.f32 %v10889, %v10827
    %v10891 = vadd.f32 %v10890, %v10828
    %v10892 = vadd.f32 %v10891, %v10829
    %v10893 = vadd.f32 %v10892, %v10830
    %v10894 = vadd.f32 %v10893, %v10831
    %v10895 = vadd.f32 %v10894, %v10832
    %v10896 = vadd.f32 %v10895, %v10833
    %v10897 = vadd.f32 %v10896, %v10834
    %v10898 = vadd.f32 %v10897, %v10835
    %v10899 = vadd.f32 %v10898, %v10836
    %v10900 = vadd.f32 %v10899, %v10837
    %v10901 = vadd.f32 %v10900, %v10838
    %v10902 = vadd.f32 %v10901, %v10839
    %v10903 = vadd.f32 %v10902, %v10840
    %v10904 = vadd.f32 %v10903, %v10841
    %v10905 = vadd.f32 %v10904, %v10842
    %v10906 = vadd.f32 %v10905, %v10843
    %v10907 = vadd.f32 %v10906, %v10844
    %v10908 = vadd.f32 %v10907, %v10845
    %v10909 = vadd.f32 %v10908, %v10846
    %v10910 = vadd.f32 %v10909, %v10847
    %v10911 = vadd.f32 %v10910, %v10848
    %v10912 = vadd.f32 %v10911, %v10849
    %v10913 = vadd.f32 %v10912, %v10850
    %v10914 = vadd.f32 %v10913, %v10851
    %v10915 = vadd.f32 %v10914, %v10852
    %v10916 = vadd.f32 %v10915, %v10853
    %v10917 = vadd.f32 %v10916, %v10854
    %v10918 = vadd.f32 %v10917, %v10855
    %v10919 = vadd.f32 %v10918, %v10856
    %v10920 = vadd.f32 %v10919, %v10857
    %v10921 = vadd.f32 %v10920, %v10858
    %v10922 = vadd.f32 %v10921, %v10859
    %v10923 = vadd.f32 %v10922, %v10860
    %v10924 = vadd.f32 %v10923, %v10861
    %v10925 = vrot.slane %v10924, 4
    %v10926 = vadd.f32 %v10924, %v10925
    %v10927 = vrot.slane %v10926, 2
    %v10928 = vadd.f32 %v10926, %v10927
    %v10929 = vrot.slane %v10928, 1
    %v10930 = vadd.f32 %v10928, %v10929
    %v10931 = vmul.f32 %v10797, 0.001953125
    %v10932 = vmul.f32 %v10930, 0.001953125
    %v10933 = vmul.f32 %v10931, %v10931
    %v10934 = vsub.f32 %v10932, %v10933
    %v10935 = vadd.f32 %v10934, 1e-05
    %v10936 = vrsqrt.pop %v10935
    %v10937 = vmul.f32 %v10936, %v10935
    %v10938 = vmul.f32 %v10937, %v10936
    %v10939 = vmul.f32 0.5, %v10938
    %v10940 = vsub.f32 1.5, %v10939
    %v10941 = vmul.f32 %v10936, %v10940
    %vm10942 = vweird.f32 %v10935
    %vm10943 = vweird.f32 %v10936
    %vm10944 = vmor %vm10942, %vm10943
    %v10945 = vsel %vm10944, %v10936, %v10941
    %v10946 = vmul.f32 %v10727, %v10945
    %v10947 = vmul.f32 %v10931, %v10946
    %v10948 = vsub.f32 %v10728, %v10947
    %v10950 = vperm.slane %v10946, 0
    %v10952 = vmul.f32 %v10568, %v10950
    %v10953 = vmul.f32 %v10570, %v10950
    %v10954 = vmul.f32 %v10573, %v10950
    %v10955 = vmul.f32 %v10575, %v10950
    %v10956 = vmul.f32 %v10578, %v10950
    %v10957 = vmul.f32 %v10580, %v10950
    %v10958 = vmul.f32 %v10583, %v10950
    %v10959 = vmul.f32 %v10585, %v10950
    %v10960 = vmul.f32 %v10588, %v10950
    %v10961 = vmul.f32 %v10590, %v10950
    %v10962 = vmul.f32 %v10593, %v10950
    %v10963 = vmul.f32 %v10595, %v10950
    %v10964 = vmul.f32 %v10598, %v10950
    %v10965 = vmul.f32 %v10600, %v10950
    %v10966 = vmul.f32 %v10603, %v10950
    %v10967 = vmul.f32 %v10605, %v10950
    %v10968 = vmul.f32 %v10608, %v10950
    %v10969 = vmul.f32 %v10610, %v10950
    %v10970 = vmul.f32 %v10613, %v10950
    %v10971 = vmul.f32 %v10615, %v10950
    %v10972 = vmul.f32 %v10618, %v10950
    %v10973 = vmul.f32 %v10620, %v10950
    %v10974 = vmul.f32 %v10623, %v10950
    %v10975 = vmul.f32 %v10625, %v10950
    %v10976 = vmul.f32 %v10628, %v10950
    %v10977 = vmul.f32 %v10630, %v10950
    %v10978 = vmul.f32 %v10633, %v10950
    %v10979 = vmul.f32 %v10635, %v10950
    %v10980 = vmul.f32 %v10638, %v10950
    %v10981 = vmul.f32 %v10640, %v10950
    %v10982 = vmul.f32 %v10643, %v10950
    %v10983 = vmul.f32 %v10645, %v10950
    %v10984 = vmul.f32 %v10648, %v10950
    %v10985 = vmul.f32 %v10650, %v10950
    %v10986 = vmul.f32 %v10653, %v10950
    %v10987 = vmul.f32 %v10655, %v10950
    %v10988 = vmul.f32 %v10658, %v10950
    %v10989 = vmul.f32 %v10660, %v10950
    %v10990 = vmul.f32 %v10663, %v10950
    %v10991 = vmul.f32 %v10665, %v10950
    %v10992 = vmul.f32 %v10668, %v10950
    %v10993 = vmul.f32 %v10670, %v10950
    %v10994 = vmul.f32 %v10673, %v10950
    %v10995 = vmul.f32 %v10675, %v10950
    %v10996 = vmul.f32 %v10678, %v10950
    %v10997 = vmul.f32 %v10680, %v10950
    %v10998 = vmul.f32 %v10683, %v10950
    %v10999 = vmul.f32 %v10685, %v10950
    %v11000 = vmul.f32 %v10688, %v10950
    %v11001 = vmul.f32 %v10690, %v10950
    %v11002 = vmul.f32 %v10693, %v10950
    %v11003 = vmul.f32 %v10695, %v10950
    %v11004 = vmul.f32 %v10698, %v10950
    %v11005 = vmul.f32 %v10700, %v10950
    %v11006 = vmul.f32 %v10703, %v10950
    %v11007 = vmul.f32 %v10705, %v10950
    %v11008 = vmul.f32 %v10708, %v10950
    %v11009 = vmul.f32 %v10710, %v10950
    %v11010 = vmul.f32 %v10713, %v10950
    %v11011 = vmul.f32 %v10715, %v10950
    %v11012 = vmul.f32 %v10718, %v10950
    %v11013 = vmul.f32 %v10720, %v10950
    %v11014 = vmul.f32 %v10723, %v10950
    %v11015 = vmul.f32 %v10725, %v10950
    %v11017 = vperm.slane %v10948, 0
    %v11019 = vadd.f32 %v10952, %v11017
    %v11020 = vadd.f32 %v10953, %v11017
    %v11021 = vadd.f32 %v10954, %v11017
    %v11022 = vadd.f32 %v10955, %v11017
    %v11023 = vadd.f32 %v10956, %v11017
    %v11024 = vadd.f32 %v10957, %v11017
    %v11025 = vadd.f32 %v10958, %v11017
    %v11026 = vadd.f32 %v10959, %v11017
    %v11027 = vadd.f32 %v10960, %v11017
    %v11028 = vadd.f32 %v10961, %v11017
    %v11029 = vadd.f32 %v10962, %v11017
    %v11030 = vadd.f32 %v10963, %v11017
    %v11031 = vadd.f32 %v10964, %v11017
    %v11032 = vadd.f32 %v10965, %v11017
    %v11033 = vadd.f32 %v10966, %v11017
    %v11034 = vadd.f32 %v10967, %v11017
    %v11035 = vadd.f32 %v10968, %v11017
    %v11036 = vadd.f32 %v10969, %v11017
    %v11037 = vadd.f32 %v10970, %v11017
    %v11038 = vadd.f32 %v10971, %v11017
    %v11039 = vadd.f32 %v10972, %v11017
    %v11040 = vadd.f32 %v10973, %v11017
    %v11041 = vadd.f32 %v10974, %v11017
    %v11042 = vadd.f32 %v10975, %v11017
    %v11043 = vadd.f32 %v10976, %v11017
    %v11044 = vadd.f32 %v10977, %v11017
    %v11045 = vadd.f32 %v10978, %v11017
    %v11046 = vadd.f32 %v10979, %v11017
    %v11047 = vadd.f32 %v10980, %v11017
    %v11048 = vadd.f32 %v10981, %v11017
    %v11049 = vadd.f32 %v10982, %v11017
    %v11050 = vadd.f32 %v10983, %v11017
    %v11051 = vadd.f32 %v10984, %v11017
    %v11052 = vadd.f32 %v10985, %v11017
    %v11053 = vadd.f32 %v10986, %v11017
    %v11054 = vadd.f32 %v10987, %v11017
    %v11055 = vadd.f32 %v10988, %v11017
    %v11056 = vadd.f32 %v10989, %v11017
    %v11057 = vadd.f32 %v10990, %v11017
    %v11058 = vadd.f32 %v10991, %v11017
    %v11059 = vadd.f32 %v10992, %v11017
    %v11060 = vadd.f32 %v10993, %v11017
    %v11061 = vadd.f32 %v10994, %v11017
    %v11062 = vadd.f32 %v10995, %v11017
    %v11063 = vadd.f32 %v10996, %v11017
    %v11064 = vadd.f32 %v10997, %v11017
    %v11065 = vadd.f32 %v10998, %v11017
    %v11066 = vadd.f32 %v10999, %v11017
    %v11067 = vadd.f32 %v11000, %v11017
    %v11068 = vadd.f32 %v11001, %v11017
    %v11069 = vadd.f32 %v11002, %v11017
    %v11070 = vadd.f32 %v11003, %v11017
    %v11071 = vadd.f32 %v11004, %v11017
    %v11072 = vadd.f32 %v11005, %v11017
    %v11073 = vadd.f32 %v11006, %v11017
    %v11074 = vadd.f32 %v11007, %v11017
    %v11075 = vadd.f32 %v11008, %v11017
    %v11076 = vadd.f32 %v11009, %v11017
    %v11077 = vadd.f32 %v11010, %v11017
    %v11078 = vadd.f32 %v11011, %v11017
    %v11079 = vadd.f32 %v11012, %v11017
    %v11080 = vadd.f32 %v11013, %v11017
    %v11081 = vadd.f32 %v11014, %v11017
    %v11082 = vadd.f32 %v11015, %v11017
    %v11083 = vld [vmem:[#allocation3] sm:$0xff]
    %v11084 = vld [vmem:[#allocation3 + $0x8] sm:$0xff]
    %v11085 = vld [vmem:[#allocation3 + $0x10] sm:$0xff]
    %v11086 = vld [vmem:[#allocation3 + $0x18] sm:$0xff]
    %v11087 = vld [vmem:[#allocation3 + $0x20] sm:$0xff]
    %v11088 = vld [vmem:[#allocation3 + $0x28] sm:$0xff]
    %v11089 = vld [vmem:[#allocation3 + $0x30] sm:$0xff]
    %v11090 = vld [vmem:[#allocation3 + $0x38] sm:$0xff]
    %v11091 = vld [vmem:[#allocation3 + $0x40] sm:$0xff]
    %v11092 = vld [vmem:[#allocation3 + $0x48] sm:$0xff]
    %v11093 = vld [vmem:[#allocation3 + $0x50] sm:$0xff]
    %v11094 = vld [vmem:[#allocation3 + $0x58] sm:$0xff]
    %v11095 = vld [vmem:[#allocation3 + $0x60] sm:$0xff]
    %v11096 = vld [vmem:[#allocation3 + $0x68] sm:$0xff]
    %v11097 = vld [vmem:[#allocation3 + $0x70] sm:$0xff]
    %v11098 = vld [vmem:[#allocation3 + $0x78] sm:$0xff]
    %v11099 = vld [vmem:[#allocation3 + $0x80] sm:$0xff]
    %v11100 = vld [vmem:[#allocation3 + $0x88] sm:$0xff]
    %v11101 = vld [vmem:[#allocation3 + $0x90] sm:$0xff]
    %v11102 = vld [vmem:[#allocation3 + $0x98] sm:$0xff]
    %v11103 = vld [vmem:[#allocation3 + $0xa0] sm:$0xff]
    %v11104 = vld [vmem:[#allocation3 + $0xa8] sm:$0xff]
    %v11105 = vld [vmem:[#allocation3 + $0xb0] sm:$0xff]
    %v11106 = vld [vmem:[#allocation3 + $0xb8] sm:$0xff]
    %v11107 = vld [vmem:[#allocation3 + $0xc0] sm:$0xff]
    %v11108 = vld [vmem:[#allocation3 + $0xc8] sm:$0xff]
    %v11109 = vld [vmem:[#allocation3 + $0xd0] sm:$0xff]
    %v11110 = vld [vmem:[#allocation3 + $0xd8] sm:$0xff]
    %v11111 = vld [vmem:[#allocation3 + $0xe0] sm:$0xff]
    %v11112 = vld [vmem:[#allocation3 + $0xe8] sm:$0xff]
    %v11113 = vld [vmem:[#allocation3 + $0xf0] sm:$0xff]
    %v11114 = vld [vmem:[#allocation3 + $0xf8] sm:$0xff]
    %v11115 = vld [vmem:[#allocation3 + $0x100] sm:$0xff]
    %v11116 = vld [vmem:[#allocation3 + $0x108] sm:$0xff]
    %v11117 = vld [vmem:[#allocation3 + $0x110] sm:$0xff]
    %v11118 = vld [vmem:[#allocation3 + $0x118] sm:$0xff]
    %v11119 = vld [vmem:[#allocation3 + $0x120] sm:$0xff]
    %v11120 = vld [vmem:[#allocation3 + $0x128] sm:$0xff]
    %v11121 = vld [vmem:[#allocation3 + $0x130] sm:$0xff]
    %v11122 = vld [vmem:[#allocation3 + $0x138] sm:$0xff]
    %v11123 = vld [vmem:[#allocation3 + $0x140] sm:$0xff]
    %v11124 = vld [vmem:[#allocation3 + $0x148] sm:$0xff]
    %v11125 = vld [vmem:[#allocation3 + $0x150] sm:$0xff]
    %v11126 = vld [vmem:[#allocation3 + $0x158] sm:$0xff]
    %v11127 = vld [vmem:[#allocation3 + $0x160] sm:$0xff]
    %v11128 = vld [vmem:[#allocation3 + $0x168] sm:$0xff]
    %v11129 = vld [vmem:[#allocation3 + $0x170] sm:$0xff]
    %v11130 = vld [vmem:[#allocation3 + $0x178] sm:$0xff]
    %v11131 = vld [vmem:[#allocation3 + $0x180] sm:$0xff]
    %v11132 = vld [vmem:[#allocation3 + $0x188] sm:$0xff]
    %v11133 = vld [vmem:[#allocation3 + $0x190] sm:$0xff]
    %v11134 = vld [vmem:[#allocation3 + $0x198] sm:$0xff]
    %v11135 = vld [vmem:[#allocation3 + $0x1a0] sm:$0xff]
    %v11136 = vld [vmem:[#allocation3 + $0x1a8] sm:$0xff]
    %v11137 = vld [vmem:[#allocation3 + $0x1b0] sm:$0xff]
    %v11138 = vld [vmem:[#allocation3 + $0x1b8] sm:$0xff]
    %v11139 = vld [vmem:[#allocation3 + $0x1c0] sm:$0xff]
    %v11140 = vld [vmem:[#allocation3 + $0x1c8] sm:$0xff]
    %v11141 = vld [vmem:[#allocation3 + $0x1d0] sm:$0xff]
    %v11142 = vld [vmem:[#allocation3 + $0x1d8] sm:$0xff]
    %v11143 = vld [vmem:[#allocation3 + $0x1e0] sm:$0xff]
    %v11144 = vld [vmem:[#allocation3 + $0x1e8] sm:$0xff]
    %v11145 = vld [vmem:[#allocation3 + $0x1f0] sm:$0xff]
    %v11146 = vld [vmem:[#allocation3 + $0x1f8] sm:$0xff]
    %v11147 = vadd.f32 %v11019, %v11083
    %v11148 = vadd.f32 %v11020, %v11084
    %v11149 = vadd.f32 %v11021, %v11085
    %v11150 = vadd.f32 %v11022, %v11086
    %v11151 = vadd.f32 %v11023, %v11087
    %v11152 = vadd.f32 %v11024, %v11088
    %v11153 = vadd.f32 %v11025, %v11089
    %v11154 = vadd.f32 %v11026, %v11090
    %v11155 = vadd.f32 %v11027, %v11091
    %v11156 = vadd.f32 %v11028, %v11092
    %v11157 = vadd.f32 %v11029, %v11093
    %v11158 = vadd.f32 %v11030, %v11094
    %v11159 = vadd.f32 %v11031, %v11095
    %v11160 = vadd.f32 %v11032, %v11096
    %v11161 = vadd.f32 %v11033, %v11097
    %v11162 = vadd.f32 %v11034, %v11098
    %v11163 = vadd.f32 %v11035, %v11099
    %v11164 = vadd.f32 %v11036, %v11100
    %v11165 = vadd.f32 %v11037, %v11101
    %v11166 = vadd.f32 %v11038, %v11102
    %v11167 = vadd.f32 %v11039, %v11103
    %v11168 = vadd.f32 %v11040, %v11104
    %v11169 = vadd.f32 %v11041, %v11105
    %v11170 = vadd.f32 %v11042, %v11106
    %v11171 = vadd.f32 %v11043, %v11107
    %v11172 = vadd.f32 %v11044, %v11108
    %v11173 = vadd.f32 %v11045, %v11109
    %v11174 = vadd.f32 %v11046, %v11110
    %v11175 = vadd.f32 %v11047, %v11111
    %v11176 = vadd.f32 %v11048, %v11112
    %v11177 = vadd.f32 %v11049, %v11113
    %v11178 = vadd.f32 %v11050, %v11114
    %v11179 = vadd.f32 %v11051, %v11115
    %v11180 = vadd.f32 %v11052, %v11116
    %v11181 = vadd.f32 %v11053, %v11117
    %v11182 = vadd.f32 %v11054, %v11118
    %v11183 = vadd.f32 %v11055, %v11119
    %v11184 = vadd.f32 %v11056, %v11120
    %v11185 = vadd.f32 %v11057, %v11121
    %v11186 = vadd.f32 %v11058, %v11122
    %v11187 = vadd.f32 %v11059, %v11123
    %v11188 = vadd.f32 %v11060, %v11124
    %v11189 = vadd.f32 %v11061, %v11125
    %v11190 = vadd.f32 %v11062, %v11126
    %v11191 = vadd.f32 %v11063, %v11127
    %v11192 = vadd.f32 %v11064, %v11128
    %v11193 = vadd.f32 %v11065, %v11129
    %v11194 = vadd.f32 %v11066, %v11130
    %v11195 = vadd.f32 %v11067, %v11131
    %v11196 = vadd.f32 %v11068, %v11132
    %v11197 = vadd.f32 %v11069, %v11133
    %v11198 = vadd.f32 %v11070, %v11134
    %v11199 = vadd.f32 %v11071, %v11135
    %v11200 = vadd.f32 %v11072, %v11136
    %v11201 = vadd.f32 %v11073, %v11137
    %v11202 = vadd.f32 %v11074, %v11138
    %v11203 = vadd.f32 %v11075, %v11139
    %v11204 = vadd.f32 %v11076, %v11140
    %v11205 = vadd.f32 %v11077, %v11141
    %v11206 = vadd.f32 %v11078, %v11142
    %v11207 = vadd.f32 %v11079, %v11143
    %v11208 = vadd.f32 %v11080, %v11144
    %v11209 = vadd.f32 %v11081, %v11145
    %v11210 = vadd.f32 %v11082, %v11146
    %v11211 = vmax.f32 %v11147, 0.0
    %v11212 = vmax.f32 %v11148, 0.0
    %v11213 = vmax.f32 %v11149, 0.0
    %v11214 = vmax.f32 %v11150, 0.0
    %v11215 = vmax.f32 %v11151, 0.0
    %v11216 = vmax.f32 %v11152, 0.0
    %v11217 = vmax.f32 %v11153, 0.0
    %v11218 = vmax.f32 %v11154, 0.0
    %v11219 = vmax.f32 %v11155, 0.0
    %v11220 = vmax.f32 %v11156, 0.0
    %v11221 = vmax.f32 %v11157, 0.0
    %v11222 = vmax.f32 %v11158, 0.0
    %v11223 = vmax.f32 %v11159, 0.0
    %v11224 = vmax.f32 %v11160, 0.0
    %v11225 = vmax.f32 %v11161, 0.0
    %v11226 = vmax.f32 %v11162, 0.0
    %v11227 = vmax.f32 %v11163, 0.0
    %v11228 = vmax.f32 %v11164, 0.0
    %v11229 = vmax.f32 %v11165, 0.0
    %v11230 = vmax.f32 %v11166, 0.0
    %v11231 = vmax.f32 %v11167, 0.0
    %v11232 = vmax.f32 %v11168, 0.0
    %v11233 = vmax.f32 %v11169, 0.0
    %v11234 = vmax.f32 %v11170, 0.0
    %v11235 = vmax.f32 %v11171, 0.0
    %v11236 = vmax.f32 %v11172, 0.0
    %v11237 = vmax.f32 %v11173, 0.0
    %v11238 = vmax.f32 %v11174, 0.0
    %v11239 = vmax.f32 %v11175, 0.0
    %v11240 = vmax.f32 %v11176, 0.0
    %v11241 = vmax.f32 %v11177, 0.0
    %v11242 = vmax.f32 %v11178, 0.0
    %v11243 = vmax.f32 %v11179, 0.0
    %v11244 = vmax.f32 %v11180, 0.0
    %v11245 = vmax.f32 %v11181, 0.0
    %v11246 = vmax.f32 %v11182, 0.0
    %v11247 = vmax.f32 %v11183, 0.0
    %v11248 = vmax.f32 %v11184, 0.0
    %v11249 = vmax.f32 %v11185, 0.0
    %v11250 = vmax.f32 %v11186, 0.0
    %v11251 = vmax.f32 %v11187, 0.0
    %v11252 = vmax.f32 %v11188, 0.0
    %v11253 = vmax.f32 %v11189, 0.0
    %v11254 = vmax.f32 %v11190, 0.0
    %v11255 = vmax.f32 %v11191, 0.0
    %v11256 = vmax.f32 %v11192, 0.0
    %v11257 = vmax.f32 %v11193, 0.0
    %v11258 = vmax.f32 %v11194, 0.0
    %v11259 = vmax.f32 %v11195, 0.0
    %v11260 = vmax.f32 %v11196, 0.0
    %v11261 = vmax.f32 %v11197, 0.0
    %v11262 = vmax.f32 %v11198, 0.0
    %v11263 = vmax.f32 %v11199, 0.0
    %v11264 = vmax.f32 %v11200, 0.0
    %v11265 = vmax.f32 %v11201, 0.0
    %v11266 = vmax.f32 %v11202, 0.0
    %v11267 = vmax.f32 %v11203, 0.0
    %v11268 = vmax.f32 %v11204, 0.0
    %v11269 = vmax.f32 %v11205, 0.0
    %v11270 = vmax.f32 %v11206, 0.0
    %v11271 = vmax.f32 %v11207, 0.0
    %v11272 = vmax.f32 %v11208, 0.0
    %v11273 = vmax.f32 %v11209, 0.0
    %v11274 = vmax.f32 %v11210, 0.0
    %11275 = vst [vmem:[#allocation9] sm:$0xff] %v11211
    %11276 = vst [vmem:[#allocation9 + $0x8] sm:$0xff] %v11212
    %11277 = vst [vmem:[#allocation9 + $0x10] sm:$0xff] %v11213
    %11278 = vst [vmem:[#allocation9 + $0x18] sm:$0xff] %v11214
    %11279 = vst [vmem:[#allocation9 + $0x20] sm:$0xff] %v11215
    %11280 = vst [vmem:[#allocation9 + $0x28] sm:$0xff] %v11216
    %11281 = vst [vmem:[#allocation9 + $0x30] sm:$0xff] %v11217
    %11282 = vst [vmem:[#allocation9 + $0x38] sm:$0xff] %v11218
    %11283 = vst [vmem:[#allocation9 + $0x40] sm:$0xff] %v11219
    %11284 = vst [vmem:[#allocation9 + $0x48] sm:$0xff] %v11220
    %11285 = vst [vmem:[#allocation9 + $0x50] sm:$0xff] %v11221
    %11286 = vst [vmem:[#allocation9 + $0x58] sm:$0xff] %v11222
    %11287 = vst [vmem:[#allocation9 + $0x60] sm:$0xff] %v11223
    %11288 = vst [vmem:[#allocation9 + $0x68] sm:$0xff] %v11224
    %11289 = vst [vmem:[#allocation9 + $0x70] sm:$0xff] %v11225
    %11290 = vst [vmem:[#allocation9 + $0x78] sm:$0xff] %v11226
    %11291 = vst [vmem:[#allocation9 + $0x80] sm:$0xff] %v11227
    %11292 = vst [vmem:[#allocation9 + $0x88] sm:$0xff] %v11228
    %11293 = vst [vmem:[#allocation9 + $0x90] sm:$0xff] %v11229
    %11294 = vst [vmem:[#allocation9 + $0x98] sm:$0xff] %v11230
    %11295 = vst [vmem:[#allocation9 + $0xa0] sm:$0xff] %v11231
    %11296 = vst [vmem:[#allocation9 + $0xa8] sm:$0xff] %v11232
    %11297 = vst [vmem:[#allocation9 + $0xb0] sm:$0xff] %v11233
    %11298 = vst [vmem:[#allocation9 + $0xb8] sm:$0xff] %v11234
    %11299 = vst [vmem:[#allocation9 + $0xc0] sm:$0xff] %v11235
    %11300 = vst [vmem:[#allocation9 + $0xc8] sm:$0xff] %v11236
    %11301 = vst [vmem:[#allocation9 + $0xd0] sm:$0xff] %v11237
    %11302 = vst [vmem:[#allocation9 + $0xd8] sm:$0xff] %v11238
    %11303 = vst [vmem:[#allocation9 + $0xe0] sm:$0xff] %v11239
    %11304 = vst [vmem:[#allocation9 + $0xe8] sm:$0xff] %v11240
    %11305 = vst [vmem:[#allocation9 + $0xf0] sm:$0xff] %v11241
    %11306 = vst [vmem:[#allocation9 + $0xf8] sm:$0xff] %v11242
    %11307 = vst [vmem:[#allocation9 + $0x100] sm:$0xff] %v11243
    %11308 = vst [vmem:[#allocation9 + $0x108] sm:$0xff] %v11244
    %11309 = vst [vmem:[#allocation9 + $0x110] sm:$0xff] %v11245
    %11310 = vst [vmem:[#allocation9 + $0x118] sm:$0xff] %v11246
    %11311 = vst [vmem:[#allocation9 + $0x120] sm:$0xff] %v11247
    %11312 = vst [vmem:[#allocation9 + $0x128] sm:$0xff] %v11248
    %11313 = vst [vmem:[#allocation9 + $0x130] sm:$0xff] %v11249
    %11314 = vst [vmem:[#allocation9 + $0x138] sm:$0xff] %v11250
    %11315 = vst [vmem:[#allocation9 + $0x140] sm:$0xff] %v11251
    %11316 = vst [vmem:[#allocation9 + $0x148] sm:$0xff] %v11252
    %11317 = vst [vmem:[#allocation9 + $0x150] sm:$0xff] %v11253
    %11318 = vst [vmem:[#allocation9 + $0x158] sm:$0xff] %v11254
    %11319 = vst [vmem:[#allocation9 + $0x160] sm:$0xff] %v11255
    %11320 = vst [vmem:[#allocation9 + $0x168] sm:$0xff] %v11256
    %11321 = vst [vmem:[#allocation9 + $0x170] sm:$0xff] %v11257
    %11322 = vst [vmem:[#allocation9 + $0x178] sm:$0xff] %v11258
    %11323 = vst [vmem:[#allocation9 + $0x180] sm:$0xff] %v11259
    %11324 = vst [vmem:[#allocation9 + $0x188] sm:$0xff] %v11260
    %11325 = vst [vmem:[#allocation9 + $0x190] sm:$0xff] %v11261
    %11326 = vst [vmem:[#allocation9 + $0x198] sm:$0xff] %v11262
    %11327 = vst [vmem:[#allocation9 + $0x1a0] sm:$0xff] %v11263
    %11328 = vst [vmem:[#allocation9 + $0x1a8] sm:$0xff] %v11264
    %11329 = vst [vmem:[#allocation9 + $0x1b0] sm:$0xff] %v11265
    %11330 = vst [vmem:[#allocation9 + $0x1b8] sm:$0xff] %v11266
    %11331 = vst [vmem:[#allocation9 + $0x1c0] sm:$0xff] %v11267
    %11332 = vst [vmem:[#allocation9 + $0x1c8] sm:$0xff] %v11268
    %11333 = vst [vmem:[#allocation9 + $0x1d0] sm:$0xff] %v11269
    %11334 = vst [vmem:[#allocation9 + $0x1d8] sm:$0xff] %v11270
    %11335 = vst [vmem:[#allocation9 + $0x1e0] sm:$0xff] %v11271
    %11336 = vst [vmem:[#allocation9 + $0x1e8] sm:$0xff] %v11272
    %11337 = vst [vmem:[#allocation9 + $0x1f0] sm:$0xff] %v11273
    %11338 = vst [vmem:[#allocation9 + $0x1f8] sm:$0xff] %v11274
    // Predicated region
    $region42: #{tpu_custom_call.1} parent=1 // pred_check
      _
    $region43: #{tpu_custom_call.1} parent=1 // pred_check_branch
      %11340 = sbr.rel (0) target = $region45
    $region44: #{tpu_custom_call.1} parent=1 // pred_region
      %11342 = vsyncadd [#allocation5], 0
      %s11343 = sshll.u32 [#allocation9], 4
      %s11344 = int_to_ptr.vmem [resolvable:$true] %s11343
      %s11345 = sshll.u32 %s7, 4
      %s11346 = int_to_ptr.hbm [resolvable:$true] %s11345
      %11351 = dma.vmem_to_hbm [thread:$0]  %s11344, 8192, %s11346, [#allocation5], 128, 128, 8
    $region45: #{tpu_custom_call.1} parent=1 // pred_fallthru
      _
    // Predicated region
    $region46: #{tpu_custom_call.1} parent=1 // pred_check
      _
    $region47: #{tpu_custom_call.1} parent=1 // pred_check_branch
      %11353 = sbr.rel (0) target = $region49
    $region48: #{tpu_custom_call.1} parent=1 // pred_region
      %11355 = dma.done [#allocation5], 8192
    $region49: #{tpu_custom_call.1} parent=1 // pred_fallthru
      _
    %11356 = vsyncpa [#allocation4], 1
    %11357 = vsyncpa [#allocation7], 1
    %11358 = vsyncpa [#allocation5], 1

</llo_original>
